<compile_context>
chip_gen: v7x
topology: tpu7x:2x2x1
jax: 0.10.0
libtpu: 0.0.40
codegen_flags: <defaults>
</compile_context>

<pallas_src>
import functools

import numpy as np
import jax
import jax.numpy as jnp
from jax.experimental import pallas as pl
from jax.experimental.pallas import tpu as pltpu


# ----------------------------------------------------------------------------
# helpers
# ----------------------------------------------------------------------------
def _gelu_tanh(x):
    # TODO(synk): tanh-approx GELU; PyTorch nn.GELU default is exact erf (diff < ~1e-3).
    return 0.5 * x * (1.0 + jnp.tanh(0.7978845608028654 * (x + 0.044715 * x * x * x)))


def _window_partition(x, ws):
    """(B, H, W, C) -> (B, nW, ws*ws, C), same window ordering as torch window_partition."""
    B, H, W, C = x.shape
    x = x.reshape(B, H // ws, ws, W // ws, ws, C)
    x = jnp.transpose(x, (0, 1, 3, 2, 4, 5))
    return x.reshape(B, (H // ws) * (W // ws), ws * ws, C)


def _window_reverse(xw, ws, H, W):
    """(B, nW, ws*ws, C) -> (B, H, W, C)."""
    B = xw.shape[0]
    C = xw.shape[-1]
    x = xw.reshape(B, H // ws, W // ws, ws, ws, C)
    x = jnp.transpose(x, (0, 1, 3, 2, 4, 5))
    return x.reshape(B, H, W, C)


def _calculate_mask(H, W, ws, shift):
    """Replicates SwinTransformerBlock.calculate_mask; returns (nW, N, N) float32."""
    N = ws * ws
    nW = (H // ws) * (W // ws)
    if shift == 0:
        return np.zeros((nW, N, N), np.float32)
    img_mask = np.zeros((H, W), np.float32)
    slices = (slice(0, -ws), slice(-ws, -shift), slice(-shift, None))
    cnt = 0
    for hs in slices:
        for wsl in slices:
            img_mask[hs, wsl] = cnt
            cnt += 1
    mw = img_mask.reshape(H // ws, ws, W // ws, ws).transpose(0, 2, 1, 3).reshape(-1, N)
    diff = mw[:, None, :] - mw[:, :, None]
    return np.where(diff != 0, -100.0, 0.0).astype(np.float32)


def _relative_position_index(ws):
    """Same as the torch buffer relative_position_index, shape (ws*ws, ws*ws)."""
    coords = np.stack(np.meshgrid(np.arange(ws), np.arange(ws), indexing="ij"))
    coords = coords.reshape(2, -1)
    rel = coords[:, :, None] - coords[:, None, :]
    rel = rel.transpose(1, 2, 0).copy()
    rel[:, :, 0] += ws - 1
    rel[:, :, 1] += ws - 1
    rel[:, :, 0] *= 2 * ws - 1
    return rel.sum(-1)


# ----------------------------------------------------------------------------
# Pallas kernel 1: fused norm1 + windowed multi-head attention (per image)
# ----------------------------------------------------------------------------
def _make_attn_kernel(nW, N, C, nH, scale, eps=1e-5):
    hd = C // nH

    def kernel(x_ref, wqkv_ref, bqkv_ref, wp_ref, bp_ref, g_ref, b_ref,
               bias_ref, o_ref):
        R = nW * N
        x = x_ref[0].reshape(R, C)                               # (R, C), C in lanes
        # --- LayerNorm (norm1), lane-axis reductions ---
        mean = jnp.mean(x, axis=-1, keepdims=True)
        ctr = x - mean
        var = jnp.mean(ctr * ctr, axis=-1, keepdims=True)
        xn = ctr * jax.lax.rsqrt(var + eps) * g_ref[...] + b_ref[...]
        # --- fused QKV: one (R,C)x(C,3C) matmul, default MXU precision, f32 acc ---
        qkv = jnp.dot(xn, wqkv_ref[...],
                      preferred_element_type=jnp.float32) + bqkv_ref[...]
        acc = jnp.zeros((R, C), jnp.float32)
        for h in range(nH):                                      # static unroll over heads
            qh = (qkv[:, h * hd:(h + 1) * hd] * scale).reshape(nW, N, hd)
            kh = qkv[:, C + h * hd:C + (h + 1) * hd].reshape(nW, N, hd)
            vh = qkv[:, 2 * C + h * hd:2 * C + (h + 1) * hd].reshape(nW, N, hd)
            a = jnp.einsum('wnd,wmd->wnm', qh, kh,
                           preferred_element_type=jnp.float32)   # (nW, N, N)
            a = a + bias_ref[h]                                  # rel-pos bias + mask (pre-combined)
            amax = jnp.max(a, axis=-1, keepdims=True)
            p = jnp.exp(a - amax)
            denom = jnp.sum(p, axis=-1, keepdims=True)
            p = p * pl.reciprocal(denom, approx=True)            # EUP slot, ~free
            oh = jnp.einsum('wnm,wmd->wnd', p, vh,
                            preferred_element_type=jnp.float32)  # (nW, N, hd)
            # fold the output projection into a per-head accumulated matmul
            acc = acc + jnp.dot(oh.reshape(R, hd),
                                wp_ref[h * hd:(h + 1) * hd, :],
                                preferred_element_type=jnp.float32)
        out = acc + bp_ref[...]
        o_ref[0] = out.reshape(nW, N, C)

    return kernel


def window_attention_pallas(xw, wqkv, bqkv, wproj, bproj, g1, b1, bias,
                            num_heads, scale):
    B, nW, N, C = xw.shape
    kernel = _make_attn_kernel(nW, N, C, num_heads, scale)
    return pl.pallas_call(
        kernel,
        out_shape=jax.ShapeDtypeStruct((B, nW, N, C), jnp.float32),
        grid=(B,),
        in_specs=[
            pl.BlockSpec((1, nW, N, C), lambda b: (b, 0, 0, 0)),
            pl.BlockSpec((C, 3 * C), lambda b: (0, 0)),
            pl.BlockSpec((1, 3 * C), lambda b: (0, 0)),
            pl.BlockSpec((C, C), lambda b: (0, 0)),
            pl.BlockSpec((1, C), lambda b: (0, 0)),
            pl.BlockSpec((1, C), lambda b: (0, 0)),
            pl.BlockSpec((1, C), lambda b: (0, 0)),
            pl.BlockSpec((num_heads, nW, N, N), lambda b: (0, 0, 0, 0)),
        ],
        out_specs=pl.BlockSpec((1, nW, N, C), lambda b: (b, 0, 0, 0)),
        compiler_params=pltpu.CompilerParams(dimension_semantics=("parallel",)),
    )(xw, wqkv, bqkv, wproj, bproj, g1, b1, bias)


# ----------------------------------------------------------------------------
# Pallas kernel 2: fused residual + norm2 + MLP + residual (per token tile)
# ----------------------------------------------------------------------------
def _make_mlp_kernel(eps=1e-5):
    def kernel(x_ref, a_ref, g_ref, b_ref, w1_ref, b1_ref, w2_ref, b2_ref, o_ref):
        x1 = x_ref[...] + a_ref[...]                             # shortcut + attention
        mean = jnp.mean(x1, axis=-1, keepdims=True)
        ctr = x1 - mean
        var = jnp.mean(ctr * ctr, axis=-1, keepdims=True)
        xn = ctr * jax.lax.rsqrt(var + eps) * g_ref[...] + b_ref[...]
        h = jnp.dot(xn, w1_ref[...], preferred_element_type=jnp.float32) + b1_ref[...]
        h = _gelu_tanh(h)
        y = jnp.dot(h, w2_ref[...], preferred_element_type=jnp.float32) + b2_ref[...]
        o_ref[...] = x1 + y                                      # second residual

    return kernel


def mlp_residual_pallas(x_flat, attn_flat, g2, b2, w1, b1v, w2, b2v, tile=256):
    R, C = x_flat.shape
    hidden = w1.shape[1]
    if R % tile != 0:
        tile = R
    return pl.pallas_call(
        _make_mlp_kernel(),
        out_shape=jax.ShapeDtypeStruct((R, C), jnp.float32),
        grid=(R // tile,),
        in_specs=[
            pl.BlockSpec((tile, C), lambda i: (i, 0)),
            pl.BlockSpec((tile, C), lambda i: (i, 0)),
            pl.BlockSpec((1, C), lambda i: (0, 0)),
            pl.BlockSpec((1, C), lambda i: (0, 0)),
            pl.BlockSpec((C, hidden), lambda i: (0, 0)),
            pl.BlockSpec((1, hidden), lambda i: (0, 0)),
            pl.BlockSpec((hidden, C), lambda i: (0, 0)),
            pl.BlockSpec((1, C), lambda i: (0, 0)),
        ],
        out_specs=pl.BlockSpec((tile, C), lambda i: (i, 0)),
        compiler_params=pltpu.CompilerParams(dimension_semantics=("parallel",)),
    )(x_flat, attn_flat, g2, b2, w1, b1v, w2, b2v)


# ----------------------------------------------------------------------------
# SwinTransformerBlock forward (inference: dropout / drop_path are identity)
# ----------------------------------------------------------------------------
def swin_block_forward(params, x, x_size, window_size, shift_size, num_heads):
    H, W = x_size
    B, L, C = x.shape
    ws = window_size
    N = ws * ws
    hd = C // num_heads
    scale = hd ** (-0.5)

    # relative position bias gather + shift-mask combine
    # (trace-time data movement, outside the kernels; constant across batch)
    rpi = params["rel_pos_index"].reshape(-1)
    rpb = params["rpb_table"][rpi].reshape(N, N, num_heads)
    rpb = jnp.transpose(rpb, (2, 0, 1))                          # (nH, N, N)
    bias = rpb[:, None, :, :] + params["attn_mask"][None, :, :, :]  # (nH, nW, N, N)

    shortcut = x
    xs = x.reshape(B, H, W, C)
    if shift_size > 0:
        xs = jnp.roll(xs, shift=(-shift_size, -shift_size), axis=(1, 2))
    xw = _window_partition(xs, ws)                               # (B, nW, N, C)

    attn_w = window_attention_pallas(
        xw,
        params["w_qkv"], params["b_qkv"].reshape(1, -1),
        params["w_proj"], params["b_proj"].reshape(1, -1),
        params["g1"].reshape(1, -1), params["bt1"].reshape(1, -1),
        bias, num_heads, scale)

    ys = _window_reverse(attn_w, ws, H, W)
    if shift_size > 0:
        ys = jnp.roll(ys, shift=(shift_size, shift_size), axis=(1, 2))
    attn_out = ys.reshape(B * L, C)

    out = mlp_residual_pallas(
        shortcut.reshape(B * L, C), attn_out,
        params["g2"].reshape(1, -1), params["bt2"].reshape(1, -1),
        params["w1"], params["b1"].reshape(1, -1),
        params["w2"], params["b2"].reshape(1, -1))
    return out.reshape(B, L, C)


# ----------------------------------------------------------------------------
# Pure-JAX reference (same math; used only for verification)
# ----------------------------------------------------------------------------
def swin_block_ref(params, x, x_size, window_size, shift_size, num_heads, eps=1e-5):
    H, W = x_size
    B, L, C = x.shape
    ws = window_size
    N = ws * ws
    nH = num_heads
    hd = C // nH
    scale = hd ** (-0.5)

    def ln(v, g, b):
        m = jnp.mean(v, -1, keepdims=True)
        c = v - m
        var = jnp.mean(c * c, -1, keepdims=True)
        return c * jax.lax.rsqrt(var + eps) * g + b

    rpi = params["rel_pos_index"].reshape(-1)
    rpb = params["rpb_table"][rpi].reshape(N, N, nH)
    rpb = jnp.transpose(rpb, (2, 0, 1))

    shortcut = x
    xn = ln(x, params["g1"], params["bt1"])
    xs = xn.reshape(B, H, W, C)
    if shift_size > 0:
        xs = jnp.roll(xs, shift=(-shift_size, -shift_size), axis=(1, 2))
    xw = _window_partition(xs, ws)
    nW = xw.shape[1]
    xw2 = xw.reshape(B * nW, N, C)

    qkv = xw2 @ params["w_qkv"] + params["b_qkv"]
    qkv = qkv.reshape(B * nW, N, 3, nH, hd).transpose(2, 0, 3, 1, 4)
    q, k, v = qkv[0] * scale, qkv[1], qkv[2]
    attn = jnp.einsum('bhnd,bhmd->bhnm', q, k)
    attn = attn + rpb[None]
    attn = attn.reshape(B, nW, nH, N, N) + params["attn_mask"][None, :, None]
    attn = jax.nn.softmax(attn.reshape(B * nW, nH, N, N), axis=-1)
    o = jnp.einsum('bhnm,bhmd->bhnd', attn, v)
    o = o.transpose(0, 2, 1, 3).reshape(B * nW, N, C)
    o = o @ params["w_proj"] + params["b_proj"]
    o = o.reshape(B, nW, N, C)
    ys = _window_reverse(o, ws, H, W)
    if shift_size > 0:
        ys = jnp.roll(ys, shift=(shift_size, shift_size), axis=(1, 2))
    x1 = shortcut + ys.reshape(B, L, C)
    h = ln(x1, params["g2"], params["bt2"])
    h = _gelu_tanh(h @ params["w1"] + params["b1"])
    return x1 + h @ params["w2"] + params["b2"]


# ----------------------------------------------------------------------------
# main
# ----------------------------------------------------------------------------
if __name__ == "__main__":
    key = jax.random.PRNGKey(0)
    B, H, W = 2, 16, 16
    C, num_heads, window_size, shift_size = 32, 4, 8, 4       # SW-MSA path (mask used)
    mlp_ratio = 4.0
    hidden = int(C * mlp_ratio)
    L = H * W

    ks = jax.random.split(key, 14)
    params = {
        "g1": 1.0 + 0.1 * jax.random.normal(ks[0], (C,), jnp.float32),
        "bt1": 0.1 * jax.random.normal(ks[1], (C,), jnp.float32),
        "w_qkv": 0.1 * jax.random.normal(ks[2], (C, 3 * C), jnp.float32),
        "b_qkv": 0.1 * jax.random.normal(ks[3], (3 * C,), jnp.float32),
        "w_proj": 0.1 * jax.random.normal(ks[4], (C, C), jnp.float32),
        "b_proj": 0.1 * jax.random.normal(ks[5], (C,), jnp.float32),
        "rpb_table": 0.02 * jax.random.normal(
            ks[6], ((2 * window_size - 1) ** 2, num_heads), jnp.float32),
        "g2": 1.0 + 0.1 * jax.random.normal(ks[7], (C,), jnp.float32),
        "bt2": 0.1 * jax.random.normal(ks[8], (C,), jnp.float32),
        "w1": 0.1 * jax.random.normal(ks[9], (C, hidden), jnp.float32),
        "b1": 0.1 * jax.random.normal(ks[10], (hidden,), jnp.float32),
        "w2": 0.1 * jax.random.normal(ks[11], (hidden, C), jnp.float32),
        "b2": 0.1 * jax.random.normal(ks[12], (C,), jnp.float32),
        "rel_pos_index": jnp.asarray(_relative_position_index(window_size)),
        "attn_mask": jnp.asarray(_calculate_mask(H, W, window_size, shift_size)),
    }
    x = jax.random.normal(ks[13], (B, L, C), jnp.float32)

    fwd = jax.jit(functools.partial(
        swin_block_forward, params, x_size=(H, W), window_size=window_size,
        shift_size=shift_size, num_heads=num_heads))
    out = jax.block_until_ready(fwd(x))

    ref = swin_block_ref(params, x, (H, W), window_size, shift_size, num_heads)
    assert out.shape == (B, L, C), out.shape
    assert bool(jnp.all(jnp.isfinite(out)))
    assert jnp.allclose(out, ref, atol=5e-3, rtol=5e-3), float(jnp.max(jnp.abs(out - ref)))

    print("KERNEL_OK")
</pallas_src>

<mosaic_0001>
module attributes {stable_mosaic.version = 11 : i64} {
  func.func @kernel(%arg0: i32, %arg1: memref<1x4x64x32xf32, #tpu.memory_space<vmem>>, %arg2: memref<32x96xf32, #tpu.memory_space<vmem>>, %arg3: memref<1x96xf32, #tpu.memory_space<vmem>>, %arg4: memref<32x32xf32, #tpu.memory_space<vmem>>, %arg5: memref<1x32xf32, #tpu.memory_space<vmem>>, %arg6: memref<1x32xf32, #tpu.memory_space<vmem>>, %arg7: memref<1x32xf32, #tpu.memory_space<vmem>>, %arg8: memref<4x4x64x64xf32, #tpu.memory_space<vmem>>, %arg9: memref<1x4x64x32xf32, #tpu.memory_space<vmem>>) attributes {dimension_semantics = [#tpu.dimension_semantics<parallel>], iteration_bounds = array<i64: 2>, scalar_prefetch = 0 : i64, scratch_operands = 0 : i64, tpu.core_type = #tpu.core_type<tc>, window_params = [{transform_indices = @transform_0, window_bounds = array<i64: 1, 4, 64, 32>}, {pipeline_mode = #tpu.pipeline_mode<synchronous>, transform_indices = @transform_1, window_bounds = array<i64: 32, 96>}, {pipeline_mode = #tpu.pipeline_mode<synchronous>, transform_indices = @transform_2, window_bounds = array<i64: 1, 96>}, {pipeline_mode = #tpu.pipeline_mode<synchronous>, transform_indices = @transform_3, window_bounds = array<i64: 32, 32>}, {pipeline_mode = #tpu.pipeline_mode<synchronous>, transform_indices = @transform_4, window_bounds = array<i64: 1, 32>}, {pipeline_mode = #tpu.pipeline_mode<synchronous>, transform_indices = @transform_5, window_bounds = array<i64: 1, 32>}, {pipeline_mode = #tpu.pipeline_mode<synchronous>, transform_indices = @transform_6, window_bounds = array<i64: 1, 32>}, {pipeline_mode = #tpu.pipeline_mode<synchronous>, transform_indices = @transform_7, window_bounds = array<i64: 4, 4, 64, 64>}, {transform_indices = @transform_8, window_bounds = array<i64: 1, 4, 64, 32>}]} {
    %c0 = arith.constant 0 : index
    %c0_0 = arith.constant 0 : index
    %c0_1 = arith.constant 0 : index
    %c0_2 = arith.constant 0 : index
    %0 = vector.load %arg1[%c0, %c0_0, %c0_1, %c0_2] : memref<1x4x64x32xf32, #tpu.memory_space<vmem>>, vector<1x4x64x32xf32>
    %1 = vector.shape_cast %0 : vector<1x4x64x32xf32> to vector<4x64x32xf32>
    %2 = vector.shape_cast %1 : vector<4x64x32xf32> to vector<256x32xf32>
    %cst = arith.constant dense<0.000000e+00> : vector<256xf32>
    %3 = vector.multi_reduction <add>, %2, %cst [1] : vector<256x32xf32> to vector<256xf32>
    %4 = vector.shape_cast %3 : vector<256xf32> to vector<256x1xf32>
    %cst_3 = arith.constant 3.200000e+01 : f32
    %5 = vector.broadcast %cst_3 : f32 to vector<256x1xf32>
    %6 = arith.divf %4, %5 : vector<256x1xf32>
    %7 = vector.broadcast %6 : vector<256x1xf32> to vector<256x32xf32>
    %8 = arith.subf %2, %7 : vector<256x32xf32>
    %9 = arith.mulf %8, %8 : vector<256x32xf32>
    %cst_4 = arith.constant dense<0.000000e+00> : vector<256xf32>
    %10 = vector.multi_reduction <add>, %9, %cst_4 [1] : vector<256x32xf32> to vector<256xf32>
    %11 = vector.shape_cast %10 : vector<256xf32> to vector<256x1xf32>
    %cst_5 = arith.constant 3.200000e+01 : f32
    %12 = vector.broadcast %cst_5 : f32 to vector<256x1xf32>
    %13 = arith.divf %11, %12 : vector<256x1xf32>
    %cst_6 = arith.constant 9.99999974E-6 : f32
    %14 = vector.broadcast %cst_6 : f32 to vector<256x1xf32>
    %15 = arith.addf %13, %14 : vector<256x1xf32>
    %16 = math.rsqrt %15 : vector<256x1xf32>
    %17 = vector.broadcast %16 : vector<256x1xf32> to vector<256x32xf32>
    %18 = arith.mulf %8, %17 : vector<256x32xf32>
    %c0_7 = arith.constant 0 : index
    %c0_8 = arith.constant 0 : index
    %19 = vector.load %arg6[%c0_7, %c0_8] : memref<1x32xf32, #tpu.memory_space<vmem>>, vector<1x32xf32>
    %20 = vector.broadcast %19 : vector<1x32xf32> to vector<256x32xf32>
    %21 = arith.mulf %18, %20 : vector<256x32xf32>
    %c0_9 = arith.constant 0 : index
    %c0_10 = arith.constant 0 : index
    %22 = vector.load %arg7[%c0_9, %c0_10] : memref<1x32xf32, #tpu.memory_space<vmem>>, vector<1x32xf32>
    %23 = vector.broadcast %22 : vector<1x32xf32> to vector<256x32xf32>
    %24 = arith.addf %21, %23 : vector<256x32xf32>
    %c0_11 = arith.constant 0 : index
    %c0_12 = arith.constant 0 : index
    %25 = vector.load %arg2[%c0_11, %c0_12] : memref<32x96xf32, #tpu.memory_space<vmem>>, vector<32x96xf32>
    %cst_13 = arith.constant dense<0.000000e+00> : vector<256x96xf32>
    %26 = tpu.matmul %24, %25, %cst_13 {dimension_numbers = #tpu.dot_dimension_numbers<[1], [0], [0], [1], [0, 0, 1, 1], [], []>} : vector<256x32xf32>, vector<32x96xf32>, vector<256x96xf32> -> vector<256x96xf32>
    %c0_14 = arith.constant 0 : index
    %c0_15 = arith.constant 0 : index
    %27 = vector.load %arg3[%c0_14, %c0_15] : memref<1x96xf32, #tpu.memory_space<vmem>>, vector<1x96xf32>
    %28 = vector.broadcast %27 : vector<1x96xf32> to vector<256x96xf32>
    %29 = arith.addf %26, %28 : vector<256x96xf32>
    %cst_16 = arith.constant 0.000000e+00 : f32
    %30 = vector.broadcast %cst_16 : f32 to vector<256x32xf32>
    %31 = vector.extract_strided_slice %29 {offsets = [0, 0], sizes = [256, 8], strides = [1, 1]} : vector<256x96xf32> to vector<256x8xf32>
    %cst_17 = arith.constant 0.353553385 : f32
    %32 = vector.broadcast %cst_17 : f32 to vector<256x8xf32>
    %33 = arith.mulf %31, %32 : vector<256x8xf32>
    %34 = vector.shape_cast %33 : vector<256x8xf32> to vector<4x64x8xf32>
    %35 = vector.extract_strided_slice %29 {offsets = [0, 32], sizes = [256, 8], strides = [1, 1]} : vector<256x96xf32> to vector<256x8xf32>
    %36 = vector.shape_cast %35 : vector<256x8xf32> to vector<4x64x8xf32>
    %37 = vector.extract_strided_slice %29 {offsets = [0, 64], sizes = [256, 8], strides = [1, 1]} : vector<256x96xf32> to vector<256x8xf32>
    %38 = vector.shape_cast %37 : vector<256x8xf32> to vector<4x64x8xf32>
    "tpu.trace_start"() <{level = 10 : i32, message = "wnd,wmd->wnm"}> : () -> ()
    %cst_18 = arith.constant dense<0.000000e+00> : vector<4x64x64xf32>
    %39 = tpu.matmul %34, %36, %cst_18 {dimension_numbers = #tpu.dot_dimension_numbers<[2], [2], [1], [1], [0, 0, 0, 1, 1, 1], [0], [0]>} : vector<4x64x8xf32>, vector<4x64x8xf32>, vector<4x64x64xf32> -> vector<4x64x64xf32>
    "tpu.trace_stop"() : () -> ()
    %c0_19 = arith.constant 0 : index
    %c0_20 = arith.constant 0 : index
    %c0_21 = arith.constant 0 : index
    %c0_22 = arith.constant 0 : index
    %40 = vector.load %arg8[%c0_19, %c0_20, %c0_21, %c0_22] : memref<4x4x64x64xf32, #tpu.memory_space<vmem>>, vector<1x4x64x64xf32>
    %41 = vector.shape_cast %40 : vector<1x4x64x64xf32> to vector<4x64x64xf32>
    %42 = arith.addf %39, %41 : vector<4x64x64xf32>
    %cst_23 = arith.constant dense<0xFF800000> : vector<4x64xf32>
    %43 = vector.multi_reduction <maximumf>, %42, %cst_23 [2] : vector<4x64x64xf32> to vector<4x64xf32>
    %44 = vector.shape_cast %43 : vector<4x64xf32> to vector<4x64x1xf32>
    %45 = vector.broadcast %44 : vector<4x64x1xf32> to vector<4x64x64xf32>
    %46 = arith.subf %42, %45 : vector<4x64x64xf32>
    %47 = math.exp %46 : vector<4x64x64xf32>
    %cst_24 = arith.constant dense<0.000000e+00> : vector<4x64xf32>
    %48 = vector.multi_reduction <add>, %47, %cst_24 [2] : vector<4x64x64xf32> to vector<4x64xf32>
    %49 = vector.shape_cast %48 : vector<4x64xf32> to vector<4x64x1xf32>
    %50 = tpu.reciprocal %49 {approx = true} : vector<4x64x1xf32> -> vector<4x64x1xf32>
    %51 = vector.broadcast %50 : vector<4x64x1xf32> to vector<4x64x64xf32>
    %52 = arith.mulf %47, %51 : vector<4x64x64xf32>
    "tpu.trace_start"() <{level = 10 : i32, message = "wnm,wmd->wnd"}> : () -> ()
    %cst_25 = arith.constant dense<0.000000e+00> : vector<4x64x8xf32>
    %53 = tpu.matmul %52, %38, %cst_25 {dimension_numbers = #tpu.dot_dimension_numbers<[2], [1], [1], [2], [0, 0, 0, 1, 1, 2], [0], [0]>} : vector<4x64x64xf32>, vector<4x64x8xf32>, vector<4x64x8xf32> -> vector<4x64x8xf32>
    "tpu.trace_stop"() : () -> ()
    %54 = vector.shape_cast %53 : vector<4x64x8xf32> to vector<256x8xf32>
    %c0_26 = arith.constant 0 : index
    %c0_27 = arith.constant 0 : index
    %55 = vector.load %arg4[%c0_26, %c0_27] : memref<32x32xf32, #tpu.memory_space<vmem>>, vector<8x32xf32>
    %cst_28 = arith.constant dense<0.000000e+00> : vector<256x32xf32>
    %56 = tpu.matmul %54, %55, %cst_28 {dimension_numbers = #tpu.dot_dimension_numbers<[1], [0], [0], [1], [0, 0, 1, 1], [], []>} : vector<256x8xf32>, vector<8x32xf32>, vector<256x32xf32> -> vector<256x32xf32>
    %57 = arith.addf %30, %56 : vector<256x32xf32>
    %58 = vector.extract_strided_slice %29 {offsets = [0, 8], sizes = [256, 8], strides = [1, 1]} : vector<256x96xf32> to vector<256x8xf32>
    %cst_29 = arith.constant 0.353553385 : f32
    %59 = vector.broadcast %cst_29 : f32 to vector<256x8xf32>
    %60 = arith.mulf %58, %59 : vector<256x8xf32>
    %61 = vector.shape_cast %60 : vector<256x8xf32> to vector<4x64x8xf32>
    %62 = vector.extract_strided_slice %29 {offsets = [0, 40], sizes = [256, 8], strides = [1, 1]} : vector<256x96xf32> to vector<256x8xf32>
    %63 = vector.shape_cast %62 : vector<256x8xf32> to vector<4x64x8xf32>
    %64 = vector.extract_strided_slice %29 {offsets = [0, 72], sizes = [256, 8], strides = [1, 1]} : vector<256x96xf32> to vector<256x8xf32>
    %65 = vector.shape_cast %64 : vector<256x8xf32> to vector<4x64x8xf32>
    "tpu.trace_start"() <{level = 10 : i32, message = "wnd,wmd->wnm"}> : () -> ()
    %cst_30 = arith.constant dense<0.000000e+00> : vector<4x64x64xf32>
    %66 = tpu.matmul %61, %63, %cst_30 {dimension_numbers = #tpu.dot_dimension_numbers<[2], [2], [1], [1], [0, 0, 0, 1, 1, 1], [0], [0]>} : vector<4x64x8xf32>, vector<4x64x8xf32>, vector<4x64x64xf32> -> vector<4x64x64xf32>
    "tpu.trace_stop"() : () -> ()
    %c1 = arith.constant 1 : index
    %c0_31 = arith.constant 0 : index
    %c0_32 = arith.constant 0 : index
    %c0_33 = arith.constant 0 : index
    %67 = vector.load %arg8[%c1, %c0_31, %c0_32, %c0_33] : memref<4x4x64x64xf32, #tpu.memory_space<vmem>>, vector<1x4x64x64xf32>
    %68 = vector.shape_cast %67 : vector<1x4x64x64xf32> to vector<4x64x64xf32>
    %69 = arith.addf %66, %68 : vector<4x64x64xf32>
    %cst_34 = arith.constant dense<0xFF800000> : vector<4x64xf32>
    %70 = vector.multi_reduction <maximumf>, %69, %cst_34 [2] : vector<4x64x64xf32> to vector<4x64xf32>
    %71 = vector.shape_cast %70 : vector<4x64xf32> to vector<4x64x1xf32>
    %72 = vector.broadcast %71 : vector<4x64x1xf32> to vector<4x64x64xf32>
    %73 = arith.subf %69, %72 : vector<4x64x64xf32>
    %74 = math.exp %73 : vector<4x64x64xf32>
    %cst_35 = arith.constant dense<0.000000e+00> : vector<4x64xf32>
    %75 = vector.multi_reduction <add>, %74, %cst_35 [2] : vector<4x64x64xf32> to vector<4x64xf32>
    %76 = vector.shape_cast %75 : vector<4x64xf32> to vector<4x64x1xf32>
    %77 = tpu.reciprocal %76 {approx = true} : vector<4x64x1xf32> -> vector<4x64x1xf32>
    %78 = vector.broadcast %77 : vector<4x64x1xf32> to vector<4x64x64xf32>
    %79 = arith.mulf %74, %78 : vector<4x64x64xf32>
    "tpu.trace_start"() <{level = 10 : i32, message = "wnm,wmd->wnd"}> : () -> ()
    %cst_36 = arith.constant dense<0.000000e+00> : vector<4x64x8xf32>
    %80 = tpu.matmul %79, %65, %cst_36 {dimension_numbers = #tpu.dot_dimension_numbers<[2], [1], [1], [2], [0, 0, 0, 1, 1, 2], [0], [0]>} : vector<4x64x64xf32>, vector<4x64x8xf32>, vector<4x64x8xf32> -> vector<4x64x8xf32>
    "tpu.trace_stop"() : () -> ()
    %81 = vector.shape_cast %80 : vector<4x64x8xf32> to vector<256x8xf32>
    %c8 = arith.constant 8 : index
    %c0_37 = arith.constant 0 : index
    %82 = vector.load %arg4[%c8, %c0_37] : memref<32x32xf32, #tpu.memory_space<vmem>>, vector<8x32xf32>
    %cst_38 = arith.constant dense<0.000000e+00> : vector<256x32xf32>
    %83 = tpu.matmul %81, %82, %cst_38 {dimension_numbers = #tpu.dot_dimension_numbers<[1], [0], [0], [1], [0, 0, 1, 1], [], []>} : vector<256x8xf32>, vector<8x32xf32>, vector<256x32xf32> -> vector<256x32xf32>
    %84 = arith.addf %57, %83 : vector<256x32xf32>
    %85 = vector.extract_strided_slice %29 {offsets = [0, 16], sizes = [256, 8], strides = [1, 1]} : vector<256x96xf32> to vector<256x8xf32>
    %cst_39 = arith.constant 0.353553385 : f32
    %86 = vector.broadcast %cst_39 : f32 to vector<256x8xf32>
    %87 = arith.mulf %85, %86 : vector<256x8xf32>
    %88 = vector.shape_cast %87 : vector<256x8xf32> to vector<4x64x8xf32>
    %89 = vector.extract_strided_slice %29 {offsets = [0, 48], sizes = [256, 8], strides = [1, 1]} : vector<256x96xf32> to vector<256x8xf32>
    %90 = vector.shape_cast %89 : vector<256x8xf32> to vector<4x64x8xf32>
    %91 = vector.extract_strided_slice %29 {offsets = [0, 80], sizes = [256, 8], strides = [1, 1]} : vector<256x96xf32> to vector<256x8xf32>
    %92 = vector.shape_cast %91 : vector<256x8xf32> to vector<4x64x8xf32>
    "tpu.trace_start"() <{level = 10 : i32, message = "wnd,wmd->wnm"}> : () -> ()
    %cst_40 = arith.constant dense<0.000000e+00> : vector<4x64x64xf32>
    %93 = tpu.matmul %88, %90, %cst_40 {dimension_numbers = #tpu.dot_dimension_numbers<[2], [2], [1], [1], [0, 0, 0, 1, 1, 1], [0], [0]>} : vector<4x64x8xf32>, vector<4x64x8xf32>, vector<4x64x64xf32> -> vector<4x64x64xf32>
    "tpu.trace_stop"() : () -> ()
    %c2 = arith.constant 2 : index
    %c0_41 = arith.constant 0 : index
    %c0_42 = arith.constant 0 : index
    %c0_43 = arith.constant 0 : index
    %94 = vector.load %arg8[%c2, %c0_41, %c0_42, %c0_43] : memref<4x4x64x64xf32, #tpu.memory_space<vmem>>, vector<1x4x64x64xf32>
    %95 = vector.shape_cast %94 : vector<1x4x64x64xf32> to vector<4x64x64xf32>
    %96 = arith.addf %93, %95 : vector<4x64x64xf32>
    %cst_44 = arith.constant dense<0xFF800000> : vector<4x64xf32>
    %97 = vector.multi_reduction <maximumf>, %96, %cst_44 [2] : vector<4x64x64xf32> to vector<4x64xf32>
    %98 = vector.shape_cast %97 : vector<4x64xf32> to vector<4x64x1xf32>
    %99 = vector.broadcast %98 : vector<4x64x1xf32> to vector<4x64x64xf32>
    %100 = arith.subf %96, %99 : vector<4x64x64xf32>
    %101 = math.exp %100 : vector<4x64x64xf32>
    %cst_45 = arith.constant dense<0.000000e+00> : vector<4x64xf32>
    %102 = vector.multi_reduction <add>, %101, %cst_45 [2] : vector<4x64x64xf32> to vector<4x64xf32>
    %103 = vector.shape_cast %102 : vector<4x64xf32> to vector<4x64x1xf32>
    %104 = tpu.reciprocal %103 {approx = true} : vector<4x64x1xf32> -> vector<4x64x1xf32>
    %105 = vector.broadcast %104 : vector<4x64x1xf32> to vector<4x64x64xf32>
    %106 = arith.mulf %101, %105 : vector<4x64x64xf32>
    "tpu.trace_start"() <{level = 10 : i32, message = "wnm,wmd->wnd"}> : () -> ()
    %cst_46 = arith.constant dense<0.000000e+00> : vector<4x64x8xf32>
    %107 = tpu.matmul %106, %92, %cst_46 {dimension_numbers = #tpu.dot_dimension_numbers<[2], [1], [1], [2], [0, 0, 0, 1, 1, 2], [0], [0]>} : vector<4x64x64xf32>, vector<4x64x8xf32>, vector<4x64x8xf32> -> vector<4x64x8xf32>
    "tpu.trace_stop"() : () -> ()
    %108 = vector.shape_cast %107 : vector<4x64x8xf32> to vector<256x8xf32>
    %c16 = arith.constant 16 : index
    %c0_47 = arith.constant 0 : index
    %109 = vector.load %arg4[%c16, %c0_47] : memref<32x32xf32, #tpu.memory_space<vmem>>, vector<8x32xf32>
    %cst_48 = arith.constant dense<0.000000e+00> : vector<256x32xf32>
    %110 = tpu.matmul %108, %109, %cst_48 {dimension_numbers = #tpu.dot_dimension_numbers<[1], [0], [0], [1], [0, 0, 1, 1], [], []>} : vector<256x8xf32>, vector<8x32xf32>, vector<256x32xf32> -> vector<256x32xf32>
    %111 = arith.addf %84, %110 : vector<256x32xf32>
    %112 = vector.extract_strided_slice %29 {offsets = [0, 24], sizes = [256, 8], strides = [1, 1]} : vector<256x96xf32> to vector<256x8xf32>
    %cst_49 = arith.constant 0.353553385 : f32
    %113 = vector.broadcast %cst_49 : f32 to vector<256x8xf32>
    %114 = arith.mulf %112, %113 : vector<256x8xf32>
    %115 = vector.shape_cast %114 : vector<256x8xf32> to vector<4x64x8xf32>
    %116 = vector.extract_strided_slice %29 {offsets = [0, 56], sizes = [256, 8], strides = [1, 1]} : vector<256x96xf32> to vector<256x8xf32>
    %117 = vector.shape_cast %116 : vector<256x8xf32> to vector<4x64x8xf32>
    %118 = vector.extract_strided_slice %29 {offsets = [0, 88], sizes = [256, 8], strides = [1, 1]} : vector<256x96xf32> to vector<256x8xf32>
    %119 = vector.shape_cast %118 : vector<256x8xf32> to vector<4x64x8xf32>
    "tpu.trace_start"() <{level = 10 : i32, message = "wnd,wmd->wnm"}> : () -> ()
    %cst_50 = arith.constant dense<0.000000e+00> : vector<4x64x64xf32>
    %120 = tpu.matmul %115, %117, %cst_50 {dimension_numbers = #tpu.dot_dimension_numbers<[2], [2], [1], [1], [0, 0, 0, 1, 1, 1], [0], [0]>} : vector<4x64x8xf32>, vector<4x64x8xf32>, vector<4x64x64xf32> -> vector<4x64x64xf32>
    "tpu.trace_stop"() : () -> ()
    %c3 = arith.constant 3 : index
    %c0_51 = arith.constant 0 : index
    %c0_52 = arith.constant 0 : index
    %c0_53 = arith.constant 0 : index
    %121 = vector.load %arg8[%c3, %c0_51, %c0_52, %c0_53] : memref<4x4x64x64xf32, #tpu.memory_space<vmem>>, vector<1x4x64x64xf32>
    %122 = vector.shape_cast %121 : vector<1x4x64x64xf32> to vector<4x64x64xf32>
    %123 = arith.addf %120, %122 : vector<4x64x64xf32>
    %cst_54 = arith.constant dense<0xFF800000> : vector<4x64xf32>
    %124 = vector.multi_reduction <maximumf>, %123, %cst_54 [2] : vector<4x64x64xf32> to vector<4x64xf32>
    %125 = vector.shape_cast %124 : vector<4x64xf32> to vector<4x64x1xf32>
    %126 = vector.broadcast %125 : vector<4x64x1xf32> to vector<4x64x64xf32>
    %127 = arith.subf %123, %126 : vector<4x64x64xf32>
    %128 = math.exp %127 : vector<4x64x64xf32>
    %cst_55 = arith.constant dense<0.000000e+00> : vector<4x64xf32>
    %129 = vector.multi_reduction <add>, %128, %cst_55 [2] : vector<4x64x64xf32> to vector<4x64xf32>
    %130 = vector.shape_cast %129 : vector<4x64xf32> to vector<4x64x1xf32>
    %131 = tpu.reciprocal %130 {approx = true} : vector<4x64x1xf32> -> vector<4x64x1xf32>
    %132 = vector.broadcast %131 : vector<4x64x1xf32> to vector<4x64x64xf32>
    %133 = arith.mulf %128, %132 : vector<4x64x64xf32>
    "tpu.trace_start"() <{level = 10 : i32, message = "wnm,wmd->wnd"}> : () -> ()
    %cst_56 = arith.constant dense<0.000000e+00> : vector<4x64x8xf32>
    %134 = tpu.matmul %133, %119, %cst_56 {dimension_numbers = #tpu.dot_dimension_numbers<[2], [1], [1], [2], [0, 0, 0, 1, 1, 2], [0], [0]>} : vector<4x64x64xf32>, vector<4x64x8xf32>, vector<4x64x8xf32> -> vector<4x64x8xf32>
    "tpu.trace_stop"() : () -> ()
    %135 = vector.shape_cast %134 : vector<4x64x8xf32> to vector<256x8xf32>
    %c24 = arith.constant 24 : index
    %c0_57 = arith.constant 0 : index
    %136 = vector.load %arg4[%c24, %c0_57] : memref<32x32xf32, #tpu.memory_space<vmem>>, vector<8x32xf32>
    %cst_58 = arith.constant dense<0.000000e+00> : vector<256x32xf32>
    %137 = tpu.matmul %135, %136, %cst_58 {dimension_numbers = #tpu.dot_dimension_numbers<[1], [0], [0], [1], [0, 0, 1, 1], [], []>} : vector<256x8xf32>, vector<8x32xf32>, vector<256x32xf32> -> vector<256x32xf32>
    %138 = arith.addf %111, %137 : vector<256x32xf32>
    %c0_59 = arith.constant 0 : index
    %c0_60 = arith.constant 0 : index
    %139 = vector.load %arg5[%c0_59, %c0_60] : memref<1x32xf32, #tpu.memory_space<vmem>>, vector<1x32xf32>
    %140 = vector.broadcast %139 : vector<1x32xf32> to vector<256x32xf32>
    %141 = arith.addf %138, %140 : vector<256x32xf32>
    %142 = vector.shape_cast %141 : vector<256x32xf32> to vector<4x64x32xf32>
    %c0_61 = arith.constant 0 : index
    %c0_62 = arith.constant 0 : index
    %c0_63 = arith.constant 0 : index
    %c0_64 = arith.constant 0 : index
    %143 = vector.load %arg9[%c0_61, %c0_62, %c0_63, %c0_64] : memref<1x4x64x32xf32, #tpu.memory_space<vmem>>, vector<1x4x64x32xf32>
    %144 = vector.shape_cast %143 : vector<1x4x64x32xf32> to vector<4x64x32xf32>
    %145 = vector.shape_cast %142 : vector<4x64x32xf32> to vector<1x4x64x32xf32>
    tpu.vector_store %arg9[%c0_61, %c0_62, %c0_63, %c0_64], %145 {strides = array<i32>} : memref<1x4x64x32xf32, #tpu.memory_space<vmem>>, vector<1x4x64x32xf32>,
    return
  }
  func.func @transform_0(%arg0: i32) -> (i32, i32, i32, i32) {
    %c0_i32 = arith.constant 0 : i32
    %c0_i32_0 = arith.constant 0 : i32
    %c0_i32_1 = arith.constant 0 : i32
    %c0_i32_2 = arith.constant 0 : i32
    return %arg0, %c0_i32, %c0_i32_0, %c0_i32_1 : i32, i32, i32, i32
  }
  func.func @transform_1(%arg0: i32) -> (i32, i32) {
    %c0_i32 = arith.constant 0 : i32
    %c0_i32_0 = arith.constant 0 : i32
    %c0_i32_1 = arith.constant 0 : i32
    return %c0_i32, %c0_i32_0 : i32, i32
  }
  func.func @transform_2(%arg0: i32) -> (i32, i32) {
    %c0_i32 = arith.constant 0 : i32
    %c0_i32_0 = arith.constant 0 : i32
    %c0_i32_1 = arith.constant 0 : i32
    return %c0_i32, %c0_i32_0 : i32, i32
  }
  func.func @transform_3(%arg0: i32) -> (i32, i32) {
    %c0_i32 = arith.constant 0 : i32
    %c0_i32_0 = arith.constant 0 : i32
    %c0_i32_1 = arith.constant 0 : i32
    return %c0_i32, %c0_i32_0 : i32, i32
  }
  func.func @transform_4(%arg0: i32) -> (i32, i32) {
    %c0_i32 = arith.constant 0 : i32
    %c0_i32_0 = arith.constant 0 : i32
    %c0_i32_1 = arith.constant 0 : i32
    return %c0_i32, %c0_i32_0 : i32, i32
  }
  func.func @transform_5(%arg0: i32) -> (i32, i32) {
    %c0_i32 = arith.constant 0 : i32
    %c0_i32_0 = arith.constant 0 : i32
    %c0_i32_1 = arith.constant 0 : i32
    return %c0_i32, %c0_i32_0 : i32, i32
  }
  func.func @transform_6(%arg0: i32) -> (i32, i32) {
    %c0_i32 = arith.constant 0 : i32
    %c0_i32_0 = arith.constant 0 : i32
    %c0_i32_1 = arith.constant 0 : i32
    return %c0_i32, %c0_i32_0 : i32, i32
  }
  func.func @transform_7(%arg0: i32) -> (i32, i32, i32, i32) {
    %c0_i32 = arith.constant 0 : i32
    %c0_i32_0 = arith.constant 0 : i32
    %c0_i32_1 = arith.constant 0 : i32
    %c0_i32_2 = arith.constant 0 : i32
    %c0_i32_3 = arith.constant 0 : i32
    return %c0_i32, %c0_i32_0, %c0_i32_1, %c0_i32_2 : i32, i32, i32, i32
  }
  func.func @transform_8(%arg0: i32) -> (i32, i32, i32, i32) {
    %c0_i32 = arith.constant 0 : i32
    %c0_i32_0 = arith.constant 0 : i32
    %c0_i32_1 = arith.constant 0 : i32
    %c0_i32_2 = arith.constant 0 : i32
    return %arg0, %c0_i32, %c0_i32_0, %c0_i32_1 : i32, i32, i32, i32
  }
}

module attributes {stable_mosaic.version = 11 : i64} {
  func.func @kernel(%arg0: i32, %arg1: memref<256x32xf32, #tpu.memory_space<vmem>>, %arg2: memref<256x32xf32, #tpu.memory_space<vmem>>, %arg3: memref<1x32xf32, #tpu.memory_space<vmem>>, %arg4: memref<1x32xf32, #tpu.memory_space<vmem>>, %arg5: memref<32x128xf32, #tpu.memory_space<vmem>>, %arg6: memref<1x128xf32, #tpu.memory_space<vmem>>, %arg7: memref<128x32xf32, #tpu.memory_space<vmem>>, %arg8: memref<1x32xf32, #tpu.memory_space<vmem>>, %arg9: memref<256x32xf32, #tpu.memory_space<vmem>>) attributes {dimension_semantics = [#tpu.dimension_semantics<parallel>], iteration_bounds = array<i64: 2>, scalar_prefetch = 0 : i64, scratch_operands = 0 : i64, tpu.core_type = #tpu.core_type<tc>, window_params = [{transform_indices = @transform_0, window_bounds = array<i64: 256, 32>}, {transform_indices = @transform_1, window_bounds = array<i64: 256, 32>}, {pipeline_mode = #tpu.pipeline_mode<synchronous>, transform_indices = @transform_2, window_bounds = array<i64: 1, 32>}, {pipeline_mode = #tpu.pipeline_mode<synchronous>, transform_indices = @transform_3, window_bounds = array<i64: 1, 32>}, {pipeline_mode = #tpu.pipeline_mode<synchronous>, transform_indices = @transform_4, window_bounds = array<i64: 32, 128>}, {pipeline_mode = #tpu.pipeline_mode<synchronous>, transform_indices = @transform_5, window_bounds = array<i64: 1, 128>}, {pipeline_mode = #tpu.pipeline_mode<synchronous>, transform_indices = @transform_6, window_bounds = array<i64: 128, 32>}, {pipeline_mode = #tpu.pipeline_mode<synchronous>, transform_indices = @transform_7, window_bounds = array<i64: 1, 32>}, {transform_indices = @transform_8, window_bounds = array<i64: 256, 32>}]} {
    %c0 = arith.constant 0 : index
    %c0_0 = arith.constant 0 : index
    %0 = vector.load %arg1[%c0, %c0_0] : memref<256x32xf32, #tpu.memory_space<vmem>>, vector<256x32xf32>
    %c0_1 = arith.constant 0 : index
    %c0_2 = arith.constant 0 : index
    %1 = vector.load %arg2[%c0_1, %c0_2] : memref<256x32xf32, #tpu.memory_space<vmem>>, vector<256x32xf32>
    %2 = arith.addf %0, %1 : vector<256x32xf32>
    %cst = arith.constant dense<0.000000e+00> : vector<256xf32>
    %3 = vector.multi_reduction <add>, %2, %cst [1] : vector<256x32xf32> to vector<256xf32>
    %4 = vector.shape_cast %3 : vector<256xf32> to vector<256x1xf32>
    %cst_3 = arith.constant 3.200000e+01 : f32
    %5 = vector.broadcast %cst_3 : f32 to vector<256x1xf32>
    %6 = arith.divf %4, %5 : vector<256x1xf32>
    %7 = vector.broadcast %6 : vector<256x1xf32> to vector<256x32xf32>
    %8 = arith.subf %2, %7 : vector<256x32xf32>
    %9 = arith.mulf %8, %8 : vector<256x32xf32>
    %cst_4 = arith.constant dense<0.000000e+00> : vector<256xf32>
    %10 = vector.multi_reduction <add>, %9, %cst_4 [1] : vector<256x32xf32> to vector<256xf32>
    %11 = vector.shape_cast %10 : vector<256xf32> to vector<256x1xf32>
    %cst_5 = arith.constant 3.200000e+01 : f32
    %12 = vector.broadcast %cst_5 : f32 to vector<256x1xf32>
    %13 = arith.divf %11, %12 : vector<256x1xf32>
    %cst_6 = arith.constant 9.99999974E-6 : f32
    %14 = vector.broadcast %cst_6 : f32 to vector<256x1xf32>
    %15 = arith.addf %13, %14 : vector<256x1xf32>
    %16 = math.rsqrt %15 : vector<256x1xf32>
    %17 = vector.broadcast %16 : vector<256x1xf32> to vector<256x32xf32>
    %18 = arith.mulf %8, %17 : vector<256x32xf32>
    %c0_7 = arith.constant 0 : index
    %c0_8 = arith.constant 0 : index
    %19 = vector.load %arg3[%c0_7, %c0_8] : memref<1x32xf32, #tpu.memory_space<vmem>>, vector<1x32xf32>
    %20 = vector.broadcast %19 : vector<1x32xf32> to vector<256x32xf32>
    %21 = arith.mulf %18, %20 : vector<256x32xf32>
    %c0_9 = arith.constant 0 : index
    %c0_10 = arith.constant 0 : index
    %22 = vector.load %arg4[%c0_9, %c0_10] : memref<1x32xf32, #tpu.memory_space<vmem>>, vector<1x32xf32>
    %23 = vector.broadcast %22 : vector<1x32xf32> to vector<256x32xf32>
    %24 = arith.addf %21, %23 : vector<256x32xf32>
    %c0_11 = arith.constant 0 : index
    %c0_12 = arith.constant 0 : index
    %25 = vector.load %arg5[%c0_11, %c0_12] : memref<32x128xf32, #tpu.memory_space<vmem>>, vector<32x128xf32>
    %cst_13 = arith.constant dense<0.000000e+00> : vector<256x128xf32>
    %26 = tpu.matmul %24, %25, %cst_13 {dimension_numbers = #tpu.dot_dimension_numbers<[1], [0], [0], [1], [0, 0, 1, 1], [], []>} : vector<256x32xf32>, vector<32x128xf32>, vector<256x128xf32> -> vector<256x128xf32>
    %c0_14 = arith.constant 0 : index
    %c0_15 = arith.constant 0 : index
    %27 = vector.load %arg6[%c0_14, %c0_15] : memref<1x128xf32, #tpu.memory_space<vmem>>, vector<1x128xf32>
    %28 = vector.broadcast %27 : vector<1x128xf32> to vector<256x128xf32>
    %29 = arith.addf %26, %28 : vector<256x128xf32>
    %cst_16 = arith.constant 5.000000e-01 : f32
    %30 = vector.broadcast %cst_16 : f32 to vector<256x128xf32>
    %31 = arith.mulf %30, %29 : vector<256x128xf32>
    %cst_17 = arith.constant 4.471500e-02 : f32
    %32 = vector.broadcast %cst_17 : f32 to vector<256x128xf32>
    %33 = arith.mulf %32, %29 : vector<256x128xf32>
    %34 = arith.mulf %33, %29 : vector<256x128xf32>
    %35 = arith.mulf %34, %29 : vector<256x128xf32>
    %36 = arith.addf %29, %35 : vector<256x128xf32>
    %cst_18 = arith.constant 0.797884583 : f32
    %37 = vector.broadcast %cst_18 : f32 to vector<256x128xf32>
    %38 = arith.mulf %37, %36 : vector<256x128xf32>
    %39 = math.tanh %38 : vector<256x128xf32>
    %cst_19 = arith.constant 1.000000e+00 : f32
    %40 = vector.broadcast %cst_19 : f32 to vector<256x128xf32>
    %41 = arith.addf %40, %39 : vector<256x128xf32>
    %42 = arith.mulf %31, %41 : vector<256x128xf32>
    %c0_20 = arith.constant 0 : index
    %c0_21 = arith.constant 0 : index
    %43 = vector.load %arg7[%c0_20, %c0_21] : memref<128x32xf32, #tpu.memory_space<vmem>>, vector<128x32xf32>
    %cst_22 = arith.constant dense<0.000000e+00> : vector<256x32xf32>
    %44 = tpu.matmul %42, %43, %cst_22 {dimension_numbers = #tpu.dot_dimension_numbers<[1], [0], [0], [1], [0, 0, 1, 1], [], []>} : vector<256x128xf32>, vector<128x32xf32>, vector<256x32xf32> -> vector<256x32xf32>
    %c0_23 = arith.constant 0 : index
    %c0_24 = arith.constant 0 : index
    %45 = vector.load %arg8[%c0_23, %c0_24] : memref<1x32xf32, #tpu.memory_space<vmem>>, vector<1x32xf32>
    %46 = vector.broadcast %45 : vector<1x32xf32> to vector<256x32xf32>
    %47 = arith.addf %44, %46 : vector<256x32xf32>
    %48 = arith.addf %2, %47 : vector<256x32xf32>
    %c0_25 = arith.constant 0 : index
    %c0_26 = arith.constant 0 : index
    %49 = vector.load %arg9[%c0_25, %c0_26] : memref<256x32xf32, #tpu.memory_space<vmem>>, vector<256x32xf32>
    tpu.vector_store %arg9[%c0_25, %c0_26], %48 {strides = array<i32>} : memref<256x32xf32, #tpu.memory_space<vmem>>, vector<256x32xf32>,
    return
  }
  func.func @transform_0(%arg0: i32) -> (i32, i32) {
    %c0_i32 = arith.constant 0 : i32
    %c0_i32_0 = arith.constant 0 : i32
    return %arg0, %c0_i32 : i32, i32
  }
  func.func @transform_1(%arg0: i32) -> (i32, i32) {
    %c0_i32 = arith.constant 0 : i32
    %c0_i32_0 = arith.constant 0 : i32
    return %arg0, %c0_i32 : i32, i32
  }
  func.func @transform_2(%arg0: i32) -> (i32, i32) {
    %c0_i32 = arith.constant 0 : i32
    %c0_i32_0 = arith.constant 0 : i32
    %c0_i32_1 = arith.constant 0 : i32
    return %c0_i32, %c0_i32_0 : i32, i32
  }
  func.func @transform_3(%arg0: i32) -> (i32, i32) {
    %c0_i32 = arith.constant 0 : i32
    %c0_i32_0 = arith.constant 0 : i32
    %c0_i32_1 = arith.constant 0 : i32
    return %c0_i32, %c0_i32_0 : i32, i32
  }
  func.func @transform_4(%arg0: i32) -> (i32, i32) {
    %c0_i32 = arith.constant 0 : i32
    %c0_i32_0 = arith.constant 0 : i32
    %c0_i32_1 = arith.constant 0 : i32
    return %c0_i32, %c0_i32_0 : i32, i32
  }
  func.func @transform_5(%arg0: i32) -> (i32, i32) {
    %c0_i32 = arith.constant 0 : i32
    %c0_i32_0 = arith.constant 0 : i32
    %c0_i32_1 = arith.constant 0 : i32
    return %c0_i32, %c0_i32_0 : i32, i32
  }
  func.func @transform_6(%arg0: i32) -> (i32, i32) {
    %c0_i32 = arith.constant 0 : i32
    %c0_i32_0 = arith.constant 0 : i32
    %c0_i32_1 = arith.constant 0 : i32
    return %c0_i32, %c0_i32_0 : i32, i32
  }
  func.func @transform_7(%arg0: i32) -> (i32, i32) {
    %c0_i32 = arith.constant 0 : i32
    %c0_i32_0 = arith.constant 0 : i32
    %c0_i32_1 = arith.constant 0 : i32
    return %c0_i32, %c0_i32_0 : i32, i32
  }
  func.func @transform_8(%arg0: i32) -> (i32, i32) {
    %c0_i32 = arith.constant 0 : i32
    %c0_i32_0 = arith.constant 0 : i32
    return %arg0, %c0_i32 : i32, i32
  }
}

</mosaic_0001>

<llo_original>
// kernel: swin_block_forward.3
$region0: #{swin_block_forward.3}
  #allocation0 [shape = 'u32[]', space=smem, size = 0x4, offset = 0x4, fixed_abs, tag = 'smem constant byte address 0x4 - core index']
  #allocation1 [shape = 'u32[144,128]{1,0:T(1,128)}', space=vmem, size = 0x12000, scoped, tag = 'internal scratch']
  %s0 = inlined_call_operand.vmem [shape: f32[512,32], index: 0, kind: input, shape index: {}]
  %s1 = inlined_call_operand.vmem [shape: f32[512,32], index: 1, kind: input, shape index: {}]
  %s2 = inlined_call_operand.vmem [shape: f32[1,32], index: 2, kind: input, shape index: {}]
  %s3 = inlined_call_operand.vmem [shape: f32[1,32], index: 3, kind: input, shape index: {}]
  %s4 = inlined_call_operand.vmem [shape: f32[32,128], index: 4, kind: input, shape index: {}]
  %s5 = inlined_call_operand.vmem [shape: f32[1,128], index: 5, kind: input, shape index: {}]
  %s6 = inlined_call_operand.vmem [shape: f32[128,32], index: 6, kind: input, shape index: {}]
  %s7 = inlined_call_operand.vmem [shape: f32[1,32], index: 7, kind: input, shape index: {}]
  %s8 = inlined_call_operand.vmem [shape: f32[512,32], index: 8, kind: output, shape index: {}]
  %s9 = sld [smem:[#allocation0]]
  $region65: #{swin_block_forward.3} parent=0
    _
  %s11 = ssub.s32 1, %s9
  %s12 = scalar_select 0, %s11, %s9
  loop: start=0, step=1, limit=4
  $region2: #{swin_block_forward.3} parent=0 // loop_pre_header
    _
  $region3: #{swin_block_forward.3} parent=0 // loop_header
    %s14 = sphi 0, %s18
    %p15 = scmp.ge.s32.totalorder %s14, 4
    %s24 = sphi 0, %s26
    %s27 = sphi 0, %s24
    %s28 = sphi 0, %s27
    %s44 = sphi 0, %s28
    %s50 = sphi 0, %s52
    %s53 = sphi 0, %s50
    %s54 = sphi 0, %s53
    %s70 = sphi 0, %s54
    %s74 = sphi 0, %s74
    %s76 = sphi 0, %s74
    %s77 = sphi 0, %s76
    %s91 = sphi 0, %s77
    %s95 = sphi 0, %s95
    %s97 = sphi 0, %s95
    %s98 = sphi 0, %s97
    %s112 = sphi 0, %s98
    %s116 = sphi 0, %s116
    %s118 = sphi 0, %s116
    %s119 = sphi 0, %s118
    %s133 = sphi 0, %s119
    %s137 = sphi 0, %s137
    %s139 = sphi 0, %s137
    %s140 = sphi 0, %s139
    %s154 = sphi 0, %s140
    %s158 = sphi 0, %s158
    %s160 = sphi 0, %s158
    %s161 = sphi 0, %s160
    %s175 = sphi 0, %s161
    %s179 = sphi 0, %s179
    %s181 = sphi 0, %s179
    %s182 = sphi 0, %s181
    %s196 = sphi 0, %s182
    %s202 = sphi 0, %s204
    %s205 = sphi 0, %s202
    %s206 = sphi 0, %s205
    %s222 = sphi 0, %s206
  $region4: #{swin_block_forward.3} parent=0 // loop_header_branch
    %17 = sbr.rel (%p15) target = $region8
  $region5: #{swin_block_forward.3} parent=0 // loop_body
    %s19 = ssub.s32 %s14, 1
    %s20 = ssub.s32 %s14, 2
    %s21 = sadd.s32 %s14, 1
    %s22 = ssub.s32 %s14, %s21
    %p23 = scmp.eq.s32.totalorder %s22, 0
    %s25 = sadd.s32 %s24, 1
    %s26 = scalar_select %p23, %s24, %s25
    %p29 = pneg %p23
    %p30 = scmp.eq.s32.totalorder %s14, 1
    %p31 = por %p29, %p30
    %p32 = scmp.ne.s32.totalorder %s24, %s27
    %p33 = scmp.eq.s32.totalorder %s14, 0
    %p34 = por %p32, %p33
    %p35 = scmp.ne.s32.totalorder %s24, %s27
    %p36 = scmp.eq.s32.totalorder %s19, 1
    %p37 = por %p35, %p36
    %p38 = scmp.ne.s32.totalorder %s27, %s28
    %p39 = scmp.eq.s32.totalorder %s19, 0
    %p40 = por %p38, %p39
    %p41 = scmp.ne.s32.totalorder %s27, %s28
    %p42 = scmp.eq.s32.totalorder %s20, 1
    %p43 = por %p41, %p42
    %p45 = scmp.ne.s32.totalorder %s28, %s44
    %p46 = scmp.eq.s32.totalorder %s20, 0
    %p47 = por %p45, %p46
    %s48 = ssub.s32 %s14, %s21
    %p49 = scmp.eq.s32.totalorder %s48, 0
    %s51 = sadd.s32 %s50, 1
    %s52 = scalar_select %p49, %s50, %s51
    %p55 = pneg %p49
    %p56 = scmp.eq.s32.totalorder %s14, 1
    %p57 = por %p55, %p56
    %p58 = scmp.ne.s32.totalorder %s50, %s53
    %p59 = scmp.eq.s32.totalorder %s14, 0
    %p60 = por %p58, %p59
    %p61 = scmp.ne.s32.totalorder %s50, %s53
    %p62 = scmp.eq.s32.totalorder %s19, 1
    %p63 = por %p61, %p62
    %p64 = scmp.ne.s32.totalorder %s53, %s54
    %p65 = scmp.eq.s32.totalorder %s19, 0
    %p66 = por %p64, %p65
    %p67 = scmp.ne.s32.totalorder %s53, %s54
    %p68 = scmp.eq.s32.totalorder %s20, 1
    %p69 = por %p67, %p68
    %p71 = scmp.ne.s32.totalorder %s54, %s70
    %p72 = scmp.eq.s32.totalorder %s20, 0
    %p73 = por %p71, %p72
    %s75 = sadd.s32 %s74, 1
    %p78 = scmp.eq.s32.totalorder %s14, 1
    %p79 = scmp.ne.s32.totalorder %s74, %s76
    %p80 = scmp.eq.s32.totalorder %s14, 0
    %p81 = por %p79, %p80
    %p82 = scmp.ne.s32.totalorder %s74, %s76
    %p83 = scmp.eq.s32.totalorder %s19, 1
    %p84 = por %p82, %p83
    %p85 = scmp.ne.s32.totalorder %s76, %s77
    %p86 = scmp.eq.s32.totalorder %s19, 0
    %p87 = por %p85, %p86
    %p88 = scmp.ne.s32.totalorder %s76, %s77
    %p89 = scmp.eq.s32.totalorder %s20, 1
    %p90 = por %p88, %p89
    %p92 = scmp.ne.s32.totalorder %s77, %s91
    %p93 = scmp.eq.s32.totalorder %s20, 0
    %p94 = por %p92, %p93
    %s96 = sadd.s32 %s95, 1
    %p99 = scmp.eq.s32.totalorder %s14, 1
    %p100 = scmp.ne.s32.totalorder %s95, %s97
    %p101 = scmp.eq.s32.totalorder %s14, 0
    %p102 = por %p100, %p101
    %p103 = scmp.ne.s32.totalorder %s95, %s97
    %p104 = scmp.eq.s32.totalorder %s19, 1
    %p105 = por %p103, %p104
    %p106 = scmp.ne.s32.totalorder %s97, %s98
    %p107 = scmp.eq.s32.totalorder %s19, 0
    %p108 = por %p106, %p107
    %p109 = scmp.ne.s32.totalorder %s97, %s98
    %p110 = scmp.eq.s32.totalorder %s20, 1
    %p111 = por %p109, %p110
    %p113 = scmp.ne.s32.totalorder %s98, %s112
    %p114 = scmp.eq.s32.totalorder %s20, 0
    %p115 = por %p113, %p114
    %s117 = sadd.s32 %s116, 1
    %p120 = scmp.eq.s32.totalorder %s14, 1
    %p121 = scmp.ne.s32.totalorder %s116, %s118
    %p122 = scmp.eq.s32.totalorder %s14, 0
    %p123 = por %p121, %p122
    %p124 = scmp.ne.s32.totalorder %s116, %s118
    %p125 = scmp.eq.s32.totalorder %s19, 1
    %p126 = por %p124, %p125
    %p127 = scmp.ne.s32.totalorder %s118, %s119
    %p128 = scmp.eq.s32.totalorder %s19, 0
    %p129 = por %p127, %p128
    %p130 = scmp.ne.s32.totalorder %s118, %s119
    %p131 = scmp.eq.s32.totalorder %s20, 1
    %p132 = por %p130, %p131
    %p134 = scmp.ne.s32.totalorder %s119, %s133
    %p135 = scmp.eq.s32.totalorder %s20, 0
    %p136 = por %p134, %p135
    %s138 = sadd.s32 %s137, 1
    %p141 = scmp.eq.s32.totalorder %s14, 1
    %p142 = scmp.ne.s32.totalorder %s137, %s139
    %p143 = scmp.eq.s32.totalorder %s14, 0
    %p144 = por %p142, %p143
    %p145 = scmp.ne.s32.totalorder %s137, %s139
    %p146 = scmp.eq.s32.totalorder %s19, 1
    %p147 = por %p145, %p146
    %p148 = scmp.ne.s32.totalorder %s139, %s140
    %p149 = scmp.eq.s32.totalorder %s19, 0
    %p150 = por %p148, %p149
    %p151 = scmp.ne.s32.totalorder %s139, %s140
    %p152 = scmp.eq.s32.totalorder %s20, 1
    %p153 = por %p151, %p152
    %p155 = scmp.ne.s32.totalorder %s140, %s154
    %p156 = scmp.eq.s32.totalorder %s20, 0
    %p157 = por %p155, %p156
    %s159 = sadd.s32 %s158, 1
    %p162 = scmp.eq.s32.totalorder %s14, 1
    %p163 = scmp.ne.s32.totalorder %s158, %s160
    %p164 = scmp.eq.s32.totalorder %s14, 0
    %p165 = por %p163, %p164
    %p166 = scmp.ne.s32.totalorder %s158, %s160
    %p167 = scmp.eq.s32.totalorder %s19, 1
    %p168 = por %p166, %p167
    %p169 = scmp.ne.s32.totalorder %s160, %s161
    %p170 = scmp.eq.s32.totalorder %s19, 0
    %p171 = por %p169, %p170
    %p172 = scmp.ne.s32.totalorder %s160, %s161
    %p173 = scmp.eq.s32.totalorder %s20, 1
    %p174 = por %p172, %p173
    %p176 = scmp.ne.s32.totalorder %s161, %s175
    %p177 = scmp.eq.s32.totalorder %s20, 0
    %p178 = por %p176, %p177
    %s180 = sadd.s32 %s179, 1
    %p183 = scmp.eq.s32.totalorder %s14, 1
    %p184 = scmp.ne.s32.totalorder %s179, %s181
    %p185 = scmp.eq.s32.totalorder %s14, 0
    %p186 = por %p184, %p185
    %p187 = scmp.ne.s32.totalorder %s179, %s181
    %p188 = scmp.eq.s32.totalorder %s19, 1
    %p189 = por %p187, %p188
    %p190 = scmp.ne.s32.totalorder %s181, %s182
    %p191 = scmp.eq.s32.totalorder %s19, 0
    %p192 = por %p190, %p191
    %p193 = scmp.ne.s32.totalorder %s181, %s182
    %p194 = scmp.eq.s32.totalorder %s20, 1
    %p195 = por %p193, %p194
    %p197 = scmp.ne.s32.totalorder %s182, %s196
    %p198 = scmp.eq.s32.totalorder %s20, 0
    %p199 = por %p197, %p198
    %s200 = ssub.s32 %s14, %s21
    %p201 = scmp.eq.s32.totalorder %s200, 0
    %s203 = sadd.s32 %s202, 1
    %s204 = scalar_select %p201, %s202, %s203
    %p207 = pneg %p201
    %p208 = scmp.eq.s32.totalorder %s14, 1
    %p209 = por %p207, %p208
    %p210 = scmp.ne.s32.totalorder %s202, %s205
    %p211 = scmp.eq.s32.totalorder %s14, 0
    %p212 = por %p210, %p211
    %p213 = scmp.ne.s32.totalorder %s202, %s205
    %p214 = scmp.eq.s32.totalorder %s19, 1
    %p215 = por %p213, %p214
    %p216 = scmp.ne.s32.totalorder %s205, %s206
    %p217 = scmp.eq.s32.totalorder %s19, 0
    %p218 = por %p216, %p217
    %p219 = scmp.ne.s32.totalorder %s205, %s206
    %p220 = scmp.eq.s32.totalorder %s20, 1
    %p221 = por %p219, %p220
    %p223 = scmp.ne.s32.totalorder %s206, %s222
    %p224 = scmp.eq.s32.totalorder %s20, 0
    %p225 = por %p223, %p224
    %p226 = scmp.le.s32.totalorder 1, %s14
    %p227 = scmp.lt.s32.totalorder %s14, 3
    %p228 = pnand %p226, %p227
    %p229 = pneg %p228
    // Predicated region
    $region9: #{swin_block_forward.3} parent=5 // pred_check
      _
    $region10: #{swin_block_forward.3} parent=5 // pred_check_branch
      %231 = sbr.rel (%p228) target = $region12
    $region11: #{swin_block_forward.3} parent=5 // pred_region
      %s232 = ssub.s32 %s14, 1
      // Predicated region
      $region13: #{swin_block_forward.3} parent=11 // pred_check
        %p233 = pneg %p87
      $region14: #{swin_block_forward.3} parent=11 // pred_check_branch
        %235 = sbr.rel (%p233) target = $region16
      $region15: #{swin_block_forward.3} parent=11 // pred_region
        _
      $region16: #{swin_block_forward.3} parent=11 // pred_fallthru
        _
      // Predicated region
      $region17: #{swin_block_forward.3} parent=11 // pred_check
        %p236 = pneg %p108
      $region18: #{swin_block_forward.3} parent=11 // pred_check_branch
        %238 = sbr.rel (%p236) target = $region20
      $region19: #{swin_block_forward.3} parent=11 // pred_region
        _
      $region20: #{swin_block_forward.3} parent=11 // pred_fallthru
        _
      // Predicated region
      $region21: #{swin_block_forward.3} parent=11 // pred_check
        %p239 = pneg %p129
      $region22: #{swin_block_forward.3} parent=11 // pred_check_branch
        %241 = sbr.rel (%p239) target = $region24
      $region23: #{swin_block_forward.3} parent=11 // pred_region
        _
      $region24: #{swin_block_forward.3} parent=11 // pred_fallthru
        _
      // Predicated region
      $region25: #{swin_block_forward.3} parent=11 // pred_check
        %p242 = pneg %p150
      $region26: #{swin_block_forward.3} parent=11 // pred_check_branch
        %244 = sbr.rel (%p242) target = $region28
      $region27: #{swin_block_forward.3} parent=11 // pred_region
        _
      $region28: #{swin_block_forward.3} parent=11 // pred_fallthru
        _
      // Predicated region
      $region29: #{swin_block_forward.3} parent=11 // pred_check
        %p245 = pneg %p171
      $region30: #{swin_block_forward.3} parent=11 // pred_check_branch
        %247 = sbr.rel (%p245) target = $region32
      $region31: #{swin_block_forward.3} parent=11 // pred_region
        _
      $region32: #{swin_block_forward.3} parent=11 // pred_fallthru
        _
      // Predicated region
      $region33: #{swin_block_forward.3} parent=11 // pred_check
        %p248 = pneg %p192
      $region34: #{swin_block_forward.3} parent=11 // pred_check_branch
        %250 = sbr.rel (%p248) target = $region36
      $region35: #{swin_block_forward.3} parent=11 // pred_region
        _
      $region36: #{swin_block_forward.3} parent=11 // pred_fallthru
        _
    $region12: #{swin_block_forward.3} parent=5 // pred_fallthru
      _
    %p251 = scmp.lt.s32.totalorder %s14, 2
    // Predicated region
    $region37: #{swin_block_forward.3} parent=5 // pred_check
      %p252 = pneg %p251
    $region38: #{swin_block_forward.3} parent=5 // pred_check_branch
      %254 = sbr.rel (%p252) target = $region40
    $region39: #{swin_block_forward.3} parent=5 // pred_region
      // Predicated region
      $region41: #{swin_block_forward.3} parent=39 // pred_check
        %p255 = pneg %p34
      $region42: #{swin_block_forward.3} parent=39 // pred_check_branch
        %257 = sbr.rel (%p255) target = $region44
      $region43: #{swin_block_forward.3} parent=39 // pred_region
        %s258 = smul.u32 32, %s14
        %p259 = scmp.lt.s32.totalorder %s258, 63
        %s260 = scalar_select %p259, %s258, 63
        %s261 = smul.addr %s260, 8
        %s262 = scalar_lea.vmem %s0, %s261
        %s263 = smul.u32 32, %s14
      $region44: #{swin_block_forward.3} parent=39 // pred_fallthru
        _
      // Predicated region
      $region45: #{swin_block_forward.3} parent=39 // pred_check
        %p264 = pneg %p60
      $region46: #{swin_block_forward.3} parent=39 // pred_check_branch
        %266 = sbr.rel (%p264) target = $region48
      $region47: #{swin_block_forward.3} parent=39 // pred_region
        %s267 = smul.u32 32, %s14
        %p268 = scmp.lt.s32.totalorder %s267, 63
        %s269 = scalar_select %p268, %s267, 63
        %s270 = smul.addr %s269, 8
        %s271 = scalar_lea.vmem %s1, %s270
        %s272 = smul.u32 32, %s14
      $region48: #{swin_block_forward.3} parent=39 // pred_fallthru
        _
    $region40: #{swin_block_forward.3} parent=5 // pred_fallthru
      _
    %p273 = scmp.le.s32.totalorder 1, %s14
    %p274 = scmp.lt.s32.totalorder %s14, 3
    %p275 = pnand %p273, %p274
    %p276 = pneg %p275
    // Predicated region
    $region49: #{swin_block_forward.3} parent=5 // pred_check
      _
    $region50: #{swin_block_forward.3} parent=5 // pred_check_branch
      %278 = sbr.rel (%p275) target = $region52
    $region51: #{swin_block_forward.3} parent=5 // pred_region
      %s279 = ssub.s32 %s14, 1
      %s280 = smul.u32 32, %s19
      %p281 = scmp.lt.s32.totalorder %s280, 63
      %s282 = scalar_select %p281, %s280, 63
      %s283 = smul.addr %s282, 8
      %s284 = scalar_lea.vmem %s0, %s283
      %p285 = pneg %p40
      %p286 = pneg %p37
      %s287 = smul.u32 32, %s19
      %p288 = scmp.lt.s32.totalorder %s287, 63
      %s289 = scalar_select %p288, %s287, 63
      %s290 = smul.addr %s289, 8
      %s291 = scalar_lea.vmem %s1, %s290
      %p292 = pneg %p66
      %p293 = pneg %p63
      %p294 = pneg %p87
      %p295 = pneg %p84
      %p296 = pneg %p108
      %p297 = pneg %p105
      %p298 = pneg %p129
      %p299 = pneg %p126
      %p300 = pneg %p150
      %p301 = pneg %p147
      %p302 = pneg %p171
      %p303 = pneg %p168
      %p304 = pneg %p192
      %p305 = pneg %p189
      %p306 = pneg %p218
      %p307 = pneg %p215
      %s308 = smul.u32 32, %s19
      %p309 = scmp.lt.s32.totalorder %s308, 63
      %s310 = scalar_select %p309, %s308, 63
      %s311 = smul.addr %s310, 8
      %s312 = scalar_lea.vmem %s8, %s311
      %s313 = smul.u32 32, %s19
      %p314 = scmp.lt.s32.totalorder %s313, 63
      %s315 = scalar_select %p314, %s313, 63
      %s316 = smul.addr %s315, 8
      %s317 = scalar_lea.vmem %s0, %s316
      %s318 = smul.u32 32, %s19
      %s319 = smul.u32 32, %s19
      %p320 = scmp.lt.s32.totalorder %s319, 63
      %s321 = scalar_select %p320, %s319, 63
      %s322 = smul.addr %s321, 8
      %s323 = scalar_lea.vmem %s1, %s322
      %s324 = smul.u32 32, %s19
      %s325 = smul.u32 32, %s19
      %p326 = scmp.lt.s32.totalorder %s325, 63
      %s327 = scalar_select %p326, %s325, 63
      %s328 = smul.addr %s327, 8
      %s329 = scalar_lea.vmem %s8, %s328
      %s330 = smul.u32 32, %s19
      %v331 = vld [vmem:[%s317] sm:$0xff]
      %v332 = vld [vmem:[%s317 + $0x8] sm:$0xff]
      %v333 = vld [vmem:[%s317 + $0x10] sm:$0xff]
      %v334 = vld [vmem:[%s317 + $0x18] sm:$0xff]
      %v335 = vld [vmem:[%s317 + $0x20] sm:$0xff]
      %v336 = vld [vmem:[%s317 + $0x28] sm:$0xff]
      %v337 = vld [vmem:[%s317 + $0x30] sm:$0xff]
      %v338 = vld [vmem:[%s317 + $0x38] sm:$0xff]
      %v339 = vld [vmem:[%s317 + $0x40] sm:$0xff]
      %v340 = vld [vmem:[%s317 + $0x48] sm:$0xff]
      %v341 = vld [vmem:[%s317 + $0x50] sm:$0xff]
      %v342 = vld [vmem:[%s317 + $0x58] sm:$0xff]
      %v343 = vld [vmem:[%s317 + $0x60] sm:$0xff]
      %v344 = vld [vmem:[%s317 + $0x68] sm:$0xff]
      %v345 = vld [vmem:[%s317 + $0x70] sm:$0xff]
      %v346 = vld [vmem:[%s317 + $0x78] sm:$0xff]
      %v347 = vld [vmem:[%s317 + $0x80] sm:$0xff]
      %v348 = vld [vmem:[%s317 + $0x88] sm:$0xff]
      %v349 = vld [vmem:[%s317 + $0x90] sm:$0xff]
      %v350 = vld [vmem:[%s317 + $0x98] sm:$0xff]
      %v351 = vld [vmem:[%s317 + $0xa0] sm:$0xff]
      %v352 = vld [vmem:[%s317 + $0xa8] sm:$0xff]
      %v353 = vld [vmem:[%s317 + $0xb0] sm:$0xff]
      %v354 = vld [vmem:[%s317 + $0xb8] sm:$0xff]
      %v355 = vld [vmem:[%s317 + $0xc0] sm:$0xff]
      %v356 = vld [vmem:[%s317 + $0xc8] sm:$0xff]
      %v357 = vld [vmem:[%s317 + $0xd0] sm:$0xff]
      %v358 = vld [vmem:[%s317 + $0xd8] sm:$0xff]
      %v359 = vld [vmem:[%s317 + $0xe0] sm:$0xff]
      %v360 = vld [vmem:[%s317 + $0xe8] sm:$0xff]
      %v361 = vld [vmem:[%s317 + $0xf0] sm:$0xff]
      %v362 = vld [vmem:[%s317 + $0xf8] sm:$0xff]
      %v363 = vld [vmem:[%s323] sm:$0xff]
      %v364 = vld [vmem:[%s323 + $0x8] sm:$0xff]
      %v365 = vld [vmem:[%s323 + $0x10] sm:$0xff]
      %v366 = vld [vmem:[%s323 + $0x18] sm:$0xff]
      %v367 = vld [vmem:[%s323 + $0x20] sm:$0xff]
      %v368 = vld [vmem:[%s323 + $0x28] sm:$0xff]
      %v369 = vld [vmem:[%s323 + $0x30] sm:$0xff]
      %v370 = vld [vmem:[%s323 + $0x38] sm:$0xff]
      %v371 = vld [vmem:[%s323 + $0x40] sm:$0xff]
      %v372 = vld [vmem:[%s323 + $0x48] sm:$0xff]
      %v373 = vld [vmem:[%s323 + $0x50] sm:$0xff]
      %v374 = vld [vmem:[%s323 + $0x58] sm:$0xff]
      %v375 = vld [vmem:[%s323 + $0x60] sm:$0xff]
      %v376 = vld [vmem:[%s323 + $0x68] sm:$0xff]
      %v377 = vld [vmem:[%s323 + $0x70] sm:$0xff]
      %v378 = vld [vmem:[%s323 + $0x78] sm:$0xff]
      %v379 = vld [vmem:[%s323 + $0x80] sm:$0xff]
      %v380 = vld [vmem:[%s323 + $0x88] sm:$0xff]
      %v381 = vld [vmem:[%s323 + $0x90] sm:$0xff]
      %v382 = vld [vmem:[%s323 + $0x98] sm:$0xff]
      %v383 = vld [vmem:[%s323 + $0xa0] sm:$0xff]
      %v384 = vld [vmem:[%s323 + $0xa8] sm:$0xff]
      %v385 = vld [vmem:[%s323 + $0xb0] sm:$0xff]
      %v386 = vld [vmem:[%s323 + $0xb8] sm:$0xff]
      %v387 = vld [vmem:[%s323 + $0xc0] sm:$0xff]
      %v388 = vld [vmem:[%s323 + $0xc8] sm:$0xff]
      %v389 = vld [vmem:[%s323 + $0xd0] sm:$0xff]
      %v390 = vld [vmem:[%s323 + $0xd8] sm:$0xff]
      %v391 = vld [vmem:[%s323 + $0xe0] sm:$0xff]
      %v392 = vld [vmem:[%s323 + $0xe8] sm:$0xff]
      %v393 = vld [vmem:[%s323 + $0xf0] sm:$0xff]
      %v394 = vld [vmem:[%s323 + $0xf8] sm:$0xff]
      %v395 = vadd.f32 %v331, %v363
      %v396 = vadd.f32 %v332, %v364
      %v397 = vadd.f32 %v333, %v365
      %v398 = vadd.f32 %v334, %v366
      %v399 = vadd.f32 %v335, %v367
      %v400 = vadd.f32 %v336, %v368
      %v401 = vadd.f32 %v337, %v369
      %v402 = vadd.f32 %v338, %v370
      %v403 = vadd.f32 %v339, %v371
      %v404 = vadd.f32 %v340, %v372
      %v405 = vadd.f32 %v341, %v373
      %v406 = vadd.f32 %v342, %v374
      %v407 = vadd.f32 %v343, %v375
      %v408 = vadd.f32 %v344, %v376
      %v409 = vadd.f32 %v345, %v377
      %v410 = vadd.f32 %v346, %v378
      %v411 = vadd.f32 %v347, %v379
      %v412 = vadd.f32 %v348, %v380
      %v413 = vadd.f32 %v349, %v381
      %v414 = vadd.f32 %v350, %v382
      %v415 = vadd.f32 %v351, %v383
      %v416 = vadd.f32 %v352, %v384
      %v417 = vadd.f32 %v353, %v385
      %v418 = vadd.f32 %v354, %v386
      %v419 = vadd.f32 %v355, %v387
      %v420 = vadd.f32 %v356, %v388
      %v421 = vadd.f32 %v357, %v389
      %v422 = vadd.f32 %v358, %v390
      %v423 = vadd.f32 %v359, %v391
      %v424 = vadd.f32 %v360, %v392
      %v425 = vadd.f32 %v361, %v393
      %v426 = vadd.f32 %v362, %v394
      %vm427 = vcmask 261120
      %v428 = vsel %vm427, %v395, 0.0
      %429 = vadd.xlane.f32.xlu0 %v428
      %v430 = vpop.xlane.xlu0 %429
      %v431 = vsel %vm427, %v396, 0.0
      %432 = vadd.xlane.f32.xlu0 %v431
      %v433 = vpop.xlane.xlu0 %432
      %v434 = vsel %vm427, %v397, 0.0
      %435 = vadd.xlane.f32.xlu0 %v434
      %v436 = vpop.xlane.xlu0 %435
      %v437 = vsel %vm427, %v398, 0.0
      %438 = vadd.xlane.f32.xlu0 %v437
      %v439 = vpop.xlane.xlu0 %438
      %v440 = vsel %vm427, %v399, 0.0
      %441 = vadd.xlane.f32.xlu0 %v440
      %v442 = vpop.xlane.xlu0 %441
      %v443 = vsel %vm427, %v400, 0.0
      %444 = vadd.xlane.f32.xlu0 %v443
      %v445 = vpop.xlane.xlu0 %444
      %v446 = vsel %vm427, %v401, 0.0
      %447 = vadd.xlane.f32.xlu0 %v446
      %v448 = vpop.xlane.xlu0 %447
      %v449 = vsel %vm427, %v402, 0.0
      %450 = vadd.xlane.f32.xlu0 %v449
      %v451 = vpop.xlane.xlu0 %450
      %v452 = vsel %vm427, %v403, 0.0
      %453 = vadd.xlane.f32.xlu0 %v452
      %v454 = vpop.xlane.xlu0 %453
      %v455 = vsel %vm427, %v404, 0.0
      %456 = vadd.xlane.f32.xlu0 %v455
      %v457 = vpop.xlane.xlu0 %456
      %v458 = vsel %vm427, %v405, 0.0
      %459 = vadd.xlane.f32.xlu0 %v458
      %v460 = vpop.xlane.xlu0 %459
      %v461 = vsel %vm427, %v406, 0.0
      %462 = vadd.xlane.f32.xlu0 %v461
      %v463 = vpop.xlane.xlu0 %462
      %v464 = vsel %vm427, %v407, 0.0
      %465 = vadd.xlane.f32.xlu0 %v464
      %v466 = vpop.xlane.xlu0 %465
      %v467 = vsel %vm427, %v408, 0.0
      %468 = vadd.xlane.f32.xlu0 %v467
      %v469 = vpop.xlane.xlu0 %468
      %v470 = vsel %vm427, %v409, 0.0
      %471 = vadd.xlane.f32.xlu0 %v470
      %v472 = vpop.xlane.xlu0 %471
      %v473 = vsel %vm427, %v410, 0.0
      %474 = vadd.xlane.f32.xlu0 %v473
      %v475 = vpop.xlane.xlu0 %474
      %v476 = vsel %vm427, %v411, 0.0
      %477 = vadd.xlane.f32.xlu0 %v476
      %v478 = vpop.xlane.xlu0 %477
      %v479 = vsel %vm427, %v412, 0.0
      %480 = vadd.xlane.f32.xlu0 %v479
      %v481 = vpop.xlane.xlu0 %480
      %v482 = vsel %vm427, %v413, 0.0
      %483 = vadd.xlane.f32.xlu0 %v482
      %v484 = vpop.xlane.xlu0 %483
      %v485 = vsel %vm427, %v414, 0.0
      %486 = vadd.xlane.f32.xlu0 %v485
      %v487 = vpop.xlane.xlu0 %486
      %v488 = vsel %vm427, %v415, 0.0
      %489 = vadd.xlane.f32.xlu0 %v488
      %v490 = vpop.xlane.xlu0 %489
      %v491 = vsel %vm427, %v416, 0.0
      %492 = vadd.xlane.f32.xlu0 %v491
      %v493 = vpop.xlane.xlu0 %492
      %v494 = vsel %vm427, %v417, 0.0
      %495 = vadd.xlane.f32.xlu0 %v494
      %v496 = vpop.xlane.xlu0 %495
      %v497 = vsel %vm427, %v418, 0.0
      %498 = vadd.xlane.f32.xlu0 %v497
      %v499 = vpop.xlane.xlu0 %498
      %v500 = vsel %vm427, %v419, 0.0
      %501 = vadd.xlane.f32.xlu0 %v500
      %v502 = vpop.xlane.xlu0 %501
      %v503 = vsel %vm427, %v420, 0.0
      %504 = vadd.xlane.f32.xlu0 %v503
      %v505 = vpop.xlane.xlu0 %504
      %v506 = vsel %vm427, %v421, 0.0
      %507 = vadd.xlane.f32.xlu0 %v506
      %v508 = vpop.xlane.xlu0 %507
      %v509 = vsel %vm427, %v422, 0.0
      %510 = vadd.xlane.f32.xlu0 %v509
      %v511 = vpop.xlane.xlu0 %510
      %v512 = vsel %vm427, %v423, 0.0
      %513 = vadd.xlane.f32.xlu0 %v512
      %v514 = vpop.xlane.xlu0 %513
      %v515 = vsel %vm427, %v424, 0.0
      %516 = vadd.xlane.f32.xlu0 %v515
      %v517 = vpop.xlane.xlu0 %516
      %v518 = vsel %vm427, %v425, 0.0
      %519 = vadd.xlane.f32.xlu0 %v518
      %v520 = vpop.xlane.xlu0 %519
      %v521 = vsel %vm427, %v426, 0.0
      %522 = vadd.xlane.f32.xlu0 %v521
      %v523 = vpop.xlane.xlu0 %522
      %v524 = vrcp.pop 32.0
      %v525 = vmul.f32 %v430, %v524
      %v526 = vmul.f32 %v433, %v524
      %v527 = vmul.f32 %v436, %v524
      %v528 = vmul.f32 %v439, %v524
      %v529 = vmul.f32 %v442, %v524
      %v530 = vmul.f32 %v445, %v524
      %v531 = vmul.f32 %v448, %v524
      %v532 = vmul.f32 %v451, %v524
      %v533 = vmul.f32 %v454, %v524
      %v534 = vmul.f32 %v457, %v524
      %v535 = vmul.f32 %v460, %v524
      %v536 = vmul.f32 %v463, %v524
      %v537 = vmul.f32 %v466, %v524
      %v538 = vmul.f32 %v469, %v524
      %v539 = vmul.f32 %v472, %v524
      %v540 = vmul.f32 %v475, %v524
      %v541 = vmul.f32 %v478, %v524
      %v542 = vmul.f32 %v481, %v524
      %v543 = vmul.f32 %v484, %v524
      %v544 = vmul.f32 %v487, %v524
      %v545 = vmul.f32 %v490, %v524
      %v546 = vmul.f32 %v493, %v524
      %v547 = vmul.f32 %v496, %v524
      %v548 = vmul.f32 %v499, %v524
      %v549 = vmul.f32 %v502, %v524
      %v550 = vmul.f32 %v505, %v524
      %v551 = vmul.f32 %v508, %v524
      %v552 = vmul.f32 %v511, %v524
      %v553 = vmul.f32 %v514, %v524
      %v554 = vmul.f32 %v517, %v524
      %v555 = vmul.f32 %v520, %v524
      %v556 = vmul.f32 %v523, %v524
      %v557 = vsub.f32 %v395, %v525
      %v558 = vsub.f32 %v396, %v526
      %v559 = vsub.f32 %v397, %v527
      %v560 = vsub.f32 %v398, %v528
      %v561 = vsub.f32 %v399, %v529
      %v562 = vsub.f32 %v400, %v530
      %v563 = vsub.f32 %v401, %v531
      %v564 = vsub.f32 %v402, %v532
      %v565 = vsub.f32 %v403, %v533
      %v566 = vsub.f32 %v404, %v534
      %v567 = vsub.f32 %v405, %v535
      %v568 = vsub.f32 %v406, %v536
      %v569 = vsub.f32 %v407, %v537
      %v570 = vsub.f32 %v408, %v538
      %v571 = vsub.f32 %v409, %v539
      %v572 = vsub.f32 %v410, %v540
      %v573 = vsub.f32 %v411, %v541
      %v574 = vsub.f32 %v412, %v542
      %v575 = vsub.f32 %v413, %v543
      %v576 = vsub.f32 %v414, %v544
      %v577 = vsub.f32 %v415, %v545
      %v578 = vsub.f32 %v416, %v546
      %v579 = vsub.f32 %v417, %v547
      %v580 = vsub.f32 %v418, %v548
      %v581 = vsub.f32 %v419, %v549
      %v582 = vsub.f32 %v420, %v550
      %v583 = vsub.f32 %v421, %v551
      %v584 = vsub.f32 %v422, %v552
      %v585 = vsub.f32 %v423, %v553
      %v586 = vsub.f32 %v424, %v554
      %v587 = vsub.f32 %v425, %v555
      %v588 = vsub.f32 %v426, %v556
      %v589 = vmul.f32 %v557, %v557
      %v590 = vmul.f32 %v558, %v558
      %v591 = vmul.f32 %v559, %v559
      %v592 = vmul.f32 %v560, %v560
      %v593 = vmul.f32 %v561, %v561
      %v594 = vmul.f32 %v562, %v562
      %v595 = vmul.f32 %v563, %v563
      %v596 = vmul.f32 %v564, %v564
      %v597 = vmul.f32 %v565, %v565
      %v598 = vmul.f32 %v566, %v566
      %v599 = vmul.f32 %v567, %v567
      %v600 = vmul.f32 %v568, %v568
      %v601 = vmul.f32 %v569, %v569
      %v602 = vmul.f32 %v570, %v570
      %v603 = vmul.f32 %v571, %v571
      %v604 = vmul.f32 %v572, %v572
      %v605 = vmul.f32 %v573, %v573
      %v606 = vmul.f32 %v574, %v574
      %v607 = vmul.f32 %v575, %v575
      %v608 = vmul.f32 %v576, %v576
      %v609 = vmul.f32 %v577, %v577
      %v610 = vmul.f32 %v578, %v578
      %v611 = vmul.f32 %v579, %v579
      %v612 = vmul.f32 %v580, %v580
      %v613 = vmul.f32 %v581, %v581
      %v614 = vmul.f32 %v582, %v582
      %v615 = vmul.f32 %v583, %v583
      %v616 = vmul.f32 %v584, %v584
      %v617 = vmul.f32 %v585, %v585
      %v618 = vmul.f32 %v586, %v586
      %v619 = vmul.f32 %v587, %v587
      %v620 = vmul.f32 %v588, %v588
      %v621 = vsel %vm427, %v589, 0.0
      %622 = vadd.xlane.f32.xlu0 %v621
      %v623 = vpop.xlane.xlu0 %622
      %v624 = vsel %vm427, %v590, 0.0
      %625 = vadd.xlane.f32.xlu0 %v624
      %v626 = vpop.xlane.xlu0 %625
      %v627 = vsel %vm427, %v591, 0.0
      %628 = vadd.xlane.f32.xlu0 %v627
      %v629 = vpop.xlane.xlu0 %628
      %v630 = vsel %vm427, %v592, 0.0
      %631 = vadd.xlane.f32.xlu0 %v630
      %v632 = vpop.xlane.xlu0 %631
      %v633 = vsel %vm427, %v593, 0.0
      %634 = vadd.xlane.f32.xlu0 %v633
      %v635 = vpop.xlane.xlu0 %634
      %v636 = vsel %vm427, %v594, 0.0
      %637 = vadd.xlane.f32.xlu0 %v636
      %v638 = vpop.xlane.xlu0 %637
      %v639 = vsel %vm427, %v595, 0.0
      %640 = vadd.xlane.f32.xlu0 %v639
      %v641 = vpop.xlane.xlu0 %640
      %v642 = vsel %vm427, %v596, 0.0
      %643 = vadd.xlane.f32.xlu0 %v642
      %v644 = vpop.xlane.xlu0 %643
      %v645 = vsel %vm427, %v597, 0.0
      %646 = vadd.xlane.f32.xlu0 %v645
      %v647 = vpop.xlane.xlu0 %646
      %v648 = vsel %vm427, %v598, 0.0
      %649 = vadd.xlane.f32.xlu0 %v648
      %v650 = vpop.xlane.xlu0 %649
      %v651 = vsel %vm427, %v599, 0.0
      %652 = vadd.xlane.f32.xlu0 %v651
      %v653 = vpop.xlane.xlu0 %652
      %v654 = vsel %vm427, %v600, 0.0
      %655 = vadd.xlane.f32.xlu0 %v654
      %v656 = vpop.xlane.xlu0 %655
      %v657 = vsel %vm427, %v601, 0.0
      %658 = vadd.xlane.f32.xlu0 %v657
      %v659 = vpop.xlane.xlu0 %658
      %v660 = vsel %vm427, %v602, 0.0
      %661 = vadd.xlane.f32.xlu0 %v660
      %v662 = vpop.xlane.xlu0 %661
      %v663 = vsel %vm427, %v603, 0.0
      %664 = vadd.xlane.f32.xlu0 %v663
      %v665 = vpop.xlane.xlu0 %664
      %v666 = vsel %vm427, %v604, 0.0
      %667 = vadd.xlane.f32.xlu0 %v666
      %v668 = vpop.xlane.xlu0 %667
      %v669 = vsel %vm427, %v605, 0.0
      %670 = vadd.xlane.f32.xlu0 %v669
      %v671 = vpop.xlane.xlu0 %670
      %v672 = vsel %vm427, %v606, 0.0
      %673 = vadd.xlane.f32.xlu0 %v672
      %v674 = vpop.xlane.xlu0 %673
      %v675 = vsel %vm427, %v607, 0.0
      %676 = vadd.xlane.f32.xlu0 %v675
      %v677 = vpop.xlane.xlu0 %676
      %v678 = vsel %vm427, %v608, 0.0
      %679 = vadd.xlane.f32.xlu0 %v678
      %v680 = vpop.xlane.xlu0 %679
      %v681 = vsel %vm427, %v609, 0.0
      %682 = vadd.xlane.f32.xlu0 %v681
      %v683 = vpop.xlane.xlu0 %682
      %v684 = vsel %vm427, %v610, 0.0
      %685 = vadd.xlane.f32.xlu0 %v684
      %v686 = vpop.xlane.xlu0 %685
      %v687 = vsel %vm427, %v611, 0.0
      %688 = vadd.xlane.f32.xlu0 %v687
      %v689 = vpop.xlane.xlu0 %688
      %v690 = vsel %vm427, %v612, 0.0
      %691 = vadd.xlane.f32.xlu0 %v690
      %v692 = vpop.xlane.xlu0 %691
      %v693 = vsel %vm427, %v613, 0.0
      %694 = vadd.xlane.f32.xlu0 %v693
      %v695 = vpop.xlane.xlu0 %694
      %v696 = vsel %vm427, %v614, 0.0
      %697 = vadd.xlane.f32.xlu0 %v696
      %v698 = vpop.xlane.xlu0 %697
      %v699 = vsel %vm427, %v615, 0.0
      %700 = vadd.xlane.f32.xlu0 %v699
      %v701 = vpop.xlane.xlu0 %700
      %v702 = vsel %vm427, %v616, 0.0
      %703 = vadd.xlane.f32.xlu0 %v702
      %v704 = vpop.xlane.xlu0 %703
      %v705 = vsel %vm427, %v617, 0.0
      %706 = vadd.xlane.f32.xlu0 %v705
      %v707 = vpop.xlane.xlu0 %706
      %v708 = vsel %vm427, %v618, 0.0
      %709 = vadd.xlane.f32.xlu0 %v708
      %v710 = vpop.xlane.xlu0 %709
      %v711 = vsel %vm427, %v619, 0.0
      %712 = vadd.xlane.f32.xlu0 %v711
      %v713 = vpop.xlane.xlu0 %712
      %v714 = vsel %vm427, %v620, 0.0
      %715 = vadd.xlane.f32.xlu0 %v714
      %v716 = vpop.xlane.xlu0 %715
      %v717 = vmul.f32 %v623, %v524
      %v718 = vmul.f32 %v626, %v524
      %v719 = vmul.f32 %v629, %v524
      %v720 = vmul.f32 %v632, %v524
      %v721 = vmul.f32 %v635, %v524
      %v722 = vmul.f32 %v638, %v524
      %v723 = vmul.f32 %v641, %v524
      %v724 = vmul.f32 %v644, %v524
      %v725 = vmul.f32 %v647, %v524
      %v726 = vmul.f32 %v650, %v524
      %v727 = vmul.f32 %v653, %v524
      %v728 = vmul.f32 %v656, %v524
      %v729 = vmul.f32 %v659, %v524
      %v730 = vmul.f32 %v662, %v524
      %v731 = vmul.f32 %v665, %v524
      %v732 = vmul.f32 %v668, %v524
      %v733 = vmul.f32 %v671, %v524
      %v734 = vmul.f32 %v674, %v524
      %v735 = vmul.f32 %v677, %v524
      %v736 = vmul.f32 %v680, %v524
      %v737 = vmul.f32 %v683, %v524
      %v738 = vmul.f32 %v686, %v524
      %v739 = vmul.f32 %v689, %v524
      %v740 = vmul.f32 %v692, %v524
      %v741 = vmul.f32 %v695, %v524
      %v742 = vmul.f32 %v698, %v524
      %v743 = vmul.f32 %v701, %v524
      %v744 = vmul.f32 %v704, %v524
      %v745 = vmul.f32 %v707, %v524
      %v746 = vmul.f32 %v710, %v524
      %v747 = vmul.f32 %v713, %v524
      %v748 = vmul.f32 %v716, %v524
      %v749 = vadd.f32 %v717, 1e-05
      %v750 = vadd.f32 %v718, 1e-05
      %v751 = vadd.f32 %v719, 1e-05
      %v752 = vadd.f32 %v720, 1e-05
      %v753 = vadd.f32 %v721, 1e-05
      %v754 = vadd.f32 %v722, 1e-05
      %v755 = vadd.f32 %v723, 1e-05
      %v756 = vadd.f32 %v724, 1e-05
      %v757 = vadd.f32 %v725, 1e-05
      %v758 = vadd.f32 %v726, 1e-05
      %v759 = vadd.f32 %v727, 1e-05
      %v760 = vadd.f32 %v728, 1e-05
      %v761 = vadd.f32 %v729, 1e-05
      %v762 = vadd.f32 %v730, 1e-05
      %v763 = vadd.f32 %v731, 1e-05
      %v764 = vadd.f32 %v732, 1e-05
      %v765 = vadd.f32 %v733, 1e-05
      %v766 = vadd.f32 %v734, 1e-05
      %v767 = vadd.f32 %v735, 1e-05
      %v768 = vadd.f32 %v736, 1e-05
      %v769 = vadd.f32 %v737, 1e-05
      %v770 = vadd.f32 %v738, 1e-05
      %v771 = vadd.f32 %v739, 1e-05
      %v772 = vadd.f32 %v740, 1e-05
      %v773 = vadd.f32 %v741, 1e-05
      %v774 = vadd.f32 %v742, 1e-05
      %v775 = vadd.f32 %v743, 1e-05
      %v776 = vadd.f32 %v744, 1e-05
      %v777 = vadd.f32 %v745, 1e-05
      %v778 = vadd.f32 %v746, 1e-05
      %v779 = vadd.f32 %v747, 1e-05
      %v780 = vadd.f32 %v748, 1e-05
      %v781 = vrsqrt.pop %v749
      %v782 = vrsqrt.pop %v750
      %v783 = vrsqrt.pop %v751
      %v784 = vrsqrt.pop %v752
      %v785 = vrsqrt.pop %v753
      %v786 = vrsqrt.pop %v754
      %v787 = vrsqrt.pop %v755
      %v788 = vrsqrt.pop %v756
      %v789 = vrsqrt.pop %v757
      %v790 = vrsqrt.pop %v758
      %v791 = vrsqrt.pop %v759
      %v792 = vrsqrt.pop %v760
      %v793 = vrsqrt.pop %v761
      %v794 = vrsqrt.pop %v762
      %v795 = vrsqrt.pop %v763
      %v796 = vrsqrt.pop %v764
      %v797 = vrsqrt.pop %v765
      %v798 = vrsqrt.pop %v766
      %v799 = vrsqrt.pop %v767
      %v800 = vrsqrt.pop %v768
      %v801 = vrsqrt.pop %v769
      %v802 = vrsqrt.pop %v770
      %v803 = vrsqrt.pop %v771
      %v804 = vrsqrt.pop %v772
      %v805 = vrsqrt.pop %v773
      %v806 = vrsqrt.pop %v774
      %v807 = vrsqrt.pop %v775
      %v808 = vrsqrt.pop %v776
      %v809 = vrsqrt.pop %v777
      %v810 = vrsqrt.pop %v778
      %v811 = vrsqrt.pop %v779
      %v812 = vrsqrt.pop %v780
      %v813 = vmul.f32 %v557, %v781
      %v814 = vmul.f32 %v558, %v782
      %v815 = vmul.f32 %v559, %v783
      %v816 = vmul.f32 %v560, %v784
      %v817 = vmul.f32 %v561, %v785
      %v818 = vmul.f32 %v562, %v786
      %v819 = vmul.f32 %v563, %v787
      %v820 = vmul.f32 %v564, %v788
      %v821 = vmul.f32 %v565, %v789
      %v822 = vmul.f32 %v566, %v790
      %v823 = vmul.f32 %v567, %v791
      %v824 = vmul.f32 %v568, %v792
      %v825 = vmul.f32 %v569, %v793
      %v826 = vmul.f32 %v570, %v794
      %v827 = vmul.f32 %v571, %v795
      %v828 = vmul.f32 %v572, %v796
      %v829 = vmul.f32 %v573, %v797
      %v830 = vmul.f32 %v574, %v798
      %v831 = vmul.f32 %v575, %v799
      %v832 = vmul.f32 %v576, %v800
      %v833 = vmul.f32 %v577, %v801
      %v834 = vmul.f32 %v578, %v802
      %v835 = vmul.f32 %v579, %v803
      %v836 = vmul.f32 %v580, %v804
      %v837 = vmul.f32 %v581, %v805
      %v838 = vmul.f32 %v582, %v806
      %v839 = vmul.f32 %v583, %v807
      %v840 = vmul.f32 %v584, %v808
      %v841 = vmul.f32 %v585, %v809
      %v842 = vmul.f32 %v586, %v810
      %v843 = vmul.f32 %v587, %v811
      %v844 = vmul.f32 %v588, %v812
      %v845 = vld [vmem:[%s2] sm:$0x1]
      %v847 = vlaneseq
      %v848 = vshrl.u32 %v847, 7
      %v849 = vsub.s32 0, %v848
      %v850 = vrot.slane %v845, %v849
      %v852 = vmul.f32 %v813, %v850
      %v853 = vmul.f32 %v814, %v850
      %v854 = vmul.f32 %v815, %v850
      %v855 = vmul.f32 %v816, %v850
      %v856 = vmul.f32 %v817, %v850
      %v857 = vmul.f32 %v818, %v850
      %v858 = vmul.f32 %v819, %v850
      %v859 = vmul.f32 %v820, %v850
      %v860 = vmul.f32 %v821, %v850
      %v861 = vmul.f32 %v822, %v850
      %v862 = vmul.f32 %v823, %v850
      %v863 = vmul.f32 %v824, %v850
      %v864 = vmul.f32 %v825, %v850
      %v865 = vmul.f32 %v826, %v850
      %v866 = vmul.f32 %v827, %v850
      %v867 = vmul.f32 %v828, %v850
      %v868 = vmul.f32 %v829, %v850
      %v869 = vmul.f32 %v830, %v850
      %v870 = vmul.f32 %v831, %v850
      %v871 = vmul.f32 %v832, %v850
      %v872 = vmul.f32 %v833, %v850
      %v873 = vmul.f32 %v834, %v850
      %v874 = vmul.f32 %v835, %v850
      %v875 = vmul.f32 %v836, %v850
      %v876 = vmul.f32 %v837, %v850
      %v877 = vmul.f32 %v838, %v850
      %v878 = vmul.f32 %v839, %v850
      %v879 = vmul.f32 %v840, %v850
      %v880 = vmul.f32 %v841, %v850
      %v881 = vmul.f32 %v842, %v850
      %v882 = vmul.f32 %v843, %v850
      %v883 = vmul.f32 %v844, %v850
      %v884 = vld [vmem:[%s3] sm:$0x1]
      %v886 = vlaneseq
      %v887 = vshrl.u32 %v886, 7
      %v888 = vsub.s32 0, %v887
      %v889 = vrot.slane %v884, %v888
      %v891 = vadd.f32 %v852, %v889
      %v892 = vadd.f32 %v853, %v889
      %v893 = vadd.f32 %v854, %v889
      %v894 = vadd.f32 %v855, %v889
      %v895 = vadd.f32 %v856, %v889
      %v896 = vadd.f32 %v857, %v889
      %v897 = vadd.f32 %v858, %v889
      %v898 = vadd.f32 %v859, %v889
      %v899 = vadd.f32 %v860, %v889
      %v900 = vadd.f32 %v861, %v889
      %v901 = vadd.f32 %v862, %v889
      %v902 = vadd.f32 %v863, %v889
      %v903 = vadd.f32 %v864, %v889
      %v904 = vadd.f32 %v865, %v889
      %v905 = vadd.f32 %v866, %v889
      %v906 = vadd.f32 %v867, %v889
      %v907 = vadd.f32 %v868, %v889
      %v908 = vadd.f32 %v869, %v889
      %v909 = vadd.f32 %v870, %v889
      %v910 = vadd.f32 %v871, %v889
      %v911 = vadd.f32 %v872, %v889
      %v912 = vadd.f32 %v873, %v889
      %v913 = vadd.f32 %v874, %v889
      %v914 = vadd.f32 %v875, %v889
      %v915 = vadd.f32 %v876, %v889
      %v916 = vadd.f32 %v877, %v889
      %v917 = vadd.f32 %v878, %v889
      %v918 = vadd.f32 %v879, %v889
      %v919 = vadd.f32 %v880, %v889
      %v920 = vadd.f32 %v881, %v889
      %v921 = vadd.f32 %v882, %v889
      %v922 = vadd.f32 %v883, %v889
      %v923 = vld [vmem:[%s4] sm:$0xff]
      %v924 = vld [vmem:[%s4 + $0x8] sm:$0xff]
      %v925 = vld [vmem:[%s4 + $0x10] sm:$0xff]
      %v926 = vld [vmem:[%s4 + $0x18] sm:$0xff]
      %v927 = vld [vmem:[%s5] sm:$0x1]
      %v929 = vlaneseq
      %v930 = vshrl.u32 %v929, 7
      %v931 = vsub.s32 0, %v930
      %v932 = vrot.slane %v927, %v931
      %v935 = vsel %vm427, %v891, 0
      %v938 = vsel %vm427, %v892, 0
      %v941 = vsel %vm427, %v893, 0
      %v944 = vsel %vm427, %v894, 0
      %v947 = vsel %vm427, %v895, 0
      %v950 = vsel %vm427, %v896, 0
      %v953 = vsel %vm427, %v897, 0
      %v956 = vsel %vm427, %v898, 0
      %v959 = vsel %vm427, %v899, 0
      %v962 = vsel %vm427, %v900, 0
      %v965 = vsel %vm427, %v901, 0
      %v968 = vsel %vm427, %v902, 0
      %v971 = vsel %vm427, %v903, 0
      %v974 = vsel %vm427, %v904, 0
      %v977 = vsel %vm427, %v905, 0
      %v980 = vsel %vm427, %v906, 0
      %v983 = vsel %vm427, %v907, 0
      %v986 = vsel %vm427, %v908, 0
      %v989 = vsel %vm427, %v909, 0
      %v992 = vsel %vm427, %v910, 0
      %v995 = vsel %vm427, %v911, 0
      %v998 = vsel %vm427, %v912, 0
      %v1001 = vsel %vm427, %v913, 0
      %v1004 = vsel %vm427, %v914, 0
      %v1007 = vsel %vm427, %v915, 0
      %v1010 = vsel %vm427, %v916, 0
      %v1013 = vsel %vm427, %v917, 0
      %v1016 = vsel %vm427, %v918, 0
      %v1019 = vsel %vm427, %v919, 0
      %v1022 = vsel %vm427, %v920, 0
      %v1025 = vsel %vm427, %v921, 0
      %v1028 = vsel %vm427, %v922, 0
      %1030 = vmatprep.subr.mxu0 0.0
      %1031 = vmatpush1.msra.mxu0 %v923
      %1032 = vmatprep.subr.mxu0 0.0
      %1033 = vmatpush1.msra.mxu0 %v924
      %1034 = vmatprep.subr.mxu0 0.0
      %1035 = vmatpush1.msra.mxu0 %v925
      %1036 = vmatprep.subr.mxu0 0.0
      %1037 = vmatpush1.msra.mxu0 %v926
      %1038 = vmatprep.subr.mxu0 0.0
      %1039 = vmatpush1.msra.mxu0 0.0
      %1040 = vmatprep.subr.mxu0 0.0
      %1041 = vmatpush1.msra.mxu0 0.0
      %1042 = vmatprep.subr.mxu0 0.0
      %1043 = vmatpush1.msra.mxu0 0.0
      %1044 = vmatprep.subr.mxu0 0.0
      %1045 = vmatpush1.msra.mxu0 0.0
      %1046 = vmatprep.subr.mxu0 0.0
      %1047 = vmatpush1.msra.mxu0 0.0
      %1048 = vmatprep.subr.mxu0 0.0
      %1049 = vmatpush1.msra.mxu0 0.0
      %1050 = vmatprep.subr.mxu0 0.0
      %1051 = vmatpush1.msra.mxu0 0.0
      %1052 = vmatprep.subr.mxu0 0.0
      %1053 = vmatpush1.msra.mxu0 0.0
      %1054 = vmatprep.subr.mxu0 0.0
      %1055 = vmatpush1.msra.mxu0 0.0
      %1056 = vmatprep.subr.mxu0 0.0
      %1057 = vmatpush1.msra.mxu0 0.0
      %1058 = vmatprep.subr.mxu0 0.0
      %1059 = vmatpush1.msra.mxu0 0.0
      %1060 = vmatprep.subr.mxu0 0.0
      %1061 = vmatpush1.msra.mxu0 0.0
      %1062 = vmatprep.subr.mxu0 0.0
      %1063 = vmatpush1.msra.mxu0 0.0
      %1064 = vmatprep.subr.mxu0 0.0
      %1065 = vmatpush1.msra.mxu0 0.0
      %1066 = vmatprep.subr.mxu0 0.0
      %1067 = vmatpush1.msra.mxu0 0.0
      %1068 = vmatprep.subr.mxu0 0.0
      %1069 = vmatpush1.msra.mxu0 0.0
      %1070 = vmatprep.subr.mxu0 0.0
      %1071 = vmatpush1.msra.mxu0 0.0
      %1072 = vmatprep.subr.mxu0 0.0
      %1073 = vmatpush1.msra.mxu0 0.0
      %1074 = vmatprep.subr.mxu0 0.0
      %1075 = vmatpush1.msra.mxu0 0.0
      %1076 = vmatprep.subr.mxu0 0.0
      %1077 = vmatpush1.msra.mxu0 0.0
      %1078 = vmatprep.subr.mxu0 0.0
      %1079 = vmatpush1.msra.mxu0 0.0
      %1080 = vmatprep.subr.mxu0 0.0
      %1081 = vmatpush1.msra.mxu0 0.0
      %1082 = vmatprep.subr.mxu0 0.0
      %1083 = vmatpush1.msra.mxu0 0.0
      %1084 = vmatprep.subr.mxu0 0.0
      %1085 = vmatpush1.msra.mxu0 0.0
      %1086 = vmatprep.subr.mxu0 0.0
      %1087 = vmatpush1.msra.mxu0 0.0
      %1088 = vmatprep.subr.mxu0 0.0
      %1089 = vmatpush1.msra.mxu0 0.0
      %1090 = vmatprep.subr.mxu0 0.0
      %1091 = vmatpush1.msra.mxu0 0.0
      %1092 = vmatprep.subr.mxu0 0.0
      %1093 = vmatpush1.msra.mxu0 0.0
      %1094 = vmatprep.mubr.f32.mxu0 0.0
      %1095 = vmatmul.mubr.f32.gmra.mrb[0].mxu0 %v935
      %v1096 = vpop.f32.mrb[0].mxu0
      %v1097 = vadd.f32 %v932, %v1096
      %v1098 = vpop.f32.mrb[0].mxu0
      %1099 = vmatprep.mubr.f32.mxu0 0.0
      %1100 = vmatmul.mubr.f32.gmra.mrb[0].mxu0 %v938
      %v1101 = vpop.f32.mrb[0].mxu0
      %v1102 = vadd.f32 %v932, %v1101
      %v1103 = vpop.f32.mrb[0].mxu0
      %1104 = vmatprep.mubr.f32.mxu0 0.0
      %1105 = vmatmul.mubr.f32.gmra.mrb[0].mxu0 %v941
      %v1106 = vpop.f32.mrb[0].mxu0
      %v1107 = vadd.f32 %v932, %v1106
      %v1108 = vpop.f32.mrb[0].mxu0
      %1109 = vmatprep.mubr.f32.mxu0 0.0
      %1110 = vmatmul.mubr.f32.gmra.mrb[0].mxu0 %v944
      %v1111 = vpop.f32.mrb[0].mxu0
      %v1112 = vadd.f32 %v932, %v1111
      %v1113 = vpop.f32.mrb[0].mxu0
      %1114 = vmatprep.mubr.f32.mxu0 0.0
      %1115 = vmatmul.mubr.f32.gmra.mrb[0].mxu0 %v947
      %v1116 = vpop.f32.mrb[0].mxu0
      %v1117 = vadd.f32 %v932, %v1116
      %v1118 = vpop.f32.mrb[0].mxu0
      %1119 = vmatprep.mubr.f32.mxu0 0.0
      %1120 = vmatmul.mubr.f32.gmra.mrb[0].mxu0 %v950
      %v1121 = vpop.f32.mrb[0].mxu0
      %v1122 = vadd.f32 %v932, %v1121
      %v1123 = vpop.f32.mrb[0].mxu0
      %1124 = vmatprep.mubr.f32.mxu0 0.0
      %1125 = vmatmul.mubr.f32.gmra.mrb[0].mxu0 %v953
      %v1126 = vpop.f32.mrb[0].mxu0
      %v1127 = vadd.f32 %v932, %v1126
      %v1128 = vpop.f32.mrb[0].mxu0
      %1129 = vmatprep.mubr.f32.mxu0 0.0
      %1130 = vmatmul.mubr.f32.gmra.mrb[0].mxu0 %v956
      %v1131 = vpop.f32.mrb[0].mxu0
      %v1132 = vadd.f32 %v932, %v1131
      %v1133 = vpop.f32.mrb[0].mxu0
      %1134 = vmatprep.mubr.f32.mxu0 0.0
      %1135 = vmatmul.mubr.f32.gmra.mrb[0].mxu0 %v959
      %v1136 = vpop.f32.mrb[0].mxu0
      %v1137 = vadd.f32 %v932, %v1136
      %v1138 = vpop.f32.mrb[0].mxu0
      %1139 = vmatprep.mubr.f32.mxu0 0.0
      %1140 = vmatmul.mubr.f32.gmra.mrb[0].mxu0 %v962
      %v1141 = vpop.f32.mrb[0].mxu0
      %v1142 = vadd.f32 %v932, %v1141
      %v1143 = vpop.f32.mrb[0].mxu0
      %1144 = vmatprep.mubr.f32.mxu0 0.0
      %1145 = vmatmul.mubr.f32.gmra.mrb[0].mxu0 %v965
      %v1146 = vpop.f32.mrb[0].mxu0
      %v1147 = vadd.f32 %v932, %v1146
      %v1148 = vpop.f32.mrb[0].mxu0
      %1149 = vmatprep.mubr.f32.mxu0 0.0
      %1150 = vmatmul.mubr.f32.gmra.mrb[0].mxu0 %v968
      %v1151 = vpop.f32.mrb[0].mxu0
      %v1152 = vadd.f32 %v932, %v1151
      %v1153 = vpop.f32.mrb[0].mxu0
      %1154 = vmatprep.mubr.f32.mxu0 0.0
      %1155 = vmatmul.mubr.f32.gmra.mrb[0].mxu0 %v971
      %v1156 = vpop.f32.mrb[0].mxu0
      %v1157 = vadd.f32 %v932, %v1156
      %v1158 = vpop.f32.mrb[0].mxu0
      %1159 = vmatprep.mubr.f32.mxu0 0.0
      %1160 = vmatmul.mubr.f32.gmra.mrb[0].mxu0 %v974
      %v1161 = vpop.f32.mrb[0].mxu0
      %v1162 = vadd.f32 %v932, %v1161
      %v1163 = vpop.f32.mrb[0].mxu0
      %1164 = vmatprep.mubr.f32.mxu0 0.0
      %1165 = vmatmul.mubr.f32.gmra.mrb[0].mxu0 %v977
      %v1166 = vpop.f32.mrb[0].mxu0
      %v1167 = vadd.f32 %v932, %v1166
      %v1168 = vpop.f32.mrb[0].mxu0
      %1169 = vmatprep.mubr.f32.mxu0 0.0
      %1170 = vmatmul.mubr.f32.gmra.mrb[0].mxu0 %v980
      %v1171 = vpop.f32.mrb[0].mxu0
      %v1172 = vadd.f32 %v932, %v1171
      %v1173 = vpop.f32.mrb[0].mxu0
      %1174 = vmatprep.mubr.f32.mxu0 0.0
      %1175 = vmatmul.mubr.f32.gmra.mrb[0].mxu0 %v983
      %v1176 = vpop.f32.mrb[0].mxu0
      %v1177 = vadd.f32 %v932, %v1176
      %v1178 = vpop.f32.mrb[0].mxu0
      %1179 = vmatprep.mubr.f32.mxu0 0.0
      %1180 = vmatmul.mubr.f32.gmra.mrb[0].mxu0 %v986
      %v1181 = vpop.f32.mrb[0].mxu0
      %v1182 = vadd.f32 %v932, %v1181
      %v1183 = vpop.f32.mrb[0].mxu0
      %1184 = vmatprep.mubr.f32.mxu0 0.0
      %1185 = vmatmul.mubr.f32.gmra.mrb[0].mxu0 %v989
      %v1186 = vpop.f32.mrb[0].mxu0
      %v1187 = vadd.f32 %v932, %v1186
      %v1188 = vpop.f32.mrb[0].mxu0
      %1189 = vmatprep.mubr.f32.mxu0 0.0
      %1190 = vmatmul.mubr.f32.gmra.mrb[0].mxu0 %v992
      %v1191 = vpop.f32.mrb[0].mxu0
      %v1192 = vadd.f32 %v932, %v1191
      %v1193 = vpop.f32.mrb[0].mxu0
      %1194 = vmatprep.mubr.f32.mxu0 0.0
      %1195 = vmatmul.mubr.f32.gmra.mrb[0].mxu0 %v995
      %v1196 = vpop.f32.mrb[0].mxu0
      %v1197 = vadd.f32 %v932, %v1196
      %v1198 = vpop.f32.mrb[0].mxu0
      %1199 = vmatprep.mubr.f32.mxu0 0.0
      %1200 = vmatmul.mubr.f32.gmra.mrb[0].mxu0 %v998
      %v1201 = vpop.f32.mrb[0].mxu0
      %v1202 = vadd.f32 %v932, %v1201
      %v1203 = vpop.f32.mrb[0].mxu0
      %1204 = vmatprep.mubr.f32.mxu0 0.0
      %1205 = vmatmul.mubr.f32.gmra.mrb[0].mxu0 %v1001
      %v1206 = vpop.f32.mrb[0].mxu0
      %v1207 = vadd.f32 %v932, %v1206
      %v1208 = vpop.f32.mrb[0].mxu0
      %1209 = vmatprep.mubr.f32.mxu0 0.0
      %1210 = vmatmul.mubr.f32.gmra.mrb[0].mxu0 %v1004
      %v1211 = vpop.f32.mrb[0].mxu0
      %v1212 = vadd.f32 %v932, %v1211
      %v1213 = vpop.f32.mrb[0].mxu0
      %1214 = vmatprep.mubr.f32.mxu0 0.0
      %1215 = vmatmul.mubr.f32.gmra.mrb[0].mxu0 %v1007
      %v1216 = vpop.f32.mrb[0].mxu0
      %v1217 = vadd.f32 %v932, %v1216
      %v1218 = vpop.f32.mrb[0].mxu0
      %1219 = vmatprep.mubr.f32.mxu0 0.0
      %1220 = vmatmul.mubr.f32.gmra.mrb[0].mxu0 %v1010
      %v1221 = vpop.f32.mrb[0].mxu0
      %v1222 = vadd.f32 %v932, %v1221
      %v1223 = vpop.f32.mrb[0].mxu0
      %1224 = vmatprep.mubr.f32.mxu0 0.0
      %1225 = vmatmul.mubr.f32.gmra.mrb[0].mxu0 %v1013
      %v1226 = vpop.f32.mrb[0].mxu0
      %v1227 = vadd.f32 %v932, %v1226
      %v1228 = vpop.f32.mrb[0].mxu0
      %1229 = vmatprep.mubr.f32.mxu0 0.0
      %1230 = vmatmul.mubr.f32.gmra.mrb[0].mxu0 %v1016
      %v1231 = vpop.f32.mrb[0].mxu0
      %v1232 = vadd.f32 %v932, %v1231
      %v1233 = vpop.f32.mrb[0].mxu0
      %1234 = vmatprep.mubr.f32.mxu0 0.0
      %1235 = vmatmul.mubr.f32.gmra.mrb[0].mxu0 %v1019
      %v1236 = vpop.f32.mrb[0].mxu0
      %v1237 = vadd.f32 %v932, %v1236
      %v1238 = vpop.f32.mrb[0].mxu0
      %1239 = vmatprep.mubr.f32.mxu0 0.0
      %1240 = vmatmul.mubr.f32.gmra.mrb[0].mxu0 %v1022
      %v1241 = vpop.f32.mrb[0].mxu0
      %v1242 = vadd.f32 %v932, %v1241
      %v1243 = vpop.f32.mrb[0].mxu0
      %1244 = vmatprep.mubr.f32.mxu0 0.0
      %1245 = vmatmul.mubr.f32.gmra.mrb[0].mxu0 %v1025
      %v1246 = vpop.f32.mrb[0].mxu0
      %v1247 = vadd.f32 %v932, %v1246
      %v1248 = vpop.f32.mrb[0].mxu0
      %1249 = vmatprep.mubr.f32.mxu0 0.0
      %1250 = vmatmul.mubr.f32.gmra.mrb[0].mxu0 %v1028
      %v1251 = vpop.f32.mrb[0].mxu0
      %v1252 = vadd.f32 %v932, %v1251
      %v1253 = vpop.f32.mrb[0].mxu0
      %1254 = vdwg.mxu0
      %v1255 = vmul.f32 %v1097, 0.5
      %v1256 = vmul.f32 %v1102, 0.5
      %v1257 = vmul.f32 %v1107, 0.5
      %v1258 = vmul.f32 %v1112, 0.5
      %v1259 = vmul.f32 %v1117, 0.5
      %v1260 = vmul.f32 %v1122, 0.5
      %v1261 = vmul.f32 %v1127, 0.5
      %v1262 = vmul.f32 %v1132, 0.5
      %v1263 = vmul.f32 %v1137, 0.5
      %v1264 = vmul.f32 %v1142, 0.5
      %v1265 = vmul.f32 %v1147, 0.5
      %v1266 = vmul.f32 %v1152, 0.5
      %v1267 = vmul.f32 %v1157, 0.5
      %v1268 = vmul.f32 %v1162, 0.5
      %v1269 = vmul.f32 %v1167, 0.5
      %v1270 = vmul.f32 %v1172, 0.5
      %v1271 = vmul.f32 %v1177, 0.5
      %v1272 = vmul.f32 %v1182, 0.5
      %v1273 = vmul.f32 %v1187, 0.5
      %v1274 = vmul.f32 %v1192, 0.5
      %v1275 = vmul.f32 %v1197, 0.5
      %v1276 = vmul.f32 %v1202, 0.5
      %v1277 = vmul.f32 %v1207, 0.5
      %v1278 = vmul.f32 %v1212, 0.5
      %v1279 = vmul.f32 %v1217, 0.5
      %v1280 = vmul.f32 %v1222, 0.5
      %v1281 = vmul.f32 %v1227, 0.5
      %v1282 = vmul.f32 %v1232, 0.5
      %v1283 = vmul.f32 %v1237, 0.5
      %v1284 = vmul.f32 %v1242, 0.5
      %v1285 = vmul.f32 %v1247, 0.5
      %v1286 = vmul.f32 %v1252, 0.5
      %v1287 = vmul.f32 %v1097, 0.044715
      %v1288 = vmul.f32 %v1102, 0.044715
      %v1289 = vmul.f32 %v1107, 0.044715
      %v1290 = vmul.f32 %v1112, 0.044715
      %v1291 = vmul.f32 %v1117, 0.044715
      %v1292 = vmul.f32 %v1122, 0.044715
      %v1293 = vmul.f32 %v1127, 0.044715
      %v1294 = vmul.f32 %v1132, 0.044715
      %v1295 = vmul.f32 %v1137, 0.044715
      %v1296 = vmul.f32 %v1142, 0.044715
      %v1297 = vmul.f32 %v1147, 0.044715
      %v1298 = vmul.f32 %v1152, 0.044715
      %v1299 = vmul.f32 %v1157, 0.044715
      %v1300 = vmul.f32 %v1162, 0.044715
      %v1301 = vmul.f32 %v1167, 0.044715
      %v1302 = vmul.f32 %v1172, 0.044715
      %v1303 = vmul.f32 %v1177, 0.044715
      %v1304 = vmul.f32 %v1182, 0.044715
      %v1305 = vmul.f32 %v1187, 0.044715
      %v1306 = vmul.f32 %v1192, 0.044715
      %v1307 = vmul.f32 %v1197, 0.044715
      %v1308 = vmul.f32 %v1202, 0.044715
      %v1309 = vmul.f32 %v1207, 0.044715
      %v1310 = vmul.f32 %v1212, 0.044715
      %v1311 = vmul.f32 %v1217, 0.044715
      %v1312 = vmul.f32 %v1222, 0.044715
      %v1313 = vmul.f32 %v1227, 0.044715
      %v1314 = vmul.f32 %v1232, 0.044715
      %v1315 = vmul.f32 %v1237, 0.044715
      %v1316 = vmul.f32 %v1242, 0.044715
      %v1317 = vmul.f32 %v1247, 0.044715
      %v1318 = vmul.f32 %v1252, 0.044715
      %v1319 = vmul.f32 %v1287, %v1097
      %v1320 = vmul.f32 %v1288, %v1102
      %v1321 = vmul.f32 %v1289, %v1107
      %v1322 = vmul.f32 %v1290, %v1112
      %v1323 = vmul.f32 %v1291, %v1117
      %v1324 = vmul.f32 %v1292, %v1122
      %v1325 = vmul.f32 %v1293, %v1127
      %v1326 = vmul.f32 %v1294, %v1132
      %v1327 = vmul.f32 %v1295, %v1137
      %v1328 = vmul.f32 %v1296, %v1142
      %v1329 = vmul.f32 %v1297, %v1147
      %v1330 = vmul.f32 %v1298, %v1152
      %v1331 = vmul.f32 %v1299, %v1157
      %v1332 = vmul.f32 %v1300, %v1162
      %v1333 = vmul.f32 %v1301, %v1167
      %v1334 = vmul.f32 %v1302, %v1172
      %v1335 = vmul.f32 %v1303, %v1177
      %v1336 = vmul.f32 %v1304, %v1182
      %v1337 = vmul.f32 %v1305, %v1187
      %v1338 = vmul.f32 %v1306, %v1192
      %v1339 = vmul.f32 %v1307, %v1197
      %v1340 = vmul.f32 %v1308, %v1202
      %v1341 = vmul.f32 %v1309, %v1207
      %v1342 = vmul.f32 %v1310, %v1212
      %v1343 = vmul.f32 %v1311, %v1217
      %v1344 = vmul.f32 %v1312, %v1222
      %v1345 = vmul.f32 %v1313, %v1227
      %v1346 = vmul.f32 %v1314, %v1232
      %v1347 = vmul.f32 %v1315, %v1237
      %v1348 = vmul.f32 %v1316, %v1242
      %v1349 = vmul.f32 %v1317, %v1247
      %v1350 = vmul.f32 %v1318, %v1252
      %v1351 = vmul.f32 %v1319, %v1097
      %v1352 = vmul.f32 %v1320, %v1102
      %v1353 = vmul.f32 %v1321, %v1107
      %v1354 = vmul.f32 %v1322, %v1112
      %v1355 = vmul.f32 %v1323, %v1117
      %v1356 = vmul.f32 %v1324, %v1122
      %v1357 = vmul.f32 %v1325, %v1127
      %v1358 = vmul.f32 %v1326, %v1132
      %v1359 = vmul.f32 %v1327, %v1137
      %v1360 = vmul.f32 %v1328, %v1142
      %v1361 = vmul.f32 %v1329, %v1147
      %v1362 = vmul.f32 %v1330, %v1152
      %v1363 = vmul.f32 %v1331, %v1157
      %v1364 = vmul.f32 %v1332, %v1162
      %v1365 = vmul.f32 %v1333, %v1167
      %v1366 = vmul.f32 %v1334, %v1172
      %v1367 = vmul.f32 %v1335, %v1177
      %v1368 = vmul.f32 %v1336, %v1182
      %v1369 = vmul.f32 %v1337, %v1187
      %v1370 = vmul.f32 %v1338, %v1192
      %v1371 = vmul.f32 %v1339, %v1197
      %v1372 = vmul.f32 %v1340, %v1202
      %v1373 = vmul.f32 %v1341, %v1207
      %v1374 = vmul.f32 %v1342, %v1212
      %v1375 = vmul.f32 %v1343, %v1217
      %v1376 = vmul.f32 %v1344, %v1222
      %v1377 = vmul.f32 %v1345, %v1227
      %v1378 = vmul.f32 %v1346, %v1232
      %v1379 = vmul.f32 %v1347, %v1237
      %v1380 = vmul.f32 %v1348, %v1242
      %v1381 = vmul.f32 %v1349, %v1247
      %v1382 = vmul.f32 %v1350, %v1252
      %v1383 = vadd.f32 %v1097, %v1351
      %v1384 = vadd.f32 %v1102, %v1352
      %v1385 = vadd.f32 %v1107, %v1353
      %v1386 = vadd.f32 %v1112, %v1354
      %v1387 = vadd.f32 %v1117, %v1355
      %v1388 = vadd.f32 %v1122, %v1356
      %v1389 = vadd.f32 %v1127, %v1357
      %v1390 = vadd.f32 %v1132, %v1358
      %v1391 = vadd.f32 %v1137, %v1359
      %v1392 = vadd.f32 %v1142, %v1360
      %v1393 = vadd.f32 %v1147, %v1361
      %v1394 = vadd.f32 %v1152, %v1362
      %v1395 = vadd.f32 %v1157, %v1363
      %v1396 = vadd.f32 %v1162, %v1364
      %v1397 = vadd.f32 %v1167, %v1365
      %v1398 = vadd.f32 %v1172, %v1366
      %v1399 = vadd.f32 %v1177, %v1367
      %v1400 = vadd.f32 %v1182, %v1368
      %v1401 = vadd.f32 %v1187, %v1369
      %v1402 = vadd.f32 %v1192, %v1370
      %v1403 = vadd.f32 %v1197, %v1371
      %v1404 = vadd.f32 %v1202, %v1372
      %v1405 = vadd.f32 %v1207, %v1373
      %v1406 = vadd.f32 %v1212, %v1374
      %v1407 = vadd.f32 %v1217, %v1375
      %v1408 = vadd.f32 %v1222, %v1376
      %v1409 = vadd.f32 %v1227, %v1377
      %v1410 = vadd.f32 %v1232, %v1378
      %v1411 = vadd.f32 %v1237, %v1379
      %v1412 = vadd.f32 %v1242, %v1380
      %v1413 = vadd.f32 %v1247, %v1381
      %v1414 = vadd.f32 %v1252, %v1382
      %v1415 = vmul.f32 %v1383, 0.7978846
      %v1416 = vmul.f32 %v1384, 0.7978846
      %v1417 = vmul.f32 %v1385, 0.7978846
      %v1418 = vmul.f32 %v1386, 0.7978846
      %v1419 = vmul.f32 %v1387, 0.7978846
      %v1420 = vmul.f32 %v1388, 0.7978846
      %v1421 = vmul.f32 %v1389, 0.7978846
      %v1422 = vmul.f32 %v1390, 0.7978846
      %v1423 = vmul.f32 %v1391, 0.7978846
      %v1424 = vmul.f32 %v1392, 0.7978846
      %v1425 = vmul.f32 %v1393, 0.7978846
      %v1426 = vmul.f32 %v1394, 0.7978846
      %v1427 = vmul.f32 %v1395, 0.7978846
      %v1428 = vmul.f32 %v1396, 0.7978846
      %v1429 = vmul.f32 %v1397, 0.7978846
      %v1430 = vmul.f32 %v1398, 0.7978846
      %v1431 = vmul.f32 %v1399, 0.7978846
      %v1432 = vmul.f32 %v1400, 0.7978846
      %v1433 = vmul.f32 %v1401, 0.7978846
      %v1434 = vmul.f32 %v1402, 0.7978846
      %v1435 = vmul.f32 %v1403, 0.7978846
      %v1436 = vmul.f32 %v1404, 0.7978846
      %v1437 = vmul.f32 %v1405, 0.7978846
      %v1438 = vmul.f32 %v1406, 0.7978846
      %v1439 = vmul.f32 %v1407, 0.7978846
      %v1440 = vmul.f32 %v1408, 0.7978846
      %v1441 = vmul.f32 %v1409, 0.7978846
      %v1442 = vmul.f32 %v1410, 0.7978846
      %v1443 = vmul.f32 %v1411, 0.7978846
      %v1444 = vmul.f32 %v1412, 0.7978846
      %v1445 = vmul.f32 %v1413, 0.7978846
      %v1446 = vmul.f32 %v1414, 0.7978846
      %v1447 = vtanh.pop %v1415
      %v1448 = vtanh.pop %v1416
      %v1449 = vtanh.pop %v1417
      %v1450 = vtanh.pop %v1418
      %v1451 = vtanh.pop %v1419
      %v1452 = vtanh.pop %v1420
      %v1453 = vtanh.pop %v1421
      %v1454 = vtanh.pop %v1422
      %v1455 = vtanh.pop %v1423
      %v1456 = vtanh.pop %v1424
      %v1457 = vtanh.pop %v1425
      %v1458 = vtanh.pop %v1426
      %v1459 = vtanh.pop %v1427
      %v1460 = vtanh.pop %v1428
      %v1461 = vtanh.pop %v1429
      %v1462 = vtanh.pop %v1430
      %v1463 = vtanh.pop %v1431
      %v1464 = vtanh.pop %v1432
      %v1465 = vtanh.pop %v1433
      %v1466 = vtanh.pop %v1434
      %v1467 = vtanh.pop %v1435
      %v1468 = vtanh.pop %v1436
      %v1469 = vtanh.pop %v1437
      %v1470 = vtanh.pop %v1438
      %v1471 = vtanh.pop %v1439
      %v1472 = vtanh.pop %v1440
      %v1473 = vtanh.pop %v1441
      %v1474 = vtanh.pop %v1442
      %v1475 = vtanh.pop %v1443
      %v1476 = vtanh.pop %v1444
      %v1477 = vtanh.pop %v1445
      %v1478 = vtanh.pop %v1446
      %v1479 = vadd.f32 %v1447, 1.0
      %v1480 = vadd.f32 %v1448, 1.0
      %v1481 = vadd.f32 %v1449, 1.0
      %v1482 = vadd.f32 %v1450, 1.0
      %v1483 = vadd.f32 %v1451, 1.0
      %v1484 = vadd.f32 %v1452, 1.0
      %v1485 = vadd.f32 %v1453, 1.0
      %v1486 = vadd.f32 %v1454, 1.0
      %v1487 = vadd.f32 %v1455, 1.0
      %v1488 = vadd.f32 %v1456, 1.0
      %v1489 = vadd.f32 %v1457, 1.0
      %v1490 = vadd.f32 %v1458, 1.0
      %v1491 = vadd.f32 %v1459, 1.0
      %v1492 = vadd.f32 %v1460, 1.0
      %v1493 = vadd.f32 %v1461, 1.0
      %v1494 = vadd.f32 %v1462, 1.0
      %v1495 = vadd.f32 %v1463, 1.0
      %v1496 = vadd.f32 %v1464, 1.0
      %v1497 = vadd.f32 %v1465, 1.0
      %v1498 = vadd.f32 %v1466, 1.0
      %v1499 = vadd.f32 %v1467, 1.0
      %v1500 = vadd.f32 %v1468, 1.0
      %v1501 = vadd.f32 %v1469, 1.0
      %v1502 = vadd.f32 %v1470, 1.0
      %v1503 = vadd.f32 %v1471, 1.0
      %v1504 = vadd.f32 %v1472, 1.0
      %v1505 = vadd.f32 %v1473, 1.0
      %v1506 = vadd.f32 %v1474, 1.0
      %v1507 = vadd.f32 %v1475, 1.0
      %v1508 = vadd.f32 %v1476, 1.0
      %v1509 = vadd.f32 %v1477, 1.0
      %v1510 = vadd.f32 %v1478, 1.0
      %v1511 = vmul.f32 %v1255, %v1479
      %v1512 = vmul.f32 %v1256, %v1480
      %v1513 = vmul.f32 %v1257, %v1481
      %v1514 = vmul.f32 %v1258, %v1482
      %v1515 = vmul.f32 %v1259, %v1483
      %v1516 = vmul.f32 %v1260, %v1484
      %v1517 = vmul.f32 %v1261, %v1485
      %v1518 = vmul.f32 %v1262, %v1486
      %v1519 = vmul.f32 %v1263, %v1487
      %v1520 = vmul.f32 %v1264, %v1488
      %v1521 = vmul.f32 %v1265, %v1489
      %v1522 = vmul.f32 %v1266, %v1490
      %v1523 = vmul.f32 %v1267, %v1491
      %v1524 = vmul.f32 %v1268, %v1492
      %v1525 = vmul.f32 %v1269, %v1493
      %v1526 = vmul.f32 %v1270, %v1494
      %v1527 = vmul.f32 %v1271, %v1495
      %v1528 = vmul.f32 %v1272, %v1496
      %v1529 = vmul.f32 %v1273, %v1497
      %v1530 = vmul.f32 %v1274, %v1498
      %v1531 = vmul.f32 %v1275, %v1499
      %v1532 = vmul.f32 %v1276, %v1500
      %v1533 = vmul.f32 %v1277, %v1501
      %v1534 = vmul.f32 %v1278, %v1502
      %v1535 = vmul.f32 %v1279, %v1503
      %v1536 = vmul.f32 %v1280, %v1504
      %v1537 = vmul.f32 %v1281, %v1505
      %v1538 = vmul.f32 %v1282, %v1506
      %v1539 = vmul.f32 %v1283, %v1507
      %v1540 = vmul.f32 %v1284, %v1508
      %v1541 = vmul.f32 %v1285, %v1509
      %v1542 = vmul.f32 %v1286, %v1510
      %v1543 = vld [vmem:[%s6] sm:$0xff]
      %v1544 = vld [vmem:[%s6 + $0x8] sm:$0xff]
      %v1545 = vld [vmem:[%s6 + $0x10] sm:$0xff]
      %v1546 = vld [vmem:[%s6 + $0x18] sm:$0xff]
      %v1547 = vld [vmem:[%s6 + $0x20] sm:$0xff]
      %v1548 = vld [vmem:[%s6 + $0x28] sm:$0xff]
      %v1549 = vld [vmem:[%s6 + $0x30] sm:$0xff]
      %v1550 = vld [vmem:[%s6 + $0x38] sm:$0xff]
      %v1551 = vld [vmem:[%s6 + $0x40] sm:$0xff]
      %v1552 = vld [vmem:[%s6 + $0x48] sm:$0xff]
      %v1553 = vld [vmem:[%s6 + $0x50] sm:$0xff]
      %v1554 = vld [vmem:[%s6 + $0x58] sm:$0xff]
      %v1555 = vld [vmem:[%s6 + $0x60] sm:$0xff]
      %v1556 = vld [vmem:[%s6 + $0x68] sm:$0xff]
      %v1557 = vld [vmem:[%s6 + $0x70] sm:$0xff]
      %v1558 = vld [vmem:[%s6 + $0x78] sm:$0xff]
      %v1559 = vld [vmem:[%s7] sm:$0x1]
      %v1561 = vlaneseq
      %v1562 = vshrl.u32 %v1561, 7
      %v1563 = vsub.s32 0, %v1562
      %v1564 = vrot.slane %v1559, %v1563
      %1566 = vmatprep.subr.mxu0 0.0
      %1567 = vmatpush1.msra.mxu0 %v1543
      %1568 = vmatprep.subr.mxu0 0.0
      %1569 = vmatpush1.msra.mxu0 %v1544
      %1570 = vmatprep.subr.mxu0 0.0
      %1571 = vmatpush1.msra.mxu0 %v1545
      %1572 = vmatprep.subr.mxu0 0.0
      %1573 = vmatpush1.msra.mxu0 %v1546
      %1574 = vmatprep.subr.mxu0 0.0
      %1575 = vmatpush1.msra.mxu0 %v1547
      %1576 = vmatprep.subr.mxu0 0.0
      %1577 = vmatpush1.msra.mxu0 %v1548
      %1578 = vmatprep.subr.mxu0 0.0
      %1579 = vmatpush1.msra.mxu0 %v1549
      %1580 = vmatprep.subr.mxu0 0.0
      %1581 = vmatpush1.msra.mxu0 %v1550
      %1582 = vmatprep.subr.mxu0 0.0
      %1583 = vmatpush1.msra.mxu0 %v1551
      %1584 = vmatprep.subr.mxu0 0.0
      %1585 = vmatpush1.msra.mxu0 %v1552
      %1586 = vmatprep.subr.mxu0 0.0
      %1587 = vmatpush1.msra.mxu0 %v1553
      %1588 = vmatprep.subr.mxu0 0.0
      %1589 = vmatpush1.msra.mxu0 %v1554
      %1590 = vmatprep.subr.mxu0 0.0
      %1591 = vmatpush1.msra.mxu0 %v1555
      %1592 = vmatprep.subr.mxu0 0.0
      %1593 = vmatpush1.msra.mxu0 %v1556
      %1594 = vmatprep.subr.mxu0 0.0
      %1595 = vmatpush1.msra.mxu0 %v1557
      %1596 = vmatprep.subr.mxu0 0.0
      %1597 = vmatpush1.msra.mxu0 %v1558
      %1598 = vmatprep.subr.mxu0 0.0
      %1599 = vmatpush1.msra.mxu0 0.0
      %1600 = vmatprep.subr.mxu0 0.0
      %1601 = vmatpush1.msra.mxu0 0.0
      %1602 = vmatprep.subr.mxu0 0.0
      %1603 = vmatpush1.msra.mxu0 0.0
      %1604 = vmatprep.subr.mxu0 0.0
      %1605 = vmatpush1.msra.mxu0 0.0
      %1606 = vmatprep.subr.mxu0 0.0
      %1607 = vmatpush1.msra.mxu0 0.0
      %1608 = vmatprep.subr.mxu0 0.0
      %1609 = vmatpush1.msra.mxu0 0.0
      %1610 = vmatprep.subr.mxu0 0.0
      %1611 = vmatpush1.msra.mxu0 0.0
      %1612 = vmatprep.subr.mxu0 0.0
      %1613 = vmatpush1.msra.mxu0 0.0
      %1614 = vmatprep.subr.mxu0 0.0
      %1615 = vmatpush1.msra.mxu0 0.0
      %1616 = vmatprep.subr.mxu0 0.0
      %1617 = vmatpush1.msra.mxu0 0.0
      %1618 = vmatprep.subr.mxu0 0.0
      %1619 = vmatpush1.msra.mxu0 0.0
      %1620 = vmatprep.subr.mxu0 0.0
      %1621 = vmatpush1.msra.mxu0 0.0
      %1622 = vmatprep.subr.mxu0 0.0
      %1623 = vmatpush1.msra.mxu0 0.0
      %1624 = vmatprep.subr.mxu0 0.0
      %1625 = vmatpush1.msra.mxu0 0.0
      %1626 = vmatprep.subr.mxu0 0.0
      %1627 = vmatpush1.msra.mxu0 0.0
      %1628 = vmatprep.subr.mxu0 0.0
      %1629 = vmatpush1.msra.mxu0 0.0
      %1630 = vmatprep.mubr.f32.mxu0 0.0
      %1631 = vmatmul.mubr.f32.gmra.mrb[0].mxu0 %v1511
      %v1632 = vpop.f32.mrb[0].mxu0
      %v1633 = vadd.f32 %v1564, %v1632
      %v1634 = vpop.f32.mrb[0].mxu0
      %1635 = vmatprep.mubr.f32.mxu0 0.0
      %1636 = vmatmul.mubr.f32.gmra.mrb[0].mxu0 %v1512
      %v1637 = vpop.f32.mrb[0].mxu0
      %v1638 = vadd.f32 %v1564, %v1637
      %v1639 = vpop.f32.mrb[0].mxu0
      %1640 = vmatprep.mubr.f32.mxu0 0.0
      %1641 = vmatmul.mubr.f32.gmra.mrb[0].mxu0 %v1513
      %v1642 = vpop.f32.mrb[0].mxu0
      %v1643 = vadd.f32 %v1564, %v1642
      %v1644 = vpop.f32.mrb[0].mxu0
      %1645 = vmatprep.mubr.f32.mxu0 0.0
      %1646 = vmatmul.mubr.f32.gmra.mrb[0].mxu0 %v1514
      %v1647 = vpop.f32.mrb[0].mxu0
      %v1648 = vadd.f32 %v1564, %v1647
      %v1649 = vpop.f32.mrb[0].mxu0
      %1650 = vmatprep.mubr.f32.mxu0 0.0
      %1651 = vmatmul.mubr.f32.gmra.mrb[0].mxu0 %v1515
      %v1652 = vpop.f32.mrb[0].mxu0
      %v1653 = vadd.f32 %v1564, %v1652
      %v1654 = vpop.f32.mrb[0].mxu0
      %1655 = vmatprep.mubr.f32.mxu0 0.0
      %1656 = vmatmul.mubr.f32.gmra.mrb[0].mxu0 %v1516
      %v1657 = vpop.f32.mrb[0].mxu0
      %v1658 = vadd.f32 %v1564, %v1657
      %v1659 = vpop.f32.mrb[0].mxu0
      %1660 = vmatprep.mubr.f32.mxu0 0.0
      %1661 = vmatmul.mubr.f32.gmra.mrb[0].mxu0 %v1517
      %v1662 = vpop.f32.mrb[0].mxu0
      %v1663 = vadd.f32 %v1564, %v1662
      %v1664 = vpop.f32.mrb[0].mxu0
      %1665 = vmatprep.mubr.f32.mxu0 0.0
      %1666 = vmatmul.mubr.f32.gmra.mrb[0].mxu0 %v1518
      %v1667 = vpop.f32.mrb[0].mxu0
      %v1668 = vadd.f32 %v1564, %v1667
      %v1669 = vpop.f32.mrb[0].mxu0
      %1670 = vmatprep.mubr.f32.mxu0 0.0
      %1671 = vmatmul.mubr.f32.gmra.mrb[0].mxu0 %v1519
      %v1672 = vpop.f32.mrb[0].mxu0
      %v1673 = vadd.f32 %v1564, %v1672
      %v1674 = vpop.f32.mrb[0].mxu0
      %1675 = vmatprep.mubr.f32.mxu0 0.0
      %1676 = vmatmul.mubr.f32.gmra.mrb[0].mxu0 %v1520
      %v1677 = vpop.f32.mrb[0].mxu0
      %v1678 = vadd.f32 %v1564, %v1677
      %v1679 = vpop.f32.mrb[0].mxu0
      %1680 = vmatprep.mubr.f32.mxu0 0.0
      %1681 = vmatmul.mubr.f32.gmra.mrb[0].mxu0 %v1521
      %v1682 = vpop.f32.mrb[0].mxu0
      %v1683 = vadd.f32 %v1564, %v1682
      %v1684 = vpop.f32.mrb[0].mxu0
      %1685 = vmatprep.mubr.f32.mxu0 0.0
      %1686 = vmatmul.mubr.f32.gmra.mrb[0].mxu0 %v1522
      %v1687 = vpop.f32.mrb[0].mxu0
      %v1688 = vadd.f32 %v1564, %v1687
      %v1689 = vpop.f32.mrb[0].mxu0
      %1690 = vmatprep.mubr.f32.mxu0 0.0
      %1691 = vmatmul.mubr.f32.gmra.mrb[0].mxu0 %v1523
      %v1692 = vpop.f32.mrb[0].mxu0
      %v1693 = vadd.f32 %v1564, %v1692
      %v1694 = vpop.f32.mrb[0].mxu0
      %1695 = vmatprep.mubr.f32.mxu0 0.0
      %1696 = vmatmul.mubr.f32.gmra.mrb[0].mxu0 %v1524
      %v1697 = vpop.f32.mrb[0].mxu0
      %v1698 = vadd.f32 %v1564, %v1697
      %v1699 = vpop.f32.mrb[0].mxu0
      %1700 = vmatprep.mubr.f32.mxu0 0.0
      %1701 = vmatmul.mubr.f32.gmra.mrb[0].mxu0 %v1525
      %v1702 = vpop.f32.mrb[0].mxu0
      %v1703 = vadd.f32 %v1564, %v1702
      %v1704 = vpop.f32.mrb[0].mxu0
      %1705 = vmatprep.mubr.f32.mxu0 0.0
      %1706 = vmatmul.mubr.f32.gmra.mrb[0].mxu0 %v1526
      %v1707 = vpop.f32.mrb[0].mxu0
      %v1708 = vadd.f32 %v1564, %v1707
      %v1709 = vpop.f32.mrb[0].mxu0
      %1710 = vmatprep.mubr.f32.mxu0 0.0
      %1711 = vmatmul.mubr.f32.gmra.mrb[0].mxu0 %v1527
      %v1712 = vpop.f32.mrb[0].mxu0
      %v1713 = vadd.f32 %v1564, %v1712
      %v1714 = vpop.f32.mrb[0].mxu0
      %1715 = vmatprep.mubr.f32.mxu0 0.0
      %1716 = vmatmul.mubr.f32.gmra.mrb[0].mxu0 %v1528
      %v1717 = vpop.f32.mrb[0].mxu0
      %v1718 = vadd.f32 %v1564, %v1717
      %v1719 = vpop.f32.mrb[0].mxu0
      %1720 = vmatprep.mubr.f32.mxu0 0.0
      %1721 = vmatmul.mubr.f32.gmra.mrb[0].mxu0 %v1529
      %v1722 = vpop.f32.mrb[0].mxu0
      %v1723 = vadd.f32 %v1564, %v1722
      %v1724 = vpop.f32.mrb[0].mxu0
      %1725 = vmatprep.mubr.f32.mxu0 0.0
      %1726 = vmatmul.mubr.f32.gmra.mrb[0].mxu0 %v1530
      %v1727 = vpop.f32.mrb[0].mxu0
      %v1728 = vadd.f32 %v1564, %v1727
      %v1729 = vpop.f32.mrb[0].mxu0
      %1730 = vmatprep.mubr.f32.mxu0 0.0
      %1731 = vmatmul.mubr.f32.gmra.mrb[0].mxu0 %v1531
      %v1732 = vpop.f32.mrb[0].mxu0
      %v1733 = vadd.f32 %v1564, %v1732
      %v1734 = vpop.f32.mrb[0].mxu0
      %1735 = vmatprep.mubr.f32.mxu0 0.0
      %1736 = vmatmul.mubr.f32.gmra.mrb[0].mxu0 %v1532
      %v1737 = vpop.f32.mrb[0].mxu0
      %v1738 = vadd.f32 %v1564, %v1737
      %v1739 = vpop.f32.mrb[0].mxu0
      %1740 = vmatprep.mubr.f32.mxu0 0.0
      %1741 = vmatmul.mubr.f32.gmra.mrb[0].mxu0 %v1533
      %v1742 = vpop.f32.mrb[0].mxu0
      %v1743 = vadd.f32 %v1564, %v1742
      %v1744 = vpop.f32.mrb[0].mxu0
      %1745 = vmatprep.mubr.f32.mxu0 0.0
      %1746 = vmatmul.mubr.f32.gmra.mrb[0].mxu0 %v1534
      %v1747 = vpop.f32.mrb[0].mxu0
      %v1748 = vadd.f32 %v1564, %v1747
      %v1749 = vpop.f32.mrb[0].mxu0
      %1750 = vmatprep.mubr.f32.mxu0 0.0
      %1751 = vmatmul.mubr.f32.gmra.mrb[0].mxu0 %v1535
      %v1752 = vpop.f32.mrb[0].mxu0
      %v1753 = vadd.f32 %v1564, %v1752
      %v1754 = vpop.f32.mrb[0].mxu0
      %1755 = vmatprep.mubr.f32.mxu0 0.0
      %1756 = vmatmul.mubr.f32.gmra.mrb[0].mxu0 %v1536
      %v1757 = vpop.f32.mrb[0].mxu0
      %v1758 = vadd.f32 %v1564, %v1757
      %v1759 = vpop.f32.mrb[0].mxu0
      %1760 = vmatprep.mubr.f32.mxu0 0.0
      %1761 = vmatmul.mubr.f32.gmra.mrb[0].mxu0 %v1537
      %v1762 = vpop.f32.mrb[0].mxu0
      %v1763 = vadd.f32 %v1564, %v1762
      %v1764 = vpop.f32.mrb[0].mxu0
      %1765 = vmatprep.mubr.f32.mxu0 0.0
      %1766 = vmatmul.mubr.f32.gmra.mrb[0].mxu0 %v1538
      %v1767 = vpop.f32.mrb[0].mxu0
      %v1768 = vadd.f32 %v1564, %v1767
      %v1769 = vpop.f32.mrb[0].mxu0
      %1770 = vmatprep.mubr.f32.mxu0 0.0
      %1771 = vmatmul.mubr.f32.gmra.mrb[0].mxu0 %v1539
      %v1772 = vpop.f32.mrb[0].mxu0
      %v1773 = vadd.f32 %v1564, %v1772
      %v1774 = vpop.f32.mrb[0].mxu0
      %1775 = vmatprep.mubr.f32.mxu0 0.0
      %1776 = vmatmul.mubr.f32.gmra.mrb[0].mxu0 %v1540
      %v1777 = vpop.f32.mrb[0].mxu0
      %v1778 = vadd.f32 %v1564, %v1777
      %v1779 = vpop.f32.mrb[0].mxu0
      %1780 = vmatprep.mubr.f32.mxu0 0.0
      %1781 = vmatmul.mubr.f32.gmra.mrb[0].mxu0 %v1541
      %v1782 = vpop.f32.mrb[0].mxu0
      %v1783 = vadd.f32 %v1564, %v1782
      %v1784 = vpop.f32.mrb[0].mxu0
      %1785 = vmatprep.mubr.f32.mxu0 0.0
      %1786 = vmatmul.mubr.f32.gmra.mrb[0].mxu0 %v1542
      %v1787 = vpop.f32.mrb[0].mxu0
      %v1788 = vadd.f32 %v1564, %v1787
      %v1789 = vpop.f32.mrb[0].mxu0
      %1790 = vdwg.mxu0
      %v1791 = vadd.f32 %v395, %v1633
      %v1792 = vadd.f32 %v396, %v1638
      %v1793 = vadd.f32 %v397, %v1643
      %v1794 = vadd.f32 %v398, %v1648
      %v1795 = vadd.f32 %v399, %v1653
      %v1796 = vadd.f32 %v400, %v1658
      %v1797 = vadd.f32 %v401, %v1663
      %v1798 = vadd.f32 %v402, %v1668
      %v1799 = vadd.f32 %v403, %v1673
      %v1800 = vadd.f32 %v404, %v1678
      %v1801 = vadd.f32 %v405, %v1683
      %v1802 = vadd.f32 %v406, %v1688
      %v1803 = vadd.f32 %v407, %v1693
      %v1804 = vadd.f32 %v408, %v1698
      %v1805 = vadd.f32 %v409, %v1703
      %v1806 = vadd.f32 %v410, %v1708
      %v1807 = vadd.f32 %v411, %v1713
      %v1808 = vadd.f32 %v412, %v1718
      %v1809 = vadd.f32 %v413, %v1723
      %v1810 = vadd.f32 %v414, %v1728
      %v1811 = vadd.f32 %v415, %v1733
      %v1812 = vadd.f32 %v416, %v1738
      %v1813 = vadd.f32 %v417, %v1743
      %v1814 = vadd.f32 %v418, %v1748
      %v1815 = vadd.f32 %v419, %v1753
      %v1816 = vadd.f32 %v420, %v1758
      %v1817 = vadd.f32 %v421, %v1763
      %v1818 = vadd.f32 %v422, %v1768
      %v1819 = vadd.f32 %v423, %v1773
      %v1820 = vadd.f32 %v424, %v1778
      %v1821 = vadd.f32 %v425, %v1783
      %v1822 = vadd.f32 %v426, %v1788
      %1823 = vst.msk [vmem:[%s329] sm:$0xff] %vm427, %v1791
      %1824 = vst.msk [vmem:[%s329 + $0x8] sm:$0xff] %vm427, %v1792
      %1825 = vst.msk [vmem:[%s329 + $0x10] sm:$0xff] %vm427, %v1793
      %1826 = vst.msk [vmem:[%s329 + $0x18] sm:$0xff] %vm427, %v1794
      %1827 = vst.msk [vmem:[%s329 + $0x20] sm:$0xff] %vm427, %v1795
      %1828 = vst.msk [vmem:[%s329 + $0x28] sm:$0xff] %vm427, %v1796
      %1829 = vst.msk [vmem:[%s329 + $0x30] sm:$0xff] %vm427, %v1797
      %1830 = vst.msk [vmem:[%s329 + $0x38] sm:$0xff] %vm427, %v1798
      %1831 = vst.msk [vmem:[%s329 + $0x40] sm:$0xff] %vm427, %v1799
      %1832 = vst.msk [vmem:[%s329 + $0x48] sm:$0xff] %vm427, %v1800
      %1833 = vst.msk [vmem:[%s329 + $0x50] sm:$0xff] %vm427, %v1801
      %1834 = vst.msk [vmem:[%s329 + $0x58] sm:$0xff] %vm427, %v1802
      %1835 = vst.msk [vmem:[%s329 + $0x60] sm:$0xff] %vm427, %v1803
      %1836 = vst.msk [vmem:[%s329 + $0x68] sm:$0xff] %vm427, %v1804
      %1837 = vst.msk [vmem:[%s329 + $0x70] sm:$0xff] %vm427, %v1805
      %1838 = vst.msk [vmem:[%s329 + $0x78] sm:$0xff] %vm427, %v1806
      %1839 = vst.msk [vmem:[%s329 + $0x80] sm:$0xff] %vm427, %v1807
      %1840 = vst.msk [vmem:[%s329 + $0x88] sm:$0xff] %vm427, %v1808
      %1841 = vst.msk [vmem:[%s329 + $0x90] sm:$0xff] %vm427, %v1809
      %1842 = vst.msk [vmem:[%s329 + $0x98] sm:$0xff] %vm427, %v1810
      %1843 = vst.msk [vmem:[%s329 + $0xa0] sm:$0xff] %vm427, %v1811
      %1844 = vst.msk [vmem:[%s329 + $0xa8] sm:$0xff] %vm427, %v1812
      %1845 = vst.msk [vmem:[%s329 + $0xb0] sm:$0xff] %vm427, %v1813
      %1846 = vst.msk [vmem:[%s329 + $0xb8] sm:$0xff] %vm427, %v1814
      %1847 = vst.msk [vmem:[%s329 + $0xc0] sm:$0xff] %vm427, %v1815
      %1848 = vst.msk [vmem:[%s329 + $0xc8] sm:$0xff] %vm427, %v1816
      %1849 = vst.msk [vmem:[%s329 + $0xd0] sm:$0xff] %vm427, %v1817
      %1850 = vst.msk [vmem:[%s329 + $0xd8] sm:$0xff] %vm427, %v1818
      %1851 = vst.msk [vmem:[%s329 + $0xe0] sm:$0xff] %vm427, %v1819
      %1852 = vst.msk [vmem:[%s329 + $0xe8] sm:$0xff] %vm427, %v1820
      %1853 = vst.msk [vmem:[%s329 + $0xf0] sm:$0xff] %vm427, %v1821
      %1854 = vst.msk [vmem:[%s329 + $0xf8] sm:$0xff] %vm427, %v1822
      %s1855 = smul.u32 32, %s19
      %p1856 = scmp.lt.s32.totalorder %s1855, 63
      %s1857 = scalar_select %p1856, %s1855, 63
      %s1858 = smul.addr %s1857, 8
      %s1859 = scalar_lea.vmem %s8, %s1858
      // Predicated region
      $region53: #{swin_block_forward.3} parent=51 // pred_check
        %p1860 = pneg %p215
      $region54: #{swin_block_forward.3} parent=51 // pred_check_branch
        %1862 = sbr.rel (%p1860) target = $region56
      $region55: #{swin_block_forward.3} parent=51 // pred_region
        %s1863 = smul.u32 32, %s19
      $region56: #{swin_block_forward.3} parent=51 // pred_fallthru
        _
    $region52: #{swin_block_forward.3} parent=5 // pred_fallthru
      _
    %p1864 = scmp.le.s32.totalorder 2, %s14
    // Predicated region
    $region57: #{swin_block_forward.3} parent=5 // pred_check
      %p1865 = pneg %p1864
    $region58: #{swin_block_forward.3} parent=5 // pred_check_branch
      %1867 = sbr.rel (%p1865) target = $region60
    $region59: #{swin_block_forward.3} parent=5 // pred_region
      %s1868 = ssub.s32 %s14, 2
      // Predicated region
      $region61: #{swin_block_forward.3} parent=59 // pred_check
        %p1869 = pneg %p221
      $region62: #{swin_block_forward.3} parent=59 // pred_check_branch
        %1871 = sbr.rel (%p1869) target = $region64
      $region63: #{swin_block_forward.3} parent=59 // pred_region
        %s1872 = smul.u32 32, %s20
        %p1873 = scmp.lt.s32.totalorder %s1872, 63
        %s1874 = scalar_select %p1873, %s1872, 63
        %s1875 = smul.addr %s1874, 8
        %s1876 = scalar_lea.vmem %s8, %s1875
      $region64: #{swin_block_forward.3} parent=59 // pred_fallthru
        _
    $region60: #{swin_block_forward.3} parent=5 // pred_fallthru
      _
  $region6: #{swin_block_forward.3} parent=0 // loop_footer
    %s18 = sadd.s32 1, %s14
  $region7: #{swin_block_forward.3} parent=0 // loop_footer_branch
    %13 = sbr.rel target = $region3
  $region8: #{swin_block_forward.3} parent=0 // loop_exit
    _

// kernel: swin_block_forward.2
$region0: #{swin_block_forward.2}
  #allocation0 [shape = 'u32[]', space=smem, size = 0x4, offset = 0x4, fixed_abs, tag = 'smem constant byte address 0x4 - core index']
  #allocation1 [shape = 'u32[144,128]{1,0:T(1,128)}', space=vmem, size = 0x12000, scoped, tag = 'internal scratch']
  %s0 = inlined_call_operand.vmem [shape: f32[2,4,64,32], index: 0, kind: input, shape index: {}]
  %s1 = inlined_call_operand.vmem [shape: f32[32,96], index: 1, kind: input, shape index: {}]
  %s2 = inlined_call_operand.vmem [shape: f32[1,96], index: 2, kind: input, shape index: {}]
  %s3 = inlined_call_operand.vmem [shape: f32[32,32], index: 3, kind: input, shape index: {}]
  %s4 = inlined_call_operand.vmem [shape: f32[1,32], index: 4, kind: input, shape index: {}]
  %s5 = inlined_call_operand.vmem [shape: f32[1,32], index: 5, kind: input, shape index: {}]
  %s6 = inlined_call_operand.vmem [shape: f32[1,32], index: 6, kind: input, shape index: {}]
  %s7 = inlined_call_operand.vmem [shape: f32[4,4,64,64], index: 7, kind: input, shape index: {}]
  %s8 = inlined_call_operand.vmem [shape: f32[2,4,64,32], index: 8, kind: output, shape index: {}]
  %s9 = sld [smem:[#allocation0]]
  $region65: #{swin_block_forward.2} parent=0
    _
  %s11 = ssub.s32 1, %s9
  %s12 = scalar_select 0, %s11, %s9
  loop: start=0, step=1, limit=4
  $region2: #{swin_block_forward.2} parent=0 // loop_pre_header
    _
  $region3: #{swin_block_forward.2} parent=0 // loop_header
    %s14 = sphi 0, %s18
    %p15 = scmp.ge.s32.totalorder %s14, 4
    %s24 = sphi 0, %s26
    %s27 = sphi 0, %s24
    %s28 = sphi 0, %s27
    %s44 = sphi 0, %s28
    %s48 = sphi 0, %s48
    %s50 = sphi 0, %s48
    %s51 = sphi 0, %s50
    %s65 = sphi 0, %s51
    %s69 = sphi 0, %s69
    %s71 = sphi 0, %s69
    %s72 = sphi 0, %s71
    %s86 = sphi 0, %s72
    %s90 = sphi 0, %s90
    %s92 = sphi 0, %s90
    %s93 = sphi 0, %s92
    %s107 = sphi 0, %s93
    %s111 = sphi 0, %s111
    %s113 = sphi 0, %s111
    %s114 = sphi 0, %s113
    %s128 = sphi 0, %s114
    %s132 = sphi 0, %s132
    %s134 = sphi 0, %s132
    %s135 = sphi 0, %s134
    %s149 = sphi 0, %s135
    %s153 = sphi 0, %s153
    %s155 = sphi 0, %s153
    %s156 = sphi 0, %s155
    %s170 = sphi 0, %s156
    %s174 = sphi 0, %s174
    %s176 = sphi 0, %s174
    %s177 = sphi 0, %s176
    %s191 = sphi 0, %s177
    %s197 = sphi 0, %s199
    %s200 = sphi 0, %s197
    %s201 = sphi 0, %s200
    %s217 = sphi 0, %s201
  $region4: #{swin_block_forward.2} parent=0 // loop_header_branch
    %17 = sbr.rel (%p15) target = $region8
  $region5: #{swin_block_forward.2} parent=0 // loop_body
    %s19 = ssub.s32 %s14, 1
    %s20 = ssub.s32 %s14, 2
    %s21 = sadd.s32 %s14, 1
    %s22 = ssub.s32 %s14, %s21
    %p23 = scmp.eq.s32.totalorder %s22, 0
    %s25 = sadd.s32 %s24, 1
    %s26 = scalar_select %p23, %s24, %s25
    %p29 = pneg %p23
    %p30 = scmp.eq.s32.totalorder %s14, 1
    %p31 = por %p29, %p30
    %p32 = scmp.ne.s32.totalorder %s24, %s27
    %p33 = scmp.eq.s32.totalorder %s14, 0
    %p34 = por %p32, %p33
    %p35 = scmp.ne.s32.totalorder %s24, %s27
    %p36 = scmp.eq.s32.totalorder %s19, 1
    %p37 = por %p35, %p36
    %p38 = scmp.ne.s32.totalorder %s27, %s28
    %p39 = scmp.eq.s32.totalorder %s19, 0
    %p40 = por %p38, %p39
    %p41 = scmp.ne.s32.totalorder %s27, %s28
    %p42 = scmp.eq.s32.totalorder %s20, 1
    %p43 = por %p41, %p42
    %p45 = scmp.ne.s32.totalorder %s28, %s44
    %p46 = scmp.eq.s32.totalorder %s20, 0
    %p47 = por %p45, %p46
    %s49 = sadd.s32 %s48, 1
    %p52 = scmp.eq.s32.totalorder %s14, 1
    %p53 = scmp.ne.s32.totalorder %s48, %s50
    %p54 = scmp.eq.s32.totalorder %s14, 0
    %p55 = por %p53, %p54
    %p56 = scmp.ne.s32.totalorder %s48, %s50
    %p57 = scmp.eq.s32.totalorder %s19, 1
    %p58 = por %p56, %p57
    %p59 = scmp.ne.s32.totalorder %s50, %s51
    %p60 = scmp.eq.s32.totalorder %s19, 0
    %p61 = por %p59, %p60
    %p62 = scmp.ne.s32.totalorder %s50, %s51
    %p63 = scmp.eq.s32.totalorder %s20, 1
    %p64 = por %p62, %p63
    %p66 = scmp.ne.s32.totalorder %s51, %s65
    %p67 = scmp.eq.s32.totalorder %s20, 0
    %p68 = por %p66, %p67
    %s70 = sadd.s32 %s69, 1
    %p73 = scmp.eq.s32.totalorder %s14, 1
    %p74 = scmp.ne.s32.totalorder %s69, %s71
    %p75 = scmp.eq.s32.totalorder %s14, 0
    %p76 = por %p74, %p75
    %p77 = scmp.ne.s32.totalorder %s69, %s71
    %p78 = scmp.eq.s32.totalorder %s19, 1
    %p79 = por %p77, %p78
    %p80 = scmp.ne.s32.totalorder %s71, %s72
    %p81 = scmp.eq.s32.totalorder %s19, 0
    %p82 = por %p80, %p81
    %p83 = scmp.ne.s32.totalorder %s71, %s72
    %p84 = scmp.eq.s32.totalorder %s20, 1
    %p85 = por %p83, %p84
    %p87 = scmp.ne.s32.totalorder %s72, %s86
    %p88 = scmp.eq.s32.totalorder %s20, 0
    %p89 = por %p87, %p88
    %s91 = sadd.s32 %s90, 1
    %p94 = scmp.eq.s32.totalorder %s14, 1
    %p95 = scmp.ne.s32.totalorder %s90, %s92
    %p96 = scmp.eq.s32.totalorder %s14, 0
    %p97 = por %p95, %p96
    %p98 = scmp.ne.s32.totalorder %s90, %s92
    %p99 = scmp.eq.s32.totalorder %s19, 1
    %p100 = por %p98, %p99
    %p101 = scmp.ne.s32.totalorder %s92, %s93
    %p102 = scmp.eq.s32.totalorder %s19, 0
    %p103 = por %p101, %p102
    %p104 = scmp.ne.s32.totalorder %s92, %s93
    %p105 = scmp.eq.s32.totalorder %s20, 1
    %p106 = por %p104, %p105
    %p108 = scmp.ne.s32.totalorder %s93, %s107
    %p109 = scmp.eq.s32.totalorder %s20, 0
    %p110 = por %p108, %p109
    %s112 = sadd.s32 %s111, 1
    %p115 = scmp.eq.s32.totalorder %s14, 1
    %p116 = scmp.ne.s32.totalorder %s111, %s113
    %p117 = scmp.eq.s32.totalorder %s14, 0
    %p118 = por %p116, %p117
    %p119 = scmp.ne.s32.totalorder %s111, %s113
    %p120 = scmp.eq.s32.totalorder %s19, 1
    %p121 = por %p119, %p120
    %p122 = scmp.ne.s32.totalorder %s113, %s114
    %p123 = scmp.eq.s32.totalorder %s19, 0
    %p124 = por %p122, %p123
    %p125 = scmp.ne.s32.totalorder %s113, %s114
    %p126 = scmp.eq.s32.totalorder %s20, 1
    %p127 = por %p125, %p126
    %p129 = scmp.ne.s32.totalorder %s114, %s128
    %p130 = scmp.eq.s32.totalorder %s20, 0
    %p131 = por %p129, %p130
    %s133 = sadd.s32 %s132, 1
    %p136 = scmp.eq.s32.totalorder %s14, 1
    %p137 = scmp.ne.s32.totalorder %s132, %s134
    %p138 = scmp.eq.s32.totalorder %s14, 0
    %p139 = por %p137, %p138
    %p140 = scmp.ne.s32.totalorder %s132, %s134
    %p141 = scmp.eq.s32.totalorder %s19, 1
    %p142 = por %p140, %p141
    %p143 = scmp.ne.s32.totalorder %s134, %s135
    %p144 = scmp.eq.s32.totalorder %s19, 0
    %p145 = por %p143, %p144
    %p146 = scmp.ne.s32.totalorder %s134, %s135
    %p147 = scmp.eq.s32.totalorder %s20, 1
    %p148 = por %p146, %p147
    %p150 = scmp.ne.s32.totalorder %s135, %s149
    %p151 = scmp.eq.s32.totalorder %s20, 0
    %p152 = por %p150, %p151
    %s154 = sadd.s32 %s153, 1
    %p157 = scmp.eq.s32.totalorder %s14, 1
    %p158 = scmp.ne.s32.totalorder %s153, %s155
    %p159 = scmp.eq.s32.totalorder %s14, 0
    %p160 = por %p158, %p159
    %p161 = scmp.ne.s32.totalorder %s153, %s155
    %p162 = scmp.eq.s32.totalorder %s19, 1
    %p163 = por %p161, %p162
    %p164 = scmp.ne.s32.totalorder %s155, %s156
    %p165 = scmp.eq.s32.totalorder %s19, 0
    %p166 = por %p164, %p165
    %p167 = scmp.ne.s32.totalorder %s155, %s156
    %p168 = scmp.eq.s32.totalorder %s20, 1
    %p169 = por %p167, %p168
    %p171 = scmp.ne.s32.totalorder %s156, %s170
    %p172 = scmp.eq.s32.totalorder %s20, 0
    %p173 = por %p171, %p172
    %s175 = sadd.s32 %s174, 1
    %p178 = scmp.eq.s32.totalorder %s14, 1
    %p179 = scmp.ne.s32.totalorder %s174, %s176
    %p180 = scmp.eq.s32.totalorder %s14, 0
    %p181 = por %p179, %p180
    %p182 = scmp.ne.s32.totalorder %s174, %s176
    %p183 = scmp.eq.s32.totalorder %s19, 1
    %p184 = por %p182, %p183
    %p185 = scmp.ne.s32.totalorder %s176, %s177
    %p186 = scmp.eq.s32.totalorder %s19, 0
    %p187 = por %p185, %p186
    %p188 = scmp.ne.s32.totalorder %s176, %s177
    %p189 = scmp.eq.s32.totalorder %s20, 1
    %p190 = por %p188, %p189
    %p192 = scmp.ne.s32.totalorder %s177, %s191
    %p193 = scmp.eq.s32.totalorder %s20, 0
    %p194 = por %p192, %p193
    %s195 = ssub.s32 %s14, %s21
    %p196 = scmp.eq.s32.totalorder %s195, 0
    %s198 = sadd.s32 %s197, 1
    %s199 = scalar_select %p196, %s197, %s198
    %p202 = pneg %p196
    %p203 = scmp.eq.s32.totalorder %s14, 1
    %p204 = por %p202, %p203
    %p205 = scmp.ne.s32.totalorder %s197, %s200
    %p206 = scmp.eq.s32.totalorder %s14, 0
    %p207 = por %p205, %p206
    %p208 = scmp.ne.s32.totalorder %s197, %s200
    %p209 = scmp.eq.s32.totalorder %s19, 1
    %p210 = por %p208, %p209
    %p211 = scmp.ne.s32.totalorder %s200, %s201
    %p212 = scmp.eq.s32.totalorder %s19, 0
    %p213 = por %p211, %p212
    %p214 = scmp.ne.s32.totalorder %s200, %s201
    %p215 = scmp.eq.s32.totalorder %s20, 1
    %p216 = por %p214, %p215
    %p218 = scmp.ne.s32.totalorder %s201, %s217
    %p219 = scmp.eq.s32.totalorder %s20, 0
    %p220 = por %p218, %p219
    %p221 = scmp.le.s32.totalorder 1, %s14
    %p222 = scmp.lt.s32.totalorder %s14, 3
    %p223 = pnand %p221, %p222
    %p224 = pneg %p223
    // Predicated region
    $region9: #{swin_block_forward.2} parent=5 // pred_check
      _
    $region10: #{swin_block_forward.2} parent=5 // pred_check_branch
      %226 = sbr.rel (%p223) target = $region12
    $region11: #{swin_block_forward.2} parent=5 // pred_region
      %s227 = ssub.s32 %s14, 1
      // Predicated region
      $region13: #{swin_block_forward.2} parent=11 // pred_check
        %p228 = pneg %p61
      $region14: #{swin_block_forward.2} parent=11 // pred_check_branch
        %230 = sbr.rel (%p228) target = $region16
      $region15: #{swin_block_forward.2} parent=11 // pred_region
        _
      $region16: #{swin_block_forward.2} parent=11 // pred_fallthru
        _
      // Predicated region
      $region17: #{swin_block_forward.2} parent=11 // pred_check
        %p231 = pneg %p82
      $region18: #{swin_block_forward.2} parent=11 // pred_check_branch
        %233 = sbr.rel (%p231) target = $region20
      $region19: #{swin_block_forward.2} parent=11 // pred_region
        _
      $region20: #{swin_block_forward.2} parent=11 // pred_fallthru
        _
      // Predicated region
      $region21: #{swin_block_forward.2} parent=11 // pred_check
        %p234 = pneg %p103
      $region22: #{swin_block_forward.2} parent=11 // pred_check_branch
        %236 = sbr.rel (%p234) target = $region24
      $region23: #{swin_block_forward.2} parent=11 // pred_region
        _
      $region24: #{swin_block_forward.2} parent=11 // pred_fallthru
        _
      // Predicated region
      $region25: #{swin_block_forward.2} parent=11 // pred_check
        %p237 = pneg %p124
      $region26: #{swin_block_forward.2} parent=11 // pred_check_branch
        %239 = sbr.rel (%p237) target = $region28
      $region27: #{swin_block_forward.2} parent=11 // pred_region
        _
      $region28: #{swin_block_forward.2} parent=11 // pred_fallthru
        _
      // Predicated region
      $region29: #{swin_block_forward.2} parent=11 // pred_check
        %p240 = pneg %p145
      $region30: #{swin_block_forward.2} parent=11 // pred_check_branch
        %242 = sbr.rel (%p240) target = $region32
      $region31: #{swin_block_forward.2} parent=11 // pred_region
        _
      $region32: #{swin_block_forward.2} parent=11 // pred_fallthru
        _
      // Predicated region
      $region33: #{swin_block_forward.2} parent=11 // pred_check
        %p243 = pneg %p166
      $region34: #{swin_block_forward.2} parent=11 // pred_check_branch
        %245 = sbr.rel (%p243) target = $region36
      $region35: #{swin_block_forward.2} parent=11 // pred_region
        _
      $region36: #{swin_block_forward.2} parent=11 // pred_fallthru
        _
      // Predicated region
      $region37: #{swin_block_forward.2} parent=11 // pred_check
        %p246 = pneg %p187
      $region38: #{swin_block_forward.2} parent=11 // pred_check_branch
        %248 = sbr.rel (%p246) target = $region40
      $region39: #{swin_block_forward.2} parent=11 // pred_region
        _
      $region40: #{swin_block_forward.2} parent=11 // pred_fallthru
        _
    $region12: #{swin_block_forward.2} parent=5 // pred_fallthru
      _
    %p249 = scmp.lt.s32.totalorder %s14, 2
    // Predicated region
    $region41: #{swin_block_forward.2} parent=5 // pred_check
      %p250 = pneg %p249
    $region42: #{swin_block_forward.2} parent=5 // pred_check_branch
      %252 = sbr.rel (%p250) target = $region44
    $region43: #{swin_block_forward.2} parent=5 // pred_region
      // Predicated region
      $region45: #{swin_block_forward.2} parent=43 // pred_check
        %p253 = pneg %p34
      $region46: #{swin_block_forward.2} parent=43 // pred_check_branch
        %255 = sbr.rel (%p253) target = $region48
      $region47: #{swin_block_forward.2} parent=43 // pred_region
        %p256 = scmp.lt.s32.totalorder %s14, 1
        %s257 = scalar_select %p256, %s14, 1
        %s258 = smul.addr %s257, 32
        %s259 = smul.addr %s258, 8
        %s260 = scalar_lea.vmem %s0, %s259
      $region48: #{swin_block_forward.2} parent=43 // pred_fallthru
        _
    $region44: #{swin_block_forward.2} parent=5 // pred_fallthru
      _
    %p261 = scmp.le.s32.totalorder 1, %s14
    %p262 = scmp.lt.s32.totalorder %s14, 3
    %p263 = pnand %p261, %p262
    %p264 = pneg %p263
    // Predicated region
    $region49: #{swin_block_forward.2} parent=5 // pred_check
      _
    $region50: #{swin_block_forward.2} parent=5 // pred_check_branch
      %266 = sbr.rel (%p263) target = $region52
    $region51: #{swin_block_forward.2} parent=5 // pred_region
      %s267 = ssub.s32 %s14, 1
      %p268 = scmp.lt.s32.totalorder %s19, 1
      %s269 = scalar_select %p268, %s19, 1
      %s270 = smul.addr %s269, 32
      %s271 = smul.addr %s270, 8
      %s272 = scalar_lea.vmem %s0, %s271
      %p273 = pneg %p40
      %p274 = pneg %p37
      %p275 = pneg %p61
      %p276 = pneg %p58
      %p277 = pneg %p82
      %p278 = pneg %p79
      %p279 = pneg %p103
      %p280 = pneg %p100
      %p281 = pneg %p124
      %p282 = pneg %p121
      %p283 = pneg %p145
      %p284 = pneg %p142
      %p285 = pneg %p166
      %p286 = pneg %p163
      %p287 = pneg %p187
      %p288 = pneg %p184
      %p289 = pneg %p213
      %p290 = pneg %p210
      %p291 = scmp.lt.s32.totalorder %s19, 1
      %s292 = scalar_select %p291, %s19, 1
      %s293 = smul.addr %s292, 32
      %s294 = smul.addr %s293, 8
      %s295 = scalar_lea.vmem %s8, %s294
      %p296 = scmp.lt.s32.totalorder %s19, 1
      %s297 = scalar_select %p296, %s19, 1
      %s298 = smul.addr %s297, 32
      %s299 = smul.addr %s298, 8
      %s300 = scalar_lea.vmem %s0, %s299
      %p301 = scmp.lt.s32.totalorder %s19, 1
      %s302 = scalar_select %p301, %s19, 1
      %s303 = smul.addr %s302, 32
      %s304 = smul.addr %s303, 8
      %s305 = scalar_lea.vmem %s8, %s304
      %v306 = vld [vmem:[%s300] sm:$0xff]
      %v307 = vld [vmem:[%s300 + $0x8] sm:$0xff]
      %v308 = vld [vmem:[%s300 + $0x10] sm:$0xff]
      %v309 = vld [vmem:[%s300 + $0x18] sm:$0xff]
      %v310 = vld [vmem:[%s300 + $0x20] sm:$0xff]
      %v311 = vld [vmem:[%s300 + $0x28] sm:$0xff]
      %v312 = vld [vmem:[%s300 + $0x30] sm:$0xff]
      %v313 = vld [vmem:[%s300 + $0x38] sm:$0xff]
      %v314 = vld [vmem:[%s300 + $0x40] sm:$0xff]
      %v315 = vld [vmem:[%s300 + $0x48] sm:$0xff]
      %v316 = vld [vmem:[%s300 + $0x50] sm:$0xff]
      %v317 = vld [vmem:[%s300 + $0x58] sm:$0xff]
      %v318 = vld [vmem:[%s300 + $0x60] sm:$0xff]
      %v319 = vld [vmem:[%s300 + $0x68] sm:$0xff]
      %v320 = vld [vmem:[%s300 + $0x70] sm:$0xff]
      %v321 = vld [vmem:[%s300 + $0x78] sm:$0xff]
      %v322 = vld [vmem:[%s300 + $0x80] sm:$0xff]
      %v323 = vld [vmem:[%s300 + $0x88] sm:$0xff]
      %v324 = vld [vmem:[%s300 + $0x90] sm:$0xff]
      %v325 = vld [vmem:[%s300 + $0x98] sm:$0xff]
      %v326 = vld [vmem:[%s300 + $0xa0] sm:$0xff]
      %v327 = vld [vmem:[%s300 + $0xa8] sm:$0xff]
      %v328 = vld [vmem:[%s300 + $0xb0] sm:$0xff]
      %v329 = vld [vmem:[%s300 + $0xb8] sm:$0xff]
      %v330 = vld [vmem:[%s300 + $0xc0] sm:$0xff]
      %v331 = vld [vmem:[%s300 + $0xc8] sm:$0xff]
      %v332 = vld [vmem:[%s300 + $0xd0] sm:$0xff]
      %v333 = vld [vmem:[%s300 + $0xd8] sm:$0xff]
      %v334 = vld [vmem:[%s300 + $0xe0] sm:$0xff]
      %v335 = vld [vmem:[%s300 + $0xe8] sm:$0xff]
      %v336 = vld [vmem:[%s300 + $0xf0] sm:$0xff]
      %v337 = vld [vmem:[%s300 + $0xf8] sm:$0xff]
      %vm338 = vcmask 261120
      %v339 = vsel %vm338, %v306, 0.0
      %340 = vadd.xlane.f32.xlu0 %v339
      %v341 = vpop.xlane.xlu0 %340
      %v342 = vsel %vm338, %v307, 0.0
      %343 = vadd.xlane.f32.xlu0 %v342
      %v344 = vpop.xlane.xlu0 %343
      %v345 = vsel %vm338, %v308, 0.0
      %346 = vadd.xlane.f32.xlu0 %v345
      %v347 = vpop.xlane.xlu0 %346
      %v348 = vsel %vm338, %v309, 0.0
      %349 = vadd.xlane.f32.xlu0 %v348
      %v350 = vpop.xlane.xlu0 %349
      %v351 = vsel %vm338, %v310, 0.0
      %352 = vadd.xlane.f32.xlu0 %v351
      %v353 = vpop.xlane.xlu0 %352
      %v354 = vsel %vm338, %v311, 0.0
      %355 = vadd.xlane.f32.xlu0 %v354
      %v356 = vpop.xlane.xlu0 %355
      %v357 = vsel %vm338, %v312, 0.0
      %358 = vadd.xlane.f32.xlu0 %v357
      %v359 = vpop.xlane.xlu0 %358
      %v360 = vsel %vm338, %v313, 0.0
      %361 = vadd.xlane.f32.xlu0 %v360
      %v362 = vpop.xlane.xlu0 %361
      %v363 = vsel %vm338, %v314, 0.0
      %364 = vadd.xlane.f32.xlu0 %v363
      %v365 = vpop.xlane.xlu0 %364
      %v366 = vsel %vm338, %v315, 0.0
      %367 = vadd.xlane.f32.xlu0 %v366
      %v368 = vpop.xlane.xlu0 %367
      %v369 = vsel %vm338, %v316, 0.0
      %370 = vadd.xlane.f32.xlu0 %v369
      %v371 = vpop.xlane.xlu0 %370
      %v372 = vsel %vm338, %v317, 0.0
      %373 = vadd.xlane.f32.xlu0 %v372
      %v374 = vpop.xlane.xlu0 %373
      %v375 = vsel %vm338, %v318, 0.0
      %376 = vadd.xlane.f32.xlu0 %v375
      %v377 = vpop.xlane.xlu0 %376
      %v378 = vsel %vm338, %v319, 0.0
      %379 = vadd.xlane.f32.xlu0 %v378
      %v380 = vpop.xlane.xlu0 %379
      %v381 = vsel %vm338, %v320, 0.0
      %382 = vadd.xlane.f32.xlu0 %v381
      %v383 = vpop.xlane.xlu0 %382
      %v384 = vsel %vm338, %v321, 0.0
      %385 = vadd.xlane.f32.xlu0 %v384
      %v386 = vpop.xlane.xlu0 %385
      %v387 = vsel %vm338, %v322, 0.0
      %388 = vadd.xlane.f32.xlu0 %v387
      %v389 = vpop.xlane.xlu0 %388
      %v390 = vsel %vm338, %v323, 0.0
      %391 = vadd.xlane.f32.xlu0 %v390
      %v392 = vpop.xlane.xlu0 %391
      %v393 = vsel %vm338, %v324, 0.0
      %394 = vadd.xlane.f32.xlu0 %v393
      %v395 = vpop.xlane.xlu0 %394
      %v396 = vsel %vm338, %v325, 0.0
      %397 = vadd.xlane.f32.xlu0 %v396
      %v398 = vpop.xlane.xlu0 %397
      %v399 = vsel %vm338, %v326, 0.0
      %400 = vadd.xlane.f32.xlu0 %v399
      %v401 = vpop.xlane.xlu0 %400
      %v402 = vsel %vm338, %v327, 0.0
      %403 = vadd.xlane.f32.xlu0 %v402
      %v404 = vpop.xlane.xlu0 %403
      %v405 = vsel %vm338, %v328, 0.0
      %406 = vadd.xlane.f32.xlu0 %v405
      %v407 = vpop.xlane.xlu0 %406
      %v408 = vsel %vm338, %v329, 0.0
      %409 = vadd.xlane.f32.xlu0 %v408
      %v410 = vpop.xlane.xlu0 %409
      %v411 = vsel %vm338, %v330, 0.0
      %412 = vadd.xlane.f32.xlu0 %v411
      %v413 = vpop.xlane.xlu0 %412
      %v414 = vsel %vm338, %v331, 0.0
      %415 = vadd.xlane.f32.xlu0 %v414
      %v416 = vpop.xlane.xlu0 %415
      %v417 = vsel %vm338, %v332, 0.0
      %418 = vadd.xlane.f32.xlu0 %v417
      %v419 = vpop.xlane.xlu0 %418
      %v420 = vsel %vm338, %v333, 0.0
      %421 = vadd.xlane.f32.xlu0 %v420
      %v422 = vpop.xlane.xlu0 %421
      %v423 = vsel %vm338, %v334, 0.0
      %424 = vadd.xlane.f32.xlu0 %v423
      %v425 = vpop.xlane.xlu0 %424
      %v426 = vsel %vm338, %v335, 0.0
      %427 = vadd.xlane.f32.xlu0 %v426
      %v428 = vpop.xlane.xlu0 %427
      %v429 = vsel %vm338, %v336, 0.0
      %430 = vadd.xlane.f32.xlu0 %v429
      %v431 = vpop.xlane.xlu0 %430
      %v432 = vsel %vm338, %v337, 0.0
      %433 = vadd.xlane.f32.xlu0 %v432
      %v434 = vpop.xlane.xlu0 %433
      %v435 = vrcp.pop 32.0
      %v436 = vmul.f32 %v341, %v435
      %v437 = vmul.f32 %v344, %v435
      %v438 = vmul.f32 %v347, %v435
      %v439 = vmul.f32 %v350, %v435
      %v440 = vmul.f32 %v353, %v435
      %v441 = vmul.f32 %v356, %v435
      %v442 = vmul.f32 %v359, %v435
      %v443 = vmul.f32 %v362, %v435
      %v444 = vmul.f32 %v365, %v435
      %v445 = vmul.f32 %v368, %v435
      %v446 = vmul.f32 %v371, %v435
      %v447 = vmul.f32 %v374, %v435
      %v448 = vmul.f32 %v377, %v435
      %v449 = vmul.f32 %v380, %v435
      %v450 = vmul.f32 %v383, %v435
      %v451 = vmul.f32 %v386, %v435
      %v452 = vmul.f32 %v389, %v435
      %v453 = vmul.f32 %v392, %v435
      %v454 = vmul.f32 %v395, %v435
      %v455 = vmul.f32 %v398, %v435
      %v456 = vmul.f32 %v401, %v435
      %v457 = vmul.f32 %v404, %v435
      %v458 = vmul.f32 %v407, %v435
      %v459 = vmul.f32 %v410, %v435
      %v460 = vmul.f32 %v413, %v435
      %v461 = vmul.f32 %v416, %v435
      %v462 = vmul.f32 %v419, %v435
      %v463 = vmul.f32 %v422, %v435
      %v464 = vmul.f32 %v425, %v435
      %v465 = vmul.f32 %v428, %v435
      %v466 = vmul.f32 %v431, %v435
      %v467 = vmul.f32 %v434, %v435
      %v468 = vsub.f32 %v306, %v436
      %v469 = vsub.f32 %v307, %v437
      %v470 = vsub.f32 %v308, %v438
      %v471 = vsub.f32 %v309, %v439
      %v472 = vsub.f32 %v310, %v440
      %v473 = vsub.f32 %v311, %v441
      %v474 = vsub.f32 %v312, %v442
      %v475 = vsub.f32 %v313, %v443
      %v476 = vsub.f32 %v314, %v444
      %v477 = vsub.f32 %v315, %v445
      %v478 = vsub.f32 %v316, %v446
      %v479 = vsub.f32 %v317, %v447
      %v480 = vsub.f32 %v318, %v448
      %v481 = vsub.f32 %v319, %v449
      %v482 = vsub.f32 %v320, %v450
      %v483 = vsub.f32 %v321, %v451
      %v484 = vsub.f32 %v322, %v452
      %v485 = vsub.f32 %v323, %v453
      %v486 = vsub.f32 %v324, %v454
      %v487 = vsub.f32 %v325, %v455
      %v488 = vsub.f32 %v326, %v456
      %v489 = vsub.f32 %v327, %v457
      %v490 = vsub.f32 %v328, %v458
      %v491 = vsub.f32 %v329, %v459
      %v492 = vsub.f32 %v330, %v460
      %v493 = vsub.f32 %v331, %v461
      %v494 = vsub.f32 %v332, %v462
      %v495 = vsub.f32 %v333, %v463
      %v496 = vsub.f32 %v334, %v464
      %v497 = vsub.f32 %v335, %v465
      %v498 = vsub.f32 %v336, %v466
      %v499 = vsub.f32 %v337, %v467
      %v500 = vmul.f32 %v468, %v468
      %v501 = vmul.f32 %v469, %v469
      %v502 = vmul.f32 %v470, %v470
      %v503 = vmul.f32 %v471, %v471
      %v504 = vmul.f32 %v472, %v472
      %v505 = vmul.f32 %v473, %v473
      %v506 = vmul.f32 %v474, %v474
      %v507 = vmul.f32 %v475, %v475
      %v508 = vmul.f32 %v476, %v476
      %v509 = vmul.f32 %v477, %v477
      %v510 = vmul.f32 %v478, %v478
      %v511 = vmul.f32 %v479, %v479
      %v512 = vmul.f32 %v480, %v480
      %v513 = vmul.f32 %v481, %v481
      %v514 = vmul.f32 %v482, %v482
      %v515 = vmul.f32 %v483, %v483
      %v516 = vmul.f32 %v484, %v484
      %v517 = vmul.f32 %v485, %v485
      %v518 = vmul.f32 %v486, %v486
      %v519 = vmul.f32 %v487, %v487
      %v520 = vmul.f32 %v488, %v488
      %v521 = vmul.f32 %v489, %v489
      %v522 = vmul.f32 %v490, %v490
      %v523 = vmul.f32 %v491, %v491
      %v524 = vmul.f32 %v492, %v492
      %v525 = vmul.f32 %v493, %v493
      %v526 = vmul.f32 %v494, %v494
      %v527 = vmul.f32 %v495, %v495
      %v528 = vmul.f32 %v496, %v496
      %v529 = vmul.f32 %v497, %v497
      %v530 = vmul.f32 %v498, %v498
      %v531 = vmul.f32 %v499, %v499
      %v532 = vsel %vm338, %v500, 0.0
      %533 = vadd.xlane.f32.xlu0 %v532
      %v534 = vpop.xlane.xlu0 %533
      %v535 = vsel %vm338, %v501, 0.0
      %536 = vadd.xlane.f32.xlu0 %v535
      %v537 = vpop.xlane.xlu0 %536
      %v538 = vsel %vm338, %v502, 0.0
      %539 = vadd.xlane.f32.xlu0 %v538
      %v540 = vpop.xlane.xlu0 %539
      %v541 = vsel %vm338, %v503, 0.0
      %542 = vadd.xlane.f32.xlu0 %v541
      %v543 = vpop.xlane.xlu0 %542
      %v544 = vsel %vm338, %v504, 0.0
      %545 = vadd.xlane.f32.xlu0 %v544
      %v546 = vpop.xlane.xlu0 %545
      %v547 = vsel %vm338, %v505, 0.0
      %548 = vadd.xlane.f32.xlu0 %v547
      %v549 = vpop.xlane.xlu0 %548
      %v550 = vsel %vm338, %v506, 0.0
      %551 = vadd.xlane.f32.xlu0 %v550
      %v552 = vpop.xlane.xlu0 %551
      %v553 = vsel %vm338, %v507, 0.0
      %554 = vadd.xlane.f32.xlu0 %v553
      %v555 = vpop.xlane.xlu0 %554
      %v556 = vsel %vm338, %v508, 0.0
      %557 = vadd.xlane.f32.xlu0 %v556
      %v558 = vpop.xlane.xlu0 %557
      %v559 = vsel %vm338, %v509, 0.0
      %560 = vadd.xlane.f32.xlu0 %v559
      %v561 = vpop.xlane.xlu0 %560
      %v562 = vsel %vm338, %v510, 0.0
      %563 = vadd.xlane.f32.xlu0 %v562
      %v564 = vpop.xlane.xlu0 %563
      %v565 = vsel %vm338, %v511, 0.0
      %566 = vadd.xlane.f32.xlu0 %v565
      %v567 = vpop.xlane.xlu0 %566
      %v568 = vsel %vm338, %v512, 0.0
      %569 = vadd.xlane.f32.xlu0 %v568
      %v570 = vpop.xlane.xlu0 %569
      %v571 = vsel %vm338, %v513, 0.0
      %572 = vadd.xlane.f32.xlu0 %v571
      %v573 = vpop.xlane.xlu0 %572
      %v574 = vsel %vm338, %v514, 0.0
      %575 = vadd.xlane.f32.xlu0 %v574
      %v576 = vpop.xlane.xlu0 %575
      %v577 = vsel %vm338, %v515, 0.0
      %578 = vadd.xlane.f32.xlu0 %v577
      %v579 = vpop.xlane.xlu0 %578
      %v580 = vsel %vm338, %v516, 0.0
      %581 = vadd.xlane.f32.xlu0 %v580
      %v582 = vpop.xlane.xlu0 %581
      %v583 = vsel %vm338, %v517, 0.0
      %584 = vadd.xlane.f32.xlu0 %v583
      %v585 = vpop.xlane.xlu0 %584
      %v586 = vsel %vm338, %v518, 0.0
      %587 = vadd.xlane.f32.xlu0 %v586
      %v588 = vpop.xlane.xlu0 %587
      %v589 = vsel %vm338, %v519, 0.0
      %590 = vadd.xlane.f32.xlu0 %v589
      %v591 = vpop.xlane.xlu0 %590
      %v592 = vsel %vm338, %v520, 0.0
      %593 = vadd.xlane.f32.xlu0 %v592
      %v594 = vpop.xlane.xlu0 %593
      %v595 = vsel %vm338, %v521, 0.0
      %596 = vadd.xlane.f32.xlu0 %v595
      %v597 = vpop.xlane.xlu0 %596
      %v598 = vsel %vm338, %v522, 0.0
      %599 = vadd.xlane.f32.xlu0 %v598
      %v600 = vpop.xlane.xlu0 %599
      %v601 = vsel %vm338, %v523, 0.0
      %602 = vadd.xlane.f32.xlu0 %v601
      %v603 = vpop.xlane.xlu0 %602
      %v604 = vsel %vm338, %v524, 0.0
      %605 = vadd.xlane.f32.xlu0 %v604
      %v606 = vpop.xlane.xlu0 %605
      %v607 = vsel %vm338, %v525, 0.0
      %608 = vadd.xlane.f32.xlu0 %v607
      %v609 = vpop.xlane.xlu0 %608
      %v610 = vsel %vm338, %v526, 0.0
      %611 = vadd.xlane.f32.xlu0 %v610
      %v612 = vpop.xlane.xlu0 %611
      %v613 = vsel %vm338, %v527, 0.0
      %614 = vadd.xlane.f32.xlu0 %v613
      %v615 = vpop.xlane.xlu0 %614
      %v616 = vsel %vm338, %v528, 0.0
      %617 = vadd.xlane.f32.xlu0 %v616
      %v618 = vpop.xlane.xlu0 %617
      %v619 = vsel %vm338, %v529, 0.0
      %620 = vadd.xlane.f32.xlu0 %v619
      %v621 = vpop.xlane.xlu0 %620
      %v622 = vsel %vm338, %v530, 0.0
      %623 = vadd.xlane.f32.xlu0 %v622
      %v624 = vpop.xlane.xlu0 %623
      %v625 = vsel %vm338, %v531, 0.0
      %626 = vadd.xlane.f32.xlu0 %v625
      %v627 = vpop.xlane.xlu0 %626
      %v628 = vmul.f32 %v534, %v435
      %v629 = vmul.f32 %v537, %v435
      %v630 = vmul.f32 %v540, %v435
      %v631 = vmul.f32 %v543, %v435
      %v632 = vmul.f32 %v546, %v435
      %v633 = vmul.f32 %v549, %v435
      %v634 = vmul.f32 %v552, %v435
      %v635 = vmul.f32 %v555, %v435
      %v636 = vmul.f32 %v558, %v435
      %v637 = vmul.f32 %v561, %v435
      %v638 = vmul.f32 %v564, %v435
      %v639 = vmul.f32 %v567, %v435
      %v640 = vmul.f32 %v570, %v435
      %v641 = vmul.f32 %v573, %v435
      %v642 = vmul.f32 %v576, %v435
      %v643 = vmul.f32 %v579, %v435
      %v644 = vmul.f32 %v582, %v435
      %v645 = vmul.f32 %v585, %v435
      %v646 = vmul.f32 %v588, %v435
      %v647 = vmul.f32 %v591, %v435
      %v648 = vmul.f32 %v594, %v435
      %v649 = vmul.f32 %v597, %v435
      %v650 = vmul.f32 %v600, %v435
      %v651 = vmul.f32 %v603, %v435
      %v652 = vmul.f32 %v606, %v435
      %v653 = vmul.f32 %v609, %v435
      %v654 = vmul.f32 %v612, %v435
      %v655 = vmul.f32 %v615, %v435
      %v656 = vmul.f32 %v618, %v435
      %v657 = vmul.f32 %v621, %v435
      %v658 = vmul.f32 %v624, %v435
      %v659 = vmul.f32 %v627, %v435
      %v660 = vadd.f32 %v628, 1e-05
      %v661 = vadd.f32 %v629, 1e-05
      %v662 = vadd.f32 %v630, 1e-05
      %v663 = vadd.f32 %v631, 1e-05
      %v664 = vadd.f32 %v632, 1e-05
      %v665 = vadd.f32 %v633, 1e-05
      %v666 = vadd.f32 %v634, 1e-05
      %v667 = vadd.f32 %v635, 1e-05
      %v668 = vadd.f32 %v636, 1e-05
      %v669 = vadd.f32 %v637, 1e-05
      %v670 = vadd.f32 %v638, 1e-05
      %v671 = vadd.f32 %v639, 1e-05
      %v672 = vadd.f32 %v640, 1e-05
      %v673 = vadd.f32 %v641, 1e-05
      %v674 = vadd.f32 %v642, 1e-05
      %v675 = vadd.f32 %v643, 1e-05
      %v676 = vadd.f32 %v644, 1e-05
      %v677 = vadd.f32 %v645, 1e-05
      %v678 = vadd.f32 %v646, 1e-05
      %v679 = vadd.f32 %v647, 1e-05
      %v680 = vadd.f32 %v648, 1e-05
      %v681 = vadd.f32 %v649, 1e-05
      %v682 = vadd.f32 %v650, 1e-05
      %v683 = vadd.f32 %v651, 1e-05
      %v684 = vadd.f32 %v652, 1e-05
      %v685 = vadd.f32 %v653, 1e-05
      %v686 = vadd.f32 %v654, 1e-05
      %v687 = vadd.f32 %v655, 1e-05
      %v688 = vadd.f32 %v656, 1e-05
      %v689 = vadd.f32 %v657, 1e-05
      %v690 = vadd.f32 %v658, 1e-05
      %v691 = vadd.f32 %v659, 1e-05
      %v692 = vrsqrt.pop %v660
      %v693 = vrsqrt.pop %v661
      %v694 = vrsqrt.pop %v662
      %v695 = vrsqrt.pop %v663
      %v696 = vrsqrt.pop %v664
      %v697 = vrsqrt.pop %v665
      %v698 = vrsqrt.pop %v666
      %v699 = vrsqrt.pop %v667
      %v700 = vrsqrt.pop %v668
      %v701 = vrsqrt.pop %v669
      %v702 = vrsqrt.pop %v670
      %v703 = vrsqrt.pop %v671
      %v704 = vrsqrt.pop %v672
      %v705 = vrsqrt.pop %v673
      %v706 = vrsqrt.pop %v674
      %v707 = vrsqrt.pop %v675
      %v708 = vrsqrt.pop %v676
      %v709 = vrsqrt.pop %v677
      %v710 = vrsqrt.pop %v678
      %v711 = vrsqrt.pop %v679
      %v712 = vrsqrt.pop %v680
      %v713 = vrsqrt.pop %v681
      %v714 = vrsqrt.pop %v682
      %v715 = vrsqrt.pop %v683
      %v716 = vrsqrt.pop %v684
      %v717 = vrsqrt.pop %v685
      %v718 = vrsqrt.pop %v686
      %v719 = vrsqrt.pop %v687
      %v720 = vrsqrt.pop %v688
      %v721 = vrsqrt.pop %v689
      %v722 = vrsqrt.pop %v690
      %v723 = vrsqrt.pop %v691
      %v724 = vmul.f32 %v468, %v692
      %v725 = vmul.f32 %v469, %v693
      %v726 = vmul.f32 %v470, %v694
      %v727 = vmul.f32 %v471, %v695
      %v728 = vmul.f32 %v472, %v696
      %v729 = vmul.f32 %v473, %v697
      %v730 = vmul.f32 %v474, %v698
      %v731 = vmul.f32 %v475, %v699
      %v732 = vmul.f32 %v476, %v700
      %v733 = vmul.f32 %v477, %v701
      %v734 = vmul.f32 %v478, %v702
      %v735 = vmul.f32 %v479, %v703
      %v736 = vmul.f32 %v480, %v704
      %v737 = vmul.f32 %v481, %v705
      %v738 = vmul.f32 %v482, %v706
      %v739 = vmul.f32 %v483, %v707
      %v740 = vmul.f32 %v484, %v708
      %v741 = vmul.f32 %v485, %v709
      %v742 = vmul.f32 %v486, %v710
      %v743 = vmul.f32 %v487, %v711
      %v744 = vmul.f32 %v488, %v712
      %v745 = vmul.f32 %v489, %v713
      %v746 = vmul.f32 %v490, %v714
      %v747 = vmul.f32 %v491, %v715
      %v748 = vmul.f32 %v492, %v716
      %v749 = vmul.f32 %v493, %v717
      %v750 = vmul.f32 %v494, %v718
      %v751 = vmul.f32 %v495, %v719
      %v752 = vmul.f32 %v496, %v720
      %v753 = vmul.f32 %v497, %v721
      %v754 = vmul.f32 %v498, %v722
      %v755 = vmul.f32 %v499, %v723
      %v756 = vld [vmem:[%s5] sm:$0x1]
      %v758 = vlaneseq
      %v759 = vshrl.u32 %v758, 7
      %v760 = vsub.s32 0, %v759
      %v761 = vrot.slane %v756, %v760
      %v763 = vmul.f32 %v724, %v761
      %v764 = vmul.f32 %v725, %v761
      %v765 = vmul.f32 %v726, %v761
      %v766 = vmul.f32 %v727, %v761
      %v767 = vmul.f32 %v728, %v761
      %v768 = vmul.f32 %v729, %v761
      %v769 = vmul.f32 %v730, %v761
      %v770 = vmul.f32 %v731, %v761
      %v771 = vmul.f32 %v732, %v761
      %v772 = vmul.f32 %v733, %v761
      %v773 = vmul.f32 %v734, %v761
      %v774 = vmul.f32 %v735, %v761
      %v775 = vmul.f32 %v736, %v761
      %v776 = vmul.f32 %v737, %v761
      %v777 = vmul.f32 %v738, %v761
      %v778 = vmul.f32 %v739, %v761
      %v779 = vmul.f32 %v740, %v761
      %v780 = vmul.f32 %v741, %v761
      %v781 = vmul.f32 %v742, %v761
      %v782 = vmul.f32 %v743, %v761
      %v783 = vmul.f32 %v744, %v761
      %v784 = vmul.f32 %v745, %v761
      %v785 = vmul.f32 %v746, %v761
      %v786 = vmul.f32 %v747, %v761
      %v787 = vmul.f32 %v748, %v761
      %v788 = vmul.f32 %v749, %v761
      %v789 = vmul.f32 %v750, %v761
      %v790 = vmul.f32 %v751, %v761
      %v791 = vmul.f32 %v752, %v761
      %v792 = vmul.f32 %v753, %v761
      %v793 = vmul.f32 %v754, %v761
      %v794 = vmul.f32 %v755, %v761
      %v795 = vld [vmem:[%s6] sm:$0x1]
      %v797 = vlaneseq
      %v798 = vshrl.u32 %v797, 7
      %v799 = vsub.s32 0, %v798
      %v800 = vrot.slane %v795, %v799
      %v802 = vadd.f32 %v763, %v800
      %v803 = vadd.f32 %v764, %v800
      %v804 = vadd.f32 %v765, %v800
      %v805 = vadd.f32 %v766, %v800
      %v806 = vadd.f32 %v767, %v800
      %v807 = vadd.f32 %v768, %v800
      %v808 = vadd.f32 %v769, %v800
      %v809 = vadd.f32 %v770, %v800
      %v810 = vadd.f32 %v771, %v800
      %v811 = vadd.f32 %v772, %v800
      %v812 = vadd.f32 %v773, %v800
      %v813 = vadd.f32 %v774, %v800
      %v814 = vadd.f32 %v775, %v800
      %v815 = vadd.f32 %v776, %v800
      %v816 = vadd.f32 %v777, %v800
      %v817 = vadd.f32 %v778, %v800
      %v818 = vadd.f32 %v779, %v800
      %v819 = vadd.f32 %v780, %v800
      %v820 = vadd.f32 %v781, %v800
      %v821 = vadd.f32 %v782, %v800
      %v822 = vadd.f32 %v783, %v800
      %v823 = vadd.f32 %v784, %v800
      %v824 = vadd.f32 %v785, %v800
      %v825 = vadd.f32 %v786, %v800
      %v826 = vadd.f32 %v787, %v800
      %v827 = vadd.f32 %v788, %v800
      %v828 = vadd.f32 %v789, %v800
      %v829 = vadd.f32 %v790, %v800
      %v830 = vadd.f32 %v791, %v800
      %v831 = vadd.f32 %v792, %v800
      %v832 = vadd.f32 %v793, %v800
      %v833 = vadd.f32 %v794, %v800
      %v834 = vld [vmem:[%s1] sm:$0xff]
      %v835 = vld [vmem:[%s1 + $0x8] sm:$0xff]
      %v836 = vld [vmem:[%s1 + $0x10] sm:$0xff]
      %v837 = vld [vmem:[%s1 + $0x18] sm:$0xff]
      %v838 = vld [vmem:[%s2] sm:$0x1]
      %v840 = vlaneseq
      %v841 = vshrl.u32 %v840, 7
      %v842 = vsub.s32 0, %v841
      %v843 = vrot.slane %v838, %v842
      %v846 = vsel %vm338, %v802, 0
      %v849 = vsel %vm338, %v803, 0
      %v852 = vsel %vm338, %v804, 0
      %v855 = vsel %vm338, %v805, 0
      %v858 = vsel %vm338, %v806, 0
      %v861 = vsel %vm338, %v807, 0
      %v864 = vsel %vm338, %v808, 0
      %v867 = vsel %vm338, %v809, 0
      %v870 = vsel %vm338, %v810, 0
      %v873 = vsel %vm338, %v811, 0
      %v876 = vsel %vm338, %v812, 0
      %v879 = vsel %vm338, %v813, 0
      %v882 = vsel %vm338, %v814, 0
      %v885 = vsel %vm338, %v815, 0
      %v888 = vsel %vm338, %v816, 0
      %v891 = vsel %vm338, %v817, 0
      %v894 = vsel %vm338, %v818, 0
      %v897 = vsel %vm338, %v819, 0
      %v900 = vsel %vm338, %v820, 0
      %v903 = vsel %vm338, %v821, 0
      %v906 = vsel %vm338, %v822, 0
      %v909 = vsel %vm338, %v823, 0
      %v912 = vsel %vm338, %v824, 0
      %v915 = vsel %vm338, %v825, 0
      %v918 = vsel %vm338, %v826, 0
      %v921 = vsel %vm338, %v827, 0
      %v924 = vsel %vm338, %v828, 0
      %v927 = vsel %vm338, %v829, 0
      %v930 = vsel %vm338, %v830, 0
      %v933 = vsel %vm338, %v831, 0
      %v936 = vsel %vm338, %v832, 0
      %v939 = vsel %vm338, %v833, 0
      %941 = vmatprep.subr.mxu0 0.0
      %942 = vmatpush1.msra.mxu0 %v834
      %943 = vmatprep.subr.mxu0 0.0
      %944 = vmatpush1.msra.mxu0 %v835
      %945 = vmatprep.subr.mxu0 0.0
      %946 = vmatpush1.msra.mxu0 %v836
      %947 = vmatprep.subr.mxu0 0.0
      %948 = vmatpush1.msra.mxu0 %v837
      %949 = vmatprep.subr.mxu0 0.0
      %950 = vmatpush1.msra.mxu0 0.0
      %951 = vmatprep.subr.mxu0 0.0
      %952 = vmatpush1.msra.mxu0 0.0
      %953 = vmatprep.subr.mxu0 0.0
      %954 = vmatpush1.msra.mxu0 0.0
      %955 = vmatprep.subr.mxu0 0.0
      %956 = vmatpush1.msra.mxu0 0.0
      %957 = vmatprep.subr.mxu0 0.0
      %958 = vmatpush1.msra.mxu0 0.0
      %959 = vmatprep.subr.mxu0 0.0
      %960 = vmatpush1.msra.mxu0 0.0
      %961 = vmatprep.subr.mxu0 0.0
      %962 = vmatpush1.msra.mxu0 0.0
      %963 = vmatprep.subr.mxu0 0.0
      %964 = vmatpush1.msra.mxu0 0.0
      %965 = vmatprep.subr.mxu0 0.0
      %966 = vmatpush1.msra.mxu0 0.0
      %967 = vmatprep.subr.mxu0 0.0
      %968 = vmatpush1.msra.mxu0 0.0
      %969 = vmatprep.subr.mxu0 0.0
      %970 = vmatpush1.msra.mxu0 0.0
      %971 = vmatprep.subr.mxu0 0.0
      %972 = vmatpush1.msra.mxu0 0.0
      %973 = vmatprep.subr.mxu0 0.0
      %974 = vmatpush1.msra.mxu0 0.0
      %975 = vmatprep.subr.mxu0 0.0
      %976 = vmatpush1.msra.mxu0 0.0
      %977 = vmatprep.subr.mxu0 0.0
      %978 = vmatpush1.msra.mxu0 0.0
      %979 = vmatprep.subr.mxu0 0.0
      %980 = vmatpush1.msra.mxu0 0.0
      %981 = vmatprep.subr.mxu0 0.0
      %982 = vmatpush1.msra.mxu0 0.0
      %983 = vmatprep.subr.mxu0 0.0
      %984 = vmatpush1.msra.mxu0 0.0
      %985 = vmatprep.subr.mxu0 0.0
      %986 = vmatpush1.msra.mxu0 0.0
      %987 = vmatprep.subr.mxu0 0.0
      %988 = vmatpush1.msra.mxu0 0.0
      %989 = vmatprep.subr.mxu0 0.0
      %990 = vmatpush1.msra.mxu0 0.0
      %991 = vmatprep.subr.mxu0 0.0
      %992 = vmatpush1.msra.mxu0 0.0
      %993 = vmatprep.subr.mxu0 0.0
      %994 = vmatpush1.msra.mxu0 0.0
      %995 = vmatprep.subr.mxu0 0.0
      %996 = vmatpush1.msra.mxu0 0.0
      %997 = vmatprep.subr.mxu0 0.0
      %998 = vmatpush1.msra.mxu0 0.0
      %999 = vmatprep.subr.mxu0 0.0
      %1000 = vmatpush1.msra.mxu0 0.0
      %1001 = vmatprep.subr.mxu0 0.0
      %1002 = vmatpush1.msra.mxu0 0.0
      %1003 = vmatprep.subr.mxu0 0.0
      %1004 = vmatpush1.msra.mxu0 0.0
      %1005 = vmatprep.mubr.f32.mxu0 0.0
      %1006 = vmatmul.mubr.f32.gmra.mrb[0].mxu0 %v846
      %v1007 = vpop.f32.mrb[0].mxu0
      %v1008 = vadd.f32 %v843, %v1007
      %v1009 = vpop.f32.mrb[0].mxu0
      %1010 = vmatprep.mubr.f32.mxu0 0.0
      %1011 = vmatmul.mubr.f32.gmra.mrb[0].mxu0 %v849
      %v1012 = vpop.f32.mrb[0].mxu0
      %v1013 = vadd.f32 %v843, %v1012
      %v1014 = vpop.f32.mrb[0].mxu0
      %1015 = vmatprep.mubr.f32.mxu0 0.0
      %1016 = vmatmul.mubr.f32.gmra.mrb[0].mxu0 %v852
      %v1017 = vpop.f32.mrb[0].mxu0
      %v1018 = vadd.f32 %v843, %v1017
      %v1019 = vpop.f32.mrb[0].mxu0
      %1020 = vmatprep.mubr.f32.mxu0 0.0
      %1021 = vmatmul.mubr.f32.gmra.mrb[0].mxu0 %v855
      %v1022 = vpop.f32.mrb[0].mxu0
      %v1023 = vadd.f32 %v843, %v1022
      %v1024 = vpop.f32.mrb[0].mxu0
      %1025 = vmatprep.mubr.f32.mxu0 0.0
      %1026 = vmatmul.mubr.f32.gmra.mrb[0].mxu0 %v858
      %v1027 = vpop.f32.mrb[0].mxu0
      %v1028 = vadd.f32 %v843, %v1027
      %v1029 = vpop.f32.mrb[0].mxu0
      %1030 = vmatprep.mubr.f32.mxu0 0.0
      %1031 = vmatmul.mubr.f32.gmra.mrb[0].mxu0 %v861
      %v1032 = vpop.f32.mrb[0].mxu0
      %v1033 = vadd.f32 %v843, %v1032
      %v1034 = vpop.f32.mrb[0].mxu0
      %1035 = vmatprep.mubr.f32.mxu0 0.0
      %1036 = vmatmul.mubr.f32.gmra.mrb[0].mxu0 %v864
      %v1037 = vpop.f32.mrb[0].mxu0
      %v1038 = vadd.f32 %v843, %v1037
      %v1039 = vpop.f32.mrb[0].mxu0
      %1040 = vmatprep.mubr.f32.mxu0 0.0
      %1041 = vmatmul.mubr.f32.gmra.mrb[0].mxu0 %v867
      %v1042 = vpop.f32.mrb[0].mxu0
      %v1043 = vadd.f32 %v843, %v1042
      %v1044 = vpop.f32.mrb[0].mxu0
      %1045 = vmatprep.mubr.f32.mxu0 0.0
      %1046 = vmatmul.mubr.f32.gmra.mrb[0].mxu0 %v870
      %v1047 = vpop.f32.mrb[0].mxu0
      %v1048 = vadd.f32 %v843, %v1047
      %v1049 = vpop.f32.mrb[0].mxu0
      %1050 = vmatprep.mubr.f32.mxu0 0.0
      %1051 = vmatmul.mubr.f32.gmra.mrb[0].mxu0 %v873
      %v1052 = vpop.f32.mrb[0].mxu0
      %v1053 = vadd.f32 %v843, %v1052
      %v1054 = vpop.f32.mrb[0].mxu0
      %1055 = vmatprep.mubr.f32.mxu0 0.0
      %1056 = vmatmul.mubr.f32.gmra.mrb[0].mxu0 %v876
      %v1057 = vpop.f32.mrb[0].mxu0
      %v1058 = vadd.f32 %v843, %v1057
      %v1059 = vpop.f32.mrb[0].mxu0
      %1060 = vmatprep.mubr.f32.mxu0 0.0
      %1061 = vmatmul.mubr.f32.gmra.mrb[0].mxu0 %v879
      %v1062 = vpop.f32.mrb[0].mxu0
      %v1063 = vadd.f32 %v843, %v1062
      %v1064 = vpop.f32.mrb[0].mxu0
      %1065 = vmatprep.mubr.f32.mxu0 0.0
      %1066 = vmatmul.mubr.f32.gmra.mrb[0].mxu0 %v882
      %v1067 = vpop.f32.mrb[0].mxu0
      %v1068 = vadd.f32 %v843, %v1067
      %v1069 = vpop.f32.mrb[0].mxu0
      %1070 = vmatprep.mubr.f32.mxu0 0.0
      %1071 = vmatmul.mubr.f32.gmra.mrb[0].mxu0 %v885
      %v1072 = vpop.f32.mrb[0].mxu0
      %v1073 = vadd.f32 %v843, %v1072
      %v1074 = vpop.f32.mrb[0].mxu0
      %1075 = vmatprep.mubr.f32.mxu0 0.0
      %1076 = vmatmul.mubr.f32.gmra.mrb[0].mxu0 %v888
      %v1077 = vpop.f32.mrb[0].mxu0
      %v1078 = vadd.f32 %v843, %v1077
      %v1079 = vpop.f32.mrb[0].mxu0
      %1080 = vmatprep.mubr.f32.mxu0 0.0
      %1081 = vmatmul.mubr.f32.gmra.mrb[0].mxu0 %v891
      %v1082 = vpop.f32.mrb[0].mxu0
      %v1083 = vadd.f32 %v843, %v1082
      %v1084 = vpop.f32.mrb[0].mxu0
      %1085 = vmatprep.mubr.f32.mxu0 0.0
      %1086 = vmatmul.mubr.f32.gmra.mrb[0].mxu0 %v894
      %v1087 = vpop.f32.mrb[0].mxu0
      %v1088 = vadd.f32 %v843, %v1087
      %v1089 = vpop.f32.mrb[0].mxu0
      %1090 = vmatprep.mubr.f32.mxu0 0.0
      %1091 = vmatmul.mubr.f32.gmra.mrb[0].mxu0 %v897
      %v1092 = vpop.f32.mrb[0].mxu0
      %v1093 = vadd.f32 %v843, %v1092
      %v1094 = vpop.f32.mrb[0].mxu0
      %1095 = vmatprep.mubr.f32.mxu0 0.0
      %1096 = vmatmul.mubr.f32.gmra.mrb[0].mxu0 %v900
      %v1097 = vpop.f32.mrb[0].mxu0
      %v1098 = vadd.f32 %v843, %v1097
      %v1099 = vpop.f32.mrb[0].mxu0
      %1100 = vmatprep.mubr.f32.mxu0 0.0
      %1101 = vmatmul.mubr.f32.gmra.mrb[0].mxu0 %v903
      %v1102 = vpop.f32.mrb[0].mxu0
      %v1103 = vadd.f32 %v843, %v1102
      %v1104 = vpop.f32.mrb[0].mxu0
      %1105 = vmatprep.mubr.f32.mxu0 0.0
      %1106 = vmatmul.mubr.f32.gmra.mrb[0].mxu0 %v906
      %v1107 = vpop.f32.mrb[0].mxu0
      %v1108 = vadd.f32 %v843, %v1107
      %v1109 = vpop.f32.mrb[0].mxu0
      %1110 = vmatprep.mubr.f32.mxu0 0.0
      %1111 = vmatmul.mubr.f32.gmra.mrb[0].mxu0 %v909
      %v1112 = vpop.f32.mrb[0].mxu0
      %v1113 = vadd.f32 %v843, %v1112
      %v1114 = vpop.f32.mrb[0].mxu0
      %1115 = vmatprep.mubr.f32.mxu0 0.0
      %1116 = vmatmul.mubr.f32.gmra.mrb[0].mxu0 %v912
      %v1117 = vpop.f32.mrb[0].mxu0
      %v1118 = vadd.f32 %v843, %v1117
      %v1119 = vpop.f32.mrb[0].mxu0
      %1120 = vmatprep.mubr.f32.mxu0 0.0
      %1121 = vmatmul.mubr.f32.gmra.mrb[0].mxu0 %v915
      %v1122 = vpop.f32.mrb[0].mxu0
      %v1123 = vadd.f32 %v843, %v1122
      %v1124 = vpop.f32.mrb[0].mxu0
      %1125 = vmatprep.mubr.f32.mxu0 0.0
      %1126 = vmatmul.mubr.f32.gmra.mrb[0].mxu0 %v918
      %v1127 = vpop.f32.mrb[0].mxu0
      %v1128 = vadd.f32 %v843, %v1127
      %v1129 = vpop.f32.mrb[0].mxu0
      %1130 = vmatprep.mubr.f32.mxu0 0.0
      %1131 = vmatmul.mubr.f32.gmra.mrb[0].mxu0 %v921
      %v1132 = vpop.f32.mrb[0].mxu0
      %v1133 = vadd.f32 %v843, %v1132
      %v1134 = vpop.f32.mrb[0].mxu0
      %1135 = vmatprep.mubr.f32.mxu0 0.0
      %1136 = vmatmul.mubr.f32.gmra.mrb[0].mxu0 %v924
      %v1137 = vpop.f32.mrb[0].mxu0
      %v1138 = vadd.f32 %v843, %v1137
      %v1139 = vpop.f32.mrb[0].mxu0
      %1140 = vmatprep.mubr.f32.mxu0 0.0
      %1141 = vmatmul.mubr.f32.gmra.mrb[0].mxu0 %v927
      %v1142 = vpop.f32.mrb[0].mxu0
      %v1143 = vadd.f32 %v843, %v1142
      %v1144 = vpop.f32.mrb[0].mxu0
      %1145 = vmatprep.mubr.f32.mxu0 0.0
      %1146 = vmatmul.mubr.f32.gmra.mrb[0].mxu0 %v930
      %v1147 = vpop.f32.mrb[0].mxu0
      %v1148 = vadd.f32 %v843, %v1147
      %v1149 = vpop.f32.mrb[0].mxu0
      %1150 = vmatprep.mubr.f32.mxu0 0.0
      %1151 = vmatmul.mubr.f32.gmra.mrb[0].mxu0 %v933
      %v1152 = vpop.f32.mrb[0].mxu0
      %v1153 = vadd.f32 %v843, %v1152
      %v1154 = vpop.f32.mrb[0].mxu0
      %1155 = vmatprep.mubr.f32.mxu0 0.0
      %1156 = vmatmul.mubr.f32.gmra.mrb[0].mxu0 %v936
      %v1157 = vpop.f32.mrb[0].mxu0
      %v1158 = vadd.f32 %v843, %v1157
      %v1159 = vpop.f32.mrb[0].mxu0
      %1160 = vmatprep.mubr.f32.mxu0 0.0
      %1161 = vmatmul.mubr.f32.gmra.mrb[0].mxu0 %v939
      %v1162 = vpop.f32.mrb[0].mxu0
      %v1163 = vadd.f32 %v843, %v1162
      %v1164 = vpop.f32.mrb[0].mxu0
      %1165 = vdwg.mxu0
      %v1166 = vmul.f32 %v1008, 0.35355338
      %v1167 = vmul.f32 %v1013, 0.35355338
      %v1168 = vmul.f32 %v1018, 0.35355338
      %v1169 = vmul.f32 %v1023, 0.35355338
      %v1170 = vmul.f32 %v1028, 0.35355338
      %v1171 = vmul.f32 %v1033, 0.35355338
      %v1172 = vmul.f32 %v1038, 0.35355338
      %v1173 = vmul.f32 %v1043, 0.35355338
      %v1174 = vmul.f32 %v1048, 0.35355338
      %v1175 = vmul.f32 %v1053, 0.35355338
      %v1176 = vmul.f32 %v1058, 0.35355338
      %v1177 = vmul.f32 %v1063, 0.35355338
      %v1178 = vmul.f32 %v1068, 0.35355338
      %v1179 = vmul.f32 %v1073, 0.35355338
      %v1180 = vmul.f32 %v1078, 0.35355338
      %v1181 = vmul.f32 %v1083, 0.35355338
      %v1182 = vmul.f32 %v1088, 0.35355338
      %v1183 = vmul.f32 %v1093, 0.35355338
      %v1184 = vmul.f32 %v1098, 0.35355338
      %v1185 = vmul.f32 %v1103, 0.35355338
      %v1186 = vmul.f32 %v1108, 0.35355338
      %v1187 = vmul.f32 %v1113, 0.35355338
      %v1188 = vmul.f32 %v1118, 0.35355338
      %v1189 = vmul.f32 %v1123, 0.35355338
      %v1190 = vmul.f32 %v1128, 0.35355338
      %v1191 = vmul.f32 %v1133, 0.35355338
      %v1192 = vmul.f32 %v1138, 0.35355338
      %v1193 = vmul.f32 %v1143, 0.35355338
      %v1194 = vmul.f32 %v1148, 0.35355338
      %v1195 = vmul.f32 %v1153, 0.35355338
      %v1196 = vmul.f32 %v1158, 0.35355338
      %v1197 = vmul.f32 %v1163, 0.35355338
      %v1198 = vld [vmem:[%s7] sm:$0xff]
      %v1199 = vld [vmem:[%s7 + $0x8] sm:$0xff]
      %v1200 = vld [vmem:[%s7 + $0x10] sm:$0xff]
      %v1201 = vld [vmem:[%s7 + $0x18] sm:$0xff]
      %v1202 = vld [vmem:[%s7 + $0x20] sm:$0xff]
      %v1203 = vld [vmem:[%s7 + $0x28] sm:$0xff]
      %v1204 = vld [vmem:[%s7 + $0x30] sm:$0xff]
      %v1205 = vld [vmem:[%s7 + $0x38] sm:$0xff]
      %v1206 = vld [vmem:[%s7 + $0x40] sm:$0xff]
      %v1207 = vld [vmem:[%s7 + $0x48] sm:$0xff]
      %v1208 = vld [vmem:[%s7 + $0x50] sm:$0xff]
      %v1209 = vld [vmem:[%s7 + $0x58] sm:$0xff]
      %v1210 = vld [vmem:[%s7 + $0x60] sm:$0xff]
      %v1211 = vld [vmem:[%s7 + $0x68] sm:$0xff]
      %v1212 = vld [vmem:[%s7 + $0x70] sm:$0xff]
      %v1213 = vld [vmem:[%s7 + $0x78] sm:$0xff]
      %v1214 = vld [vmem:[%s7 + $0x80] sm:$0xff]
      %v1215 = vld [vmem:[%s7 + $0x88] sm:$0xff]
      %v1216 = vld [vmem:[%s7 + $0x90] sm:$0xff]
      %v1217 = vld [vmem:[%s7 + $0x98] sm:$0xff]
      %v1218 = vld [vmem:[%s7 + $0xa0] sm:$0xff]
      %v1219 = vld [vmem:[%s7 + $0xa8] sm:$0xff]
      %v1220 = vld [vmem:[%s7 + $0xb0] sm:$0xff]
      %v1221 = vld [vmem:[%s7 + $0xb8] sm:$0xff]
      %v1222 = vld [vmem:[%s7 + $0xc0] sm:$0xff]
      %v1223 = vld [vmem:[%s7 + $0xc8] sm:$0xff]
      %v1224 = vld [vmem:[%s7 + $0xd0] sm:$0xff]
      %v1225 = vld [vmem:[%s7 + $0xd8] sm:$0xff]
      %v1226 = vld [vmem:[%s7 + $0xe0] sm:$0xff]
      %v1227 = vld [vmem:[%s7 + $0xe8] sm:$0xff]
      %v1228 = vld [vmem:[%s7 + $0xf0] sm:$0xff]
      %v1229 = vld [vmem:[%s7 + $0xf8] sm:$0xff]
      %1238 = vrot.lane.b32.xlu0 %v1008, 96
      %v1239 = vpop.permute.xlu0 %1238
      %1240 = vrot.lane.b32.xlu0 %v1013, 96
      %v1241 = vpop.permute.xlu0 %1240
      %1242 = vrot.lane.b32.xlu0 %v1018, 96
      %v1243 = vpop.permute.xlu0 %1242
      %1244 = vrot.lane.b32.xlu0 %v1023, 96
      %v1245 = vpop.permute.xlu0 %1244
      %1246 = vrot.lane.b32.xlu0 %v1028, 96
      %v1247 = vpop.permute.xlu0 %1246
      %1248 = vrot.lane.b32.xlu0 %v1033, 96
      %v1249 = vpop.permute.xlu0 %1248
      %1250 = vrot.lane.b32.xlu0 %v1038, 96
      %v1251 = vpop.permute.xlu0 %1250
      %1252 = vrot.lane.b32.xlu0 %v1043, 96
      %v1253 = vpop.permute.xlu0 %1252
      %vm1254 = vcmask 64512
      %v1256 = vsel %vm1254, %v1166, 0
      %v1259 = vsel %vm1254, %v1167, 0
      %v1262 = vsel %vm1254, %v1168, 0
      %v1265 = vsel %vm1254, %v1169, 0
      %v1268 = vsel %vm1254, %v1170, 0
      %v1271 = vsel %vm1254, %v1171, 0
      %v1274 = vsel %vm1254, %v1172, 0
      %v1277 = vsel %vm1254, %v1173, 0
      %v1279 = vsel %vm1254, %v1239, 0
      %v1281 = vsel %vm1254, %v1241, 0
      %v1283 = vsel %vm1254, %v1243, 0
      %v1285 = vsel %vm1254, %v1245, 0
      %v1287 = vsel %vm1254, %v1247, 0
      %v1289 = vsel %vm1254, %v1249, 0
      %v1291 = vsel %vm1254, %v1251, 0
      %v1293 = vsel %vm1254, %v1253, 0
      %1295 = vmatprep.subr.mxu0 0.0
      %1296 = vmatpush1.xpose.msra.mxu0 %v1279
      %1297 = vmatprep.subr.mxu0 0.0
      %1298 = vmatpush1.xpose.msra.mxu0 %v1281
      %1299 = vmatprep.subr.mxu0 0.0
      %1300 = vmatpush1.xpose.msra.mxu0 %v1283
      %1301 = vmatprep.subr.mxu0 0.0
      %1302 = vmatpush1.xpose.msra.mxu0 %v1285
      %1303 = vmatprep.subr.mxu0 0.0
      %1304 = vmatpush1.xpose.msra.mxu0 %v1287
      %1305 = vmatprep.subr.mxu0 0.0
      %1306 = vmatpush1.xpose.msra.mxu0 %v1289
      %1307 = vmatprep.subr.mxu0 0.0
      %1308 = vmatpush1.xpose.msra.mxu0 %v1291
      %1309 = vmatprep.subr.mxu0 0.0
      %1310 = vmatpush1.xpose.msra.mxu0 %v1293
      %1311 = vmatprep.subr.mxu0 0.0
      %1312 = vmatpush1.xpose.msra.mxu0 0.0
      %1313 = vmatprep.subr.mxu0 0.0
      %1314 = vmatpush1.xpose.msra.mxu0 0.0
      %1315 = vmatprep.subr.mxu0 0.0
      %1316 = vmatpush1.xpose.msra.mxu0 0.0
      %1317 = vmatprep.subr.mxu0 0.0
      %1318 = vmatpush1.xpose.msra.mxu0 0.0
      %1319 = vmatprep.subr.mxu0 0.0
      %1320 = vmatpush1.xpose.msra.mxu0 0.0
      %1321 = vmatprep.subr.mxu0 0.0
      %1322 = vmatpush1.xpose.msra.mxu0 0.0
      %1323 = vmatprep.subr.mxu0 0.0
      %1324 = vmatpush1.xpose.msra.mxu0 0.0
      %1325 = vmatprep.subr.mxu0 0.0
      %1326 = vmatpush1.xpose.msra.mxu0 0.0
      %1327 = vmatprep.subr.mxu0 0.0
      %1328 = vmatpush1.xpose.msra.mxu0 0.0
      %1329 = vmatprep.subr.mxu0 0.0
      %1330 = vmatpush1.xpose.msra.mxu0 0.0
      %1331 = vmatprep.subr.mxu0 0.0
      %1332 = vmatpush1.xpose.msra.mxu0 0.0
      %1333 = vmatprep.subr.mxu0 0.0
      %1334 = vmatpush1.xpose.msra.mxu0 0.0
      %1335 = vmatprep.subr.mxu0 0.0
      %1336 = vmatpush1.xpose.msra.mxu0 0.0
      %1337 = vmatprep.subr.mxu0 0.0
      %1338 = vmatpush1.xpose.msra.mxu0 0.0
      %1339 = vmatprep.subr.mxu0 0.0
      %1340 = vmatpush1.xpose.msra.mxu0 0.0
      %1341 = vmatprep.subr.mxu0 0.0
      %1342 = vmatpush1.xpose.msra.mxu0 0.0
      %1343 = vmatprep.subr.mxu0 0.0
      %1344 = vmatpush1.xpose.msra.mxu0 0.0
      %1345 = vmatprep.subr.mxu0 0.0
      %1346 = vmatpush1.xpose.msra.mxu0 0.0
      %1347 = vmatprep.subr.mxu0 0.0
      %1348 = vmatpush1.xpose.msra.mxu0 0.0
      %1349 = vmatprep.subr.mxu0 0.0
      %1350 = vmatpush1.xpose.msra.mxu0 0.0
      %1351 = vmatprep.subr.mxu0 0.0
      %1352 = vmatpush1.xpose.msra.mxu0 0.0
      %1353 = vmatprep.subr.mxu0 0.0
      %1354 = vmatpush1.xpose.msra.mxu0 0.0
      %1355 = vmatprep.subr.mxu0 0.0
      %1356 = vmatpush1.xpose.msra.mxu0 0.0
      %1357 = vmatprep.subr.mxu0 0.0
      %1358 = vmatpush1.xpose.msra.mxu0 0.0
      %1359 = vmatprep.mubr.f32.mxu0 0.0
      %1360 = vmatmul.mubr.f32.gmra.mrb[0].mxu0 %v1256
      %v1361 = vpop.f32.mrb[0].mxu0
      %v1362 = vadd.f32 %v1198, %v1361
      %v1363 = vpop.f32.mrb[0].mxu0
      %1364 = vmatprep.mubr.f32.mxu0 0.0
      %1365 = vmatmul.mubr.f32.gmra.mrb[0].mxu0 %v1259
      %v1366 = vpop.f32.mrb[0].mxu0
      %v1367 = vadd.f32 %v1199, %v1366
      %v1368 = vpop.f32.mrb[0].mxu0
      %1369 = vmatprep.mubr.f32.mxu0 0.0
      %1370 = vmatmul.mubr.f32.gmra.mrb[0].mxu0 %v1262
      %v1371 = vpop.f32.mrb[0].mxu0
      %v1372 = vadd.f32 %v1200, %v1371
      %v1373 = vpop.f32.mrb[0].mxu0
      %1374 = vmatprep.mubr.f32.mxu0 0.0
      %1375 = vmatmul.mubr.f32.gmra.mrb[0].mxu0 %v1265
      %v1376 = vpop.f32.mrb[0].mxu0
      %v1377 = vadd.f32 %v1201, %v1376
      %v1378 = vpop.f32.mrb[0].mxu0
      %1379 = vmatprep.mubr.f32.mxu0 0.0
      %1380 = vmatmul.mubr.f32.gmra.mrb[0].mxu0 %v1268
      %v1381 = vpop.f32.mrb[0].mxu0
      %v1382 = vadd.f32 %v1202, %v1381
      %v1383 = vpop.f32.mrb[0].mxu0
      %1384 = vmatprep.mubr.f32.mxu0 0.0
      %1385 = vmatmul.mubr.f32.gmra.mrb[0].mxu0 %v1271
      %v1386 = vpop.f32.mrb[0].mxu0
      %v1387 = vadd.f32 %v1203, %v1386
      %v1388 = vpop.f32.mrb[0].mxu0
      %1389 = vmatprep.mubr.f32.mxu0 0.0
      %1390 = vmatmul.mubr.f32.gmra.mrb[0].mxu0 %v1274
      %v1391 = vpop.f32.mrb[0].mxu0
      %v1392 = vadd.f32 %v1204, %v1391
      %v1393 = vpop.f32.mrb[0].mxu0
      %1394 = vmatprep.mubr.f32.mxu0 0.0
      %1395 = vmatmul.mubr.f32.gmra.mrb[0].mxu0 %v1277
      %v1396 = vpop.f32.mrb[0].mxu0
      %v1397 = vadd.f32 %v1205, %v1396
      %v1398 = vpop.f32.mrb[0].mxu0
      %1399 = vdwg.mxu0
      %1408 = vrot.lane.b32.xlu0 %v1048, 96
      %v1409 = vpop.permute.xlu0 %1408
      %1410 = vrot.lane.b32.xlu0 %v1053, 96
      %v1411 = vpop.permute.xlu0 %1410
      %1412 = vrot.lane.b32.xlu0 %v1058, 96
      %v1413 = vpop.permute.xlu0 %1412
      %1414 = vrot.lane.b32.xlu0 %v1063, 96
      %v1415 = vpop.permute.xlu0 %1414
      %1416 = vrot.lane.b32.xlu0 %v1068, 96
      %v1417 = vpop.permute.xlu0 %1416
      %1418 = vrot.lane.b32.xlu0 %v1073, 96
      %v1419 = vpop.permute.xlu0 %1418
      %1420 = vrot.lane.b32.xlu0 %v1078, 96
      %v1421 = vpop.permute.xlu0 %1420
      %1422 = vrot.lane.b32.xlu0 %v1083, 96
      %v1423 = vpop.permute.xlu0 %1422
      %v1425 = vsel %vm1254, %v1174, 0
      %v1428 = vsel %vm1254, %v1175, 0
      %v1431 = vsel %vm1254, %v1176, 0
      %v1434 = vsel %vm1254, %v1177, 0
      %v1437 = vsel %vm1254, %v1178, 0
      %v1440 = vsel %vm1254, %v1179, 0
      %v1443 = vsel %vm1254, %v1180, 0
      %v1446 = vsel %vm1254, %v1181, 0
      %v1448 = vsel %vm1254, %v1409, 0
      %v1450 = vsel %vm1254, %v1411, 0
      %v1452 = vsel %vm1254, %v1413, 0
      %v1454 = vsel %vm1254, %v1415, 0
      %v1456 = vsel %vm1254, %v1417, 0
      %v1458 = vsel %vm1254, %v1419, 0
      %v1460 = vsel %vm1254, %v1421, 0
      %v1462 = vsel %vm1254, %v1423, 0
      %1464 = vmatprep.subr.mxu0 0.0
      %1465 = vmatpush1.xpose.msra.mxu0 %v1448
      %1466 = vmatprep.subr.mxu0 0.0
      %1467 = vmatpush1.xpose.msra.mxu0 %v1450
      %1468 = vmatprep.subr.mxu0 0.0
      %1469 = vmatpush1.xpose.msra.mxu0 %v1452
      %1470 = vmatprep.subr.mxu0 0.0
      %1471 = vmatpush1.xpose.msra.mxu0 %v1454
      %1472 = vmatprep.subr.mxu0 0.0
      %1473 = vmatpush1.xpose.msra.mxu0 %v1456
      %1474 = vmatprep.subr.mxu0 0.0
      %1475 = vmatpush1.xpose.msra.mxu0 %v1458
      %1476 = vmatprep.subr.mxu0 0.0
      %1477 = vmatpush1.xpose.msra.mxu0 %v1460
      %1478 = vmatprep.subr.mxu0 0.0
      %1479 = vmatpush1.xpose.msra.mxu0 %v1462
      %1480 = vmatprep.subr.mxu0 0.0
      %1481 = vmatpush1.xpose.msra.mxu0 0.0
      %1482 = vmatprep.subr.mxu0 0.0
      %1483 = vmatpush1.xpose.msra.mxu0 0.0
      %1484 = vmatprep.subr.mxu0 0.0
      %1485 = vmatpush1.xpose.msra.mxu0 0.0
      %1486 = vmatprep.subr.mxu0 0.0
      %1487 = vmatpush1.xpose.msra.mxu0 0.0
      %1488 = vmatprep.subr.mxu0 0.0
      %1489 = vmatpush1.xpose.msra.mxu0 0.0
      %1490 = vmatprep.subr.mxu0 0.0
      %1491 = vmatpush1.xpose.msra.mxu0 0.0
      %1492 = vmatprep.subr.mxu0 0.0
      %1493 = vmatpush1.xpose.msra.mxu0 0.0
      %1494 = vmatprep.subr.mxu0 0.0
      %1495 = vmatpush1.xpose.msra.mxu0 0.0
      %1496 = vmatprep.subr.mxu0 0.0
      %1497 = vmatpush1.xpose.msra.mxu0 0.0
      %1498 = vmatprep.subr.mxu0 0.0
      %1499 = vmatpush1.xpose.msra.mxu0 0.0
      %1500 = vmatprep.subr.mxu0 0.0
      %1501 = vmatpush1.xpose.msra.mxu0 0.0
      %1502 = vmatprep.subr.mxu0 0.0
      %1503 = vmatpush1.xpose.msra.mxu0 0.0
      %1504 = vmatprep.subr.mxu0 0.0
      %1505 = vmatpush1.xpose.msra.mxu0 0.0
      %1506 = vmatprep.subr.mxu0 0.0
      %1507 = vmatpush1.xpose.msra.mxu0 0.0
      %1508 = vmatprep.subr.mxu0 0.0
      %1509 = vmatpush1.xpose.msra.mxu0 0.0
      %1510 = vmatprep.subr.mxu0 0.0
      %1511 = vmatpush1.xpose.msra.mxu0 0.0
      %1512 = vmatprep.subr.mxu0 0.0
      %1513 = vmatpush1.xpose.msra.mxu0 0.0
      %1514 = vmatprep.subr.mxu0 0.0
      %1515 = vmatpush1.xpose.msra.mxu0 0.0
      %1516 = vmatprep.subr.mxu0 0.0
      %1517 = vmatpush1.xpose.msra.mxu0 0.0
      %1518 = vmatprep.subr.mxu0 0.0
      %1519 = vmatpush1.xpose.msra.mxu0 0.0
      %1520 = vmatprep.subr.mxu0 0.0
      %1521 = vmatpush1.xpose.msra.mxu0 0.0
      %1522 = vmatprep.subr.mxu0 0.0
      %1523 = vmatpush1.xpose.msra.mxu0 0.0
      %1524 = vmatprep.subr.mxu0 0.0
      %1525 = vmatpush1.xpose.msra.mxu0 0.0
      %1526 = vmatprep.subr.mxu0 0.0
      %1527 = vmatpush1.xpose.msra.mxu0 0.0
      %1528 = vmatprep.mubr.f32.mxu0 0.0
      %1529 = vmatmul.mubr.f32.gmra.mrb[0].mxu0 %v1425
      %v1530 = vpop.f32.mrb[0].mxu0
      %v1531 = vadd.f32 %v1206, %v1530
      %v1532 = vpop.f32.mrb[0].mxu0
      %1533 = vmatprep.mubr.f32.mxu0 0.0
      %1534 = vmatmul.mubr.f32.gmra.mrb[0].mxu0 %v1428
      %v1535 = vpop.f32.mrb[0].mxu0
      %v1536 = vadd.f32 %v1207, %v1535
      %v1537 = vpop.f32.mrb[0].mxu0
      %1538 = vmatprep.mubr.f32.mxu0 0.0
      %1539 = vmatmul.mubr.f32.gmra.mrb[0].mxu0 %v1431
      %v1540 = vpop.f32.mrb[0].mxu0
      %v1541 = vadd.f32 %v1208, %v1540
      %v1542 = vpop.f32.mrb[0].mxu0
      %1543 = vmatprep.mubr.f32.mxu0 0.0
      %1544 = vmatmul.mubr.f32.gmra.mrb[0].mxu0 %v1434
      %v1545 = vpop.f32.mrb[0].mxu0
      %v1546 = vadd.f32 %v1209, %v1545
      %v1547 = vpop.f32.mrb[0].mxu0
      %1548 = vmatprep.mubr.f32.mxu0 0.0
      %1549 = vmatmul.mubr.f32.gmra.mrb[0].mxu0 %v1437
      %v1550 = vpop.f32.mrb[0].mxu0
      %v1551 = vadd.f32 %v1210, %v1550
      %v1552 = vpop.f32.mrb[0].mxu0
      %1553 = vmatprep.mubr.f32.mxu0 0.0
      %1554 = vmatmul.mubr.f32.gmra.mrb[0].mxu0 %v1440
      %v1555 = vpop.f32.mrb[0].mxu0
      %v1556 = vadd.f32 %v1211, %v1555
      %v1557 = vpop.f32.mrb[0].mxu0
      %1558 = vmatprep.mubr.f32.mxu0 0.0
      %1559 = vmatmul.mubr.f32.gmra.mrb[0].mxu0 %v1443
      %v1560 = vpop.f32.mrb[0].mxu0
      %v1561 = vadd.f32 %v1212, %v1560
      %v1562 = vpop.f32.mrb[0].mxu0
      %1563 = vmatprep.mubr.f32.mxu0 0.0
      %1564 = vmatmul.mubr.f32.gmra.mrb[0].mxu0 %v1446
      %v1565 = vpop.f32.mrb[0].mxu0
      %v1566 = vadd.f32 %v1213, %v1565
      %v1567 = vpop.f32.mrb[0].mxu0
      %1568 = vdwg.mxu0
      %1577 = vrot.lane.b32.xlu0 %v1088, 96
      %v1578 = vpop.permute.xlu0 %1577
      %1579 = vrot.lane.b32.xlu0 %v1093, 96
      %v1580 = vpop.permute.xlu0 %1579
      %1581 = vrot.lane.b32.xlu0 %v1098, 96
      %v1582 = vpop.permute.xlu0 %1581
      %1583 = vrot.lane.b32.xlu0 %v1103, 96
      %v1584 = vpop.permute.xlu0 %1583
      %1585 = vrot.lane.b32.xlu0 %v1108, 96
      %v1586 = vpop.permute.xlu0 %1585
      %1587 = vrot.lane.b32.xlu0 %v1113, 96
      %v1588 = vpop.permute.xlu0 %1587
      %1589 = vrot.lane.b32.xlu0 %v1118, 96
      %v1590 = vpop.permute.xlu0 %1589
      %1591 = vrot.lane.b32.xlu0 %v1123, 96
      %v1592 = vpop.permute.xlu0 %1591
      %v1594 = vsel %vm1254, %v1182, 0
      %v1597 = vsel %vm1254, %v1183, 0
      %v1600 = vsel %vm1254, %v1184, 0
      %v1603 = vsel %vm1254, %v1185, 0
      %v1606 = vsel %vm1254, %v1186, 0
      %v1609 = vsel %vm1254, %v1187, 0
      %v1612 = vsel %vm1254, %v1188, 0
      %v1615 = vsel %vm1254, %v1189, 0
      %v1617 = vsel %vm1254, %v1578, 0
      %v1619 = vsel %vm1254, %v1580, 0
      %v1621 = vsel %vm1254, %v1582, 0
      %v1623 = vsel %vm1254, %v1584, 0
      %v1625 = vsel %vm1254, %v1586, 0
      %v1627 = vsel %vm1254, %v1588, 0
      %v1629 = vsel %vm1254, %v1590, 0
      %v1631 = vsel %vm1254, %v1592, 0
      %1633 = vmatprep.subr.mxu0 0.0
      %1634 = vmatpush1.xpose.msra.mxu0 %v1617
      %1635 = vmatprep.subr.mxu0 0.0
      %1636 = vmatpush1.xpose.msra.mxu0 %v1619
      %1637 = vmatprep.subr.mxu0 0.0
      %1638 = vmatpush1.xpose.msra.mxu0 %v1621
      %1639 = vmatprep.subr.mxu0 0.0
      %1640 = vmatpush1.xpose.msra.mxu0 %v1623
      %1641 = vmatprep.subr.mxu0 0.0
      %1642 = vmatpush1.xpose.msra.mxu0 %v1625
      %1643 = vmatprep.subr.mxu0 0.0
      %1644 = vmatpush1.xpose.msra.mxu0 %v1627
      %1645 = vmatprep.subr.mxu0 0.0
      %1646 = vmatpush1.xpose.msra.mxu0 %v1629
      %1647 = vmatprep.subr.mxu0 0.0
      %1648 = vmatpush1.xpose.msra.mxu0 %v1631
      %1649 = vmatprep.subr.mxu0 0.0
      %1650 = vmatpush1.xpose.msra.mxu0 0.0
      %1651 = vmatprep.subr.mxu0 0.0
      %1652 = vmatpush1.xpose.msra.mxu0 0.0
      %1653 = vmatprep.subr.mxu0 0.0
      %1654 = vmatpush1.xpose.msra.mxu0 0.0
      %1655 = vmatprep.subr.mxu0 0.0
      %1656 = vmatpush1.xpose.msra.mxu0 0.0
      %1657 = vmatprep.subr.mxu0 0.0
      %1658 = vmatpush1.xpose.msra.mxu0 0.0
      %1659 = vmatprep.subr.mxu0 0.0
      %1660 = vmatpush1.xpose.msra.mxu0 0.0
      %1661 = vmatprep.subr.mxu0 0.0
      %1662 = vmatpush1.xpose.msra.mxu0 0.0
      %1663 = vmatprep.subr.mxu0 0.0
      %1664 = vmatpush1.xpose.msra.mxu0 0.0
      %1665 = vmatprep.subr.mxu0 0.0
      %1666 = vmatpush1.xpose.msra.mxu0 0.0
      %1667 = vmatprep.subr.mxu0 0.0
      %1668 = vmatpush1.xpose.msra.mxu0 0.0
      %1669 = vmatprep.subr.mxu0 0.0
      %1670 = vmatpush1.xpose.msra.mxu0 0.0
      %1671 = vmatprep.subr.mxu0 0.0
      %1672 = vmatpush1.xpose.msra.mxu0 0.0
      %1673 = vmatprep.subr.mxu0 0.0
      %1674 = vmatpush1.xpose.msra.mxu0 0.0
      %1675 = vmatprep.subr.mxu0 0.0
      %1676 = vmatpush1.xpose.msra.mxu0 0.0
      %1677 = vmatprep.subr.mxu0 0.0
      %1678 = vmatpush1.xpose.msra.mxu0 0.0
      %1679 = vmatprep.subr.mxu0 0.0
      %1680 = vmatpush1.xpose.msra.mxu0 0.0
      %1681 = vmatprep.subr.mxu0 0.0
      %1682 = vmatpush1.xpose.msra.mxu0 0.0
      %1683 = vmatprep.subr.mxu0 0.0
      %1684 = vmatpush1.xpose.msra.mxu0 0.0
      %1685 = vmatprep.subr.mxu0 0.0
      %1686 = vmatpush1.xpose.msra.mxu0 0.0
      %1687 = vmatprep.subr.mxu0 0.0
      %1688 = vmatpush1.xpose.msra.mxu0 0.0
      %1689 = vmatprep.subr.mxu0 0.0
      %1690 = vmatpush1.xpose.msra.mxu0 0.0
      %1691 = vmatprep.subr.mxu0 0.0
      %1692 = vmatpush1.xpose.msra.mxu0 0.0
      %1693 = vmatprep.subr.mxu0 0.0
      %1694 = vmatpush1.xpose.msra.mxu0 0.0
      %1695 = vmatprep.subr.mxu0 0.0
      %1696 = vmatpush1.xpose.msra.mxu0 0.0
      %1697 = vmatprep.mubr.f32.mxu0 0.0
      %1698 = vmatmul.mubr.f32.gmra.mrb[0].mxu0 %v1594
      %v1699 = vpop.f32.mrb[0].mxu0
      %v1700 = vadd.f32 %v1214, %v1699
      %v1701 = vpop.f32.mrb[0].mxu0
      %1702 = vmatprep.mubr.f32.mxu0 0.0
      %1703 = vmatmul.mubr.f32.gmra.mrb[0].mxu0 %v1597
      %v1704 = vpop.f32.mrb[0].mxu0
      %v1705 = vadd.f32 %v1215, %v1704
      %v1706 = vpop.f32.mrb[0].mxu0
      %1707 = vmatprep.mubr.f32.mxu0 0.0
      %1708 = vmatmul.mubr.f32.gmra.mrb[0].mxu0 %v1600
      %v1709 = vpop.f32.mrb[0].mxu0
      %v1710 = vadd.f32 %v1216, %v1709
      %v1711 = vpop.f32.mrb[0].mxu0
      %1712 = vmatprep.mubr.f32.mxu0 0.0
      %1713 = vmatmul.mubr.f32.gmra.mrb[0].mxu0 %v1603
      %v1714 = vpop.f32.mrb[0].mxu0
      %v1715 = vadd.f32 %v1217, %v1714
      %v1716 = vpop.f32.mrb[0].mxu0
      %1717 = vmatprep.mubr.f32.mxu0 0.0
      %1718 = vmatmul.mubr.f32.gmra.mrb[0].mxu0 %v1606
      %v1719 = vpop.f32.mrb[0].mxu0
      %v1720 = vadd.f32 %v1218, %v1719
      %v1721 = vpop.f32.mrb[0].mxu0
      %1722 = vmatprep.mubr.f32.mxu0 0.0
      %1723 = vmatmul.mubr.f32.gmra.mrb[0].mxu0 %v1609
      %v1724 = vpop.f32.mrb[0].mxu0
      %v1725 = vadd.f32 %v1219, %v1724
      %v1726 = vpop.f32.mrb[0].mxu0
      %1727 = vmatprep.mubr.f32.mxu0 0.0
      %1728 = vmatmul.mubr.f32.gmra.mrb[0].mxu0 %v1612
      %v1729 = vpop.f32.mrb[0].mxu0
      %v1730 = vadd.f32 %v1220, %v1729
      %v1731 = vpop.f32.mrb[0].mxu0
      %1732 = vmatprep.mubr.f32.mxu0 0.0
      %1733 = vmatmul.mubr.f32.gmra.mrb[0].mxu0 %v1615
      %v1734 = vpop.f32.mrb[0].mxu0
      %v1735 = vadd.f32 %v1221, %v1734
      %v1736 = vpop.f32.mrb[0].mxu0
      %1737 = vdwg.mxu0
      %1746 = vrot.lane.b32.xlu0 %v1128, 96
      %v1747 = vpop.permute.xlu0 %1746
      %1748 = vrot.lane.b32.xlu0 %v1133, 96
      %v1749 = vpop.permute.xlu0 %1748
      %1750 = vrot.lane.b32.xlu0 %v1138, 96
      %v1751 = vpop.permute.xlu0 %1750
      %1752 = vrot.lane.b32.xlu0 %v1143, 96
      %v1753 = vpop.permute.xlu0 %1752
      %1754 = vrot.lane.b32.xlu0 %v1148, 96
      %v1755 = vpop.permute.xlu0 %1754
      %1756 = vrot.lane.b32.xlu0 %v1153, 96
      %v1757 = vpop.permute.xlu0 %1756
      %1758 = vrot.lane.b32.xlu0 %v1158, 96
      %v1759 = vpop.permute.xlu0 %1758
      %1760 = vrot.lane.b32.xlu0 %v1163, 96
      %v1761 = vpop.permute.xlu0 %1760
      %v1763 = vsel %vm1254, %v1190, 0
      %v1766 = vsel %vm1254, %v1191, 0
      %v1769 = vsel %vm1254, %v1192, 0
      %v1772 = vsel %vm1254, %v1193, 0
      %v1775 = vsel %vm1254, %v1194, 0
      %v1778 = vsel %vm1254, %v1195, 0
      %v1781 = vsel %vm1254, %v1196, 0
      %v1784 = vsel %vm1254, %v1197, 0
      %v1786 = vsel %vm1254, %v1747, 0
      %v1788 = vsel %vm1254, %v1749, 0
      %v1790 = vsel %vm1254, %v1751, 0
      %v1792 = vsel %vm1254, %v1753, 0
      %v1794 = vsel %vm1254, %v1755, 0
      %v1796 = vsel %vm1254, %v1757, 0
      %v1798 = vsel %vm1254, %v1759, 0
      %v1800 = vsel %vm1254, %v1761, 0
      %1802 = vmatprep.subr.mxu0 0.0
      %1803 = vmatpush1.xpose.msra.mxu0 %v1786
      %1804 = vmatprep.subr.mxu0 0.0
      %1805 = vmatpush1.xpose.msra.mxu0 %v1788
      %1806 = vmatprep.subr.mxu0 0.0
      %1807 = vmatpush1.xpose.msra.mxu0 %v1790
      %1808 = vmatprep.subr.mxu0 0.0
      %1809 = vmatpush1.xpose.msra.mxu0 %v1792
      %1810 = vmatprep.subr.mxu0 0.0
      %1811 = vmatpush1.xpose.msra.mxu0 %v1794
      %1812 = vmatprep.subr.mxu0 0.0
      %1813 = vmatpush1.xpose.msra.mxu0 %v1796
      %1814 = vmatprep.subr.mxu0 0.0
      %1815 = vmatpush1.xpose.msra.mxu0 %v1798
      %1816 = vmatprep.subr.mxu0 0.0
      %1817 = vmatpush1.xpose.msra.mxu0 %v1800
      %1818 = vmatprep.subr.mxu0 0.0
      %1819 = vmatpush1.xpose.msra.mxu0 0.0
      %1820 = vmatprep.subr.mxu0 0.0
      %1821 = vmatpush1.xpose.msra.mxu0 0.0
      %1822 = vmatprep.subr.mxu0 0.0
      %1823 = vmatpush1.xpose.msra.mxu0 0.0
      %1824 = vmatprep.subr.mxu0 0.0
      %1825 = vmatpush1.xpose.msra.mxu0 0.0
      %1826 = vmatprep.subr.mxu0 0.0
      %1827 = vmatpush1.xpose.msra.mxu0 0.0
      %1828 = vmatprep.subr.mxu0 0.0
      %1829 = vmatpush1.xpose.msra.mxu0 0.0
      %1830 = vmatprep.subr.mxu0 0.0
      %1831 = vmatpush1.xpose.msra.mxu0 0.0
      %1832 = vmatprep.subr.mxu0 0.0
      %1833 = vmatpush1.xpose.msra.mxu0 0.0
      %1834 = vmatprep.subr.mxu0 0.0
      %1835 = vmatpush1.xpose.msra.mxu0 0.0
      %1836 = vmatprep.subr.mxu0 0.0
      %1837 = vmatpush1.xpose.msra.mxu0 0.0
      %1838 = vmatprep.subr.mxu0 0.0
      %1839 = vmatpush1.xpose.msra.mxu0 0.0
      %1840 = vmatprep.subr.mxu0 0.0
      %1841 = vmatpush1.xpose.msra.mxu0 0.0
      %1842 = vmatprep.subr.mxu0 0.0
      %1843 = vmatpush1.xpose.msra.mxu0 0.0
      %1844 = vmatprep.subr.mxu0 0.0
      %1845 = vmatpush1.xpose.msra.mxu0 0.0
      %1846 = vmatprep.subr.mxu0 0.0
      %1847 = vmatpush1.xpose.msra.mxu0 0.0
      %1848 = vmatprep.subr.mxu0 0.0
      %1849 = vmatpush1.xpose.msra.mxu0 0.0
      %1850 = vmatprep.subr.mxu0 0.0
      %1851 = vmatpush1.xpose.msra.mxu0 0.0
      %1852 = vmatprep.subr.mxu0 0.0
      %1853 = vmatpush1.xpose.msra.mxu0 0.0
      %1854 = vmatprep.subr.mxu0 0.0
      %1855 = vmatpush1.xpose.msra.mxu0 0.0
      %1856 = vmatprep.subr.mxu0 0.0
      %1857 = vmatpush1.xpose.msra.mxu0 0.0
      %1858 = vmatprep.subr.mxu0 0.0
      %1859 = vmatpush1.xpose.msra.mxu0 0.0
      %1860 = vmatprep.subr.mxu0 0.0
      %1861 = vmatpush1.xpose.msra.mxu0 0.0
      %1862 = vmatprep.subr.mxu0 0.0
      %1863 = vmatpush1.xpose.msra.mxu0 0.0
      %1864 = vmatprep.subr.mxu0 0.0
      %1865 = vmatpush1.xpose.msra.mxu0 0.0
      %1866 = vmatprep.mubr.f32.mxu0 0.0
      %1867 = vmatmul.mubr.f32.gmra.mrb[0].mxu0 %v1763
      %v1868 = vpop.f32.mrb[0].mxu0
      %v1869 = vadd.f32 %v1222, %v1868
      %v1870 = vpop.f32.mrb[0].mxu0
      %1871 = vmatprep.mubr.f32.mxu0 0.0
      %1872 = vmatmul.mubr.f32.gmra.mrb[0].mxu0 %v1766
      %v1873 = vpop.f32.mrb[0].mxu0
      %v1874 = vadd.f32 %v1223, %v1873
      %v1875 = vpop.f32.mrb[0].mxu0
      %1876 = vmatprep.mubr.f32.mxu0 0.0
      %1877 = vmatmul.mubr.f32.gmra.mrb[0].mxu0 %v1769
      %v1878 = vpop.f32.mrb[0].mxu0
      %v1879 = vadd.f32 %v1224, %v1878
      %v1880 = vpop.f32.mrb[0].mxu0
      %1881 = vmatprep.mubr.f32.mxu0 0.0
      %1882 = vmatmul.mubr.f32.gmra.mrb[0].mxu0 %v1772
      %v1883 = vpop.f32.mrb[0].mxu0
      %v1884 = vadd.f32 %v1225, %v1883
      %v1885 = vpop.f32.mrb[0].mxu0
      %1886 = vmatprep.mubr.f32.mxu0 0.0
      %1887 = vmatmul.mubr.f32.gmra.mrb[0].mxu0 %v1775
      %v1888 = vpop.f32.mrb[0].mxu0
      %v1889 = vadd.f32 %v1226, %v1888
      %v1890 = vpop.f32.mrb[0].mxu0
      %1891 = vmatprep.mubr.f32.mxu0 0.0
      %1892 = vmatmul.mubr.f32.gmra.mrb[0].mxu0 %v1778
      %v1893 = vpop.f32.mrb[0].mxu0
      %v1894 = vadd.f32 %v1227, %v1893
      %v1895 = vpop.f32.mrb[0].mxu0
      %1896 = vmatprep.mubr.f32.mxu0 0.0
      %1897 = vmatmul.mubr.f32.gmra.mrb[0].mxu0 %v1781
      %v1898 = vpop.f32.mrb[0].mxu0
      %v1899 = vadd.f32 %v1228, %v1898
      %v1900 = vpop.f32.mrb[0].mxu0
      %1901 = vmatprep.mubr.f32.mxu0 0.0
      %1902 = vmatmul.mubr.f32.gmra.mrb[0].mxu0 %v1784
      %v1903 = vpop.f32.mrb[0].mxu0
      %v1904 = vadd.f32 %v1229, %v1903
      %v1905 = vpop.f32.mrb[0].mxu0
      %1906 = vdwg.mxu0
      %vm1907 = vcmask 523264
      %v1908 = vsel %vm1907, %v1362, -inf
      %1909 = vmax.xlane.f32.xlu0 %v1908
      %v1910 = vpop.xlane.xlu0 %1909
      %v1911 = vsel %vm1907, %v1367, -inf
      %1912 = vmax.xlane.f32.xlu0 %v1911
      %v1913 = vpop.xlane.xlu0 %1912
      %v1914 = vsel %vm1907, %v1372, -inf
      %1915 = vmax.xlane.f32.xlu0 %v1914
      %v1916 = vpop.xlane.xlu0 %1915
      %v1917 = vsel %vm1907, %v1377, -inf
      %1918 = vmax.xlane.f32.xlu0 %v1917
      %v1919 = vpop.xlane.xlu0 %1918
      %v1920 = vsel %vm1907, %v1382, -inf
      %1921 = vmax.xlane.f32.xlu0 %v1920
      %v1922 = vpop.xlane.xlu0 %1921
      %v1923 = vsel %vm1907, %v1387, -inf
      %1924 = vmax.xlane.f32.xlu0 %v1923
      %v1925 = vpop.xlane.xlu0 %1924
      %v1926 = vsel %vm1907, %v1392, -inf
      %1927 = vmax.xlane.f32.xlu0 %v1926
      %v1928 = vpop.xlane.xlu0 %1927
      %v1929 = vsel %vm1907, %v1397, -inf
      %1930 = vmax.xlane.f32.xlu0 %v1929
      %v1931 = vpop.xlane.xlu0 %1930
      %v1932 = vsel %vm1907, %v1531, -inf
      %1933 = vmax.xlane.f32.xlu0 %v1932
      %v1934 = vpop.xlane.xlu0 %1933
      %v1935 = vsel %vm1907, %v1536, -inf
      %1936 = vmax.xlane.f32.xlu0 %v1935
      %v1937 = vpop.xlane.xlu0 %1936
      %v1938 = vsel %vm1907, %v1541, -inf
      %1939 = vmax.xlane.f32.xlu0 %v1938
      %v1940 = vpop.xlane.xlu0 %1939
      %v1941 = vsel %vm1907, %v1546, -inf
      %1942 = vmax.xlane.f32.xlu0 %v1941
      %v1943 = vpop.xlane.xlu0 %1942
      %v1944 = vsel %vm1907, %v1551, -inf
      %1945 = vmax.xlane.f32.xlu0 %v1944
      %v1946 = vpop.xlane.xlu0 %1945
      %v1947 = vsel %vm1907, %v1556, -inf
      %1948 = vmax.xlane.f32.xlu0 %v1947
      %v1949 = vpop.xlane.xlu0 %1948
      %v1950 = vsel %vm1907, %v1561, -inf
      %1951 = vmax.xlane.f32.xlu0 %v1950
      %v1952 = vpop.xlane.xlu0 %1951
      %v1953 = vsel %vm1907, %v1566, -inf
      %1954 = vmax.xlane.f32.xlu0 %v1953
      %v1955 = vpop.xlane.xlu0 %1954
      %v1956 = vsel %vm1907, %v1700, -inf
      %1957 = vmax.xlane.f32.xlu0 %v1956
      %v1958 = vpop.xlane.xlu0 %1957
      %v1959 = vsel %vm1907, %v1705, -inf
      %1960 = vmax.xlane.f32.xlu0 %v1959
      %v1961 = vpop.xlane.xlu0 %1960
      %v1962 = vsel %vm1907, %v1710, -inf
      %1963 = vmax.xlane.f32.xlu0 %v1962
      %v1964 = vpop.xlane.xlu0 %1963
      %v1965 = vsel %vm1907, %v1715, -inf
      %1966 = vmax.xlane.f32.xlu0 %v1965
      %v1967 = vpop.xlane.xlu0 %1966
      %v1968 = vsel %vm1907, %v1720, -inf
      %1969 = vmax.xlane.f32.xlu0 %v1968
      %v1970 = vpop.xlane.xlu0 %1969
      %v1971 = vsel %vm1907, %v1725, -inf
      %1972 = vmax.xlane.f32.xlu0 %v1971
      %v1973 = vpop.xlane.xlu0 %1972
      %v1974 = vsel %vm1907, %v1730, -inf
      %1975 = vmax.xlane.f32.xlu0 %v1974
      %v1976 = vpop.xlane.xlu0 %1975
      %v1977 = vsel %vm1907, %v1735, -inf
      %1978 = vmax.xlane.f32.xlu0 %v1977
      %v1979 = vpop.xlane.xlu0 %1978
      %v1980 = vsel %vm1907, %v1869, -inf
      %1981 = vmax.xlane.f32.xlu0 %v1980
      %v1982 = vpop.xlane.xlu0 %1981
      %v1983 = vsel %vm1907, %v1874, -inf
      %1984 = vmax.xlane.f32.xlu0 %v1983
      %v1985 = vpop.xlane.xlu0 %1984
      %v1986 = vsel %vm1907, %v1879, -inf
      %1987 = vmax.xlane.f32.xlu0 %v1986
      %v1988 = vpop.xlane.xlu0 %1987
      %v1989 = vsel %vm1907, %v1884, -inf
      %1990 = vmax.xlane.f32.xlu0 %v1989
      %v1991 = vpop.xlane.xlu0 %1990
      %v1992 = vsel %vm1907, %v1889, -inf
      %1993 = vmax.xlane.f32.xlu0 %v1992
      %v1994 = vpop.xlane.xlu0 %1993
      %v1995 = vsel %vm1907, %v1894, -inf
      %1996 = vmax.xlane.f32.xlu0 %v1995
      %v1997 = vpop.xlane.xlu0 %1996
      %v1998 = vsel %vm1907, %v1899, -inf
      %1999 = vmax.xlane.f32.xlu0 %v1998
      %v2000 = vpop.xlane.xlu0 %1999
      %v2001 = vsel %vm1907, %v1904, -inf
      %2002 = vmax.xlane.f32.xlu0 %v2001
      %v2003 = vpop.xlane.xlu0 %2002
      %v2004 = vsub.f32 %v1362, %v1910
      %v2005 = vsub.f32 %v1367, %v1913
      %v2006 = vsub.f32 %v1372, %v1916
      %v2007 = vsub.f32 %v1377, %v1919
      %v2008 = vsub.f32 %v1382, %v1922
      %v2009 = vsub.f32 %v1387, %v1925
      %v2010 = vsub.f32 %v1392, %v1928
      %v2011 = vsub.f32 %v1397, %v1931
      %v2012 = vsub.f32 %v1531, %v1934
      %v2013 = vsub.f32 %v1536, %v1937
      %v2014 = vsub.f32 %v1541, %v1940
      %v2015 = vsub.f32 %v1546, %v1943
      %v2016 = vsub.f32 %v1551, %v1946
      %v2017 = vsub.f32 %v1556, %v1949
      %v2018 = vsub.f32 %v1561, %v1952
      %v2019 = vsub.f32 %v1566, %v1955
      %v2020 = vsub.f32 %v1700, %v1958
      %v2021 = vsub.f32 %v1705, %v1961
      %v2022 = vsub.f32 %v1710, %v1964
      %v2023 = vsub.f32 %v1715, %v1967
      %v2024 = vsub.f32 %v1720, %v1970
      %v2025 = vsub.f32 %v1725, %v1973
      %v2026 = vsub.f32 %v1730, %v1976
      %v2027 = vsub.f32 %v1735, %v1979
      %v2028 = vsub.f32 %v1869, %v1982
      %v2029 = vsub.f32 %v1874, %v1985
      %v2030 = vsub.f32 %v1879, %v1988
      %v2031 = vsub.f32 %v1884, %v1991
      %v2032 = vsub.f32 %v1889, %v1994
      %v2033 = vsub.f32 %v1894, %v1997
      %v2034 = vsub.f32 %v1899, %v2000
      %v2035 = vsub.f32 %v1904, %v2003
      %v2036 = vmul.f32 %v2004, 1.442695
      %v2037 = vpow.pop %v2036
      %v2038 = vmul.f32 %v2005, 1.442695
      %v2039 = vpow.pop %v2038
      %v2040 = vmul.f32 %v2006, 1.442695
      %v2041 = vpow.pop %v2040
      %v2042 = vmul.f32 %v2007, 1.442695
      %v2043 = vpow.pop %v2042
      %v2044 = vmul.f32 %v2008, 1.442695
      %v2045 = vpow.pop %v2044
      %v2046 = vmul.f32 %v2009, 1.442695
      %v2047 = vpow.pop %v2046
      %v2048 = vmul.f32 %v2010, 1.442695
      %v2049 = vpow.pop %v2048
      %v2050 = vmul.f32 %v2011, 1.442695
      %v2051 = vpow.pop %v2050
      %v2052 = vmul.f32 %v2012, 1.442695
      %v2053 = vpow.pop %v2052
      %v2054 = vmul.f32 %v2013, 1.442695
      %v2055 = vpow.pop %v2054
      %v2056 = vmul.f32 %v2014, 1.442695
      %v2057 = vpow.pop %v2056
      %v2058 = vmul.f32 %v2015, 1.442695
      %v2059 = vpow.pop %v2058
      %v2060 = vmul.f32 %v2016, 1.442695
      %v2061 = vpow.pop %v2060
      %v2062 = vmul.f32 %v2017, 1.442695
      %v2063 = vpow.pop %v2062
      %v2064 = vmul.f32 %v2018, 1.442695
      %v2065 = vpow.pop %v2064
      %v2066 = vmul.f32 %v2019, 1.442695
      %v2067 = vpow.pop %v2066
      %v2068 = vmul.f32 %v2020, 1.442695
      %v2069 = vpow.pop %v2068
      %v2070 = vmul.f32 %v2021, 1.442695
      %v2071 = vpow.pop %v2070
      %v2072 = vmul.f32 %v2022, 1.442695
      %v2073 = vpow.pop %v2072
      %v2074 = vmul.f32 %v2023, 1.442695
      %v2075 = vpow.pop %v2074
      %v2076 = vmul.f32 %v2024, 1.442695
      %v2077 = vpow.pop %v2076
      %v2078 = vmul.f32 %v2025, 1.442695
      %v2079 = vpow.pop %v2078
      %v2080 = vmul.f32 %v2026, 1.442695
      %v2081 = vpow.pop %v2080
      %v2082 = vmul.f32 %v2027, 1.442695
      %v2083 = vpow.pop %v2082
      %v2084 = vmul.f32 %v2028, 1.442695
      %v2085 = vpow.pop %v2084
      %v2086 = vmul.f32 %v2029, 1.442695
      %v2087 = vpow.pop %v2086
      %v2088 = vmul.f32 %v2030, 1.442695
      %v2089 = vpow.pop %v2088
      %v2090 = vmul.f32 %v2031, 1.442695
      %v2091 = vpow.pop %v2090
      %v2092 = vmul.f32 %v2032, 1.442695
      %v2093 = vpow.pop %v2092
      %v2094 = vmul.f32 %v2033, 1.442695
      %v2095 = vpow.pop %v2094
      %v2096 = vmul.f32 %v2034, 1.442695
      %v2097 = vpow.pop %v2096
      %v2098 = vmul.f32 %v2035, 1.442695
      %v2099 = vpow.pop %v2098
      %v2100 = vsel %vm1907, %v2037, 0.0
      %2101 = vadd.xlane.f32.xlu0 %v2100
      %v2102 = vpop.xlane.xlu0 %2101
      %v2103 = vsel %vm1907, %v2039, 0.0
      %2104 = vadd.xlane.f32.xlu0 %v2103
      %v2105 = vpop.xlane.xlu0 %2104
      %v2106 = vsel %vm1907, %v2041, 0.0
      %2107 = vadd.xlane.f32.xlu0 %v2106
      %v2108 = vpop.xlane.xlu0 %2107
      %v2109 = vsel %vm1907, %v2043, 0.0
      %2110 = vadd.xlane.f32.xlu0 %v2109
      %v2111 = vpop.xlane.xlu0 %2110
      %v2112 = vsel %vm1907, %v2045, 0.0
      %2113 = vadd.xlane.f32.xlu0 %v2112
      %v2114 = vpop.xlane.xlu0 %2113
      %v2115 = vsel %vm1907, %v2047, 0.0
      %2116 = vadd.xlane.f32.xlu0 %v2115
      %v2117 = vpop.xlane.xlu0 %2116
      %v2118 = vsel %vm1907, %v2049, 0.0
      %2119 = vadd.xlane.f32.xlu0 %v2118
      %v2120 = vpop.xlane.xlu0 %2119
      %v2121 = vsel %vm1907, %v2051, 0.0
      %2122 = vadd.xlane.f32.xlu0 %v2121
      %v2123 = vpop.xlane.xlu0 %2122
      %v2124 = vsel %vm1907, %v2053, 0.0
      %2125 = vadd.xlane.f32.xlu0 %v2124
      %v2126 = vpop.xlane.xlu0 %2125
      %v2127 = vsel %vm1907, %v2055, 0.0
      %2128 = vadd.xlane.f32.xlu0 %v2127
      %v2129 = vpop.xlane.xlu0 %2128
      %v2130 = vsel %vm1907, %v2057, 0.0
      %2131 = vadd.xlane.f32.xlu0 %v2130
      %v2132 = vpop.xlane.xlu0 %2131
      %v2133 = vsel %vm1907, %v2059, 0.0
      %2134 = vadd.xlane.f32.xlu0 %v2133
      %v2135 = vpop.xlane.xlu0 %2134
      %v2136 = vsel %vm1907, %v2061, 0.0
      %2137 = vadd.xlane.f32.xlu0 %v2136
      %v2138 = vpop.xlane.xlu0 %2137
      %v2139 = vsel %vm1907, %v2063, 0.0
      %2140 = vadd.xlane.f32.xlu0 %v2139
      %v2141 = vpop.xlane.xlu0 %2140
      %v2142 = vsel %vm1907, %v2065, 0.0
      %2143 = vadd.xlane.f32.xlu0 %v2142
      %v2144 = vpop.xlane.xlu0 %2143
      %v2145 = vsel %vm1907, %v2067, 0.0
      %2146 = vadd.xlane.f32.xlu0 %v2145
      %v2147 = vpop.xlane.xlu0 %2146
      %v2148 = vsel %vm1907, %v2069, 0.0
      %2149 = vadd.xlane.f32.xlu0 %v2148
      %v2150 = vpop.xlane.xlu0 %2149
      %v2151 = vsel %vm1907, %v2071, 0.0
      %2152 = vadd.xlane.f32.xlu0 %v2151
      %v2153 = vpop.xlane.xlu0 %2152
      %v2154 = vsel %vm1907, %v2073, 0.0
      %2155 = vadd.xlane.f32.xlu0 %v2154
      %v2156 = vpop.xlane.xlu0 %2155
      %v2157 = vsel %vm1907, %v2075, 0.0
      %2158 = vadd.xlane.f32.xlu0 %v2157
      %v2159 = vpop.xlane.xlu0 %2158
      %v2160 = vsel %vm1907, %v2077, 0.0
      %2161 = vadd.xlane.f32.xlu0 %v2160
      %v2162 = vpop.xlane.xlu0 %2161
      %v2163 = vsel %vm1907, %v2079, 0.0
      %2164 = vadd.xlane.f32.xlu0 %v2163
      %v2165 = vpop.xlane.xlu0 %2164
      %v2166 = vsel %vm1907, %v2081, 0.0
      %2167 = vadd.xlane.f32.xlu0 %v2166
      %v2168 = vpop.xlane.xlu0 %2167
      %v2169 = vsel %vm1907, %v2083, 0.0
      %2170 = vadd.xlane.f32.xlu0 %v2169
      %v2171 = vpop.xlane.xlu0 %2170
      %v2172 = vsel %vm1907, %v2085, 0.0
      %2173 = vadd.xlane.f32.xlu0 %v2172
      %v2174 = vpop.xlane.xlu0 %2173
      %v2175 = vsel %vm1907, %v2087, 0.0
      %2176 = vadd.xlane.f32.xlu0 %v2175
      %v2177 = vpop.xlane.xlu0 %2176
      %v2178 = vsel %vm1907, %v2089, 0.0
      %2179 = vadd.xlane.f32.xlu0 %v2178
      %v2180 = vpop.xlane.xlu0 %2179
      %v2181 = vsel %vm1907, %v2091, 0.0
      %2182 = vadd.xlane.f32.xlu0 %v2181
      %v2183 = vpop.xlane.xlu0 %2182
      %v2184 = vsel %vm1907, %v2093, 0.0
      %2185 = vadd.xlane.f32.xlu0 %v2184
      %v2186 = vpop.xlane.xlu0 %2185
      %v2187 = vsel %vm1907, %v2095, 0.0
      %2188 = vadd.xlane.f32.xlu0 %v2187
      %v2189 = vpop.xlane.xlu0 %2188
      %v2190 = vsel %vm1907, %v2097, 0.0
      %2191 = vadd.xlane.f32.xlu0 %v2190
      %v2192 = vpop.xlane.xlu0 %2191
      %v2193 = vsel %vm1907, %v2099, 0.0
      %2194 = vadd.xlane.f32.xlu0 %v2193
      %v2195 = vpop.xlane.xlu0 %2194
      %v2196 = vrcp.pop %v2102
      %v2197 = vrcp.pop %v2105
      %v2198 = vrcp.pop %v2108
      %v2199 = vrcp.pop %v2111
      %v2200 = vrcp.pop %v2114
      %v2201 = vrcp.pop %v2117
      %v2202 = vrcp.pop %v2120
      %v2203 = vrcp.pop %v2123
      %v2204 = vrcp.pop %v2126
      %v2205 = vrcp.pop %v2129
      %v2206 = vrcp.pop %v2132
      %v2207 = vrcp.pop %v2135
      %v2208 = vrcp.pop %v2138
      %v2209 = vrcp.pop %v2141
      %v2210 = vrcp.pop %v2144
      %v2211 = vrcp.pop %v2147
      %v2212 = vrcp.pop %v2150
      %v2213 = vrcp.pop %v2153
      %v2214 = vrcp.pop %v2156
      %v2215 = vrcp.pop %v2159
      %v2216 = vrcp.pop %v2162
      %v2217 = vrcp.pop %v2165
      %v2218 = vrcp.pop %v2168
      %v2219 = vrcp.pop %v2171
      %v2220 = vrcp.pop %v2174
      %v2221 = vrcp.pop %v2177
      %v2222 = vrcp.pop %v2180
      %v2223 = vrcp.pop %v2183
      %v2224 = vrcp.pop %v2186
      %v2225 = vrcp.pop %v2189
      %v2226 = vrcp.pop %v2192
      %v2227 = vrcp.pop %v2195
      %v2228 = vmul.f32 %v2037, %v2196
      %v2229 = vmul.f32 %v2039, %v2197
      %v2230 = vmul.f32 %v2041, %v2198
      %v2231 = vmul.f32 %v2043, %v2199
      %v2232 = vmul.f32 %v2045, %v2200
      %v2233 = vmul.f32 %v2047, %v2201
      %v2234 = vmul.f32 %v2049, %v2202
      %v2235 = vmul.f32 %v2051, %v2203
      %v2236 = vmul.f32 %v2053, %v2204
      %v2237 = vmul.f32 %v2055, %v2205
      %v2238 = vmul.f32 %v2057, %v2206
      %v2239 = vmul.f32 %v2059, %v2207
      %v2240 = vmul.f32 %v2061, %v2208
      %v2241 = vmul.f32 %v2063, %v2209
      %v2242 = vmul.f32 %v2065, %v2210
      %v2243 = vmul.f32 %v2067, %v2211
      %v2244 = vmul.f32 %v2069, %v2212
      %v2245 = vmul.f32 %v2071, %v2213
      %v2246 = vmul.f32 %v2073, %v2214
      %v2247 = vmul.f32 %v2075, %v2215
      %v2248 = vmul.f32 %v2077, %v2216
      %v2249 = vmul.f32 %v2079, %v2217
      %v2250 = vmul.f32 %v2081, %v2218
      %v2251 = vmul.f32 %v2083, %v2219
      %v2252 = vmul.f32 %v2085, %v2220
      %v2253 = vmul.f32 %v2087, %v2221
      %v2254 = vmul.f32 %v2089, %v2222
      %v2255 = vmul.f32 %v2091, %v2223
      %v2256 = vmul.f32 %v2093, %v2224
      %v2257 = vmul.f32 %v2095, %v2225
      %v2258 = vmul.f32 %v2097, %v2226
      %v2259 = vmul.f32 %v2099, %v2227
      %2260 = vrot.lane.b32.xlu0 %v1008, 64
      %v2261 = vpop.permute.xlu0 %2260
      %2262 = vrot.lane.b32.xlu0 %v1013, 64
      %v2263 = vpop.permute.xlu0 %2262
      %2264 = vrot.lane.b32.xlu0 %v1018, 64
      %v2265 = vpop.permute.xlu0 %2264
      %2266 = vrot.lane.b32.xlu0 %v1023, 64
      %v2267 = vpop.permute.xlu0 %2266
      %2268 = vrot.lane.b32.xlu0 %v1028, 64
      %v2269 = vpop.permute.xlu0 %2268
      %2270 = vrot.lane.b32.xlu0 %v1033, 64
      %v2271 = vpop.permute.xlu0 %2270
      %2272 = vrot.lane.b32.xlu0 %v1038, 64
      %v2273 = vpop.permute.xlu0 %2272
      %2274 = vrot.lane.b32.xlu0 %v1043, 64
      %v2275 = vpop.permute.xlu0 %2274
      %v2285 = vsel %vm1907, %v2228, 0
      %v2288 = vsel %vm1907, %v2229, 0
      %v2291 = vsel %vm1907, %v2230, 0
      %v2294 = vsel %vm1907, %v2231, 0
      %v2297 = vsel %vm1907, %v2232, 0
      %v2300 = vsel %vm1907, %v2233, 0
      %v2303 = vsel %vm1907, %v2234, 0
      %v2306 = vsel %vm1907, %v2235, 0
      %2308 = vmatprep.subr.mxu0 0.0
      %2309 = vmatpush1.msra.mxu0 %v2261
      %2310 = vmatprep.subr.mxu0 0.0
      %2311 = vmatpush1.msra.mxu0 %v2263
      %2312 = vmatprep.subr.mxu0 0.0
      %2313 = vmatpush1.msra.mxu0 %v2265
      %2314 = vmatprep.subr.mxu0 0.0
      %2315 = vmatpush1.msra.mxu0 %v2267
      %2316 = vmatprep.subr.mxu0 0.0
      %2317 = vmatpush1.msra.mxu0 %v2269
      %2318 = vmatprep.subr.mxu0 0.0
      %2319 = vmatpush1.msra.mxu0 %v2271
      %2320 = vmatprep.subr.mxu0 0.0
      %2321 = vmatpush1.msra.mxu0 %v2273
      %2322 = vmatprep.subr.mxu0 0.0
      %2323 = vmatpush1.msra.mxu0 %v2275
      %2324 = vmatprep.subr.mxu0 0.0
      %2325 = vmatpush1.msra.mxu0 0.0
      %2326 = vmatprep.subr.mxu0 0.0
      %2327 = vmatpush1.msra.mxu0 0.0
      %2328 = vmatprep.subr.mxu0 0.0
      %2329 = vmatpush1.msra.mxu0 0.0
      %2330 = vmatprep.subr.mxu0 0.0
      %2331 = vmatpush1.msra.mxu0 0.0
      %2332 = vmatprep.subr.mxu0 0.0
      %2333 = vmatpush1.msra.mxu0 0.0
      %2334 = vmatprep.subr.mxu0 0.0
      %2335 = vmatpush1.msra.mxu0 0.0
      %2336 = vmatprep.subr.mxu0 0.0
      %2337 = vmatpush1.msra.mxu0 0.0
      %2338 = vmatprep.subr.mxu0 0.0
      %2339 = vmatpush1.msra.mxu0 0.0
      %2340 = vmatprep.subr.mxu0 0.0
      %2341 = vmatpush1.msra.mxu0 0.0
      %2342 = vmatprep.subr.mxu0 0.0
      %2343 = vmatpush1.msra.mxu0 0.0
      %2344 = vmatprep.subr.mxu0 0.0
      %2345 = vmatpush1.msra.mxu0 0.0
      %2346 = vmatprep.subr.mxu0 0.0
      %2347 = vmatpush1.msra.mxu0 0.0
      %2348 = vmatprep.subr.mxu0 0.0
      %2349 = vmatpush1.msra.mxu0 0.0
      %2350 = vmatprep.subr.mxu0 0.0
      %2351 = vmatpush1.msra.mxu0 0.0
      %2352 = vmatprep.subr.mxu0 0.0
      %2353 = vmatpush1.msra.mxu0 0.0
      %2354 = vmatprep.subr.mxu0 0.0
      %2355 = vmatpush1.msra.mxu0 0.0
      %2356 = vmatprep.subr.mxu0 0.0
      %2357 = vmatpush1.msra.mxu0 0.0
      %2358 = vmatprep.subr.mxu0 0.0
      %2359 = vmatpush1.msra.mxu0 0.0
      %2360 = vmatprep.subr.mxu0 0.0
      %2361 = vmatpush1.msra.mxu0 0.0
      %2362 = vmatprep.subr.mxu0 0.0
      %2363 = vmatpush1.msra.mxu0 0.0
      %2364 = vmatprep.subr.mxu0 0.0
      %2365 = vmatpush1.msra.mxu0 0.0
      %2366 = vmatprep.subr.mxu0 0.0
      %2367 = vmatpush1.msra.mxu0 0.0
      %2368 = vmatprep.subr.mxu0 0.0
      %2369 = vmatpush1.msra.mxu0 0.0
      %2370 = vmatprep.subr.mxu0 0.0
      %2371 = vmatpush1.msra.mxu0 0.0
      %2372 = vmatprep.mubr.f32.mxu0 0.0
      %2373 = vmatmul.mubr.f32.gmra.mrb[0].mxu0 %v2285
      %v2374 = vpop.f32.mrb[0].mxu0
      %v2375 = vadd.f32 0.0, %v2374
      %v2376 = vpop.f32.mrb[0].mxu0
      %2377 = vmatprep.mubr.f32.mxu0 0.0
      %2378 = vmatmul.mubr.f32.gmra.mrb[0].mxu0 %v2288
      %v2379 = vpop.f32.mrb[0].mxu0
      %v2380 = vadd.f32 0.0, %v2379
      %v2381 = vpop.f32.mrb[0].mxu0
      %2382 = vmatprep.mubr.f32.mxu0 0.0
      %2383 = vmatmul.mubr.f32.gmra.mrb[0].mxu0 %v2291
      %v2384 = vpop.f32.mrb[0].mxu0
      %v2385 = vadd.f32 0.0, %v2384
      %v2386 = vpop.f32.mrb[0].mxu0
      %2387 = vmatprep.mubr.f32.mxu0 0.0
      %2388 = vmatmul.mubr.f32.gmra.mrb[0].mxu0 %v2294
      %v2389 = vpop.f32.mrb[0].mxu0
      %v2390 = vadd.f32 0.0, %v2389
      %v2391 = vpop.f32.mrb[0].mxu0
      %2392 = vmatprep.mubr.f32.mxu0 0.0
      %2393 = vmatmul.mubr.f32.gmra.mrb[0].mxu0 %v2297
      %v2394 = vpop.f32.mrb[0].mxu0
      %v2395 = vadd.f32 0.0, %v2394
      %v2396 = vpop.f32.mrb[0].mxu0
      %2397 = vmatprep.mubr.f32.mxu0 0.0
      %2398 = vmatmul.mubr.f32.gmra.mrb[0].mxu0 %v2300
      %v2399 = vpop.f32.mrb[0].mxu0
      %v2400 = vadd.f32 0.0, %v2399
      %v2401 = vpop.f32.mrb[0].mxu0
      %2402 = vmatprep.mubr.f32.mxu0 0.0
      %2403 = vmatmul.mubr.f32.gmra.mrb[0].mxu0 %v2303
      %v2404 = vpop.f32.mrb[0].mxu0
      %v2405 = vadd.f32 0.0, %v2404
      %v2406 = vpop.f32.mrb[0].mxu0
      %2407 = vmatprep.mubr.f32.mxu0 0.0
      %2408 = vmatmul.mubr.f32.gmra.mrb[0].mxu0 %v2306
      %v2409 = vpop.f32.mrb[0].mxu0
      %v2410 = vadd.f32 0.0, %v2409
      %v2411 = vpop.f32.mrb[0].mxu0
      %2412 = vdwg.mxu0
      %2413 = vrot.lane.b32.xlu0 %v1048, 64
      %v2414 = vpop.permute.xlu0 %2413
      %2415 = vrot.lane.b32.xlu0 %v1053, 64
      %v2416 = vpop.permute.xlu0 %2415
      %2417 = vrot.lane.b32.xlu0 %v1058, 64
      %v2418 = vpop.permute.xlu0 %2417
      %2419 = vrot.lane.b32.xlu0 %v1063, 64
      %v2420 = vpop.permute.xlu0 %2419
      %2421 = vrot.lane.b32.xlu0 %v1068, 64
      %v2422 = vpop.permute.xlu0 %2421
      %2423 = vrot.lane.b32.xlu0 %v1073, 64
      %v2424 = vpop.permute.xlu0 %2423
      %2425 = vrot.lane.b32.xlu0 %v1078, 64
      %v2426 = vpop.permute.xlu0 %2425
      %2427 = vrot.lane.b32.xlu0 %v1083, 64
      %v2428 = vpop.permute.xlu0 %2427
      %v2438 = vsel %vm1907, %v2236, 0
      %v2441 = vsel %vm1907, %v2237, 0
      %v2444 = vsel %vm1907, %v2238, 0
      %v2447 = vsel %vm1907, %v2239, 0
      %v2450 = vsel %vm1907, %v2240, 0
      %v2453 = vsel %vm1907, %v2241, 0
      %v2456 = vsel %vm1907, %v2242, 0
      %v2459 = vsel %vm1907, %v2243, 0
      %2461 = vmatprep.subr.mxu0 0.0
      %2462 = vmatpush1.msra.mxu0 %v2414
      %2463 = vmatprep.subr.mxu0 0.0
      %2464 = vmatpush1.msra.mxu0 %v2416
      %2465 = vmatprep.subr.mxu0 0.0
      %2466 = vmatpush1.msra.mxu0 %v2418
      %2467 = vmatprep.subr.mxu0 0.0
      %2468 = vmatpush1.msra.mxu0 %v2420
      %2469 = vmatprep.subr.mxu0 0.0
      %2470 = vmatpush1.msra.mxu0 %v2422
      %2471 = vmatprep.subr.mxu0 0.0
      %2472 = vmatpush1.msra.mxu0 %v2424
      %2473 = vmatprep.subr.mxu0 0.0
      %2474 = vmatpush1.msra.mxu0 %v2426
      %2475 = vmatprep.subr.mxu0 0.0
      %2476 = vmatpush1.msra.mxu0 %v2428
      %2477 = vmatprep.subr.mxu0 0.0
      %2478 = vmatpush1.msra.mxu0 0.0
      %2479 = vmatprep.subr.mxu0 0.0
      %2480 = vmatpush1.msra.mxu0 0.0
      %2481 = vmatprep.subr.mxu0 0.0
      %2482 = vmatpush1.msra.mxu0 0.0
      %2483 = vmatprep.subr.mxu0 0.0
      %2484 = vmatpush1.msra.mxu0 0.0
      %2485 = vmatprep.subr.mxu0 0.0
      %2486 = vmatpush1.msra.mxu0 0.0
      %2487 = vmatprep.subr.mxu0 0.0
      %2488 = vmatpush1.msra.mxu0 0.0
      %2489 = vmatprep.subr.mxu0 0.0
      %2490 = vmatpush1.msra.mxu0 0.0
      %2491 = vmatprep.subr.mxu0 0.0
      %2492 = vmatpush1.msra.mxu0 0.0
      %2493 = vmatprep.subr.mxu0 0.0
      %2494 = vmatpush1.msra.mxu0 0.0
      %2495 = vmatprep.subr.mxu0 0.0
      %2496 = vmatpush1.msra.mxu0 0.0
      %2497 = vmatprep.subr.mxu0 0.0
      %2498 = vmatpush1.msra.mxu0 0.0
      %2499 = vmatprep.subr.mxu0 0.0
      %2500 = vmatpush1.msra.mxu0 0.0
      %2501 = vmatprep.subr.mxu0 0.0
      %2502 = vmatpush1.msra.mxu0 0.0
      %2503 = vmatprep.subr.mxu0 0.0
      %2504 = vmatpush1.msra.mxu0 0.0
      %2505 = vmatprep.subr.mxu0 0.0
      %2506 = vmatpush1.msra.mxu0 0.0
      %2507 = vmatprep.subr.mxu0 0.0
      %2508 = vmatpush1.msra.mxu0 0.0
      %2509 = vmatprep.subr.mxu0 0.0
      %2510 = vmatpush1.msra.mxu0 0.0
      %2511 = vmatprep.subr.mxu0 0.0
      %2512 = vmatpush1.msra.mxu0 0.0
      %2513 = vmatprep.subr.mxu0 0.0
      %2514 = vmatpush1.msra.mxu0 0.0
      %2515 = vmatprep.subr.mxu0 0.0
      %2516 = vmatpush1.msra.mxu0 0.0
      %2517 = vmatprep.subr.mxu0 0.0
      %2518 = vmatpush1.msra.mxu0 0.0
      %2519 = vmatprep.subr.mxu0 0.0
      %2520 = vmatpush1.msra.mxu0 0.0
      %2521 = vmatprep.subr.mxu0 0.0
      %2522 = vmatpush1.msra.mxu0 0.0
      %2523 = vmatprep.subr.mxu0 0.0
      %2524 = vmatpush1.msra.mxu0 0.0
      %2525 = vmatprep.mubr.f32.mxu0 0.0
      %2526 = vmatmul.mubr.f32.gmra.mrb[0].mxu0 %v2438
      %v2527 = vpop.f32.mrb[0].mxu0
      %v2528 = vadd.f32 0.0, %v2527
      %v2529 = vpop.f32.mrb[0].mxu0
      %2530 = vmatprep.mubr.f32.mxu0 0.0
      %2531 = vmatmul.mubr.f32.gmra.mrb[0].mxu0 %v2441
      %v2532 = vpop.f32.mrb[0].mxu0
      %v2533 = vadd.f32 0.0, %v2532
      %v2534 = vpop.f32.mrb[0].mxu0
      %2535 = vmatprep.mubr.f32.mxu0 0.0
      %2536 = vmatmul.mubr.f32.gmra.mrb[0].mxu0 %v2444
      %v2537 = vpop.f32.mrb[0].mxu0
      %v2538 = vadd.f32 0.0, %v2537
      %v2539 = vpop.f32.mrb[0].mxu0
      %2540 = vmatprep.mubr.f32.mxu0 0.0
      %2541 = vmatmul.mubr.f32.gmra.mrb[0].mxu0 %v2447
      %v2542 = vpop.f32.mrb[0].mxu0
      %v2543 = vadd.f32 0.0, %v2542
      %v2544 = vpop.f32.mrb[0].mxu0
      %2545 = vmatprep.mubr.f32.mxu0 0.0
      %2546 = vmatmul.mubr.f32.gmra.mrb[0].mxu0 %v2450
      %v2547 = vpop.f32.mrb[0].mxu0
      %v2548 = vadd.f32 0.0, %v2547
      %v2549 = vpop.f32.mrb[0].mxu0
      %2550 = vmatprep.mubr.f32.mxu0 0.0
      %2551 = vmatmul.mubr.f32.gmra.mrb[0].mxu0 %v2453
      %v2552 = vpop.f32.mrb[0].mxu0
      %v2553 = vadd.f32 0.0, %v2552
      %v2554 = vpop.f32.mrb[0].mxu0
      %2555 = vmatprep.mubr.f32.mxu0 0.0
      %2556 = vmatmul.mubr.f32.gmra.mrb[0].mxu0 %v2456
      %v2557 = vpop.f32.mrb[0].mxu0
      %v2558 = vadd.f32 0.0, %v2557
      %v2559 = vpop.f32.mrb[0].mxu0
      %2560 = vmatprep.mubr.f32.mxu0 0.0
      %2561 = vmatmul.mubr.f32.gmra.mrb[0].mxu0 %v2459
      %v2562 = vpop.f32.mrb[0].mxu0
      %v2563 = vadd.f32 0.0, %v2562
      %v2564 = vpop.f32.mrb[0].mxu0
      %2565 = vdwg.mxu0
      %2566 = vrot.lane.b32.xlu0 %v1088, 64
      %v2567 = vpop.permute.xlu0 %2566
      %2568 = vrot.lane.b32.xlu0 %v1093, 64
      %v2569 = vpop.permute.xlu0 %2568
      %2570 = vrot.lane.b32.xlu0 %v1098, 64
      %v2571 = vpop.permute.xlu0 %2570
      %2572 = vrot.lane.b32.xlu0 %v1103, 64
      %v2573 = vpop.permute.xlu0 %2572
      %2574 = vrot.lane.b32.xlu0 %v1108, 64
      %v2575 = vpop.permute.xlu0 %2574
      %2576 = vrot.lane.b32.xlu0 %v1113, 64
      %v2577 = vpop.permute.xlu0 %2576
      %2578 = vrot.lane.b32.xlu0 %v1118, 64
      %v2579 = vpop.permute.xlu0 %2578
      %2580 = vrot.lane.b32.xlu0 %v1123, 64
      %v2581 = vpop.permute.xlu0 %2580
      %v2591 = vsel %vm1907, %v2244, 0
      %v2594 = vsel %vm1907, %v2245, 0
      %v2597 = vsel %vm1907, %v2246, 0
      %v2600 = vsel %vm1907, %v2247, 0
      %v2603 = vsel %vm1907, %v2248, 0
      %v2606 = vsel %vm1907, %v2249, 0
      %v2609 = vsel %vm1907, %v2250, 0
      %v2612 = vsel %vm1907, %v2251, 0
      %2614 = vmatprep.subr.mxu0 0.0
      %2615 = vmatpush1.msra.mxu0 %v2567
      %2616 = vmatprep.subr.mxu0 0.0
      %2617 = vmatpush1.msra.mxu0 %v2569
      %2618 = vmatprep.subr.mxu0 0.0
      %2619 = vmatpush1.msra.mxu0 %v2571
      %2620 = vmatprep.subr.mxu0 0.0
      %2621 = vmatpush1.msra.mxu0 %v2573
      %2622 = vmatprep.subr.mxu0 0.0
      %2623 = vmatpush1.msra.mxu0 %v2575
      %2624 = vmatprep.subr.mxu0 0.0
      %2625 = vmatpush1.msra.mxu0 %v2577
      %2626 = vmatprep.subr.mxu0 0.0
      %2627 = vmatpush1.msra.mxu0 %v2579
      %2628 = vmatprep.subr.mxu0 0.0
      %2629 = vmatpush1.msra.mxu0 %v2581
      %2630 = vmatprep.subr.mxu0 0.0
      %2631 = vmatpush1.msra.mxu0 0.0
      %2632 = vmatprep.subr.mxu0 0.0
      %2633 = vmatpush1.msra.mxu0 0.0
      %2634 = vmatprep.subr.mxu0 0.0
      %2635 = vmatpush1.msra.mxu0 0.0
      %2636 = vmatprep.subr.mxu0 0.0
      %2637 = vmatpush1.msra.mxu0 0.0
      %2638 = vmatprep.subr.mxu0 0.0
      %2639 = vmatpush1.msra.mxu0 0.0
      %2640 = vmatprep.subr.mxu0 0.0
      %2641 = vmatpush1.msra.mxu0 0.0
      %2642 = vmatprep.subr.mxu0 0.0
      %2643 = vmatpush1.msra.mxu0 0.0
      %2644 = vmatprep.subr.mxu0 0.0
      %2645 = vmatpush1.msra.mxu0 0.0
      %2646 = vmatprep.subr.mxu0 0.0
      %2647 = vmatpush1.msra.mxu0 0.0
      %2648 = vmatprep.subr.mxu0 0.0
      %2649 = vmatpush1.msra.mxu0 0.0
      %2650 = vmatprep.subr.mxu0 0.0
      %2651 = vmatpush1.msra.mxu0 0.0
      %2652 = vmatprep.subr.mxu0 0.0
      %2653 = vmatpush1.msra.mxu0 0.0
      %2654 = vmatprep.subr.mxu0 0.0
      %2655 = vmatpush1.msra.mxu0 0.0
      %2656 = vmatprep.subr.mxu0 0.0
      %2657 = vmatpush1.msra.mxu0 0.0
      %2658 = vmatprep.subr.mxu0 0.0
      %2659 = vmatpush1.msra.mxu0 0.0
      %2660 = vmatprep.subr.mxu0 0.0
      %2661 = vmatpush1.msra.mxu0 0.0
      %2662 = vmatprep.subr.mxu0 0.0
      %2663 = vmatpush1.msra.mxu0 0.0
      %2664 = vmatprep.subr.mxu0 0.0
      %2665 = vmatpush1.msra.mxu0 0.0
      %2666 = vmatprep.subr.mxu0 0.0
      %2667 = vmatpush1.msra.mxu0 0.0
      %2668 = vmatprep.subr.mxu0 0.0
      %2669 = vmatpush1.msra.mxu0 0.0
      %2670 = vmatprep.subr.mxu0 0.0
      %2671 = vmatpush1.msra.mxu0 0.0
      %2672 = vmatprep.subr.mxu0 0.0
      %2673 = vmatpush1.msra.mxu0 0.0
      %2674 = vmatprep.subr.mxu0 0.0
      %2675 = vmatpush1.msra.mxu0 0.0
      %2676 = vmatprep.subr.mxu0 0.0
      %2677 = vmatpush1.msra.mxu0 0.0
      %2678 = vmatprep.mubr.f32.mxu0 0.0
      %2679 = vmatmul.mubr.f32.gmra.mrb[0].mxu0 %v2591
      %v2680 = vpop.f32.mrb[0].mxu0
      %v2681 = vadd.f32 0.0, %v2680
      %v2682 = vpop.f32.mrb[0].mxu0
      %2683 = vmatprep.mubr.f32.mxu0 0.0
      %2684 = vmatmul.mubr.f32.gmra.mrb[0].mxu0 %v2594
      %v2685 = vpop.f32.mrb[0].mxu0
      %v2686 = vadd.f32 0.0, %v2685
      %v2687 = vpop.f32.mrb[0].mxu0
      %2688 = vmatprep.mubr.f32.mxu0 0.0
      %2689 = vmatmul.mubr.f32.gmra.mrb[0].mxu0 %v2597
      %v2690 = vpop.f32.mrb[0].mxu0
      %v2691 = vadd.f32 0.0, %v2690
      %v2692 = vpop.f32.mrb[0].mxu0
      %2693 = vmatprep.mubr.f32.mxu0 0.0
      %2694 = vmatmul.mubr.f32.gmra.mrb[0].mxu0 %v2600
      %v2695 = vpop.f32.mrb[0].mxu0
      %v2696 = vadd.f32 0.0, %v2695
      %v2697 = vpop.f32.mrb[0].mxu0
      %2698 = vmatprep.mubr.f32.mxu0 0.0
      %2699 = vmatmul.mubr.f32.gmra.mrb[0].mxu0 %v2603
      %v2700 = vpop.f32.mrb[0].mxu0
      %v2701 = vadd.f32 0.0, %v2700
      %v2702 = vpop.f32.mrb[0].mxu0
      %2703 = vmatprep.mubr.f32.mxu0 0.0
      %2704 = vmatmul.mubr.f32.gmra.mrb[0].mxu0 %v2606
      %v2705 = vpop.f32.mrb[0].mxu0
      %v2706 = vadd.f32 0.0, %v2705
      %v2707 = vpop.f32.mrb[0].mxu0
      %2708 = vmatprep.mubr.f32.mxu0 0.0
      %2709 = vmatmul.mubr.f32.gmra.mrb[0].mxu0 %v2609
      %v2710 = vpop.f32.mrb[0].mxu0
      %v2711 = vadd.f32 0.0, %v2710
      %v2712 = vpop.f32.mrb[0].mxu0
      %2713 = vmatprep.mubr.f32.mxu0 0.0
      %2714 = vmatmul.mubr.f32.gmra.mrb[0].mxu0 %v2612
      %v2715 = vpop.f32.mrb[0].mxu0
      %v2716 = vadd.f32 0.0, %v2715
      %v2717 = vpop.f32.mrb[0].mxu0
      %2718 = vdwg.mxu0
      %2719 = vrot.lane.b32.xlu0 %v1128, 64
      %v2720 = vpop.permute.xlu0 %2719
      %2721 = vrot.lane.b32.xlu0 %v1133, 64
      %v2722 = vpop.permute.xlu0 %2721
      %2723 = vrot.lane.b32.xlu0 %v1138, 64
      %v2724 = vpop.permute.xlu0 %2723
      %2725 = vrot.lane.b32.xlu0 %v1143, 64
      %v2726 = vpop.permute.xlu0 %2725
      %2727 = vrot.lane.b32.xlu0 %v1148, 64
      %v2728 = vpop.permute.xlu0 %2727
      %2729 = vrot.lane.b32.xlu0 %v1153, 64
      %v2730 = vpop.permute.xlu0 %2729
      %2731 = vrot.lane.b32.xlu0 %v1158, 64
      %v2732 = vpop.permute.xlu0 %2731
      %2733 = vrot.lane.b32.xlu0 %v1163, 64
      %v2734 = vpop.permute.xlu0 %2733
      %v2744 = vsel %vm1907, %v2252, 0
      %v2747 = vsel %vm1907, %v2253, 0
      %v2750 = vsel %vm1907, %v2254, 0
      %v2753 = vsel %vm1907, %v2255, 0
      %v2756 = vsel %vm1907, %v2256, 0
      %v2759 = vsel %vm1907, %v2257, 0
      %v2762 = vsel %vm1907, %v2258, 0
      %v2765 = vsel %vm1907, %v2259, 0
      %2767 = vmatprep.subr.mxu0 0.0
      %2768 = vmatpush1.msra.mxu0 %v2720
      %2769 = vmatprep.subr.mxu0 0.0
      %2770 = vmatpush1.msra.mxu0 %v2722
      %2771 = vmatprep.subr.mxu0 0.0
      %2772 = vmatpush1.msra.mxu0 %v2724
      %2773 = vmatprep.subr.mxu0 0.0
      %2774 = vmatpush1.msra.mxu0 %v2726
      %2775 = vmatprep.subr.mxu0 0.0
      %2776 = vmatpush1.msra.mxu0 %v2728
      %2777 = vmatprep.subr.mxu0 0.0
      %2778 = vmatpush1.msra.mxu0 %v2730
      %2779 = vmatprep.subr.mxu0 0.0
      %2780 = vmatpush1.msra.mxu0 %v2732
      %2781 = vmatprep.subr.mxu0 0.0
      %2782 = vmatpush1.msra.mxu0 %v2734
      %2783 = vmatprep.subr.mxu0 0.0
      %2784 = vmatpush1.msra.mxu0 0.0
      %2785 = vmatprep.subr.mxu0 0.0
      %2786 = vmatpush1.msra.mxu0 0.0
      %2787 = vmatprep.subr.mxu0 0.0
      %2788 = vmatpush1.msra.mxu0 0.0
      %2789 = vmatprep.subr.mxu0 0.0
      %2790 = vmatpush1.msra.mxu0 0.0
      %2791 = vmatprep.subr.mxu0 0.0
      %2792 = vmatpush1.msra.mxu0 0.0
      %2793 = vmatprep.subr.mxu0 0.0
      %2794 = vmatpush1.msra.mxu0 0.0
      %2795 = vmatprep.subr.mxu0 0.0
      %2796 = vmatpush1.msra.mxu0 0.0
      %2797 = vmatprep.subr.mxu0 0.0
      %2798 = vmatpush1.msra.mxu0 0.0
      %2799 = vmatprep.subr.mxu0 0.0
      %2800 = vmatpush1.msra.mxu0 0.0
      %2801 = vmatprep.subr.mxu0 0.0
      %2802 = vmatpush1.msra.mxu0 0.0
      %2803 = vmatprep.subr.mxu0 0.0
      %2804 = vmatpush1.msra.mxu0 0.0
      %2805 = vmatprep.subr.mxu0 0.0
      %2806 = vmatpush1.msra.mxu0 0.0
      %2807 = vmatprep.subr.mxu0 0.0
      %2808 = vmatpush1.msra.mxu0 0.0
      %2809 = vmatprep.subr.mxu0 0.0
      %2810 = vmatpush1.msra.mxu0 0.0
      %2811 = vmatprep.subr.mxu0 0.0
      %2812 = vmatpush1.msra.mxu0 0.0
      %2813 = vmatprep.subr.mxu0 0.0
      %2814 = vmatpush1.msra.mxu0 0.0
      %2815 = vmatprep.subr.mxu0 0.0
      %2816 = vmatpush1.msra.mxu0 0.0
      %2817 = vmatprep.subr.mxu0 0.0
      %2818 = vmatpush1.msra.mxu0 0.0
      %2819 = vmatprep.subr.mxu0 0.0
      %2820 = vmatpush1.msra.mxu0 0.0
      %2821 = vmatprep.subr.mxu0 0.0
      %2822 = vmatpush1.msra.mxu0 0.0
      %2823 = vmatprep.subr.mxu0 0.0
      %2824 = vmatpush1.msra.mxu0 0.0
      %2825 = vmatprep.subr.mxu0 0.0
      %2826 = vmatpush1.msra.mxu0 0.0
      %2827 = vmatprep.subr.mxu0 0.0
      %2828 = vmatpush1.msra.mxu0 0.0
      %2829 = vmatprep.subr.mxu0 0.0
      %2830 = vmatpush1.msra.mxu0 0.0
      %2831 = vmatprep.mubr.f32.mxu0 0.0
      %2832 = vmatmul.mubr.f32.gmra.mrb[0].mxu0 %v2744
      %v2833 = vpop.f32.mrb[0].mxu0
      %v2834 = vadd.f32 0.0, %v2833
      %v2835 = vpop.f32.mrb[0].mxu0
      %2836 = vmatprep.mubr.f32.mxu0 0.0
      %2837 = vmatmul.mubr.f32.gmra.mrb[0].mxu0 %v2747
      %v2838 = vpop.f32.mrb[0].mxu0
      %v2839 = vadd.f32 0.0, %v2838
      %v2840 = vpop.f32.mrb[0].mxu0
      %2841 = vmatprep.mubr.f32.mxu0 0.0
      %2842 = vmatmul.mubr.f32.gmra.mrb[0].mxu0 %v2750
      %v2843 = vpop.f32.mrb[0].mxu0
      %v2844 = vadd.f32 0.0, %v2843
      %v2845 = vpop.f32.mrb[0].mxu0
      %2846 = vmatprep.mubr.f32.mxu0 0.0
      %2847 = vmatmul.mubr.f32.gmra.mrb[0].mxu0 %v2753
      %v2848 = vpop.f32.mrb[0].mxu0
      %v2849 = vadd.f32 0.0, %v2848
      %v2850 = vpop.f32.mrb[0].mxu0
      %2851 = vmatprep.mubr.f32.mxu0 0.0
      %2852 = vmatmul.mubr.f32.gmra.mrb[0].mxu0 %v2756
      %v2853 = vpop.f32.mrb[0].mxu0
      %v2854 = vadd.f32 0.0, %v2853
      %v2855 = vpop.f32.mrb[0].mxu0
      %2856 = vmatprep.mubr.f32.mxu0 0.0
      %2857 = vmatmul.mubr.f32.gmra.mrb[0].mxu0 %v2759
      %v2858 = vpop.f32.mrb[0].mxu0
      %v2859 = vadd.f32 0.0, %v2858
      %v2860 = vpop.f32.mrb[0].mxu0
      %2861 = vmatprep.mubr.f32.mxu0 0.0
      %2862 = vmatmul.mubr.f32.gmra.mrb[0].mxu0 %v2762
      %v2863 = vpop.f32.mrb[0].mxu0
      %v2864 = vadd.f32 0.0, %v2863
      %v2865 = vpop.f32.mrb[0].mxu0
      %2866 = vmatprep.mubr.f32.mxu0 0.0
      %2867 = vmatmul.mubr.f32.gmra.mrb[0].mxu0 %v2765
      %v2868 = vpop.f32.mrb[0].mxu0
      %v2869 = vadd.f32 0.0, %v2868
      %v2870 = vpop.f32.mrb[0].mxu0
      %2871 = vdwg.mxu0
      %v2872 = vld [vmem:[%s3] sm:$0xff]
      %s2873 = scalar_lea.vmem %s7, 256
      %v2874 = vld [vmem:[%s2873] sm:$0xff]
      %v2875 = vld [vmem:[%s2873 + $0x8] sm:$0xff]
      %v2876 = vld [vmem:[%s2873 + $0x10] sm:$0xff]
      %v2877 = vld [vmem:[%s2873 + $0x18] sm:$0xff]
      %v2878 = vld [vmem:[%s2873 + $0x20] sm:$0xff]
      %v2879 = vld [vmem:[%s2873 + $0x28] sm:$0xff]
      %v2880 = vld [vmem:[%s2873 + $0x30] sm:$0xff]
      %v2881 = vld [vmem:[%s2873 + $0x38] sm:$0xff]
      %v2882 = vld [vmem:[%s2873 + $0x40] sm:$0xff]
      %v2883 = vld [vmem:[%s2873 + $0x48] sm:$0xff]
      %v2884 = vld [vmem:[%s2873 + $0x50] sm:$0xff]
      %v2885 = vld [vmem:[%s2873 + $0x58] sm:$0xff]
      %v2886 = vld [vmem:[%s2873 + $0x60] sm:$0xff]
      %v2887 = vld [vmem:[%s2873 + $0x68] sm:$0xff]
      %v2888 = vld [vmem:[%s2873 + $0x70] sm:$0xff]
      %v2889 = vld [vmem:[%s2873 + $0x78] sm:$0xff]
      %v2890 = vld [vmem:[%s2873 + $0x80] sm:$0xff]
      %v2891 = vld [vmem:[%s2873 + $0x88] sm:$0xff]
      %v2892 = vld [vmem:[%s2873 + $0x90] sm:$0xff]
      %v2893 = vld [vmem:[%s2873 + $0x98] sm:$0xff]
      %v2894 = vld [vmem:[%s2873 + $0xa0] sm:$0xff]
      %v2895 = vld [vmem:[%s2873 + $0xa8] sm:$0xff]
      %v2896 = vld [vmem:[%s2873 + $0xb0] sm:$0xff]
      %v2897 = vld [vmem:[%s2873 + $0xb8] sm:$0xff]
      %v2898 = vld [vmem:[%s2873 + $0xc0] sm:$0xff]
      %v2899 = vld [vmem:[%s2873 + $0xc8] sm:$0xff]
      %v2900 = vld [vmem:[%s2873 + $0xd0] sm:$0xff]
      %v2901 = vld [vmem:[%s2873 + $0xd8] sm:$0xff]
      %v2902 = vld [vmem:[%s2873 + $0xe0] sm:$0xff]
      %v2903 = vld [vmem:[%s2873 + $0xe8] sm:$0xff]
      %v2904 = vld [vmem:[%s2873 + $0xf0] sm:$0xff]
      %v2905 = vld [vmem:[%s2873 + $0xf8] sm:$0xff]
      %2906 = vrot.lane.b32.xlu0 %v1166, 120
      %v2907 = vpop.permute.xlu0 %2906
      %2908 = vrot.lane.b32.xlu0 %v1167, 120
      %v2909 = vpop.permute.xlu0 %2908
      %2910 = vrot.lane.b32.xlu0 %v1168, 120
      %v2911 = vpop.permute.xlu0 %2910
      %2912 = vrot.lane.b32.xlu0 %v1169, 120
      %v2913 = vpop.permute.xlu0 %2912
      %2914 = vrot.lane.b32.xlu0 %v1170, 120
      %v2915 = vpop.permute.xlu0 %2914
      %2916 = vrot.lane.b32.xlu0 %v1171, 120
      %v2917 = vpop.permute.xlu0 %2916
      %2918 = vrot.lane.b32.xlu0 %v1172, 120
      %v2919 = vpop.permute.xlu0 %2918
      %2920 = vrot.lane.b32.xlu0 %v1173, 120
      %v2921 = vpop.permute.xlu0 %2920
      %2922 = vrot.lane.b32.xlu0 %v1008, 88
      %v2923 = vpop.permute.xlu0 %2922
      %2924 = vrot.lane.b32.xlu0 %v1013, 88
      %v2925 = vpop.permute.xlu0 %2924
      %2926 = vrot.lane.b32.xlu0 %v1018, 88
      %v2927 = vpop.permute.xlu0 %2926
      %2928 = vrot.lane.b32.xlu0 %v1023, 88
      %v2929 = vpop.permute.xlu0 %2928
      %2930 = vrot.lane.b32.xlu0 %v1028, 88
      %v2931 = vpop.permute.xlu0 %2930
      %2932 = vrot.lane.b32.xlu0 %v1033, 88
      %v2933 = vpop.permute.xlu0 %2932
      %2934 = vrot.lane.b32.xlu0 %v1038, 88
      %v2935 = vpop.permute.xlu0 %2934
      %2936 = vrot.lane.b32.xlu0 %v1043, 88
      %v2937 = vpop.permute.xlu0 %2936
      %v2938 = vsel %vm1254, %v2907, 0
      %v2940 = vsel %vm1254, %v2909, 0
      %v2942 = vsel %vm1254, %v2911, 0
      %v2944 = vsel %vm1254, %v2913, 0
      %v2946 = vsel %vm1254, %v2915, 0
      %v2948 = vsel %vm1254, %v2917, 0
      %v2950 = vsel %vm1254, %v2919, 0
      %v2952 = vsel %vm1254, %v2921, 0
      %v2954 = vsel %vm1254, %v2923, 0
      %v2956 = vsel %vm1254, %v2925, 0
      %v2958 = vsel %vm1254, %v2927, 0
      %v2960 = vsel %vm1254, %v2929, 0
      %v2962 = vsel %vm1254, %v2931, 0
      %v2964 = vsel %vm1254, %v2933, 0
      %v2966 = vsel %vm1254, %v2935, 0
      %v2968 = vsel %vm1254, %v2937, 0
      %2970 = vmatprep.subr.mxu0 0.0
      %2971 = vmatpush1.xpose.msra.mxu0 %v2954
      %2972 = vmatprep.subr.mxu0 0.0
      %2973 = vmatpush1.xpose.msra.mxu0 %v2956
      %2974 = vmatprep.subr.mxu0 0.0
      %2975 = vmatpush1.xpose.msra.mxu0 %v2958
      %2976 = vmatprep.subr.mxu0 0.0
      %2977 = vmatpush1.xpose.msra.mxu0 %v2960
      %2978 = vmatprep.subr.mxu0 0.0
      %2979 = vmatpush1.xpose.msra.mxu0 %v2962
      %2980 = vmatprep.subr.mxu0 0.0
      %2981 = vmatpush1.xpose.msra.mxu0 %v2964
      %2982 = vmatprep.subr.mxu0 0.0
      %2983 = vmatpush1.xpose.msra.mxu0 %v2966
      %2984 = vmatprep.subr.mxu0 0.0
      %2985 = vmatpush1.xpose.msra.mxu0 %v2968
      %2986 = vmatprep.subr.mxu0 0.0
      %2987 = vmatpush1.xpose.msra.mxu0 0.0
      %2988 = vmatprep.subr.mxu0 0.0
      %2989 = vmatpush1.xpose.msra.mxu0 0.0
      %2990 = vmatprep.subr.mxu0 0.0
      %2991 = vmatpush1.xpose.msra.mxu0 0.0
      %2992 = vmatprep.subr.mxu0 0.0
      %2993 = vmatpush1.xpose.msra.mxu0 0.0
      %2994 = vmatprep.subr.mxu0 0.0
      %2995 = vmatpush1.xpose.msra.mxu0 0.0
      %2996 = vmatprep.subr.mxu0 0.0
      %2997 = vmatpush1.xpose.msra.mxu0 0.0
      %2998 = vmatprep.subr.mxu0 0.0
      %2999 = vmatpush1.xpose.msra.mxu0 0.0
      %3000 = vmatprep.subr.mxu0 0.0
      %3001 = vmatpush1.xpose.msra.mxu0 0.0
      %3002 = vmatprep.subr.mxu0 0.0
      %3003 = vmatpush1.xpose.msra.mxu0 0.0
      %3004 = vmatprep.subr.mxu0 0.0
      %3005 = vmatpush1.xpose.msra.mxu0 0.0
      %3006 = vmatprep.subr.mxu0 0.0
      %3007 = vmatpush1.xpose.msra.mxu0 0.0
      %3008 = vmatprep.subr.mxu0 0.0
      %3009 = vmatpush1.xpose.msra.mxu0 0.0
      %3010 = vmatprep.subr.mxu0 0.0
      %3011 = vmatpush1.xpose.msra.mxu0 0.0
      %3012 = vmatprep.subr.mxu0 0.0
      %3013 = vmatpush1.xpose.msra.mxu0 0.0
      %3014 = vmatprep.subr.mxu0 0.0
      %3015 = vmatpush1.xpose.msra.mxu0 0.0
      %3016 = vmatprep.subr.mxu0 0.0
      %3017 = vmatpush1.xpose.msra.mxu0 0.0
      %3018 = vmatprep.subr.mxu0 0.0
      %3019 = vmatpush1.xpose.msra.mxu0 0.0
      %3020 = vmatprep.subr.mxu0 0.0
      %3021 = vmatpush1.xpose.msra.mxu0 0.0
      %3022 = vmatprep.subr.mxu0 0.0
      %3023 = vmatpush1.xpose.msra.mxu0 0.0
      %3024 = vmatprep.subr.mxu0 0.0
      %3025 = vmatpush1.xpose.msra.mxu0 0.0
      %3026 = vmatprep.subr.mxu0 0.0
      %3027 = vmatpush1.xpose.msra.mxu0 0.0
      %3028 = vmatprep.subr.mxu0 0.0
      %3029 = vmatpush1.xpose.msra.mxu0 0.0
      %3030 = vmatprep.subr.mxu0 0.0
      %3031 = vmatpush1.xpose.msra.mxu0 0.0
      %3032 = vmatprep.subr.mxu0 0.0
      %3033 = vmatpush1.xpose.msra.mxu0 0.0
      %3034 = vmatprep.mubr.f32.mxu0 0.0
      %3035 = vmatmul.mubr.f32.gmra.mrb[0].mxu0 %v2938
      %v3036 = vpop.f32.mrb[0].mxu0
      %v3037 = vadd.f32 %v2874, %v3036
      %v3038 = vpop.f32.mrb[0].mxu0
      %3039 = vmatprep.mubr.f32.mxu0 0.0
      %3040 = vmatmul.mubr.f32.gmra.mrb[0].mxu0 %v2940
      %v3041 = vpop.f32.mrb[0].mxu0
      %v3042 = vadd.f32 %v2875, %v3041
      %v3043 = vpop.f32.mrb[0].mxu0
      %3044 = vmatprep.mubr.f32.mxu0 0.0
      %3045 = vmatmul.mubr.f32.gmra.mrb[0].mxu0 %v2942
      %v3046 = vpop.f32.mrb[0].mxu0
      %v3047 = vadd.f32 %v2876, %v3046
      %v3048 = vpop.f32.mrb[0].mxu0
      %3049 = vmatprep.mubr.f32.mxu0 0.0
      %3050 = vmatmul.mubr.f32.gmra.mrb[0].mxu0 %v2944
      %v3051 = vpop.f32.mrb[0].mxu0
      %v3052 = vadd.f32 %v2877, %v3051
      %v3053 = vpop.f32.mrb[0].mxu0
      %3054 = vmatprep.mubr.f32.mxu0 0.0
      %3055 = vmatmul.mubr.f32.gmra.mrb[0].mxu0 %v2946
      %v3056 = vpop.f32.mrb[0].mxu0
      %v3057 = vadd.f32 %v2878, %v3056
      %v3058 = vpop.f32.mrb[0].mxu0
      %3059 = vmatprep.mubr.f32.mxu0 0.0
      %3060 = vmatmul.mubr.f32.gmra.mrb[0].mxu0 %v2948
      %v3061 = vpop.f32.mrb[0].mxu0
      %v3062 = vadd.f32 %v2879, %v3061
      %v3063 = vpop.f32.mrb[0].mxu0
      %3064 = vmatprep.mubr.f32.mxu0 0.0
      %3065 = vmatmul.mubr.f32.gmra.mrb[0].mxu0 %v2950
      %v3066 = vpop.f32.mrb[0].mxu0
      %v3067 = vadd.f32 %v2880, %v3066
      %v3068 = vpop.f32.mrb[0].mxu0
      %3069 = vmatprep.mubr.f32.mxu0 0.0
      %3070 = vmatmul.mubr.f32.gmra.mrb[0].mxu0 %v2952
      %v3071 = vpop.f32.mrb[0].mxu0
      %v3072 = vadd.f32 %v2881, %v3071
      %v3073 = vpop.f32.mrb[0].mxu0
      %3074 = vdwg.mxu0
      %3075 = vrot.lane.b32.xlu0 %v1174, 120
      %v3076 = vpop.permute.xlu0 %3075
      %3077 = vrot.lane.b32.xlu0 %v1175, 120
      %v3078 = vpop.permute.xlu0 %3077
      %3079 = vrot.lane.b32.xlu0 %v1176, 120
      %v3080 = vpop.permute.xlu0 %3079
      %3081 = vrot.lane.b32.xlu0 %v1177, 120
      %v3082 = vpop.permute.xlu0 %3081
      %3083 = vrot.lane.b32.xlu0 %v1178, 120
      %v3084 = vpop.permute.xlu0 %3083
      %3085 = vrot.lane.b32.xlu0 %v1179, 120
      %v3086 = vpop.permute.xlu0 %3085
      %3087 = vrot.lane.b32.xlu0 %v1180, 120
      %v3088 = vpop.permute.xlu0 %3087
      %3089 = vrot.lane.b32.xlu0 %v1181, 120
      %v3090 = vpop.permute.xlu0 %3089
      %3091 = vrot.lane.b32.xlu0 %v1048, 88
      %v3092 = vpop.permute.xlu0 %3091
      %3093 = vrot.lane.b32.xlu0 %v1053, 88
      %v3094 = vpop.permute.xlu0 %3093
      %3095 = vrot.lane.b32.xlu0 %v1058, 88
      %v3096 = vpop.permute.xlu0 %3095
      %3097 = vrot.lane.b32.xlu0 %v1063, 88
      %v3098 = vpop.permute.xlu0 %3097
      %3099 = vrot.lane.b32.xlu0 %v1068, 88
      %v3100 = vpop.permute.xlu0 %3099
      %3101 = vrot.lane.b32.xlu0 %v1073, 88
      %v3102 = vpop.permute.xlu0 %3101
      %3103 = vrot.lane.b32.xlu0 %v1078, 88
      %v3104 = vpop.permute.xlu0 %3103
      %3105 = vrot.lane.b32.xlu0 %v1083, 88
      %v3106 = vpop.permute.xlu0 %3105
      %v3107 = vsel %vm1254, %v3076, 0
      %v3109 = vsel %vm1254, %v3078, 0
      %v3111 = vsel %vm1254, %v3080, 0
      %v3113 = vsel %vm1254, %v3082, 0
      %v3115 = vsel %vm1254, %v3084, 0
      %v3117 = vsel %vm1254, %v3086, 0
      %v3119 = vsel %vm1254, %v3088, 0
      %v3121 = vsel %vm1254, %v3090, 0
      %v3123 = vsel %vm1254, %v3092, 0
      %v3125 = vsel %vm1254, %v3094, 0
      %v3127 = vsel %vm1254, %v3096, 0
      %v3129 = vsel %vm1254, %v3098, 0
      %v3131 = vsel %vm1254, %v3100, 0
      %v3133 = vsel %vm1254, %v3102, 0
      %v3135 = vsel %vm1254, %v3104, 0
      %v3137 = vsel %vm1254, %v3106, 0
      %3139 = vmatprep.subr.mxu0 0.0
      %3140 = vmatpush1.xpose.msra.mxu0 %v3123
      %3141 = vmatprep.subr.mxu0 0.0
      %3142 = vmatpush1.xpose.msra.mxu0 %v3125
      %3143 = vmatprep.subr.mxu0 0.0
      %3144 = vmatpush1.xpose.msra.mxu0 %v3127
      %3145 = vmatprep.subr.mxu0 0.0
      %3146 = vmatpush1.xpose.msra.mxu0 %v3129
      %3147 = vmatprep.subr.mxu0 0.0
      %3148 = vmatpush1.xpose.msra.mxu0 %v3131
      %3149 = vmatprep.subr.mxu0 0.0
      %3150 = vmatpush1.xpose.msra.mxu0 %v3133
      %3151 = vmatprep.subr.mxu0 0.0
      %3152 = vmatpush1.xpose.msra.mxu0 %v3135
      %3153 = vmatprep.subr.mxu0 0.0
      %3154 = vmatpush1.xpose.msra.mxu0 %v3137
      %3155 = vmatprep.subr.mxu0 0.0
      %3156 = vmatpush1.xpose.msra.mxu0 0.0
      %3157 = vmatprep.subr.mxu0 0.0
      %3158 = vmatpush1.xpose.msra.mxu0 0.0
      %3159 = vmatprep.subr.mxu0 0.0
      %3160 = vmatpush1.xpose.msra.mxu0 0.0
      %3161 = vmatprep.subr.mxu0 0.0
      %3162 = vmatpush1.xpose.msra.mxu0 0.0
      %3163 = vmatprep.subr.mxu0 0.0
      %3164 = vmatpush1.xpose.msra.mxu0 0.0
      %3165 = vmatprep.subr.mxu0 0.0
      %3166 = vmatpush1.xpose.msra.mxu0 0.0
      %3167 = vmatprep.subr.mxu0 0.0
      %3168 = vmatpush1.xpose.msra.mxu0 0.0
      %3169 = vmatprep.subr.mxu0 0.0
      %3170 = vmatpush1.xpose.msra.mxu0 0.0
      %3171 = vmatprep.subr.mxu0 0.0
      %3172 = vmatpush1.xpose.msra.mxu0 0.0
      %3173 = vmatprep.subr.mxu0 0.0
      %3174 = vmatpush1.xpose.msra.mxu0 0.0
      %3175 = vmatprep.subr.mxu0 0.0
      %3176 = vmatpush1.xpose.msra.mxu0 0.0
      %3177 = vmatprep.subr.mxu0 0.0
      %3178 = vmatpush1.xpose.msra.mxu0 0.0
      %3179 = vmatprep.subr.mxu0 0.0
      %3180 = vmatpush1.xpose.msra.mxu0 0.0
      %3181 = vmatprep.subr.mxu0 0.0
      %3182 = vmatpush1.xpose.msra.mxu0 0.0
      %3183 = vmatprep.subr.mxu0 0.0
      %3184 = vmatpush1.xpose.msra.mxu0 0.0
      %3185 = vmatprep.subr.mxu0 0.0
      %3186 = vmatpush1.xpose.msra.mxu0 0.0
      %3187 = vmatprep.subr.mxu0 0.0
      %3188 = vmatpush1.xpose.msra.mxu0 0.0
      %3189 = vmatprep.subr.mxu0 0.0
      %3190 = vmatpush1.xpose.msra.mxu0 0.0
      %3191 = vmatprep.subr.mxu0 0.0
      %3192 = vmatpush1.xpose.msra.mxu0 0.0
      %3193 = vmatprep.subr.mxu0 0.0
      %3194 = vmatpush1.xpose.msra.mxu0 0.0
      %3195 = vmatprep.subr.mxu0 0.0
      %3196 = vmatpush1.xpose.msra.mxu0 0.0
      %3197 = vmatprep.subr.mxu0 0.0
      %3198 = vmatpush1.xpose.msra.mxu0 0.0
      %3199 = vmatprep.subr.mxu0 0.0
      %3200 = vmatpush1.xpose.msra.mxu0 0.0
      %3201 = vmatprep.subr.mxu0 0.0
      %3202 = vmatpush1.xpose.msra.mxu0 0.0
      %3203 = vmatprep.mubr.f32.mxu0 0.0
      %3204 = vmatmul.mubr.f32.gmra.mrb[0].mxu0 %v3107
      %v3205 = vpop.f32.mrb[0].mxu0
      %v3206 = vadd.f32 %v2882, %v3205
      %v3207 = vpop.f32.mrb[0].mxu0
      %3208 = vmatprep.mubr.f32.mxu0 0.0
      %3209 = vmatmul.mubr.f32.gmra.mrb[0].mxu0 %v3109
      %v3210 = vpop.f32.mrb[0].mxu0
      %v3211 = vadd.f32 %v2883, %v3210
      %v3212 = vpop.f32.mrb[0].mxu0
      %3213 = vmatprep.mubr.f32.mxu0 0.0
      %3214 = vmatmul.mubr.f32.gmra.mrb[0].mxu0 %v3111
      %v3215 = vpop.f32.mrb[0].mxu0
      %v3216 = vadd.f32 %v2884, %v3215
      %v3217 = vpop.f32.mrb[0].mxu0
      %3218 = vmatprep.mubr.f32.mxu0 0.0
      %3219 = vmatmul.mubr.f32.gmra.mrb[0].mxu0 %v3113
      %v3220 = vpop.f32.mrb[0].mxu0
      %v3221 = vadd.f32 %v2885, %v3220
      %v3222 = vpop.f32.mrb[0].mxu0
      %3223 = vmatprep.mubr.f32.mxu0 0.0
      %3224 = vmatmul.mubr.f32.gmra.mrb[0].mxu0 %v3115
      %v3225 = vpop.f32.mrb[0].mxu0
      %v3226 = vadd.f32 %v2886, %v3225
      %v3227 = vpop.f32.mrb[0].mxu0
      %3228 = vmatprep.mubr.f32.mxu0 0.0
      %3229 = vmatmul.mubr.f32.gmra.mrb[0].mxu0 %v3117
      %v3230 = vpop.f32.mrb[0].mxu0
      %v3231 = vadd.f32 %v2887, %v3230
      %v3232 = vpop.f32.mrb[0].mxu0
      %3233 = vmatprep.mubr.f32.mxu0 0.0
      %3234 = vmatmul.mubr.f32.gmra.mrb[0].mxu0 %v3119
      %v3235 = vpop.f32.mrb[0].mxu0
      %v3236 = vadd.f32 %v2888, %v3235
      %v3237 = vpop.f32.mrb[0].mxu0
      %3238 = vmatprep.mubr.f32.mxu0 0.0
      %3239 = vmatmul.mubr.f32.gmra.mrb[0].mxu0 %v3121
      %v3240 = vpop.f32.mrb[0].mxu0
      %v3241 = vadd.f32 %v2889, %v3240
      %v3242 = vpop.f32.mrb[0].mxu0
      %3243 = vdwg.mxu0
      %3244 = vrot.lane.b32.xlu0 %v1182, 120
      %v3245 = vpop.permute.xlu0 %3244
      %3246 = vrot.lane.b32.xlu0 %v1183, 120
      %v3247 = vpop.permute.xlu0 %3246
      %3248 = vrot.lane.b32.xlu0 %v1184, 120
      %v3249 = vpop.permute.xlu0 %3248
      %3250 = vrot.lane.b32.xlu0 %v1185, 120
      %v3251 = vpop.permute.xlu0 %3250
      %3252 = vrot.lane.b32.xlu0 %v1186, 120
      %v3253 = vpop.permute.xlu0 %3252
      %3254 = vrot.lane.b32.xlu0 %v1187, 120
      %v3255 = vpop.permute.xlu0 %3254
      %3256 = vrot.lane.b32.xlu0 %v1188, 120
      %v3257 = vpop.permute.xlu0 %3256
      %3258 = vrot.lane.b32.xlu0 %v1189, 120
      %v3259 = vpop.permute.xlu0 %3258
      %3260 = vrot.lane.b32.xlu0 %v1088, 88
      %v3261 = vpop.permute.xlu0 %3260
      %3262 = vrot.lane.b32.xlu0 %v1093, 88
      %v3263 = vpop.permute.xlu0 %3262
      %3264 = vrot.lane.b32.xlu0 %v1098, 88
      %v3265 = vpop.permute.xlu0 %3264
      %3266 = vrot.lane.b32.xlu0 %v1103, 88
      %v3267 = vpop.permute.xlu0 %3266
      %3268 = vrot.lane.b32.xlu0 %v1108, 88
      %v3269 = vpop.permute.xlu0 %3268
      %3270 = vrot.lane.b32.xlu0 %v1113, 88
      %v3271 = vpop.permute.xlu0 %3270
      %3272 = vrot.lane.b32.xlu0 %v1118, 88
      %v3273 = vpop.permute.xlu0 %3272
      %3274 = vrot.lane.b32.xlu0 %v1123, 88
      %v3275 = vpop.permute.xlu0 %3274
      %v3276 = vsel %vm1254, %v3245, 0
      %v3278 = vsel %vm1254, %v3247, 0
      %v3280 = vsel %vm1254, %v3249, 0
      %v3282 = vsel %vm1254, %v3251, 0
      %v3284 = vsel %vm1254, %v3253, 0
      %v3286 = vsel %vm1254, %v3255, 0
      %v3288 = vsel %vm1254, %v3257, 0
      %v3290 = vsel %vm1254, %v3259, 0
      %v3292 = vsel %vm1254, %v3261, 0
      %v3294 = vsel %vm1254, %v3263, 0
      %v3296 = vsel %vm1254, %v3265, 0
      %v3298 = vsel %vm1254, %v3267, 0
      %v3300 = vsel %vm1254, %v3269, 0
      %v3302 = vsel %vm1254, %v3271, 0
      %v3304 = vsel %vm1254, %v3273, 0
      %v3306 = vsel %vm1254, %v3275, 0
      %3308 = vmatprep.subr.mxu0 0.0
      %3309 = vmatpush1.xpose.msra.mxu0 %v3292
      %3310 = vmatprep.subr.mxu0 0.0
      %3311 = vmatpush1.xpose.msra.mxu0 %v3294
      %3312 = vmatprep.subr.mxu0 0.0
      %3313 = vmatpush1.xpose.msra.mxu0 %v3296
      %3314 = vmatprep.subr.mxu0 0.0
      %3315 = vmatpush1.xpose.msra.mxu0 %v3298
      %3316 = vmatprep.subr.mxu0 0.0
      %3317 = vmatpush1.xpose.msra.mxu0 %v3300
      %3318 = vmatprep.subr.mxu0 0.0
      %3319 = vmatpush1.xpose.msra.mxu0 %v3302
      %3320 = vmatprep.subr.mxu0 0.0
      %3321 = vmatpush1.xpose.msra.mxu0 %v3304
      %3322 = vmatprep.subr.mxu0 0.0
      %3323 = vmatpush1.xpose.msra.mxu0 %v3306
      %3324 = vmatprep.subr.mxu0 0.0
      %3325 = vmatpush1.xpose.msra.mxu0 0.0
      %3326 = vmatprep.subr.mxu0 0.0
      %3327 = vmatpush1.xpose.msra.mxu0 0.0
      %3328 = vmatprep.subr.mxu0 0.0
      %3329 = vmatpush1.xpose.msra.mxu0 0.0
      %3330 = vmatprep.subr.mxu0 0.0
      %3331 = vmatpush1.xpose.msra.mxu0 0.0
      %3332 = vmatprep.subr.mxu0 0.0
      %3333 = vmatpush1.xpose.msra.mxu0 0.0
      %3334 = vmatprep.subr.mxu0 0.0
      %3335 = vmatpush1.xpose.msra.mxu0 0.0
      %3336 = vmatprep.subr.mxu0 0.0
      %3337 = vmatpush1.xpose.msra.mxu0 0.0
      %3338 = vmatprep.subr.mxu0 0.0
      %3339 = vmatpush1.xpose.msra.mxu0 0.0
      %3340 = vmatprep.subr.mxu0 0.0
      %3341 = vmatpush1.xpose.msra.mxu0 0.0
      %3342 = vmatprep.subr.mxu0 0.0
      %3343 = vmatpush1.xpose.msra.mxu0 0.0
      %3344 = vmatprep.subr.mxu0 0.0
      %3345 = vmatpush1.xpose.msra.mxu0 0.0
      %3346 = vmatprep.subr.mxu0 0.0
      %3347 = vmatpush1.xpose.msra.mxu0 0.0
      %3348 = vmatprep.subr.mxu0 0.0
      %3349 = vmatpush1.xpose.msra.mxu0 0.0
      %3350 = vmatprep.subr.mxu0 0.0
      %3351 = vmatpush1.xpose.msra.mxu0 0.0
      %3352 = vmatprep.subr.mxu0 0.0
      %3353 = vmatpush1.xpose.msra.mxu0 0.0
      %3354 = vmatprep.subr.mxu0 0.0
      %3355 = vmatpush1.xpose.msra.mxu0 0.0
      %3356 = vmatprep.subr.mxu0 0.0
      %3357 = vmatpush1.xpose.msra.mxu0 0.0
      %3358 = vmatprep.subr.mxu0 0.0
      %3359 = vmatpush1.xpose.msra.mxu0 0.0
      %3360 = vmatprep.subr.mxu0 0.0
      %3361 = vmatpush1.xpose.msra.mxu0 0.0
      %3362 = vmatprep.subr.mxu0 0.0
      %3363 = vmatpush1.xpose.msra.mxu0 0.0
      %3364 = vmatprep.subr.mxu0 0.0
      %3365 = vmatpush1.xpose.msra.mxu0 0.0
      %3366 = vmatprep.subr.mxu0 0.0
      %3367 = vmatpush1.xpose.msra.mxu0 0.0
      %3368 = vmatprep.subr.mxu0 0.0
      %3369 = vmatpush1.xpose.msra.mxu0 0.0
      %3370 = vmatprep.subr.mxu0 0.0
      %3371 = vmatpush1.xpose.msra.mxu0 0.0
      %3372 = vmatprep.mubr.f32.mxu0 0.0
      %3373 = vmatmul.mubr.f32.gmra.mrb[0].mxu0 %v3276
      %v3374 = vpop.f32.mrb[0].mxu0
      %v3375 = vadd.f32 %v2890, %v3374
      %v3376 = vpop.f32.mrb[0].mxu0
      %3377 = vmatprep.mubr.f32.mxu0 0.0
      %3378 = vmatmul.mubr.f32.gmra.mrb[0].mxu0 %v3278
      %v3379 = vpop.f32.mrb[0].mxu0
      %v3380 = vadd.f32 %v2891, %v3379
      %v3381 = vpop.f32.mrb[0].mxu0
      %3382 = vmatprep.mubr.f32.mxu0 0.0
      %3383 = vmatmul.mubr.f32.gmra.mrb[0].mxu0 %v3280
      %v3384 = vpop.f32.mrb[0].mxu0
      %v3385 = vadd.f32 %v2892, %v3384
      %v3386 = vpop.f32.mrb[0].mxu0
      %3387 = vmatprep.mubr.f32.mxu0 0.0
      %3388 = vmatmul.mubr.f32.gmra.mrb[0].mxu0 %v3282
      %v3389 = vpop.f32.mrb[0].mxu0
      %v3390 = vadd.f32 %v2893, %v3389
      %v3391 = vpop.f32.mrb[0].mxu0
      %3392 = vmatprep.mubr.f32.mxu0 0.0
      %3393 = vmatmul.mubr.f32.gmra.mrb[0].mxu0 %v3284
      %v3394 = vpop.f32.mrb[0].mxu0
      %v3395 = vadd.f32 %v2894, %v3394
      %v3396 = vpop.f32.mrb[0].mxu0
      %3397 = vmatprep.mubr.f32.mxu0 0.0
      %3398 = vmatmul.mubr.f32.gmra.mrb[0].mxu0 %v3286
      %v3399 = vpop.f32.mrb[0].mxu0
      %v3400 = vadd.f32 %v2895, %v3399
      %v3401 = vpop.f32.mrb[0].mxu0
      %3402 = vmatprep.mubr.f32.mxu0 0.0
      %3403 = vmatmul.mubr.f32.gmra.mrb[0].mxu0 %v3288
      %v3404 = vpop.f32.mrb[0].mxu0
      %v3405 = vadd.f32 %v2896, %v3404
      %v3406 = vpop.f32.mrb[0].mxu0
      %3407 = vmatprep.mubr.f32.mxu0 0.0
      %3408 = vmatmul.mubr.f32.gmra.mrb[0].mxu0 %v3290
      %v3409 = vpop.f32.mrb[0].mxu0
      %v3410 = vadd.f32 %v2897, %v3409
      %v3411 = vpop.f32.mrb[0].mxu0
      %3412 = vdwg.mxu0
      %3413 = vrot.lane.b32.xlu0 %v1190, 120
      %v3414 = vpop.permute.xlu0 %3413
      %3415 = vrot.lane.b32.xlu0 %v1191, 120
      %v3416 = vpop.permute.xlu0 %3415
      %3417 = vrot.lane.b32.xlu0 %v1192, 120
      %v3418 = vpop.permute.xlu0 %3417
      %3419 = vrot.lane.b32.xlu0 %v1193, 120
      %v3420 = vpop.permute.xlu0 %3419
      %3421 = vrot.lane.b32.xlu0 %v1194, 120
      %v3422 = vpop.permute.xlu0 %3421
      %3423 = vrot.lane.b32.xlu0 %v1195, 120
      %v3424 = vpop.permute.xlu0 %3423
      %3425 = vrot.lane.b32.xlu0 %v1196, 120
      %v3426 = vpop.permute.xlu0 %3425
      %3427 = vrot.lane.b32.xlu0 %v1197, 120
      %v3428 = vpop.permute.xlu0 %3427
      %3429 = vrot.lane.b32.xlu0 %v1128, 88
      %v3430 = vpop.permute.xlu0 %3429
      %3431 = vrot.lane.b32.xlu0 %v1133, 88
      %v3432 = vpop.permute.xlu0 %3431
      %3433 = vrot.lane.b32.xlu0 %v1138, 88
      %v3434 = vpop.permute.xlu0 %3433
      %3435 = vrot.lane.b32.xlu0 %v1143, 88
      %v3436 = vpop.permute.xlu0 %3435
      %3437 = vrot.lane.b32.xlu0 %v1148, 88
      %v3438 = vpop.permute.xlu0 %3437
      %3439 = vrot.lane.b32.xlu0 %v1153, 88
      %v3440 = vpop.permute.xlu0 %3439
      %3441 = vrot.lane.b32.xlu0 %v1158, 88
      %v3442 = vpop.permute.xlu0 %3441
      %3443 = vrot.lane.b32.xlu0 %v1163, 88
      %v3444 = vpop.permute.xlu0 %3443
      %v3445 = vsel %vm1254, %v3414, 0
      %v3447 = vsel %vm1254, %v3416, 0
      %v3449 = vsel %vm1254, %v3418, 0
      %v3451 = vsel %vm1254, %v3420, 0
      %v3453 = vsel %vm1254, %v3422, 0
      %v3455 = vsel %vm1254, %v3424, 0
      %v3457 = vsel %vm1254, %v3426, 0
      %v3459 = vsel %vm1254, %v3428, 0
      %v3461 = vsel %vm1254, %v3430, 0
      %v3463 = vsel %vm1254, %v3432, 0
      %v3465 = vsel %vm1254, %v3434, 0
      %v3467 = vsel %vm1254, %v3436, 0
      %v3469 = vsel %vm1254, %v3438, 0
      %v3471 = vsel %vm1254, %v3440, 0
      %v3473 = vsel %vm1254, %v3442, 0
      %v3475 = vsel %vm1254, %v3444, 0
      %3477 = vmatprep.subr.mxu0 0.0
      %3478 = vmatpush1.xpose.msra.mxu0 %v3461
      %3479 = vmatprep.subr.mxu0 0.0
      %3480 = vmatpush1.xpose.msra.mxu0 %v3463
      %3481 = vmatprep.subr.mxu0 0.0
      %3482 = vmatpush1.xpose.msra.mxu0 %v3465
      %3483 = vmatprep.subr.mxu0 0.0
      %3484 = vmatpush1.xpose.msra.mxu0 %v3467
      %3485 = vmatprep.subr.mxu0 0.0
      %3486 = vmatpush1.xpose.msra.mxu0 %v3469
      %3487 = vmatprep.subr.mxu0 0.0
      %3488 = vmatpush1.xpose.msra.mxu0 %v3471
      %3489 = vmatprep.subr.mxu0 0.0
      %3490 = vmatpush1.xpose.msra.mxu0 %v3473
      %3491 = vmatprep.subr.mxu0 0.0
      %3492 = vmatpush1.xpose.msra.mxu0 %v3475
      %3493 = vmatprep.subr.mxu0 0.0
      %3494 = vmatpush1.xpose.msra.mxu0 0.0
      %3495 = vmatprep.subr.mxu0 0.0
      %3496 = vmatpush1.xpose.msra.mxu0 0.0
      %3497 = vmatprep.subr.mxu0 0.0
      %3498 = vmatpush1.xpose.msra.mxu0 0.0
      %3499 = vmatprep.subr.mxu0 0.0
      %3500 = vmatpush1.xpose.msra.mxu0 0.0
      %3501 = vmatprep.subr.mxu0 0.0
      %3502 = vmatpush1.xpose.msra.mxu0 0.0
      %3503 = vmatprep.subr.mxu0 0.0
      %3504 = vmatpush1.xpose.msra.mxu0 0.0
      %3505 = vmatprep.subr.mxu0 0.0
      %3506 = vmatpush1.xpose.msra.mxu0 0.0
      %3507 = vmatprep.subr.mxu0 0.0
      %3508 = vmatpush1.xpose.msra.mxu0 0.0
      %3509 = vmatprep.subr.mxu0 0.0
      %3510 = vmatpush1.xpose.msra.mxu0 0.0
      %3511 = vmatprep.subr.mxu0 0.0
      %3512 = vmatpush1.xpose.msra.mxu0 0.0
      %3513 = vmatprep.subr.mxu0 0.0
      %3514 = vmatpush1.xpose.msra.mxu0 0.0
      %3515 = vmatprep.subr.mxu0 0.0
      %3516 = vmatpush1.xpose.msra.mxu0 0.0
      %3517 = vmatprep.subr.mxu0 0.0
      %3518 = vmatpush1.xpose.msra.mxu0 0.0
      %3519 = vmatprep.subr.mxu0 0.0
      %3520 = vmatpush1.xpose.msra.mxu0 0.0
      %3521 = vmatprep.subr.mxu0 0.0
      %3522 = vmatpush1.xpose.msra.mxu0 0.0
      %3523 = vmatprep.subr.mxu0 0.0
      %3524 = vmatpush1.xpose.msra.mxu0 0.0
      %3525 = vmatprep.subr.mxu0 0.0
      %3526 = vmatpush1.xpose.msra.mxu0 0.0
      %3527 = vmatprep.subr.mxu0 0.0
      %3528 = vmatpush1.xpose.msra.mxu0 0.0
      %3529 = vmatprep.subr.mxu0 0.0
      %3530 = vmatpush1.xpose.msra.mxu0 0.0
      %3531 = vmatprep.subr.mxu0 0.0
      %3532 = vmatpush1.xpose.msra.mxu0 0.0
      %3533 = vmatprep.subr.mxu0 0.0
      %3534 = vmatpush1.xpose.msra.mxu0 0.0
      %3535 = vmatprep.subr.mxu0 0.0
      %3536 = vmatpush1.xpose.msra.mxu0 0.0
      %3537 = vmatprep.subr.mxu0 0.0
      %3538 = vmatpush1.xpose.msra.mxu0 0.0
      %3539 = vmatprep.subr.mxu0 0.0
      %3540 = vmatpush1.xpose.msra.mxu0 0.0
      %3541 = vmatprep.mubr.f32.mxu0 0.0
      %3542 = vmatmul.mubr.f32.gmra.mrb[0].mxu0 %v3445
      %v3543 = vpop.f32.mrb[0].mxu0
      %v3544 = vadd.f32 %v2898, %v3543
      %v3545 = vpop.f32.mrb[0].mxu0
      %3546 = vmatprep.mubr.f32.mxu0 0.0
      %3547 = vmatmul.mubr.f32.gmra.mrb[0].mxu0 %v3447
      %v3548 = vpop.f32.mrb[0].mxu0
      %v3549 = vadd.f32 %v2899, %v3548
      %v3550 = vpop.f32.mrb[0].mxu0
      %3551 = vmatprep.mubr.f32.mxu0 0.0
      %3552 = vmatmul.mubr.f32.gmra.mrb[0].mxu0 %v3449
      %v3553 = vpop.f32.mrb[0].mxu0
      %v3554 = vadd.f32 %v2900, %v3553
      %v3555 = vpop.f32.mrb[0].mxu0
      %3556 = vmatprep.mubr.f32.mxu0 0.0
      %3557 = vmatmul.mubr.f32.gmra.mrb[0].mxu0 %v3451
      %v3558 = vpop.f32.mrb[0].mxu0
      %v3559 = vadd.f32 %v2901, %v3558
      %v3560 = vpop.f32.mrb[0].mxu0
      %3561 = vmatprep.mubr.f32.mxu0 0.0
      %3562 = vmatmul.mubr.f32.gmra.mrb[0].mxu0 %v3453
      %v3563 = vpop.f32.mrb[0].mxu0
      %v3564 = vadd.f32 %v2902, %v3563
      %v3565 = vpop.f32.mrb[0].mxu0
      %3566 = vmatprep.mubr.f32.mxu0 0.0
      %3567 = vmatmul.mubr.f32.gmra.mrb[0].mxu0 %v3455
      %v3568 = vpop.f32.mrb[0].mxu0
      %v3569 = vadd.f32 %v2903, %v3568
      %v3570 = vpop.f32.mrb[0].mxu0
      %3571 = vmatprep.mubr.f32.mxu0 0.0
      %3572 = vmatmul.mubr.f32.gmra.mrb[0].mxu0 %v3457
      %v3573 = vpop.f32.mrb[0].mxu0
      %v3574 = vadd.f32 %v2904, %v3573
      %v3575 = vpop.f32.mrb[0].mxu0
      %3576 = vmatprep.mubr.f32.mxu0 0.0
      %3577 = vmatmul.mubr.f32.gmra.mrb[0].mxu0 %v3459
      %v3578 = vpop.f32.mrb[0].mxu0
      %v3579 = vadd.f32 %v2905, %v3578
      %v3580 = vpop.f32.mrb[0].mxu0
      %3581 = vdwg.mxu0
      %v3582 = vsel %vm1907, %v3037, -inf
      %3583 = vmax.xlane.f32.xlu0 %v3582
      %v3584 = vpop.xlane.xlu0 %3583
      %v3585 = vsel %vm1907, %v3042, -inf
      %3586 = vmax.xlane.f32.xlu0 %v3585
      %v3587 = vpop.xlane.xlu0 %3586
      %v3588 = vsel %vm1907, %v3047, -inf
      %3589 = vmax.xlane.f32.xlu0 %v3588
      %v3590 = vpop.xlane.xlu0 %3589
      %v3591 = vsel %vm1907, %v3052, -inf
      %3592 = vmax.xlane.f32.xlu0 %v3591
      %v3593 = vpop.xlane.xlu0 %3592
      %v3594 = vsel %vm1907, %v3057, -inf
      %3595 = vmax.xlane.f32.xlu0 %v3594
      %v3596 = vpop.xlane.xlu0 %3595
      %v3597 = vsel %vm1907, %v3062, -inf
      %3598 = vmax.xlane.f32.xlu0 %v3597
      %v3599 = vpop.xlane.xlu0 %3598
      %v3600 = vsel %vm1907, %v3067, -inf
      %3601 = vmax.xlane.f32.xlu0 %v3600
      %v3602 = vpop.xlane.xlu0 %3601
      %v3603 = vsel %vm1907, %v3072, -inf
      %3604 = vmax.xlane.f32.xlu0 %v3603
      %v3605 = vpop.xlane.xlu0 %3604
      %v3606 = vsel %vm1907, %v3206, -inf
      %3607 = vmax.xlane.f32.xlu0 %v3606
      %v3608 = vpop.xlane.xlu0 %3607
      %v3609 = vsel %vm1907, %v3211, -inf
      %3610 = vmax.xlane.f32.xlu0 %v3609
      %v3611 = vpop.xlane.xlu0 %3610
      %v3612 = vsel %vm1907, %v3216, -inf
      %3613 = vmax.xlane.f32.xlu0 %v3612
      %v3614 = vpop.xlane.xlu0 %3613
      %v3615 = vsel %vm1907, %v3221, -inf
      %3616 = vmax.xlane.f32.xlu0 %v3615
      %v3617 = vpop.xlane.xlu0 %3616
      %v3618 = vsel %vm1907, %v3226, -inf
      %3619 = vmax.xlane.f32.xlu0 %v3618
      %v3620 = vpop.xlane.xlu0 %3619
      %v3621 = vsel %vm1907, %v3231, -inf
      %3622 = vmax.xlane.f32.xlu0 %v3621
      %v3623 = vpop.xlane.xlu0 %3622
      %v3624 = vsel %vm1907, %v3236, -inf
      %3625 = vmax.xlane.f32.xlu0 %v3624
      %v3626 = vpop.xlane.xlu0 %3625
      %v3627 = vsel %vm1907, %v3241, -inf
      %3628 = vmax.xlane.f32.xlu0 %v3627
      %v3629 = vpop.xlane.xlu0 %3628
      %v3630 = vsel %vm1907, %v3375, -inf
      %3631 = vmax.xlane.f32.xlu0 %v3630
      %v3632 = vpop.xlane.xlu0 %3631
      %v3633 = vsel %vm1907, %v3380, -inf
      %3634 = vmax.xlane.f32.xlu0 %v3633
      %v3635 = vpop.xlane.xlu0 %3634
      %v3636 = vsel %vm1907, %v3385, -inf
      %3637 = vmax.xlane.f32.xlu0 %v3636
      %v3638 = vpop.xlane.xlu0 %3637
      %v3639 = vsel %vm1907, %v3390, -inf
      %3640 = vmax.xlane.f32.xlu0 %v3639
      %v3641 = vpop.xlane.xlu0 %3640
      %v3642 = vsel %vm1907, %v3395, -inf
      %3643 = vmax.xlane.f32.xlu0 %v3642
      %v3644 = vpop.xlane.xlu0 %3643
      %v3645 = vsel %vm1907, %v3400, -inf
      %3646 = vmax.xlane.f32.xlu0 %v3645
      %v3647 = vpop.xlane.xlu0 %3646
      %v3648 = vsel %vm1907, %v3405, -inf
      %3649 = vmax.xlane.f32.xlu0 %v3648
      %v3650 = vpop.xlane.xlu0 %3649
      %v3651 = vsel %vm1907, %v3410, -inf
      %3652 = vmax.xlane.f32.xlu0 %v3651
      %v3653 = vpop.xlane.xlu0 %3652
      %v3654 = vsel %vm1907, %v3544, -inf
      %3655 = vmax.xlane.f32.xlu0 %v3654
      %v3656 = vpop.xlane.xlu0 %3655
      %v3657 = vsel %vm1907, %v3549, -inf
      %3658 = vmax.xlane.f32.xlu0 %v3657
      %v3659 = vpop.xlane.xlu0 %3658
      %v3660 = vsel %vm1907, %v3554, -inf
      %3661 = vmax.xlane.f32.xlu0 %v3660
      %v3662 = vpop.xlane.xlu0 %3661
      %v3663 = vsel %vm1907, %v3559, -inf
      %3664 = vmax.xlane.f32.xlu0 %v3663
      %v3665 = vpop.xlane.xlu0 %3664
      %v3666 = vsel %vm1907, %v3564, -inf
      %3667 = vmax.xlane.f32.xlu0 %v3666
      %v3668 = vpop.xlane.xlu0 %3667
      %v3669 = vsel %vm1907, %v3569, -inf
      %3670 = vmax.xlane.f32.xlu0 %v3669
      %v3671 = vpop.xlane.xlu0 %3670
      %v3672 = vsel %vm1907, %v3574, -inf
      %3673 = vmax.xlane.f32.xlu0 %v3672
      %v3674 = vpop.xlane.xlu0 %3673
      %v3675 = vsel %vm1907, %v3579, -inf
      %3676 = vmax.xlane.f32.xlu0 %v3675
      %v3677 = vpop.xlane.xlu0 %3676
      %v3678 = vsub.f32 %v3037, %v3584
      %v3679 = vsub.f32 %v3042, %v3587
      %v3680 = vsub.f32 %v3047, %v3590
      %v3681 = vsub.f32 %v3052, %v3593
      %v3682 = vsub.f32 %v3057, %v3596
      %v3683 = vsub.f32 %v3062, %v3599
      %v3684 = vsub.f32 %v3067, %v3602
      %v3685 = vsub.f32 %v3072, %v3605
      %v3686 = vsub.f32 %v3206, %v3608
      %v3687 = vsub.f32 %v3211, %v3611
      %v3688 = vsub.f32 %v3216, %v3614
      %v3689 = vsub.f32 %v3221, %v3617
      %v3690 = vsub.f32 %v3226, %v3620
      %v3691 = vsub.f32 %v3231, %v3623
      %v3692 = vsub.f32 %v3236, %v3626
      %v3693 = vsub.f32 %v3241, %v3629
      %v3694 = vsub.f32 %v3375, %v3632
      %v3695 = vsub.f32 %v3380, %v3635
      %v3696 = vsub.f32 %v3385, %v3638
      %v3697 = vsub.f32 %v3390, %v3641
      %v3698 = vsub.f32 %v3395, %v3644
      %v3699 = vsub.f32 %v3400, %v3647
      %v3700 = vsub.f32 %v3405, %v3650
      %v3701 = vsub.f32 %v3410, %v3653
      %v3702 = vsub.f32 %v3544, %v3656
      %v3703 = vsub.f32 %v3549, %v3659
      %v3704 = vsub.f32 %v3554, %v3662
      %v3705 = vsub.f32 %v3559, %v3665
      %v3706 = vsub.f32 %v3564, %v3668
      %v3707 = vsub.f32 %v3569, %v3671
      %v3708 = vsub.f32 %v3574, %v3674
      %v3709 = vsub.f32 %v3579, %v3677
      %v3710 = vmul.f32 %v3678, 1.442695
      %v3711 = vpow.pop %v3710
      %v3712 = vmul.f32 %v3679, 1.442695
      %v3713 = vpow.pop %v3712
      %v3714 = vmul.f32 %v3680, 1.442695
      %v3715 = vpow.pop %v3714
      %v3716 = vmul.f32 %v3681, 1.442695
      %v3717 = vpow.pop %v3716
      %v3718 = vmul.f32 %v3682, 1.442695
      %v3719 = vpow.pop %v3718
      %v3720 = vmul.f32 %v3683, 1.442695
      %v3721 = vpow.pop %v3720
      %v3722 = vmul.f32 %v3684, 1.442695
      %v3723 = vpow.pop %v3722
      %v3724 = vmul.f32 %v3685, 1.442695
      %v3725 = vpow.pop %v3724
      %v3726 = vmul.f32 %v3686, 1.442695
      %v3727 = vpow.pop %v3726
      %v3728 = vmul.f32 %v3687, 1.442695
      %v3729 = vpow.pop %v3728
      %v3730 = vmul.f32 %v3688, 1.442695
      %v3731 = vpow.pop %v3730
      %v3732 = vmul.f32 %v3689, 1.442695
      %v3733 = vpow.pop %v3732
      %v3734 = vmul.f32 %v3690, 1.442695
      %v3735 = vpow.pop %v3734
      %v3736 = vmul.f32 %v3691, 1.442695
      %v3737 = vpow.pop %v3736
      %v3738 = vmul.f32 %v3692, 1.442695
      %v3739 = vpow.pop %v3738
      %v3740 = vmul.f32 %v3693, 1.442695
      %v3741 = vpow.pop %v3740
      %v3742 = vmul.f32 %v3694, 1.442695
      %v3743 = vpow.pop %v3742
      %v3744 = vmul.f32 %v3695, 1.442695
      %v3745 = vpow.pop %v3744
      %v3746 = vmul.f32 %v3696, 1.442695
      %v3747 = vpow.pop %v3746
      %v3748 = vmul.f32 %v3697, 1.442695
      %v3749 = vpow.pop %v3748
      %v3750 = vmul.f32 %v3698, 1.442695
      %v3751 = vpow.pop %v3750
      %v3752 = vmul.f32 %v3699, 1.442695
      %v3753 = vpow.pop %v3752
      %v3754 = vmul.f32 %v3700, 1.442695
      %v3755 = vpow.pop %v3754
      %v3756 = vmul.f32 %v3701, 1.442695
      %v3757 = vpow.pop %v3756
      %v3758 = vmul.f32 %v3702, 1.442695
      %v3759 = vpow.pop %v3758
      %v3760 = vmul.f32 %v3703, 1.442695
      %v3761 = vpow.pop %v3760
      %v3762 = vmul.f32 %v3704, 1.442695
      %v3763 = vpow.pop %v3762
      %v3764 = vmul.f32 %v3705, 1.442695
      %v3765 = vpow.pop %v3764
      %v3766 = vmul.f32 %v3706, 1.442695
      %v3767 = vpow.pop %v3766
      %v3768 = vmul.f32 %v3707, 1.442695
      %v3769 = vpow.pop %v3768
      %v3770 = vmul.f32 %v3708, 1.442695
      %v3771 = vpow.pop %v3770
      %v3772 = vmul.f32 %v3709, 1.442695
      %v3773 = vpow.pop %v3772
      %v3774 = vsel %vm1907, %v3711, 0.0
      %3775 = vadd.xlane.f32.xlu0 %v3774
      %v3776 = vpop.xlane.xlu0 %3775
      %v3777 = vsel %vm1907, %v3713, 0.0
      %3778 = vadd.xlane.f32.xlu0 %v3777
      %v3779 = vpop.xlane.xlu0 %3778
      %v3780 = vsel %vm1907, %v3715, 0.0
      %3781 = vadd.xlane.f32.xlu0 %v3780
      %v3782 = vpop.xlane.xlu0 %3781
      %v3783 = vsel %vm1907, %v3717, 0.0
      %3784 = vadd.xlane.f32.xlu0 %v3783
      %v3785 = vpop.xlane.xlu0 %3784
      %v3786 = vsel %vm1907, %v3719, 0.0
      %3787 = vadd.xlane.f32.xlu0 %v3786
      %v3788 = vpop.xlane.xlu0 %3787
      %v3789 = vsel %vm1907, %v3721, 0.0
      %3790 = vadd.xlane.f32.xlu0 %v3789
      %v3791 = vpop.xlane.xlu0 %3790
      %v3792 = vsel %vm1907, %v3723, 0.0
      %3793 = vadd.xlane.f32.xlu0 %v3792
      %v3794 = vpop.xlane.xlu0 %3793
      %v3795 = vsel %vm1907, %v3725, 0.0
      %3796 = vadd.xlane.f32.xlu0 %v3795
      %v3797 = vpop.xlane.xlu0 %3796
      %v3798 = vsel %vm1907, %v3727, 0.0
      %3799 = vadd.xlane.f32.xlu0 %v3798
      %v3800 = vpop.xlane.xlu0 %3799
      %v3801 = vsel %vm1907, %v3729, 0.0
      %3802 = vadd.xlane.f32.xlu0 %v3801
      %v3803 = vpop.xlane.xlu0 %3802
      %v3804 = vsel %vm1907, %v3731, 0.0
      %3805 = vadd.xlane.f32.xlu0 %v3804
      %v3806 = vpop.xlane.xlu0 %3805
      %v3807 = vsel %vm1907, %v3733, 0.0
      %3808 = vadd.xlane.f32.xlu0 %v3807
      %v3809 = vpop.xlane.xlu0 %3808
      %v3810 = vsel %vm1907, %v3735, 0.0
      %3811 = vadd.xlane.f32.xlu0 %v3810
      %v3812 = vpop.xlane.xlu0 %3811
      %v3813 = vsel %vm1907, %v3737, 0.0
      %3814 = vadd.xlane.f32.xlu0 %v3813
      %v3815 = vpop.xlane.xlu0 %3814
      %v3816 = vsel %vm1907, %v3739, 0.0
      %3817 = vadd.xlane.f32.xlu0 %v3816
      %v3818 = vpop.xlane.xlu0 %3817
      %v3819 = vsel %vm1907, %v3741, 0.0
      %3820 = vadd.xlane.f32.xlu0 %v3819
      %v3821 = vpop.xlane.xlu0 %3820
      %v3822 = vsel %vm1907, %v3743, 0.0
      %3823 = vadd.xlane.f32.xlu0 %v3822
      %v3824 = vpop.xlane.xlu0 %3823
      %v3825 = vsel %vm1907, %v3745, 0.0
      %3826 = vadd.xlane.f32.xlu0 %v3825
      %v3827 = vpop.xlane.xlu0 %3826
      %v3828 = vsel %vm1907, %v3747, 0.0
      %3829 = vadd.xlane.f32.xlu0 %v3828
      %v3830 = vpop.xlane.xlu0 %3829
      %v3831 = vsel %vm1907, %v3749, 0.0
      %3832 = vadd.xlane.f32.xlu0 %v3831
      %v3833 = vpop.xlane.xlu0 %3832
      %v3834 = vsel %vm1907, %v3751, 0.0
      %3835 = vadd.xlane.f32.xlu0 %v3834
      %v3836 = vpop.xlane.xlu0 %3835
      %v3837 = vsel %vm1907, %v3753, 0.0
      %3838 = vadd.xlane.f32.xlu0 %v3837
      %v3839 = vpop.xlane.xlu0 %3838
      %v3840 = vsel %vm1907, %v3755, 0.0
      %3841 = vadd.xlane.f32.xlu0 %v3840
      %v3842 = vpop.xlane.xlu0 %3841
      %v3843 = vsel %vm1907, %v3757, 0.0
      %3844 = vadd.xlane.f32.xlu0 %v3843
      %v3845 = vpop.xlane.xlu0 %3844
      %v3846 = vsel %vm1907, %v3759, 0.0
      %3847 = vadd.xlane.f32.xlu0 %v3846
      %v3848 = vpop.xlane.xlu0 %3847
      %v3849 = vsel %vm1907, %v3761, 0.0
      %3850 = vadd.xlane.f32.xlu0 %v3849
      %v3851 = vpop.xlane.xlu0 %3850
      %v3852 = vsel %vm1907, %v3763, 0.0
      %3853 = vadd.xlane.f32.xlu0 %v3852
      %v3854 = vpop.xlane.xlu0 %3853
      %v3855 = vsel %vm1907, %v3765, 0.0
      %3856 = vadd.xlane.f32.xlu0 %v3855
      %v3857 = vpop.xlane.xlu0 %3856
      %v3858 = vsel %vm1907, %v3767, 0.0
      %3859 = vadd.xlane.f32.xlu0 %v3858
      %v3860 = vpop.xlane.xlu0 %3859
      %v3861 = vsel %vm1907, %v3769, 0.0
      %3862 = vadd.xlane.f32.xlu0 %v3861
      %v3863 = vpop.xlane.xlu0 %3862
      %v3864 = vsel %vm1907, %v3771, 0.0
      %3865 = vadd.xlane.f32.xlu0 %v3864
      %v3866 = vpop.xlane.xlu0 %3865
      %v3867 = vsel %vm1907, %v3773, 0.0
      %3868 = vadd.xlane.f32.xlu0 %v3867
      %v3869 = vpop.xlane.xlu0 %3868
      %v3870 = vrcp.pop %v3776
      %v3871 = vrcp.pop %v3779
      %v3872 = vrcp.pop %v3782
      %v3873 = vrcp.pop %v3785
      %v3874 = vrcp.pop %v3788
      %v3875 = vrcp.pop %v3791
      %v3876 = vrcp.pop %v3794
      %v3877 = vrcp.pop %v3797
      %v3878 = vrcp.pop %v3800
      %v3879 = vrcp.pop %v3803
      %v3880 = vrcp.pop %v3806
      %v3881 = vrcp.pop %v3809
      %v3882 = vrcp.pop %v3812
      %v3883 = vrcp.pop %v3815
      %v3884 = vrcp.pop %v3818
      %v3885 = vrcp.pop %v3821
      %v3886 = vrcp.pop %v3824
      %v3887 = vrcp.pop %v3827
      %v3888 = vrcp.pop %v3830
      %v3889 = vrcp.pop %v3833
      %v3890 = vrcp.pop %v3836
      %v3891 = vrcp.pop %v3839
      %v3892 = vrcp.pop %v3842
      %v3893 = vrcp.pop %v3845
      %v3894 = vrcp.pop %v3848
      %v3895 = vrcp.pop %v3851
      %v3896 = vrcp.pop %v3854
      %v3897 = vrcp.pop %v3857
      %v3898 = vrcp.pop %v3860
      %v3899 = vrcp.pop %v3863
      %v3900 = vrcp.pop %v3866
      %v3901 = vrcp.pop %v3869
      %v3902 = vmul.f32 %v3711, %v3870
      %v3903 = vmul.f32 %v3713, %v3871
      %v3904 = vmul.f32 %v3715, %v3872
      %v3905 = vmul.f32 %v3717, %v3873
      %v3906 = vmul.f32 %v3719, %v3874
      %v3907 = vmul.f32 %v3721, %v3875
      %v3908 = vmul.f32 %v3723, %v3876
      %v3909 = vmul.f32 %v3725, %v3877
      %v3910 = vmul.f32 %v3727, %v3878
      %v3911 = vmul.f32 %v3729, %v3879
      %v3912 = vmul.f32 %v3731, %v3880
      %v3913 = vmul.f32 %v3733, %v3881
      %v3914 = vmul.f32 %v3735, %v3882
      %v3915 = vmul.f32 %v3737, %v3883
      %v3916 = vmul.f32 %v3739, %v3884
      %v3917 = vmul.f32 %v3741, %v3885
      %v3918 = vmul.f32 %v3743, %v3886
      %v3919 = vmul.f32 %v3745, %v3887
      %v3920 = vmul.f32 %v3747, %v3888
      %v3921 = vmul.f32 %v3749, %v3889
      %v3922 = vmul.f32 %v3751, %v3890
      %v3923 = vmul.f32 %v3753, %v3891
      %v3924 = vmul.f32 %v3755, %v3892
      %v3925 = vmul.f32 %v3757, %v3893
      %v3926 = vmul.f32 %v3759, %v3894
      %v3927 = vmul.f32 %v3761, %v3895
      %v3928 = vmul.f32 %v3763, %v3896
      %v3929 = vmul.f32 %v3765, %v3897
      %v3930 = vmul.f32 %v3767, %v3898
      %v3931 = vmul.f32 %v3769, %v3899
      %v3932 = vmul.f32 %v3771, %v3900
      %v3933 = vmul.f32 %v3773, %v3901
      %3934 = vrot.lane.b32.xlu0 %v1008, 56
      %v3935 = vpop.permute.xlu0 %3934
      %3936 = vrot.lane.b32.xlu0 %v1013, 56
      %v3937 = vpop.permute.xlu0 %3936
      %3938 = vrot.lane.b32.xlu0 %v1018, 56
      %v3939 = vpop.permute.xlu0 %3938
      %3940 = vrot.lane.b32.xlu0 %v1023, 56
      %v3941 = vpop.permute.xlu0 %3940
      %3942 = vrot.lane.b32.xlu0 %v1028, 56
      %v3943 = vpop.permute.xlu0 %3942
      %3944 = vrot.lane.b32.xlu0 %v1033, 56
      %v3945 = vpop.permute.xlu0 %3944
      %3946 = vrot.lane.b32.xlu0 %v1038, 56
      %v3947 = vpop.permute.xlu0 %3946
      %3948 = vrot.lane.b32.xlu0 %v1043, 56
      %v3949 = vpop.permute.xlu0 %3948
      %v3959 = vsel %vm1907, %v3902, 0
      %v3962 = vsel %vm1907, %v3903, 0
      %v3965 = vsel %vm1907, %v3904, 0
      %v3968 = vsel %vm1907, %v3905, 0
      %v3971 = vsel %vm1907, %v3906, 0
      %v3974 = vsel %vm1907, %v3907, 0
      %v3977 = vsel %vm1907, %v3908, 0
      %v3980 = vsel %vm1907, %v3909, 0
      %3982 = vmatprep.subr.mxu0 0.0
      %3983 = vmatpush1.msra.mxu0 %v3935
      %3984 = vmatprep.subr.mxu0 0.0
      %3985 = vmatpush1.msra.mxu0 %v3937
      %3986 = vmatprep.subr.mxu0 0.0
      %3987 = vmatpush1.msra.mxu0 %v3939
      %3988 = vmatprep.subr.mxu0 0.0
      %3989 = vmatpush1.msra.mxu0 %v3941
      %3990 = vmatprep.subr.mxu0 0.0
      %3991 = vmatpush1.msra.mxu0 %v3943
      %3992 = vmatprep.subr.mxu0 0.0
      %3993 = vmatpush1.msra.mxu0 %v3945
      %3994 = vmatprep.subr.mxu0 0.0
      %3995 = vmatpush1.msra.mxu0 %v3947
      %3996 = vmatprep.subr.mxu0 0.0
      %3997 = vmatpush1.msra.mxu0 %v3949
      %3998 = vmatprep.subr.mxu0 0.0
      %3999 = vmatpush1.msra.mxu0 0.0
      %4000 = vmatprep.subr.mxu0 0.0
      %4001 = vmatpush1.msra.mxu0 0.0
      %4002 = vmatprep.subr.mxu0 0.0
      %4003 = vmatpush1.msra.mxu0 0.0
      %4004 = vmatprep.subr.mxu0 0.0
      %4005 = vmatpush1.msra.mxu0 0.0
      %4006 = vmatprep.subr.mxu0 0.0
      %4007 = vmatpush1.msra.mxu0 0.0
      %4008 = vmatprep.subr.mxu0 0.0
      %4009 = vmatpush1.msra.mxu0 0.0
      %4010 = vmatprep.subr.mxu0 0.0
      %4011 = vmatpush1.msra.mxu0 0.0
      %4012 = vmatprep.subr.mxu0 0.0
      %4013 = vmatpush1.msra.mxu0 0.0
      %4014 = vmatprep.subr.mxu0 0.0
      %4015 = vmatpush1.msra.mxu0 0.0
      %4016 = vmatprep.subr.mxu0 0.0
      %4017 = vmatpush1.msra.mxu0 0.0
      %4018 = vmatprep.subr.mxu0 0.0
      %4019 = vmatpush1.msra.mxu0 0.0
      %4020 = vmatprep.subr.mxu0 0.0
      %4021 = vmatpush1.msra.mxu0 0.0
      %4022 = vmatprep.subr.mxu0 0.0
      %4023 = vmatpush1.msra.mxu0 0.0
      %4024 = vmatprep.subr.mxu0 0.0
      %4025 = vmatpush1.msra.mxu0 0.0
      %4026 = vmatprep.subr.mxu0 0.0
      %4027 = vmatpush1.msra.mxu0 0.0
      %4028 = vmatprep.subr.mxu0 0.0
      %4029 = vmatpush1.msra.mxu0 0.0
      %4030 = vmatprep.subr.mxu0 0.0
      %4031 = vmatpush1.msra.mxu0 0.0
      %4032 = vmatprep.subr.mxu0 0.0
      %4033 = vmatpush1.msra.mxu0 0.0
      %4034 = vmatprep.subr.mxu0 0.0
      %4035 = vmatpush1.msra.mxu0 0.0
      %4036 = vmatprep.subr.mxu0 0.0
      %4037 = vmatpush1.msra.mxu0 0.0
      %4038 = vmatprep.subr.mxu0 0.0
      %4039 = vmatpush1.msra.mxu0 0.0
      %4040 = vmatprep.subr.mxu0 0.0
      %4041 = vmatpush1.msra.mxu0 0.0
      %4042 = vmatprep.subr.mxu0 0.0
      %4043 = vmatpush1.msra.mxu0 0.0
      %4044 = vmatprep.subr.mxu0 0.0
      %4045 = vmatpush1.msra.mxu0 0.0
      %4046 = vmatprep.mubr.f32.mxu0 0.0
      %4047 = vmatmul.mubr.f32.gmra.mrb[0].mxu0 %v3959
      %v4048 = vpop.f32.mrb[0].mxu0
      %v4049 = vadd.f32 0.0, %v4048
      %v4050 = vpop.f32.mrb[0].mxu0
      %4051 = vmatprep.mubr.f32.mxu0 0.0
      %4052 = vmatmul.mubr.f32.gmra.mrb[0].mxu0 %v3962
      %v4053 = vpop.f32.mrb[0].mxu0
      %v4054 = vadd.f32 0.0, %v4053
      %v4055 = vpop.f32.mrb[0].mxu0
      %4056 = vmatprep.mubr.f32.mxu0 0.0
      %4057 = vmatmul.mubr.f32.gmra.mrb[0].mxu0 %v3965
      %v4058 = vpop.f32.mrb[0].mxu0
      %v4059 = vadd.f32 0.0, %v4058
      %v4060 = vpop.f32.mrb[0].mxu0
      %4061 = vmatprep.mubr.f32.mxu0 0.0
      %4062 = vmatmul.mubr.f32.gmra.mrb[0].mxu0 %v3968
      %v4063 = vpop.f32.mrb[0].mxu0
      %v4064 = vadd.f32 0.0, %v4063
      %v4065 = vpop.f32.mrb[0].mxu0
      %4066 = vmatprep.mubr.f32.mxu0 0.0
      %4067 = vmatmul.mubr.f32.gmra.mrb[0].mxu0 %v3971
      %v4068 = vpop.f32.mrb[0].mxu0
      %v4069 = vadd.f32 0.0, %v4068
      %v4070 = vpop.f32.mrb[0].mxu0
      %4071 = vmatprep.mubr.f32.mxu0 0.0
      %4072 = vmatmul.mubr.f32.gmra.mrb[0].mxu0 %v3974
      %v4073 = vpop.f32.mrb[0].mxu0
      %v4074 = vadd.f32 0.0, %v4073
      %v4075 = vpop.f32.mrb[0].mxu0
      %4076 = vmatprep.mubr.f32.mxu0 0.0
      %4077 = vmatmul.mubr.f32.gmra.mrb[0].mxu0 %v3977
      %v4078 = vpop.f32.mrb[0].mxu0
      %v4079 = vadd.f32 0.0, %v4078
      %v4080 = vpop.f32.mrb[0].mxu0
      %4081 = vmatprep.mubr.f32.mxu0 0.0
      %4082 = vmatmul.mubr.f32.gmra.mrb[0].mxu0 %v3980
      %v4083 = vpop.f32.mrb[0].mxu0
      %v4084 = vadd.f32 0.0, %v4083
      %v4085 = vpop.f32.mrb[0].mxu0
      %4086 = vdwg.mxu0
      %4087 = vrot.lane.b32.xlu0 %v1048, 56
      %v4088 = vpop.permute.xlu0 %4087
      %4089 = vrot.lane.b32.xlu0 %v1053, 56
      %v4090 = vpop.permute.xlu0 %4089
      %4091 = vrot.lane.b32.xlu0 %v1058, 56
      %v4092 = vpop.permute.xlu0 %4091
      %4093 = vrot.lane.b32.xlu0 %v1063, 56
      %v4094 = vpop.permute.xlu0 %4093
      %4095 = vrot.lane.b32.xlu0 %v1068, 56
      %v4096 = vpop.permute.xlu0 %4095
      %4097 = vrot.lane.b32.xlu0 %v1073, 56
      %v4098 = vpop.permute.xlu0 %4097
      %4099 = vrot.lane.b32.xlu0 %v1078, 56
      %v4100 = vpop.permute.xlu0 %4099
      %4101 = vrot.lane.b32.xlu0 %v1083, 56
      %v4102 = vpop.permute.xlu0 %4101
      %v4112 = vsel %vm1907, %v3910, 0
      %v4115 = vsel %vm1907, %v3911, 0
      %v4118 = vsel %vm1907, %v3912, 0
      %v4121 = vsel %vm1907, %v3913, 0
      %v4124 = vsel %vm1907, %v3914, 0
      %v4127 = vsel %vm1907, %v3915, 0
      %v4130 = vsel %vm1907, %v3916, 0
      %v4133 = vsel %vm1907, %v3917, 0
      %4135 = vmatprep.subr.mxu0 0.0
      %4136 = vmatpush1.msra.mxu0 %v4088
      %4137 = vmatprep.subr.mxu0 0.0
      %4138 = vmatpush1.msra.mxu0 %v4090
      %4139 = vmatprep.subr.mxu0 0.0
      %4140 = vmatpush1.msra.mxu0 %v4092
      %4141 = vmatprep.subr.mxu0 0.0
      %4142 = vmatpush1.msra.mxu0 %v4094
      %4143 = vmatprep.subr.mxu0 0.0
      %4144 = vmatpush1.msra.mxu0 %v4096
      %4145 = vmatprep.subr.mxu0 0.0
      %4146 = vmatpush1.msra.mxu0 %v4098
      %4147 = vmatprep.subr.mxu0 0.0
      %4148 = vmatpush1.msra.mxu0 %v4100
      %4149 = vmatprep.subr.mxu0 0.0
      %4150 = vmatpush1.msra.mxu0 %v4102
      %4151 = vmatprep.subr.mxu0 0.0
      %4152 = vmatpush1.msra.mxu0 0.0
      %4153 = vmatprep.subr.mxu0 0.0
      %4154 = vmatpush1.msra.mxu0 0.0
      %4155 = vmatprep.subr.mxu0 0.0
      %4156 = vmatpush1.msra.mxu0 0.0
      %4157 = vmatprep.subr.mxu0 0.0
      %4158 = vmatpush1.msra.mxu0 0.0
      %4159 = vmatprep.subr.mxu0 0.0
      %4160 = vmatpush1.msra.mxu0 0.0
      %4161 = vmatprep.subr.mxu0 0.0
      %4162 = vmatpush1.msra.mxu0 0.0
      %4163 = vmatprep.subr.mxu0 0.0
      %4164 = vmatpush1.msra.mxu0 0.0
      %4165 = vmatprep.subr.mxu0 0.0
      %4166 = vmatpush1.msra.mxu0 0.0
      %4167 = vmatprep.subr.mxu0 0.0
      %4168 = vmatpush1.msra.mxu0 0.0
      %4169 = vmatprep.subr.mxu0 0.0
      %4170 = vmatpush1.msra.mxu0 0.0
      %4171 = vmatprep.subr.mxu0 0.0
      %4172 = vmatpush1.msra.mxu0 0.0
      %4173 = vmatprep.subr.mxu0 0.0
      %4174 = vmatpush1.msra.mxu0 0.0
      %4175 = vmatprep.subr.mxu0 0.0
      %4176 = vmatpush1.msra.mxu0 0.0
      %4177 = vmatprep.subr.mxu0 0.0
      %4178 = vmatpush1.msra.mxu0 0.0
      %4179 = vmatprep.subr.mxu0 0.0
      %4180 = vmatpush1.msra.mxu0 0.0
      %4181 = vmatprep.subr.mxu0 0.0
      %4182 = vmatpush1.msra.mxu0 0.0
      %4183 = vmatprep.subr.mxu0 0.0
      %4184 = vmatpush1.msra.mxu0 0.0
      %4185 = vmatprep.subr.mxu0 0.0
      %4186 = vmatpush1.msra.mxu0 0.0
      %4187 = vmatprep.subr.mxu0 0.0
      %4188 = vmatpush1.msra.mxu0 0.0
      %4189 = vmatprep.subr.mxu0 0.0
      %4190 = vmatpush1.msra.mxu0 0.0
      %4191 = vmatprep.subr.mxu0 0.0
      %4192 = vmatpush1.msra.mxu0 0.0
      %4193 = vmatprep.subr.mxu0 0.0
      %4194 = vmatpush1.msra.mxu0 0.0
      %4195 = vmatprep.subr.mxu0 0.0
      %4196 = vmatpush1.msra.mxu0 0.0
      %4197 = vmatprep.subr.mxu0 0.0
      %4198 = vmatpush1.msra.mxu0 0.0
      %4199 = vmatprep.mubr.f32.mxu0 0.0
      %4200 = vmatmul.mubr.f32.gmra.mrb[0].mxu0 %v4112
      %v4201 = vpop.f32.mrb[0].mxu0
      %v4202 = vadd.f32 0.0, %v4201
      %v4203 = vpop.f32.mrb[0].mxu0
      %4204 = vmatprep.mubr.f32.mxu0 0.0
      %4205 = vmatmul.mubr.f32.gmra.mrb[0].mxu0 %v4115
      %v4206 = vpop.f32.mrb[0].mxu0
      %v4207 = vadd.f32 0.0, %v4206
      %v4208 = vpop.f32.mrb[0].mxu0
      %4209 = vmatprep.mubr.f32.mxu0 0.0
      %4210 = vmatmul.mubr.f32.gmra.mrb[0].mxu0 %v4118
      %v4211 = vpop.f32.mrb[0].mxu0
      %v4212 = vadd.f32 0.0, %v4211
      %v4213 = vpop.f32.mrb[0].mxu0
      %4214 = vmatprep.mubr.f32.mxu0 0.0
      %4215 = vmatmul.mubr.f32.gmra.mrb[0].mxu0 %v4121
      %v4216 = vpop.f32.mrb[0].mxu0
      %v4217 = vadd.f32 0.0, %v4216
      %v4218 = vpop.f32.mrb[0].mxu0
      %4219 = vmatprep.mubr.f32.mxu0 0.0
      %4220 = vmatmul.mubr.f32.gmra.mrb[0].mxu0 %v4124
      %v4221 = vpop.f32.mrb[0].mxu0
      %v4222 = vadd.f32 0.0, %v4221
      %v4223 = vpop.f32.mrb[0].mxu0
      %4224 = vmatprep.mubr.f32.mxu0 0.0
      %4225 = vmatmul.mubr.f32.gmra.mrb[0].mxu0 %v4127
      %v4226 = vpop.f32.mrb[0].mxu0
      %v4227 = vadd.f32 0.0, %v4226
      %v4228 = vpop.f32.mrb[0].mxu0
      %4229 = vmatprep.mubr.f32.mxu0 0.0
      %4230 = vmatmul.mubr.f32.gmra.mrb[0].mxu0 %v4130
      %v4231 = vpop.f32.mrb[0].mxu0
      %v4232 = vadd.f32 0.0, %v4231
      %v4233 = vpop.f32.mrb[0].mxu0
      %4234 = vmatprep.mubr.f32.mxu0 0.0
      %4235 = vmatmul.mubr.f32.gmra.mrb[0].mxu0 %v4133
      %v4236 = vpop.f32.mrb[0].mxu0
      %v4237 = vadd.f32 0.0, %v4236
      %v4238 = vpop.f32.mrb[0].mxu0
      %4239 = vdwg.mxu0
      %4240 = vrot.lane.b32.xlu0 %v1088, 56
      %v4241 = vpop.permute.xlu0 %4240
      %4242 = vrot.lane.b32.xlu0 %v1093, 56
      %v4243 = vpop.permute.xlu0 %4242
      %4244 = vrot.lane.b32.xlu0 %v1098, 56
      %v4245 = vpop.permute.xlu0 %4244
      %4246 = vrot.lane.b32.xlu0 %v1103, 56
      %v4247 = vpop.permute.xlu0 %4246
      %4248 = vrot.lane.b32.xlu0 %v1108, 56
      %v4249 = vpop.permute.xlu0 %4248
      %4250 = vrot.lane.b32.xlu0 %v1113, 56
      %v4251 = vpop.permute.xlu0 %4250
      %4252 = vrot.lane.b32.xlu0 %v1118, 56
      %v4253 = vpop.permute.xlu0 %4252
      %4254 = vrot.lane.b32.xlu0 %v1123, 56
      %v4255 = vpop.permute.xlu0 %4254
      %v4265 = vsel %vm1907, %v3918, 0
      %v4268 = vsel %vm1907, %v3919, 0
      %v4271 = vsel %vm1907, %v3920, 0
      %v4274 = vsel %vm1907, %v3921, 0
      %v4277 = vsel %vm1907, %v3922, 0
      %v4280 = vsel %vm1907, %v3923, 0
      %v4283 = vsel %vm1907, %v3924, 0
      %v4286 = vsel %vm1907, %v3925, 0
      %4288 = vmatprep.subr.mxu0 0.0
      %4289 = vmatpush1.msra.mxu0 %v4241
      %4290 = vmatprep.subr.mxu0 0.0
      %4291 = vmatpush1.msra.mxu0 %v4243
      %4292 = vmatprep.subr.mxu0 0.0
      %4293 = vmatpush1.msra.mxu0 %v4245
      %4294 = vmatprep.subr.mxu0 0.0
      %4295 = vmatpush1.msra.mxu0 %v4247
      %4296 = vmatprep.subr.mxu0 0.0
      %4297 = vmatpush1.msra.mxu0 %v4249
      %4298 = vmatprep.subr.mxu0 0.0
      %4299 = vmatpush1.msra.mxu0 %v4251
      %4300 = vmatprep.subr.mxu0 0.0
      %4301 = vmatpush1.msra.mxu0 %v4253
      %4302 = vmatprep.subr.mxu0 0.0
      %4303 = vmatpush1.msra.mxu0 %v4255
      %4304 = vmatprep.subr.mxu0 0.0
      %4305 = vmatpush1.msra.mxu0 0.0
      %4306 = vmatprep.subr.mxu0 0.0
      %4307 = vmatpush1.msra.mxu0 0.0
      %4308 = vmatprep.subr.mxu0 0.0
      %4309 = vmatpush1.msra.mxu0 0.0
      %4310 = vmatprep.subr.mxu0 0.0
      %4311 = vmatpush1.msra.mxu0 0.0
      %4312 = vmatprep.subr.mxu0 0.0
      %4313 = vmatpush1.msra.mxu0 0.0
      %4314 = vmatprep.subr.mxu0 0.0
      %4315 = vmatpush1.msra.mxu0 0.0
      %4316 = vmatprep.subr.mxu0 0.0
      %4317 = vmatpush1.msra.mxu0 0.0
      %4318 = vmatprep.subr.mxu0 0.0
      %4319 = vmatpush1.msra.mxu0 0.0
      %4320 = vmatprep.subr.mxu0 0.0
      %4321 = vmatpush1.msra.mxu0 0.0
      %4322 = vmatprep.subr.mxu0 0.0
      %4323 = vmatpush1.msra.mxu0 0.0
      %4324 = vmatprep.subr.mxu0 0.0
      %4325 = vmatpush1.msra.mxu0 0.0
      %4326 = vmatprep.subr.mxu0 0.0
      %4327 = vmatpush1.msra.mxu0 0.0
      %4328 = vmatprep.subr.mxu0 0.0
      %4329 = vmatpush1.msra.mxu0 0.0
      %4330 = vmatprep.subr.mxu0 0.0
      %4331 = vmatpush1.msra.mxu0 0.0
      %4332 = vmatprep.subr.mxu0 0.0
      %4333 = vmatpush1.msra.mxu0 0.0
      %4334 = vmatprep.subr.mxu0 0.0
      %4335 = vmatpush1.msra.mxu0 0.0
      %4336 = vmatprep.subr.mxu0 0.0
      %4337 = vmatpush1.msra.mxu0 0.0
      %4338 = vmatprep.subr.mxu0 0.0
      %4339 = vmatpush1.msra.mxu0 0.0
      %4340 = vmatprep.subr.mxu0 0.0
      %4341 = vmatpush1.msra.mxu0 0.0
      %4342 = vmatprep.subr.mxu0 0.0
      %4343 = vmatpush1.msra.mxu0 0.0
      %4344 = vmatprep.subr.mxu0 0.0
      %4345 = vmatpush1.msra.mxu0 0.0
      %4346 = vmatprep.subr.mxu0 0.0
      %4347 = vmatpush1.msra.mxu0 0.0
      %4348 = vmatprep.subr.mxu0 0.0
      %4349 = vmatpush1.msra.mxu0 0.0
      %4350 = vmatprep.subr.mxu0 0.0
      %4351 = vmatpush1.msra.mxu0 0.0
      %4352 = vmatprep.mubr.f32.mxu0 0.0
      %4353 = vmatmul.mubr.f32.gmra.mrb[0].mxu0 %v4265
      %v4354 = vpop.f32.mrb[0].mxu0
      %v4355 = vadd.f32 0.0, %v4354
      %v4356 = vpop.f32.mrb[0].mxu0
      %4357 = vmatprep.mubr.f32.mxu0 0.0
      %4358 = vmatmul.mubr.f32.gmra.mrb[0].mxu0 %v4268
      %v4359 = vpop.f32.mrb[0].mxu0
      %v4360 = vadd.f32 0.0, %v4359
      %v4361 = vpop.f32.mrb[0].mxu0
      %4362 = vmatprep.mubr.f32.mxu0 0.0
      %4363 = vmatmul.mubr.f32.gmra.mrb[0].mxu0 %v4271
      %v4364 = vpop.f32.mrb[0].mxu0
      %v4365 = vadd.f32 0.0, %v4364
      %v4366 = vpop.f32.mrb[0].mxu0
      %4367 = vmatprep.mubr.f32.mxu0 0.0
      %4368 = vmatmul.mubr.f32.gmra.mrb[0].mxu0 %v4274
      %v4369 = vpop.f32.mrb[0].mxu0
      %v4370 = vadd.f32 0.0, %v4369
      %v4371 = vpop.f32.mrb[0].mxu0
      %4372 = vmatprep.mubr.f32.mxu0 0.0
      %4373 = vmatmul.mubr.f32.gmra.mrb[0].mxu0 %v4277
      %v4374 = vpop.f32.mrb[0].mxu0
      %v4375 = vadd.f32 0.0, %v4374
      %v4376 = vpop.f32.mrb[0].mxu0
      %4377 = vmatprep.mubr.f32.mxu0 0.0
      %4378 = vmatmul.mubr.f32.gmra.mrb[0].mxu0 %v4280
      %v4379 = vpop.f32.mrb[0].mxu0
      %v4380 = vadd.f32 0.0, %v4379
      %v4381 = vpop.f32.mrb[0].mxu0
      %4382 = vmatprep.mubr.f32.mxu0 0.0
      %4383 = vmatmul.mubr.f32.gmra.mrb[0].mxu0 %v4283
      %v4384 = vpop.f32.mrb[0].mxu0
      %v4385 = vadd.f32 0.0, %v4384
      %v4386 = vpop.f32.mrb[0].mxu0
      %4387 = vmatprep.mubr.f32.mxu0 0.0
      %4388 = vmatmul.mubr.f32.gmra.mrb[0].mxu0 %v4286
      %v4389 = vpop.f32.mrb[0].mxu0
      %v4390 = vadd.f32 0.0, %v4389
      %v4391 = vpop.f32.mrb[0].mxu0
      %4392 = vdwg.mxu0
      %4393 = vrot.lane.b32.xlu0 %v1128, 56
      %v4394 = vpop.permute.xlu0 %4393
      %4395 = vrot.lane.b32.xlu0 %v1133, 56
      %v4396 = vpop.permute.xlu0 %4395
      %4397 = vrot.lane.b32.xlu0 %v1138, 56
      %v4398 = vpop.permute.xlu0 %4397
      %4399 = vrot.lane.b32.xlu0 %v1143, 56
      %v4400 = vpop.permute.xlu0 %4399
      %4401 = vrot.lane.b32.xlu0 %v1148, 56
      %v4402 = vpop.permute.xlu0 %4401
      %4403 = vrot.lane.b32.xlu0 %v1153, 56
      %v4404 = vpop.permute.xlu0 %4403
      %4405 = vrot.lane.b32.xlu0 %v1158, 56
      %v4406 = vpop.permute.xlu0 %4405
      %4407 = vrot.lane.b32.xlu0 %v1163, 56
      %v4408 = vpop.permute.xlu0 %4407
      %v4418 = vsel %vm1907, %v3926, 0
      %v4421 = vsel %vm1907, %v3927, 0
      %v4424 = vsel %vm1907, %v3928, 0
      %v4427 = vsel %vm1907, %v3929, 0
      %v4430 = vsel %vm1907, %v3930, 0
      %v4433 = vsel %vm1907, %v3931, 0
      %v4436 = vsel %vm1907, %v3932, 0
      %v4439 = vsel %vm1907, %v3933, 0
      %4441 = vmatprep.subr.mxu0 0.0
      %4442 = vmatpush1.msra.mxu0 %v4394
      %4443 = vmatprep.subr.mxu0 0.0
      %4444 = vmatpush1.msra.mxu0 %v4396
      %4445 = vmatprep.subr.mxu0 0.0
      %4446 = vmatpush1.msra.mxu0 %v4398
      %4447 = vmatprep.subr.mxu0 0.0
      %4448 = vmatpush1.msra.mxu0 %v4400
      %4449 = vmatprep.subr.mxu0 0.0
      %4450 = vmatpush1.msra.mxu0 %v4402
      %4451 = vmatprep.subr.mxu0 0.0
      %4452 = vmatpush1.msra.mxu0 %v4404
      %4453 = vmatprep.subr.mxu0 0.0
      %4454 = vmatpush1.msra.mxu0 %v4406
      %4455 = vmatprep.subr.mxu0 0.0
      %4456 = vmatpush1.msra.mxu0 %v4408
      %4457 = vmatprep.subr.mxu0 0.0
      %4458 = vmatpush1.msra.mxu0 0.0
      %4459 = vmatprep.subr.mxu0 0.0
      %4460 = vmatpush1.msra.mxu0 0.0
      %4461 = vmatprep.subr.mxu0 0.0
      %4462 = vmatpush1.msra.mxu0 0.0
      %4463 = vmatprep.subr.mxu0 0.0
      %4464 = vmatpush1.msra.mxu0 0.0
      %4465 = vmatprep.subr.mxu0 0.0
      %4466 = vmatpush1.msra.mxu0 0.0
      %4467 = vmatprep.subr.mxu0 0.0
      %4468 = vmatpush1.msra.mxu0 0.0
      %4469 = vmatprep.subr.mxu0 0.0
      %4470 = vmatpush1.msra.mxu0 0.0
      %4471 = vmatprep.subr.mxu0 0.0
      %4472 = vmatpush1.msra.mxu0 0.0
      %4473 = vmatprep.subr.mxu0 0.0
      %4474 = vmatpush1.msra.mxu0 0.0
      %4475 = vmatprep.subr.mxu0 0.0
      %4476 = vmatpush1.msra.mxu0 0.0
      %4477 = vmatprep.subr.mxu0 0.0
      %4478 = vmatpush1.msra.mxu0 0.0
      %4479 = vmatprep.subr.mxu0 0.0
      %4480 = vmatpush1.msra.mxu0 0.0
      %4481 = vmatprep.subr.mxu0 0.0
      %4482 = vmatpush1.msra.mxu0 0.0
      %4483 = vmatprep.subr.mxu0 0.0
      %4484 = vmatpush1.msra.mxu0 0.0
      %4485 = vmatprep.subr.mxu0 0.0
      %4486 = vmatpush1.msra.mxu0 0.0
      %4487 = vmatprep.subr.mxu0 0.0
      %4488 = vmatpush1.msra.mxu0 0.0
      %4489 = vmatprep.subr.mxu0 0.0
      %4490 = vmatpush1.msra.mxu0 0.0
      %4491 = vmatprep.subr.mxu0 0.0
      %4492 = vmatpush1.msra.mxu0 0.0
      %4493 = vmatprep.subr.mxu0 0.0
      %4494 = vmatpush1.msra.mxu0 0.0
      %4495 = vmatprep.subr.mxu0 0.0
      %4496 = vmatpush1.msra.mxu0 0.0
      %4497 = vmatprep.subr.mxu0 0.0
      %4498 = vmatpush1.msra.mxu0 0.0
      %4499 = vmatprep.subr.mxu0 0.0
      %4500 = vmatpush1.msra.mxu0 0.0
      %4501 = vmatprep.subr.mxu0 0.0
      %4502 = vmatpush1.msra.mxu0 0.0
      %4503 = vmatprep.subr.mxu0 0.0
      %4504 = vmatpush1.msra.mxu0 0.0
      %4505 = vmatprep.mubr.f32.mxu0 0.0
      %4506 = vmatmul.mubr.f32.gmra.mrb[0].mxu0 %v4418
      %v4507 = vpop.f32.mrb[0].mxu0
      %v4508 = vadd.f32 0.0, %v4507
      %v4509 = vpop.f32.mrb[0].mxu0
      %4510 = vmatprep.mubr.f32.mxu0 0.0
      %4511 = vmatmul.mubr.f32.gmra.mrb[0].mxu0 %v4421
      %v4512 = vpop.f32.mrb[0].mxu0
      %v4513 = vadd.f32 0.0, %v4512
      %v4514 = vpop.f32.mrb[0].mxu0
      %4515 = vmatprep.mubr.f32.mxu0 0.0
      %4516 = vmatmul.mubr.f32.gmra.mrb[0].mxu0 %v4424
      %v4517 = vpop.f32.mrb[0].mxu0
      %v4518 = vadd.f32 0.0, %v4517
      %v4519 = vpop.f32.mrb[0].mxu0
      %4520 = vmatprep.mubr.f32.mxu0 0.0
      %4521 = vmatmul.mubr.f32.gmra.mrb[0].mxu0 %v4427
      %v4522 = vpop.f32.mrb[0].mxu0
      %v4523 = vadd.f32 0.0, %v4522
      %v4524 = vpop.f32.mrb[0].mxu0
      %4525 = vmatprep.mubr.f32.mxu0 0.0
      %4526 = vmatmul.mubr.f32.gmra.mrb[0].mxu0 %v4430
      %v4527 = vpop.f32.mrb[0].mxu0
      %v4528 = vadd.f32 0.0, %v4527
      %v4529 = vpop.f32.mrb[0].mxu0
      %4530 = vmatprep.mubr.f32.mxu0 0.0
      %4531 = vmatmul.mubr.f32.gmra.mrb[0].mxu0 %v4433
      %v4532 = vpop.f32.mrb[0].mxu0
      %v4533 = vadd.f32 0.0, %v4532
      %v4534 = vpop.f32.mrb[0].mxu0
      %4535 = vmatprep.mubr.f32.mxu0 0.0
      %4536 = vmatmul.mubr.f32.gmra.mrb[0].mxu0 %v4436
      %v4537 = vpop.f32.mrb[0].mxu0
      %v4538 = vadd.f32 0.0, %v4537
      %v4539 = vpop.f32.mrb[0].mxu0
      %4540 = vmatprep.mubr.f32.mxu0 0.0
      %4541 = vmatmul.mubr.f32.gmra.mrb[0].mxu0 %v4439
      %v4542 = vpop.f32.mrb[0].mxu0
      %v4543 = vadd.f32 0.0, %v4542
      %v4544 = vpop.f32.mrb[0].mxu0
      %4545 = vdwg.mxu0
      %v4546 = vld [vmem:[%s3 + $0x8] sm:$0xff]
      %v4548 = vsel %vm1254, %v4049, 0
      %v4551 = vsel %vm1254, %v4054, 0
      %v4554 = vsel %vm1254, %v4059, 0
      %v4557 = vsel %vm1254, %v4064, 0
      %v4560 = vsel %vm1254, %v4069, 0
      %v4563 = vsel %vm1254, %v4074, 0
      %v4566 = vsel %vm1254, %v4079, 0
      %v4569 = vsel %vm1254, %v4084, 0
      %v4572 = vsel %vm1254, %v4202, 0
      %v4575 = vsel %vm1254, %v4207, 0
      %v4578 = vsel %vm1254, %v4212, 0
      %v4581 = vsel %vm1254, %v4217, 0
      %v4584 = vsel %vm1254, %v4222, 0
      %v4587 = vsel %vm1254, %v4227, 0
      %v4590 = vsel %vm1254, %v4232, 0
      %v4593 = vsel %vm1254, %v4237, 0
      %v4596 = vsel %vm1254, %v4355, 0
      %v4599 = vsel %vm1254, %v4360, 0
      %v4602 = vsel %vm1254, %v4365, 0
      %v4605 = vsel %vm1254, %v4370, 0
      %v4608 = vsel %vm1254, %v4375, 0
      %v4611 = vsel %vm1254, %v4380, 0
      %v4614 = vsel %vm1254, %v4385, 0
      %v4617 = vsel %vm1254, %v4390, 0
      %v4620 = vsel %vm1254, %v4508, 0
      %v4623 = vsel %vm1254, %v4513, 0
      %v4626 = vsel %vm1254, %v4518, 0
      %v4629 = vsel %vm1254, %v4523, 0
      %v4632 = vsel %vm1254, %v4528, 0
      %v4635 = vsel %vm1254, %v4533, 0
      %v4638 = vsel %vm1254, %v4538, 0
      %v4641 = vsel %vm1254, %v4543, 0
      %4643 = vmatprep.subr.mxu0 0.0
      %4644 = vmatpush1.msra.mxu0 %v4546
      %4645 = vmatprep.subr.mxu0 0.0
      %4646 = vmatpush1.msra.mxu0 0.0
      %4647 = vmatprep.subr.mxu0 0.0
      %4648 = vmatpush1.msra.mxu0 0.0
      %4649 = vmatprep.subr.mxu0 0.0
      %4650 = vmatpush1.msra.mxu0 0.0
      %4651 = vmatprep.subr.mxu0 0.0
      %4652 = vmatpush1.msra.mxu0 0.0
      %4653 = vmatprep.subr.mxu0 0.0
      %4654 = vmatpush1.msra.mxu0 0.0
      %4655 = vmatprep.subr.mxu0 0.0
      %4656 = vmatpush1.msra.mxu0 0.0
      %4657 = vmatprep.subr.mxu0 0.0
      %4658 = vmatpush1.msra.mxu0 0.0
      %4659 = vmatprep.subr.mxu0 0.0
      %4660 = vmatpush1.msra.mxu0 0.0
      %4661 = vmatprep.subr.mxu0 0.0
      %4662 = vmatpush1.msra.mxu0 0.0
      %4663 = vmatprep.subr.mxu0 0.0
      %4664 = vmatpush1.msra.mxu0 0.0
      %4665 = vmatprep.subr.mxu0 0.0
      %4666 = vmatpush1.msra.mxu0 0.0
      %4667 = vmatprep.subr.mxu0 0.0
      %4668 = vmatpush1.msra.mxu0 0.0
      %4669 = vmatprep.subr.mxu0 0.0
      %4670 = vmatpush1.msra.mxu0 0.0
      %4671 = vmatprep.subr.mxu0 0.0
      %4672 = vmatpush1.msra.mxu0 0.0
      %4673 = vmatprep.subr.mxu0 0.0
      %4674 = vmatpush1.msra.mxu0 0.0
      %4675 = vmatprep.subr.mxu0 0.0
      %4676 = vmatpush1.msra.mxu0 0.0
      %4677 = vmatprep.subr.mxu0 0.0
      %4678 = vmatpush1.msra.mxu0 0.0
      %4679 = vmatprep.subr.mxu0 0.0
      %4680 = vmatpush1.msra.mxu0 0.0
      %4681 = vmatprep.subr.mxu0 0.0
      %4682 = vmatpush1.msra.mxu0 0.0
      %4683 = vmatprep.subr.mxu0 0.0
      %4684 = vmatpush1.msra.mxu0 0.0
      %4685 = vmatprep.subr.mxu0 0.0
      %4686 = vmatpush1.msra.mxu0 0.0
      %4687 = vmatprep.subr.mxu0 0.0
      %4688 = vmatpush1.msra.mxu0 0.0
      %4689 = vmatprep.subr.mxu0 0.0
      %4690 = vmatpush1.msra.mxu0 0.0
      %4691 = vmatprep.subr.mxu0 0.0
      %4692 = vmatpush1.msra.mxu0 0.0
      %4693 = vmatprep.subr.mxu0 0.0
      %4694 = vmatpush1.msra.mxu0 0.0
      %4695 = vmatprep.subr.mxu0 0.0
      %4696 = vmatpush1.msra.mxu0 0.0
      %4697 = vmatprep.subr.mxu0 0.0
      %4698 = vmatpush1.msra.mxu0 0.0
      %4699 = vmatprep.subr.mxu0 0.0
      %4700 = vmatpush1.msra.mxu0 0.0
      %4701 = vmatprep.subr.mxu0 0.0
      %4702 = vmatpush1.msra.mxu0 0.0
      %4703 = vmatprep.subr.mxu0 0.0
      %4704 = vmatpush1.msra.mxu0 0.0
      %4705 = vmatprep.subr.mxu0 0.0
      %4706 = vmatpush1.msra.mxu0 0.0
      %4707 = vmatprep.mubr.f32.mxu0 0.0
      %4708 = vmatmul.mubr.f32.gmra.mrb[0].mxu0 %v4548
      %v4709 = vpop.f32.mrb[0].mxu0
      %v4710 = vadd.f32 0.0, %v4709
      %v4711 = vpop.f32.mrb[0].mxu0
      %4712 = vmatprep.mubr.f32.mxu0 0.0
      %4713 = vmatmul.mubr.f32.gmra.mrb[0].mxu0 %v4551
      %v4714 = vpop.f32.mrb[0].mxu0
      %v4715 = vadd.f32 0.0, %v4714
      %v4716 = vpop.f32.mrb[0].mxu0
      %4717 = vmatprep.mubr.f32.mxu0 0.0
      %4718 = vmatmul.mubr.f32.gmra.mrb[0].mxu0 %v4554
      %v4719 = vpop.f32.mrb[0].mxu0
      %v4720 = vadd.f32 0.0, %v4719
      %v4721 = vpop.f32.mrb[0].mxu0
      %4722 = vmatprep.mubr.f32.mxu0 0.0
      %4723 = vmatmul.mubr.f32.gmra.mrb[0].mxu0 %v4557
      %v4724 = vpop.f32.mrb[0].mxu0
      %v4725 = vadd.f32 0.0, %v4724
      %v4726 = vpop.f32.mrb[0].mxu0
      %4727 = vmatprep.mubr.f32.mxu0 0.0
      %4728 = vmatmul.mubr.f32.gmra.mrb[0].mxu0 %v4560
      %v4729 = vpop.f32.mrb[0].mxu0
      %v4730 = vadd.f32 0.0, %v4729
      %v4731 = vpop.f32.mrb[0].mxu0
      %4732 = vmatprep.mubr.f32.mxu0 0.0
      %4733 = vmatmul.mubr.f32.gmra.mrb[0].mxu0 %v4563
      %v4734 = vpop.f32.mrb[0].mxu0
      %v4735 = vadd.f32 0.0, %v4734
      %v4736 = vpop.f32.mrb[0].mxu0
      %4737 = vmatprep.mubr.f32.mxu0 0.0
      %4738 = vmatmul.mubr.f32.gmra.mrb[0].mxu0 %v4566
      %v4739 = vpop.f32.mrb[0].mxu0
      %v4740 = vadd.f32 0.0, %v4739
      %v4741 = vpop.f32.mrb[0].mxu0
      %4742 = vmatprep.mubr.f32.mxu0 0.0
      %4743 = vmatmul.mubr.f32.gmra.mrb[0].mxu0 %v4569
      %v4744 = vpop.f32.mrb[0].mxu0
      %v4745 = vadd.f32 0.0, %v4744
      %v4746 = vpop.f32.mrb[0].mxu0
      %4747 = vmatprep.mubr.f32.mxu0 0.0
      %4748 = vmatmul.mubr.f32.gmra.mrb[0].mxu0 %v4572
      %v4749 = vpop.f32.mrb[0].mxu0
      %v4750 = vadd.f32 0.0, %v4749
      %v4751 = vpop.f32.mrb[0].mxu0
      %4752 = vmatprep.mubr.f32.mxu0 0.0
      %4753 = vmatmul.mubr.f32.gmra.mrb[0].mxu0 %v4575
      %v4754 = vpop.f32.mrb[0].mxu0
      %v4755 = vadd.f32 0.0, %v4754
      %v4756 = vpop.f32.mrb[0].mxu0
      %4757 = vmatprep.mubr.f32.mxu0 0.0
      %4758 = vmatmul.mubr.f32.gmra.mrb[0].mxu0 %v4578
      %v4759 = vpop.f32.mrb[0].mxu0
      %v4760 = vadd.f32 0.0, %v4759
      %v4761 = vpop.f32.mrb[0].mxu0
      %4762 = vmatprep.mubr.f32.mxu0 0.0
      %4763 = vmatmul.mubr.f32.gmra.mrb[0].mxu0 %v4581
      %v4764 = vpop.f32.mrb[0].mxu0
      %v4765 = vadd.f32 0.0, %v4764
      %v4766 = vpop.f32.mrb[0].mxu0
      %4767 = vmatprep.mubr.f32.mxu0 0.0
      %4768 = vmatmul.mubr.f32.gmra.mrb[0].mxu0 %v4584
      %v4769 = vpop.f32.mrb[0].mxu0
      %v4770 = vadd.f32 0.0, %v4769
      %v4771 = vpop.f32.mrb[0].mxu0
      %4772 = vmatprep.mubr.f32.mxu0 0.0
      %4773 = vmatmul.mubr.f32.gmra.mrb[0].mxu0 %v4587
      %v4774 = vpop.f32.mrb[0].mxu0
      %v4775 = vadd.f32 0.0, %v4774
      %v4776 = vpop.f32.mrb[0].mxu0
      %4777 = vmatprep.mubr.f32.mxu0 0.0
      %4778 = vmatmul.mubr.f32.gmra.mrb[0].mxu0 %v4590
      %v4779 = vpop.f32.mrb[0].mxu0
      %v4780 = vadd.f32 0.0, %v4779
      %v4781 = vpop.f32.mrb[0].mxu0
      %4782 = vmatprep.mubr.f32.mxu0 0.0
      %4783 = vmatmul.mubr.f32.gmra.mrb[0].mxu0 %v4593
      %v4784 = vpop.f32.mrb[0].mxu0
      %v4785 = vadd.f32 0.0, %v4784
      %v4786 = vpop.f32.mrb[0].mxu0
      %4787 = vmatprep.mubr.f32.mxu0 0.0
      %4788 = vmatmul.mubr.f32.gmra.mrb[0].mxu0 %v4596
      %v4789 = vpop.f32.mrb[0].mxu0
      %v4790 = vadd.f32 0.0, %v4789
      %v4791 = vpop.f32.mrb[0].mxu0
      %4792 = vmatprep.mubr.f32.mxu0 0.0
      %4793 = vmatmul.mubr.f32.gmra.mrb[0].mxu0 %v4599
      %v4794 = vpop.f32.mrb[0].mxu0
      %v4795 = vadd.f32 0.0, %v4794
      %v4796 = vpop.f32.mrb[0].mxu0
      %4797 = vmatprep.mubr.f32.mxu0 0.0
      %4798 = vmatmul.mubr.f32.gmra.mrb[0].mxu0 %v4602
      %v4799 = vpop.f32.mrb[0].mxu0
      %v4800 = vadd.f32 0.0, %v4799
      %v4801 = vpop.f32.mrb[0].mxu0
      %4802 = vmatprep.mubr.f32.mxu0 0.0
      %4803 = vmatmul.mubr.f32.gmra.mrb[0].mxu0 %v4605
      %v4804 = vpop.f32.mrb[0].mxu0
      %v4805 = vadd.f32 0.0, %v4804
      %v4806 = vpop.f32.mrb[0].mxu0
      %4807 = vmatprep.mubr.f32.mxu0 0.0
      %4808 = vmatmul.mubr.f32.gmra.mrb[0].mxu0 %v4608
      %v4809 = vpop.f32.mrb[0].mxu0
      %v4810 = vadd.f32 0.0, %v4809
      %v4811 = vpop.f32.mrb[0].mxu0
      %4812 = vmatprep.mubr.f32.mxu0 0.0
      %4813 = vmatmul.mubr.f32.gmra.mrb[0].mxu0 %v4611
      %v4814 = vpop.f32.mrb[0].mxu0
      %v4815 = vadd.f32 0.0, %v4814
      %v4816 = vpop.f32.mrb[0].mxu0
      %4817 = vmatprep.mubr.f32.mxu0 0.0
      %4818 = vmatmul.mubr.f32.gmra.mrb[0].mxu0 %v4614
      %v4819 = vpop.f32.mrb[0].mxu0
      %v4820 = vadd.f32 0.0, %v4819
      %v4821 = vpop.f32.mrb[0].mxu0
      %4822 = vmatprep.mubr.f32.mxu0 0.0
      %4823 = vmatmul.mubr.f32.gmra.mrb[0].mxu0 %v4617
      %v4824 = vpop.f32.mrb[0].mxu0
      %v4825 = vadd.f32 0.0, %v4824
      %v4826 = vpop.f32.mrb[0].mxu0
      %4827 = vmatprep.mubr.f32.mxu0 0.0
      %4828 = vmatmul.mubr.f32.gmra.mrb[0].mxu0 %v4620
      %v4829 = vpop.f32.mrb[0].mxu0
      %v4830 = vadd.f32 0.0, %v4829
      %v4831 = vpop.f32.mrb[0].mxu0
      %4832 = vmatprep.mubr.f32.mxu0 0.0
      %4833 = vmatmul.mubr.f32.gmra.mrb[0].mxu0 %v4623
      %v4834 = vpop.f32.mrb[0].mxu0
      %v4835 = vadd.f32 0.0, %v4834
      %v4836 = vpop.f32.mrb[0].mxu0
      %4837 = vmatprep.mubr.f32.mxu0 0.0
      %4838 = vmatmul.mubr.f32.gmra.mrb[0].mxu0 %v4626
      %v4839 = vpop.f32.mrb[0].mxu0
      %v4840 = vadd.f32 0.0, %v4839
      %v4841 = vpop.f32.mrb[0].mxu0
      %4842 = vmatprep.mubr.f32.mxu0 0.0
      %4843 = vmatmul.mubr.f32.gmra.mrb[0].mxu0 %v4629
      %v4844 = vpop.f32.mrb[0].mxu0
      %v4845 = vadd.f32 0.0, %v4844
      %v4846 = vpop.f32.mrb[0].mxu0
      %4847 = vmatprep.mubr.f32.mxu0 0.0
      %4848 = vmatmul.mubr.f32.gmra.mrb[0].mxu0 %v4632
      %v4849 = vpop.f32.mrb[0].mxu0
      %v4850 = vadd.f32 0.0, %v4849
      %v4851 = vpop.f32.mrb[0].mxu0
      %4852 = vmatprep.mubr.f32.mxu0 0.0
      %4853 = vmatmul.mubr.f32.gmra.mrb[0].mxu0 %v4635
      %v4854 = vpop.f32.mrb[0].mxu0
      %v4855 = vadd.f32 0.0, %v4854
      %v4856 = vpop.f32.mrb[0].mxu0
      %4857 = vmatprep.mubr.f32.mxu0 0.0
      %4858 = vmatmul.mubr.f32.gmra.mrb[0].mxu0 %v4638
      %v4859 = vpop.f32.mrb[0].mxu0
      %v4860 = vadd.f32 0.0, %v4859
      %v4861 = vpop.f32.mrb[0].mxu0
      %4862 = vmatprep.mubr.f32.mxu0 0.0
      %4863 = vmatmul.mubr.f32.gmra.mrb[0].mxu0 %v4641
      %v4864 = vpop.f32.mrb[0].mxu0
      %v4865 = vadd.f32 0.0, %v4864
      %v4866 = vpop.f32.mrb[0].mxu0
      %4867 = vdwg.mxu0
      %v4869 = vsel %vm1254, %v2375, 0
      %v4872 = vsel %vm1254, %v2380, 0
      %v4875 = vsel %vm1254, %v2385, 0
      %v4878 = vsel %vm1254, %v2390, 0
      %v4881 = vsel %vm1254, %v2395, 0
      %v4884 = vsel %vm1254, %v2400, 0
      %v4887 = vsel %vm1254, %v2405, 0
      %v4890 = vsel %vm1254, %v2410, 0
      %v4893 = vsel %vm1254, %v2528, 0
      %v4896 = vsel %vm1254, %v2533, 0
      %v4899 = vsel %vm1254, %v2538, 0
      %v4902 = vsel %vm1254, %v2543, 0
      %v4905 = vsel %vm1254, %v2548, 0
      %v4908 = vsel %vm1254, %v2553, 0
      %v4911 = vsel %vm1254, %v2558, 0
      %v4914 = vsel %vm1254, %v2563, 0
      %v4917 = vsel %vm1254, %v2681, 0
      %v4920 = vsel %vm1254, %v2686, 0
      %v4923 = vsel %vm1254, %v2691, 0
      %v4926 = vsel %vm1254, %v2696, 0
      %v4929 = vsel %vm1254, %v2701, 0
      %v4932 = vsel %vm1254, %v2706, 0
      %v4935 = vsel %vm1254, %v2711, 0
      %v4938 = vsel %vm1254, %v2716, 0
      %v4941 = vsel %vm1254, %v2834, 0
      %v4944 = vsel %vm1254, %v2839, 0
      %v4947 = vsel %vm1254, %v2844, 0
      %v4950 = vsel %vm1254, %v2849, 0
      %v4953 = vsel %vm1254, %v2854, 0
      %v4956 = vsel %vm1254, %v2859, 0
      %v4959 = vsel %vm1254, %v2864, 0
      %v4962 = vsel %vm1254, %v2869, 0
      %4964 = vmatprep.subr.mxu0 0.0
      %4965 = vmatpush1.msra.mxu0 %v2872
      %4966 = vmatprep.subr.mxu0 0.0
      %4967 = vmatpush1.msra.mxu0 0.0
      %4968 = vmatprep.subr.mxu0 0.0
      %4969 = vmatpush1.msra.mxu0 0.0
      %4970 = vmatprep.subr.mxu0 0.0
      %4971 = vmatpush1.msra.mxu0 0.0
      %4972 = vmatprep.subr.mxu0 0.0
      %4973 = vmatpush1.msra.mxu0 0.0
      %4974 = vmatprep.subr.mxu0 0.0
      %4975 = vmatpush1.msra.mxu0 0.0
      %4976 = vmatprep.subr.mxu0 0.0
      %4977 = vmatpush1.msra.mxu0 0.0
      %4978 = vmatprep.subr.mxu0 0.0
      %4979 = vmatpush1.msra.mxu0 0.0
      %4980 = vmatprep.subr.mxu0 0.0
      %4981 = vmatpush1.msra.mxu0 0.0
      %4982 = vmatprep.subr.mxu0 0.0
      %4983 = vmatpush1.msra.mxu0 0.0
      %4984 = vmatprep.subr.mxu0 0.0
      %4985 = vmatpush1.msra.mxu0 0.0
      %4986 = vmatprep.subr.mxu0 0.0
      %4987 = vmatpush1.msra.mxu0 0.0
      %4988 = vmatprep.subr.mxu0 0.0
      %4989 = vmatpush1.msra.mxu0 0.0
      %4990 = vmatprep.subr.mxu0 0.0
      %4991 = vmatpush1.msra.mxu0 0.0
      %4992 = vmatprep.subr.mxu0 0.0
      %4993 = vmatpush1.msra.mxu0 0.0
      %4994 = vmatprep.subr.mxu0 0.0
      %4995 = vmatpush1.msra.mxu0 0.0
      %4996 = vmatprep.subr.mxu0 0.0
      %4997 = vmatpush1.msra.mxu0 0.0
      %4998 = vmatprep.subr.mxu0 0.0
      %4999 = vmatpush1.msra.mxu0 0.0
      %5000 = vmatprep.subr.mxu0 0.0
      %5001 = vmatpush1.msra.mxu0 0.0
      %5002 = vmatprep.subr.mxu0 0.0
      %5003 = vmatpush1.msra.mxu0 0.0
      %5004 = vmatprep.subr.mxu0 0.0
      %5005 = vmatpush1.msra.mxu0 0.0
      %5006 = vmatprep.subr.mxu0 0.0
      %5007 = vmatpush1.msra.mxu0 0.0
      %5008 = vmatprep.subr.mxu0 0.0
      %5009 = vmatpush1.msra.mxu0 0.0
      %5010 = vmatprep.subr.mxu0 0.0
      %5011 = vmatpush1.msra.mxu0 0.0
      %5012 = vmatprep.subr.mxu0 0.0
      %5013 = vmatpush1.msra.mxu0 0.0
      %5014 = vmatprep.subr.mxu0 0.0
      %5015 = vmatpush1.msra.mxu0 0.0
      %5016 = vmatprep.subr.mxu0 0.0
      %5017 = vmatpush1.msra.mxu0 0.0
      %5018 = vmatprep.subr.mxu0 0.0
      %5019 = vmatpush1.msra.mxu0 0.0
      %5020 = vmatprep.subr.mxu0 0.0
      %5021 = vmatpush1.msra.mxu0 0.0
      %5022 = vmatprep.subr.mxu0 0.0
      %5023 = vmatpush1.msra.mxu0 0.0
      %5024 = vmatprep.subr.mxu0 0.0
      %5025 = vmatpush1.msra.mxu0 0.0
      %5026 = vmatprep.subr.mxu0 0.0
      %5027 = vmatpush1.msra.mxu0 0.0
      %5028 = vmatprep.mubr.f32.mxu0 0.0
      %5029 = vmatmul.mubr.f32.gmra.mrb[0].mxu0 %v4869
      %v5030 = vpop.f32.mrb[0].mxu0
      %v5031 = vadd.f32 %v4710, %v5030
      %v5032 = vpop.f32.mrb[0].mxu0
      %5033 = vmatprep.mubr.f32.mxu0 0.0
      %5034 = vmatmul.mubr.f32.gmra.mrb[0].mxu0 %v4872
      %v5035 = vpop.f32.mrb[0].mxu0
      %v5036 = vadd.f32 %v4715, %v5035
      %v5037 = vpop.f32.mrb[0].mxu0
      %5038 = vmatprep.mubr.f32.mxu0 0.0
      %5039 = vmatmul.mubr.f32.gmra.mrb[0].mxu0 %v4875
      %v5040 = vpop.f32.mrb[0].mxu0
      %v5041 = vadd.f32 %v4720, %v5040
      %v5042 = vpop.f32.mrb[0].mxu0
      %5043 = vmatprep.mubr.f32.mxu0 0.0
      %5044 = vmatmul.mubr.f32.gmra.mrb[0].mxu0 %v4878
      %v5045 = vpop.f32.mrb[0].mxu0
      %v5046 = vadd.f32 %v4725, %v5045
      %v5047 = vpop.f32.mrb[0].mxu0
      %5048 = vmatprep.mubr.f32.mxu0 0.0
      %5049 = vmatmul.mubr.f32.gmra.mrb[0].mxu0 %v4881
      %v5050 = vpop.f32.mrb[0].mxu0
      %v5051 = vadd.f32 %v4730, %v5050
      %v5052 = vpop.f32.mrb[0].mxu0
      %5053 = vmatprep.mubr.f32.mxu0 0.0
      %5054 = vmatmul.mubr.f32.gmra.mrb[0].mxu0 %v4884
      %v5055 = vpop.f32.mrb[0].mxu0
      %v5056 = vadd.f32 %v4735, %v5055
      %v5057 = vpop.f32.mrb[0].mxu0
      %5058 = vmatprep.mubr.f32.mxu0 0.0
      %5059 = vmatmul.mubr.f32.gmra.mrb[0].mxu0 %v4887
      %v5060 = vpop.f32.mrb[0].mxu0
      %v5061 = vadd.f32 %v4740, %v5060
      %v5062 = vpop.f32.mrb[0].mxu0
      %5063 = vmatprep.mubr.f32.mxu0 0.0
      %5064 = vmatmul.mubr.f32.gmra.mrb[0].mxu0 %v4890
      %v5065 = vpop.f32.mrb[0].mxu0
      %v5066 = vadd.f32 %v4745, %v5065
      %v5067 = vpop.f32.mrb[0].mxu0
      %5068 = vmatprep.mubr.f32.mxu0 0.0
      %5069 = vmatmul.mubr.f32.gmra.mrb[0].mxu0 %v4893
      %v5070 = vpop.f32.mrb[0].mxu0
      %v5071 = vadd.f32 %v4750, %v5070
      %v5072 = vpop.f32.mrb[0].mxu0
      %5073 = vmatprep.mubr.f32.mxu0 0.0
      %5074 = vmatmul.mubr.f32.gmra.mrb[0].mxu0 %v4896
      %v5075 = vpop.f32.mrb[0].mxu0
      %v5076 = vadd.f32 %v4755, %v5075
      %v5077 = vpop.f32.mrb[0].mxu0
      %5078 = vmatprep.mubr.f32.mxu0 0.0
      %5079 = vmatmul.mubr.f32.gmra.mrb[0].mxu0 %v4899
      %v5080 = vpop.f32.mrb[0].mxu0
      %v5081 = vadd.f32 %v4760, %v5080
      %v5082 = vpop.f32.mrb[0].mxu0
      %5083 = vmatprep.mubr.f32.mxu0 0.0
      %5084 = vmatmul.mubr.f32.gmra.mrb[0].mxu0 %v4902
      %v5085 = vpop.f32.mrb[0].mxu0
      %v5086 = vadd.f32 %v4765, %v5085
      %v5087 = vpop.f32.mrb[0].mxu0
      %5088 = vmatprep.mubr.f32.mxu0 0.0
      %5089 = vmatmul.mubr.f32.gmra.mrb[0].mxu0 %v4905
      %v5090 = vpop.f32.mrb[0].mxu0
      %v5091 = vadd.f32 %v4770, %v5090
      %v5092 = vpop.f32.mrb[0].mxu0
      %5093 = vmatprep.mubr.f32.mxu0 0.0
      %5094 = vmatmul.mubr.f32.gmra.mrb[0].mxu0 %v4908
      %v5095 = vpop.f32.mrb[0].mxu0
      %v5096 = vadd.f32 %v4775, %v5095
      %v5097 = vpop.f32.mrb[0].mxu0
      %5098 = vmatprep.mubr.f32.mxu0 0.0
      %5099 = vmatmul.mubr.f32.gmra.mrb[0].mxu0 %v4911
      %v5100 = vpop.f32.mrb[0].mxu0
      %v5101 = vadd.f32 %v4780, %v5100
      %v5102 = vpop.f32.mrb[0].mxu0
      %5103 = vmatprep.mubr.f32.mxu0 0.0
      %5104 = vmatmul.mubr.f32.gmra.mrb[0].mxu0 %v4914
      %v5105 = vpop.f32.mrb[0].mxu0
      %v5106 = vadd.f32 %v4785, %v5105
      %v5107 = vpop.f32.mrb[0].mxu0
      %5108 = vmatprep.mubr.f32.mxu0 0.0
      %5109 = vmatmul.mubr.f32.gmra.mrb[0].mxu0 %v4917
      %v5110 = vpop.f32.mrb[0].mxu0
      %v5111 = vadd.f32 %v4790, %v5110
      %v5112 = vpop.f32.mrb[0].mxu0
      %5113 = vmatprep.mubr.f32.mxu0 0.0
      %5114 = vmatmul.mubr.f32.gmra.mrb[0].mxu0 %v4920
      %v5115 = vpop.f32.mrb[0].mxu0
      %v5116 = vadd.f32 %v4795, %v5115
      %v5117 = vpop.f32.mrb[0].mxu0
      %5118 = vmatprep.mubr.f32.mxu0 0.0
      %5119 = vmatmul.mubr.f32.gmra.mrb[0].mxu0 %v4923
      %v5120 = vpop.f32.mrb[0].mxu0
      %v5121 = vadd.f32 %v4800, %v5120
      %v5122 = vpop.f32.mrb[0].mxu0
      %5123 = vmatprep.mubr.f32.mxu0 0.0
      %5124 = vmatmul.mubr.f32.gmra.mrb[0].mxu0 %v4926
      %v5125 = vpop.f32.mrb[0].mxu0
      %v5126 = vadd.f32 %v4805, %v5125
      %v5127 = vpop.f32.mrb[0].mxu0
      %5128 = vmatprep.mubr.f32.mxu0 0.0
      %5129 = vmatmul.mubr.f32.gmra.mrb[0].mxu0 %v4929
      %v5130 = vpop.f32.mrb[0].mxu0
      %v5131 = vadd.f32 %v4810, %v5130
      %v5132 = vpop.f32.mrb[0].mxu0
      %5133 = vmatprep.mubr.f32.mxu0 0.0
      %5134 = vmatmul.mubr.f32.gmra.mrb[0].mxu0 %v4932
      %v5135 = vpop.f32.mrb[0].mxu0
      %v5136 = vadd.f32 %v4815, %v5135
      %v5137 = vpop.f32.mrb[0].mxu0
      %5138 = vmatprep.mubr.f32.mxu0 0.0
      %5139 = vmatmul.mubr.f32.gmra.mrb[0].mxu0 %v4935
      %v5140 = vpop.f32.mrb[0].mxu0
      %v5141 = vadd.f32 %v4820, %v5140
      %v5142 = vpop.f32.mrb[0].mxu0
      %5143 = vmatprep.mubr.f32.mxu0 0.0
      %5144 = vmatmul.mubr.f32.gmra.mrb[0].mxu0 %v4938
      %v5145 = vpop.f32.mrb[0].mxu0
      %v5146 = vadd.f32 %v4825, %v5145
      %v5147 = vpop.f32.mrb[0].mxu0
      %5148 = vmatprep.mubr.f32.mxu0 0.0
      %5149 = vmatmul.mubr.f32.gmra.mrb[0].mxu0 %v4941
      %v5150 = vpop.f32.mrb[0].mxu0
      %v5151 = vadd.f32 %v4830, %v5150
      %v5152 = vpop.f32.mrb[0].mxu0
      %5153 = vmatprep.mubr.f32.mxu0 0.0
      %5154 = vmatmul.mubr.f32.gmra.mrb[0].mxu0 %v4944
      %v5155 = vpop.f32.mrb[0].mxu0
      %v5156 = vadd.f32 %v4835, %v5155
      %v5157 = vpop.f32.mrb[0].mxu0
      %5158 = vmatprep.mubr.f32.mxu0 0.0
      %5159 = vmatmul.mubr.f32.gmra.mrb[0].mxu0 %v4947
      %v5160 = vpop.f32.mrb[0].mxu0
      %v5161 = vadd.f32 %v4840, %v5160
      %v5162 = vpop.f32.mrb[0].mxu0
      %5163 = vmatprep.mubr.f32.mxu0 0.0
      %5164 = vmatmul.mubr.f32.gmra.mrb[0].mxu0 %v4950
      %v5165 = vpop.f32.mrb[0].mxu0
      %v5166 = vadd.f32 %v4845, %v5165
      %v5167 = vpop.f32.mrb[0].mxu0
      %5168 = vmatprep.mubr.f32.mxu0 0.0
      %5169 = vmatmul.mubr.f32.gmra.mrb[0].mxu0 %v4953
      %v5170 = vpop.f32.mrb[0].mxu0
      %v5171 = vadd.f32 %v4850, %v5170
      %v5172 = vpop.f32.mrb[0].mxu0
      %5173 = vmatprep.mubr.f32.mxu0 0.0
      %5174 = vmatmul.mubr.f32.gmra.mrb[0].mxu0 %v4956
      %v5175 = vpop.f32.mrb[0].mxu0
      %v5176 = vadd.f32 %v4855, %v5175
      %v5177 = vpop.f32.mrb[0].mxu0
      %5178 = vmatprep.mubr.f32.mxu0 0.0
      %5179 = vmatmul.mubr.f32.gmra.mrb[0].mxu0 %v4959
      %v5180 = vpop.f32.mrb[0].mxu0
      %v5181 = vadd.f32 %v4860, %v5180
      %v5182 = vpop.f32.mrb[0].mxu0
      %5183 = vmatprep.mubr.f32.mxu0 0.0
      %5184 = vmatmul.mubr.f32.gmra.mrb[0].mxu0 %v4962
      %v5185 = vpop.f32.mrb[0].mxu0
      %v5186 = vadd.f32 %v4865, %v5185
      %v5187 = vpop.f32.mrb[0].mxu0
      %5188 = vdwg.mxu0
      %s5189 = scalar_lea.vmem %s7, 512
      %v5190 = vld [vmem:[%s5189] sm:$0xff]
      %v5191 = vld [vmem:[%s5189 + $0x8] sm:$0xff]
      %v5192 = vld [vmem:[%s5189 + $0x10] sm:$0xff]
      %v5193 = vld [vmem:[%s5189 + $0x18] sm:$0xff]
      %v5194 = vld [vmem:[%s5189 + $0x20] sm:$0xff]
      %v5195 = vld [vmem:[%s5189 + $0x28] sm:$0xff]
      %v5196 = vld [vmem:[%s5189 + $0x30] sm:$0xff]
      %v5197 = vld [vmem:[%s5189 + $0x38] sm:$0xff]
      %v5198 = vld [vmem:[%s5189 + $0x40] sm:$0xff]
      %v5199 = vld [vmem:[%s5189 + $0x48] sm:$0xff]
      %v5200 = vld [vmem:[%s5189 + $0x50] sm:$0xff]
      %v5201 = vld [vmem:[%s5189 + $0x58] sm:$0xff]
      %v5202 = vld [vmem:[%s5189 + $0x60] sm:$0xff]
      %v5203 = vld [vmem:[%s5189 + $0x68] sm:$0xff]
      %v5204 = vld [vmem:[%s5189 + $0x70] sm:$0xff]
      %v5205 = vld [vmem:[%s5189 + $0x78] sm:$0xff]
      %v5206 = vld [vmem:[%s5189 + $0x80] sm:$0xff]
      %v5207 = vld [vmem:[%s5189 + $0x88] sm:$0xff]
      %v5208 = vld [vmem:[%s5189 + $0x90] sm:$0xff]
      %v5209 = vld [vmem:[%s5189 + $0x98] sm:$0xff]
      %v5210 = vld [vmem:[%s5189 + $0xa0] sm:$0xff]
      %v5211 = vld [vmem:[%s5189 + $0xa8] sm:$0xff]
      %v5212 = vld [vmem:[%s5189 + $0xb0] sm:$0xff]
      %v5213 = vld [vmem:[%s5189 + $0xb8] sm:$0xff]
      %v5214 = vld [vmem:[%s5189 + $0xc0] sm:$0xff]
      %v5215 = vld [vmem:[%s5189 + $0xc8] sm:$0xff]
      %v5216 = vld [vmem:[%s5189 + $0xd0] sm:$0xff]
      %v5217 = vld [vmem:[%s5189 + $0xd8] sm:$0xff]
      %v5218 = vld [vmem:[%s5189 + $0xe0] sm:$0xff]
      %v5219 = vld [vmem:[%s5189 + $0xe8] sm:$0xff]
      %v5220 = vld [vmem:[%s5189 + $0xf0] sm:$0xff]
      %v5221 = vld [vmem:[%s5189 + $0xf8] sm:$0xff]
      %5222 = vrot.lane.b32.xlu0 %v1166, 112
      %v5223 = vpop.permute.xlu0 %5222
      %5224 = vrot.lane.b32.xlu0 %v1167, 112
      %v5225 = vpop.permute.xlu0 %5224
      %5226 = vrot.lane.b32.xlu0 %v1168, 112
      %v5227 = vpop.permute.xlu0 %5226
      %5228 = vrot.lane.b32.xlu0 %v1169, 112
      %v5229 = vpop.permute.xlu0 %5228
      %5230 = vrot.lane.b32.xlu0 %v1170, 112
      %v5231 = vpop.permute.xlu0 %5230
      %5232 = vrot.lane.b32.xlu0 %v1171, 112
      %v5233 = vpop.permute.xlu0 %5232
      %5234 = vrot.lane.b32.xlu0 %v1172, 112
      %v5235 = vpop.permute.xlu0 %5234
      %5236 = vrot.lane.b32.xlu0 %v1173, 112
      %v5237 = vpop.permute.xlu0 %5236
      %5238 = vrot.lane.b32.xlu0 %v1008, 80
      %v5239 = vpop.permute.xlu0 %5238
      %5240 = vrot.lane.b32.xlu0 %v1013, 80
      %v5241 = vpop.permute.xlu0 %5240
      %5242 = vrot.lane.b32.xlu0 %v1018, 80
      %v5243 = vpop.permute.xlu0 %5242
      %5244 = vrot.lane.b32.xlu0 %v1023, 80
      %v5245 = vpop.permute.xlu0 %5244
      %5246 = vrot.lane.b32.xlu0 %v1028, 80
      %v5247 = vpop.permute.xlu0 %5246
      %5248 = vrot.lane.b32.xlu0 %v1033, 80
      %v5249 = vpop.permute.xlu0 %5248
      %5250 = vrot.lane.b32.xlu0 %v1038, 80
      %v5251 = vpop.permute.xlu0 %5250
      %5252 = vrot.lane.b32.xlu0 %v1043, 80
      %v5253 = vpop.permute.xlu0 %5252
      %v5254 = vsel %vm1254, %v5223, 0
      %v5256 = vsel %vm1254, %v5225, 0
      %v5258 = vsel %vm1254, %v5227, 0
      %v5260 = vsel %vm1254, %v5229, 0
      %v5262 = vsel %vm1254, %v5231, 0
      %v5264 = vsel %vm1254, %v5233, 0
      %v5266 = vsel %vm1254, %v5235, 0
      %v5268 = vsel %vm1254, %v5237, 0
      %v5270 = vsel %vm1254, %v5239, 0
      %v5272 = vsel %vm1254, %v5241, 0
      %v5274 = vsel %vm1254, %v5243, 0
      %v5276 = vsel %vm1254, %v5245, 0
      %v5278 = vsel %vm1254, %v5247, 0
      %v5280 = vsel %vm1254, %v5249, 0
      %v5282 = vsel %vm1254, %v5251, 0
      %v5284 = vsel %vm1254, %v5253, 0
      %5286 = vmatprep.subr.mxu0 0.0
      %5287 = vmatpush1.xpose.msra.mxu0 %v5270
      %5288 = vmatprep.subr.mxu0 0.0
      %5289 = vmatpush1.xpose.msra.mxu0 %v5272
      %5290 = vmatprep.subr.mxu0 0.0
      %5291 = vmatpush1.xpose.msra.mxu0 %v5274
      %5292 = vmatprep.subr.mxu0 0.0
      %5293 = vmatpush1.xpose.msra.mxu0 %v5276
      %5294 = vmatprep.subr.mxu0 0.0
      %5295 = vmatpush1.xpose.msra.mxu0 %v5278
      %5296 = vmatprep.subr.mxu0 0.0
      %5297 = vmatpush1.xpose.msra.mxu0 %v5280
      %5298 = vmatprep.subr.mxu0 0.0
      %5299 = vmatpush1.xpose.msra.mxu0 %v5282
      %5300 = vmatprep.subr.mxu0 0.0
      %5301 = vmatpush1.xpose.msra.mxu0 %v5284
      %5302 = vmatprep.subr.mxu0 0.0
      %5303 = vmatpush1.xpose.msra.mxu0 0.0
      %5304 = vmatprep.subr.mxu0 0.0
      %5305 = vmatpush1.xpose.msra.mxu0 0.0
      %5306 = vmatprep.subr.mxu0 0.0
      %5307 = vmatpush1.xpose.msra.mxu0 0.0
      %5308 = vmatprep.subr.mxu0 0.0
      %5309 = vmatpush1.xpose.msra.mxu0 0.0
      %5310 = vmatprep.subr.mxu0 0.0
      %5311 = vmatpush1.xpose.msra.mxu0 0.0
      %5312 = vmatprep.subr.mxu0 0.0
      %5313 = vmatpush1.xpose.msra.mxu0 0.0
      %5314 = vmatprep.subr.mxu0 0.0
      %5315 = vmatpush1.xpose.msra.mxu0 0.0
      %5316 = vmatprep.subr.mxu0 0.0
      %5317 = vmatpush1.xpose.msra.mxu0 0.0
      %5318 = vmatprep.subr.mxu0 0.0
      %5319 = vmatpush1.xpose.msra.mxu0 0.0
      %5320 = vmatprep.subr.mxu0 0.0
      %5321 = vmatpush1.xpose.msra.mxu0 0.0
      %5322 = vmatprep.subr.mxu0 0.0
      %5323 = vmatpush1.xpose.msra.mxu0 0.0
      %5324 = vmatprep.subr.mxu0 0.0
      %5325 = vmatpush1.xpose.msra.mxu0 0.0
      %5326 = vmatprep.subr.mxu0 0.0
      %5327 = vmatpush1.xpose.msra.mxu0 0.0
      %5328 = vmatprep.subr.mxu0 0.0
      %5329 = vmatpush1.xpose.msra.mxu0 0.0
      %5330 = vmatprep.subr.mxu0 0.0
      %5331 = vmatpush1.xpose.msra.mxu0 0.0
      %5332 = vmatprep.subr.mxu0 0.0
      %5333 = vmatpush1.xpose.msra.mxu0 0.0
      %5334 = vmatprep.subr.mxu0 0.0
      %5335 = vmatpush1.xpose.msra.mxu0 0.0
      %5336 = vmatprep.subr.mxu0 0.0
      %5337 = vmatpush1.xpose.msra.mxu0 0.0
      %5338 = vmatprep.subr.mxu0 0.0
      %5339 = vmatpush1.xpose.msra.mxu0 0.0
      %5340 = vmatprep.subr.mxu0 0.0
      %5341 = vmatpush1.xpose.msra.mxu0 0.0
      %5342 = vmatprep.subr.mxu0 0.0
      %5343 = vmatpush1.xpose.msra.mxu0 0.0
      %5344 = vmatprep.subr.mxu0 0.0
      %5345 = vmatpush1.xpose.msra.mxu0 0.0
      %5346 = vmatprep.subr.mxu0 0.0
      %5347 = vmatpush1.xpose.msra.mxu0 0.0
      %5348 = vmatprep.subr.mxu0 0.0
      %5349 = vmatpush1.xpose.msra.mxu0 0.0
      %5350 = vmatprep.mubr.f32.mxu0 0.0
      %5351 = vmatmul.mubr.f32.gmra.mrb[0].mxu0 %v5254
      %v5352 = vpop.f32.mrb[0].mxu0
      %v5353 = vadd.f32 %v5190, %v5352
      %v5354 = vpop.f32.mrb[0].mxu0
      %5355 = vmatprep.mubr.f32.mxu0 0.0
      %5356 = vmatmul.mubr.f32.gmra.mrb[0].mxu0 %v5256
      %v5357 = vpop.f32.mrb[0].mxu0
      %v5358 = vadd.f32 %v5191, %v5357
      %v5359 = vpop.f32.mrb[0].mxu0
      %5360 = vmatprep.mubr.f32.mxu0 0.0
      %5361 = vmatmul.mubr.f32.gmra.mrb[0].mxu0 %v5258
      %v5362 = vpop.f32.mrb[0].mxu0
      %v5363 = vadd.f32 %v5192, %v5362
      %v5364 = vpop.f32.mrb[0].mxu0
      %5365 = vmatprep.mubr.f32.mxu0 0.0
      %5366 = vmatmul.mubr.f32.gmra.mrb[0].mxu0 %v5260
      %v5367 = vpop.f32.mrb[0].mxu0
      %v5368 = vadd.f32 %v5193, %v5367
      %v5369 = vpop.f32.mrb[0].mxu0
      %5370 = vmatprep.mubr.f32.mxu0 0.0
      %5371 = vmatmul.mubr.f32.gmra.mrb[0].mxu0 %v5262
      %v5372 = vpop.f32.mrb[0].mxu0
      %v5373 = vadd.f32 %v5194, %v5372
      %v5374 = vpop.f32.mrb[0].mxu0
      %5375 = vmatprep.mubr.f32.mxu0 0.0
      %5376 = vmatmul.mubr.f32.gmra.mrb[0].mxu0 %v5264
      %v5377 = vpop.f32.mrb[0].mxu0
      %v5378 = vadd.f32 %v5195, %v5377
      %v5379 = vpop.f32.mrb[0].mxu0
      %5380 = vmatprep.mubr.f32.mxu0 0.0
      %5381 = vmatmul.mubr.f32.gmra.mrb[0].mxu0 %v5266
      %v5382 = vpop.f32.mrb[0].mxu0
      %v5383 = vadd.f32 %v5196, %v5382
      %v5384 = vpop.f32.mrb[0].mxu0
      %5385 = vmatprep.mubr.f32.mxu0 0.0
      %5386 = vmatmul.mubr.f32.gmra.mrb[0].mxu0 %v5268
      %v5387 = vpop.f32.mrb[0].mxu0
      %v5388 = vadd.f32 %v5197, %v5387
      %v5389 = vpop.f32.mrb[0].mxu0
      %5390 = vdwg.mxu0
      %5391 = vrot.lane.b32.xlu0 %v1174, 112
      %v5392 = vpop.permute.xlu0 %5391
      %5393 = vrot.lane.b32.xlu0 %v1175, 112
      %v5394 = vpop.permute.xlu0 %5393
      %5395 = vrot.lane.b32.xlu0 %v1176, 112
      %v5396 = vpop.permute.xlu0 %5395
      %5397 = vrot.lane.b32.xlu0 %v1177, 112
      %v5398 = vpop.permute.xlu0 %5397
      %5399 = vrot.lane.b32.xlu0 %v1178, 112
      %v5400 = vpop.permute.xlu0 %5399
      %5401 = vrot.lane.b32.xlu0 %v1179, 112
      %v5402 = vpop.permute.xlu0 %5401
      %5403 = vrot.lane.b32.xlu0 %v1180, 112
      %v5404 = vpop.permute.xlu0 %5403
      %5405 = vrot.lane.b32.xlu0 %v1181, 112
      %v5406 = vpop.permute.xlu0 %5405
      %5407 = vrot.lane.b32.xlu0 %v1048, 80
      %v5408 = vpop.permute.xlu0 %5407
      %5409 = vrot.lane.b32.xlu0 %v1053, 80
      %v5410 = vpop.permute.xlu0 %5409
      %5411 = vrot.lane.b32.xlu0 %v1058, 80
      %v5412 = vpop.permute.xlu0 %5411
      %5413 = vrot.lane.b32.xlu0 %v1063, 80
      %v5414 = vpop.permute.xlu0 %5413
      %5415 = vrot.lane.b32.xlu0 %v1068, 80
      %v5416 = vpop.permute.xlu0 %5415
      %5417 = vrot.lane.b32.xlu0 %v1073, 80
      %v5418 = vpop.permute.xlu0 %5417
      %5419 = vrot.lane.b32.xlu0 %v1078, 80
      %v5420 = vpop.permute.xlu0 %5419
      %5421 = vrot.lane.b32.xlu0 %v1083, 80
      %v5422 = vpop.permute.xlu0 %5421
      %v5423 = vsel %vm1254, %v5392, 0
      %v5425 = vsel %vm1254, %v5394, 0
      %v5427 = vsel %vm1254, %v5396, 0
      %v5429 = vsel %vm1254, %v5398, 0
      %v5431 = vsel %vm1254, %v5400, 0
      %v5433 = vsel %vm1254, %v5402, 0
      %v5435 = vsel %vm1254, %v5404, 0
      %v5437 = vsel %vm1254, %v5406, 0
      %v5439 = vsel %vm1254, %v5408, 0
      %v5441 = vsel %vm1254, %v5410, 0
      %v5443 = vsel %vm1254, %v5412, 0
      %v5445 = vsel %vm1254, %v5414, 0
      %v5447 = vsel %vm1254, %v5416, 0
      %v5449 = vsel %vm1254, %v5418, 0
      %v5451 = vsel %vm1254, %v5420, 0
      %v5453 = vsel %vm1254, %v5422, 0
      %5455 = vmatprep.subr.mxu0 0.0
      %5456 = vmatpush1.xpose.msra.mxu0 %v5439
      %5457 = vmatprep.subr.mxu0 0.0
      %5458 = vmatpush1.xpose.msra.mxu0 %v5441
      %5459 = vmatprep.subr.mxu0 0.0
      %5460 = vmatpush1.xpose.msra.mxu0 %v5443
      %5461 = vmatprep.subr.mxu0 0.0
      %5462 = vmatpush1.xpose.msra.mxu0 %v5445
      %5463 = vmatprep.subr.mxu0 0.0
      %5464 = vmatpush1.xpose.msra.mxu0 %v5447
      %5465 = vmatprep.subr.mxu0 0.0
      %5466 = vmatpush1.xpose.msra.mxu0 %v5449
      %5467 = vmatprep.subr.mxu0 0.0
      %5468 = vmatpush1.xpose.msra.mxu0 %v5451
      %5469 = vmatprep.subr.mxu0 0.0
      %5470 = vmatpush1.xpose.msra.mxu0 %v5453
      %5471 = vmatprep.subr.mxu0 0.0
      %5472 = vmatpush1.xpose.msra.mxu0 0.0
      %5473 = vmatprep.subr.mxu0 0.0
      %5474 = vmatpush1.xpose.msra.mxu0 0.0
      %5475 = vmatprep.subr.mxu0 0.0
      %5476 = vmatpush1.xpose.msra.mxu0 0.0
      %5477 = vmatprep.subr.mxu0 0.0
      %5478 = vmatpush1.xpose.msra.mxu0 0.0
      %5479 = vmatprep.subr.mxu0 0.0
      %5480 = vmatpush1.xpose.msra.mxu0 0.0
      %5481 = vmatprep.subr.mxu0 0.0
      %5482 = vmatpush1.xpose.msra.mxu0 0.0
      %5483 = vmatprep.subr.mxu0 0.0
      %5484 = vmatpush1.xpose.msra.mxu0 0.0
      %5485 = vmatprep.subr.mxu0 0.0
      %5486 = vmatpush1.xpose.msra.mxu0 0.0
      %5487 = vmatprep.subr.mxu0 0.0
      %5488 = vmatpush1.xpose.msra.mxu0 0.0
      %5489 = vmatprep.subr.mxu0 0.0
      %5490 = vmatpush1.xpose.msra.mxu0 0.0
      %5491 = vmatprep.subr.mxu0 0.0
      %5492 = vmatpush1.xpose.msra.mxu0 0.0
      %5493 = vmatprep.subr.mxu0 0.0
      %5494 = vmatpush1.xpose.msra.mxu0 0.0
      %5495 = vmatprep.subr.mxu0 0.0
      %5496 = vmatpush1.xpose.msra.mxu0 0.0
      %5497 = vmatprep.subr.mxu0 0.0
      %5498 = vmatpush1.xpose.msra.mxu0 0.0
      %5499 = vmatprep.subr.mxu0 0.0
      %5500 = vmatpush1.xpose.msra.mxu0 0.0
      %5501 = vmatprep.subr.mxu0 0.0
      %5502 = vmatpush1.xpose.msra.mxu0 0.0
      %5503 = vmatprep.subr.mxu0 0.0
      %5504 = vmatpush1.xpose.msra.mxu0 0.0
      %5505 = vmatprep.subr.mxu0 0.0
      %5506 = vmatpush1.xpose.msra.mxu0 0.0
      %5507 = vmatprep.subr.mxu0 0.0
      %5508 = vmatpush1.xpose.msra.mxu0 0.0
      %5509 = vmatprep.subr.mxu0 0.0
      %5510 = vmatpush1.xpose.msra.mxu0 0.0
      %5511 = vmatprep.subr.mxu0 0.0
      %5512 = vmatpush1.xpose.msra.mxu0 0.0
      %5513 = vmatprep.subr.mxu0 0.0
      %5514 = vmatpush1.xpose.msra.mxu0 0.0
      %5515 = vmatprep.subr.mxu0 0.0
      %5516 = vmatpush1.xpose.msra.mxu0 0.0
      %5517 = vmatprep.subr.mxu0 0.0
      %5518 = vmatpush1.xpose.msra.mxu0 0.0
      %5519 = vmatprep.mubr.f32.mxu0 0.0
      %5520 = vmatmul.mubr.f32.gmra.mrb[0].mxu0 %v5423
      %v5521 = vpop.f32.mrb[0].mxu0
      %v5522 = vadd.f32 %v5198, %v5521
      %v5523 = vpop.f32.mrb[0].mxu0
      %5524 = vmatprep.mubr.f32.mxu0 0.0
      %5525 = vmatmul.mubr.f32.gmra.mrb[0].mxu0 %v5425
      %v5526 = vpop.f32.mrb[0].mxu0
      %v5527 = vadd.f32 %v5199, %v5526
      %v5528 = vpop.f32.mrb[0].mxu0
      %5529 = vmatprep.mubr.f32.mxu0 0.0
      %5530 = vmatmul.mubr.f32.gmra.mrb[0].mxu0 %v5427
      %v5531 = vpop.f32.mrb[0].mxu0
      %v5532 = vadd.f32 %v5200, %v5531
      %v5533 = vpop.f32.mrb[0].mxu0
      %5534 = vmatprep.mubr.f32.mxu0 0.0
      %5535 = vmatmul.mubr.f32.gmra.mrb[0].mxu0 %v5429
      %v5536 = vpop.f32.mrb[0].mxu0
      %v5537 = vadd.f32 %v5201, %v5536
      %v5538 = vpop.f32.mrb[0].mxu0
      %5539 = vmatprep.mubr.f32.mxu0 0.0
      %5540 = vmatmul.mubr.f32.gmra.mrb[0].mxu0 %v5431
      %v5541 = vpop.f32.mrb[0].mxu0
      %v5542 = vadd.f32 %v5202, %v5541
      %v5543 = vpop.f32.mrb[0].mxu0
      %5544 = vmatprep.mubr.f32.mxu0 0.0
      %5545 = vmatmul.mubr.f32.gmra.mrb[0].mxu0 %v5433
      %v5546 = vpop.f32.mrb[0].mxu0
      %v5547 = vadd.f32 %v5203, %v5546
      %v5548 = vpop.f32.mrb[0].mxu0
      %5549 = vmatprep.mubr.f32.mxu0 0.0
      %5550 = vmatmul.mubr.f32.gmra.mrb[0].mxu0 %v5435
      %v5551 = vpop.f32.mrb[0].mxu0
      %v5552 = vadd.f32 %v5204, %v5551
      %v5553 = vpop.f32.mrb[0].mxu0
      %5554 = vmatprep.mubr.f32.mxu0 0.0
      %5555 = vmatmul.mubr.f32.gmra.mrb[0].mxu0 %v5437
      %v5556 = vpop.f32.mrb[0].mxu0
      %v5557 = vadd.f32 %v5205, %v5556
      %v5558 = vpop.f32.mrb[0].mxu0
      %5559 = vdwg.mxu0
      %5560 = vrot.lane.b32.xlu0 %v1182, 112
      %v5561 = vpop.permute.xlu0 %5560
      %5562 = vrot.lane.b32.xlu0 %v1183, 112
      %v5563 = vpop.permute.xlu0 %5562
      %5564 = vrot.lane.b32.xlu0 %v1184, 112
      %v5565 = vpop.permute.xlu0 %5564
      %5566 = vrot.lane.b32.xlu0 %v1185, 112
      %v5567 = vpop.permute.xlu0 %5566
      %5568 = vrot.lane.b32.xlu0 %v1186, 112
      %v5569 = vpop.permute.xlu0 %5568
      %5570 = vrot.lane.b32.xlu0 %v1187, 112
      %v5571 = vpop.permute.xlu0 %5570
      %5572 = vrot.lane.b32.xlu0 %v1188, 112
      %v5573 = vpop.permute.xlu0 %5572
      %5574 = vrot.lane.b32.xlu0 %v1189, 112
      %v5575 = vpop.permute.xlu0 %5574
      %5576 = vrot.lane.b32.xlu0 %v1088, 80
      %v5577 = vpop.permute.xlu0 %5576
      %5578 = vrot.lane.b32.xlu0 %v1093, 80
      %v5579 = vpop.permute.xlu0 %5578
      %5580 = vrot.lane.b32.xlu0 %v1098, 80
      %v5581 = vpop.permute.xlu0 %5580
      %5582 = vrot.lane.b32.xlu0 %v1103, 80
      %v5583 = vpop.permute.xlu0 %5582
      %5584 = vrot.lane.b32.xlu0 %v1108, 80
      %v5585 = vpop.permute.xlu0 %5584
      %5586 = vrot.lane.b32.xlu0 %v1113, 80
      %v5587 = vpop.permute.xlu0 %5586
      %5588 = vrot.lane.b32.xlu0 %v1118, 80
      %v5589 = vpop.permute.xlu0 %5588
      %5590 = vrot.lane.b32.xlu0 %v1123, 80
      %v5591 = vpop.permute.xlu0 %5590
      %v5592 = vsel %vm1254, %v5561, 0
      %v5594 = vsel %vm1254, %v5563, 0
      %v5596 = vsel %vm1254, %v5565, 0
      %v5598 = vsel %vm1254, %v5567, 0
      %v5600 = vsel %vm1254, %v5569, 0
      %v5602 = vsel %vm1254, %v5571, 0
      %v5604 = vsel %vm1254, %v5573, 0
      %v5606 = vsel %vm1254, %v5575, 0
      %v5608 = vsel %vm1254, %v5577, 0
      %v5610 = vsel %vm1254, %v5579, 0
      %v5612 = vsel %vm1254, %v5581, 0
      %v5614 = vsel %vm1254, %v5583, 0
      %v5616 = vsel %vm1254, %v5585, 0
      %v5618 = vsel %vm1254, %v5587, 0
      %v5620 = vsel %vm1254, %v5589, 0
      %v5622 = vsel %vm1254, %v5591, 0
      %5624 = vmatprep.subr.mxu0 0.0
      %5625 = vmatpush1.xpose.msra.mxu0 %v5608
      %5626 = vmatprep.subr.mxu0 0.0
      %5627 = vmatpush1.xpose.msra.mxu0 %v5610
      %5628 = vmatprep.subr.mxu0 0.0
      %5629 = vmatpush1.xpose.msra.mxu0 %v5612
      %5630 = vmatprep.subr.mxu0 0.0
      %5631 = vmatpush1.xpose.msra.mxu0 %v5614
      %5632 = vmatprep.subr.mxu0 0.0
      %5633 = vmatpush1.xpose.msra.mxu0 %v5616
      %5634 = vmatprep.subr.mxu0 0.0
      %5635 = vmatpush1.xpose.msra.mxu0 %v5618
      %5636 = vmatprep.subr.mxu0 0.0
      %5637 = vmatpush1.xpose.msra.mxu0 %v5620
      %5638 = vmatprep.subr.mxu0 0.0
      %5639 = vmatpush1.xpose.msra.mxu0 %v5622
      %5640 = vmatprep.subr.mxu0 0.0
      %5641 = vmatpush1.xpose.msra.mxu0 0.0
      %5642 = vmatprep.subr.mxu0 0.0
      %5643 = vmatpush1.xpose.msra.mxu0 0.0
      %5644 = vmatprep.subr.mxu0 0.0
      %5645 = vmatpush1.xpose.msra.mxu0 0.0
      %5646 = vmatprep.subr.mxu0 0.0
      %5647 = vmatpush1.xpose.msra.mxu0 0.0
      %5648 = vmatprep.subr.mxu0 0.0
      %5649 = vmatpush1.xpose.msra.mxu0 0.0
      %5650 = vmatprep.subr.mxu0 0.0
      %5651 = vmatpush1.xpose.msra.mxu0 0.0
      %5652 = vmatprep.subr.mxu0 0.0
      %5653 = vmatpush1.xpose.msra.mxu0 0.0
      %5654 = vmatprep.subr.mxu0 0.0
      %5655 = vmatpush1.xpose.msra.mxu0 0.0
      %5656 = vmatprep.subr.mxu0 0.0
      %5657 = vmatpush1.xpose.msra.mxu0 0.0
      %5658 = vmatprep.subr.mxu0 0.0
      %5659 = vmatpush1.xpose.msra.mxu0 0.0
      %5660 = vmatprep.subr.mxu0 0.0
      %5661 = vmatpush1.xpose.msra.mxu0 0.0
      %5662 = vmatprep.subr.mxu0 0.0
      %5663 = vmatpush1.xpose.msra.mxu0 0.0
      %5664 = vmatprep.subr.mxu0 0.0
      %5665 = vmatpush1.xpose.msra.mxu0 0.0
      %5666 = vmatprep.subr.mxu0 0.0
      %5667 = vmatpush1.xpose.msra.mxu0 0.0
      %5668 = vmatprep.subr.mxu0 0.0
      %5669 = vmatpush1.xpose.msra.mxu0 0.0
      %5670 = vmatprep.subr.mxu0 0.0
      %5671 = vmatpush1.xpose.msra.mxu0 0.0
      %5672 = vmatprep.subr.mxu0 0.0
      %5673 = vmatpush1.xpose.msra.mxu0 0.0
      %5674 = vmatprep.subr.mxu0 0.0
      %5675 = vmatpush1.xpose.msra.mxu0 0.0
      %5676 = vmatprep.subr.mxu0 0.0
      %5677 = vmatpush1.xpose.msra.mxu0 0.0
      %5678 = vmatprep.subr.mxu0 0.0
      %5679 = vmatpush1.xpose.msra.mxu0 0.0
      %5680 = vmatprep.subr.mxu0 0.0
      %5681 = vmatpush1.xpose.msra.mxu0 0.0
      %5682 = vmatprep.subr.mxu0 0.0
      %5683 = vmatpush1.xpose.msra.mxu0 0.0
      %5684 = vmatprep.subr.mxu0 0.0
      %5685 = vmatpush1.xpose.msra.mxu0 0.0
      %5686 = vmatprep.subr.mxu0 0.0
      %5687 = vmatpush1.xpose.msra.mxu0 0.0
      %5688 = vmatprep.mubr.f32.mxu0 0.0
      %5689 = vmatmul.mubr.f32.gmra.mrb[0].mxu0 %v5592
      %v5690 = vpop.f32.mrb[0].mxu0
      %v5691 = vadd.f32 %v5206, %v5690
      %v5692 = vpop.f32.mrb[0].mxu0
      %5693 = vmatprep.mubr.f32.mxu0 0.0
      %5694 = vmatmul.mubr.f32.gmra.mrb[0].mxu0 %v5594
      %v5695 = vpop.f32.mrb[0].mxu0
      %v5696 = vadd.f32 %v5207, %v5695
      %v5697 = vpop.f32.mrb[0].mxu0
      %5698 = vmatprep.mubr.f32.mxu0 0.0
      %5699 = vmatmul.mubr.f32.gmra.mrb[0].mxu0 %v5596
      %v5700 = vpop.f32.mrb[0].mxu0
      %v5701 = vadd.f32 %v5208, %v5700
      %v5702 = vpop.f32.mrb[0].mxu0
      %5703 = vmatprep.mubr.f32.mxu0 0.0
      %5704 = vmatmul.mubr.f32.gmra.mrb[0].mxu0 %v5598
      %v5705 = vpop.f32.mrb[0].mxu0
      %v5706 = vadd.f32 %v5209, %v5705
      %v5707 = vpop.f32.mrb[0].mxu0
      %5708 = vmatprep.mubr.f32.mxu0 0.0
      %5709 = vmatmul.mubr.f32.gmra.mrb[0].mxu0 %v5600
      %v5710 = vpop.f32.mrb[0].mxu0
      %v5711 = vadd.f32 %v5210, %v5710
      %v5712 = vpop.f32.mrb[0].mxu0
      %5713 = vmatprep.mubr.f32.mxu0 0.0
      %5714 = vmatmul.mubr.f32.gmra.mrb[0].mxu0 %v5602
      %v5715 = vpop.f32.mrb[0].mxu0
      %v5716 = vadd.f32 %v5211, %v5715
      %v5717 = vpop.f32.mrb[0].mxu0
      %5718 = vmatprep.mubr.f32.mxu0 0.0
      %5719 = vmatmul.mubr.f32.gmra.mrb[0].mxu0 %v5604
      %v5720 = vpop.f32.mrb[0].mxu0
      %v5721 = vadd.f32 %v5212, %v5720
      %v5722 = vpop.f32.mrb[0].mxu0
      %5723 = vmatprep.mubr.f32.mxu0 0.0
      %5724 = vmatmul.mubr.f32.gmra.mrb[0].mxu0 %v5606
      %v5725 = vpop.f32.mrb[0].mxu0
      %v5726 = vadd.f32 %v5213, %v5725
      %v5727 = vpop.f32.mrb[0].mxu0
      %5728 = vdwg.mxu0
      %5729 = vrot.lane.b32.xlu0 %v1190, 112
      %v5730 = vpop.permute.xlu0 %5729
      %5731 = vrot.lane.b32.xlu0 %v1191, 112
      %v5732 = vpop.permute.xlu0 %5731
      %5733 = vrot.lane.b32.xlu0 %v1192, 112
      %v5734 = vpop.permute.xlu0 %5733
      %5735 = vrot.lane.b32.xlu0 %v1193, 112
      %v5736 = vpop.permute.xlu0 %5735
      %5737 = vrot.lane.b32.xlu0 %v1194, 112
      %v5738 = vpop.permute.xlu0 %5737
      %5739 = vrot.lane.b32.xlu0 %v1195, 112
      %v5740 = vpop.permute.xlu0 %5739
      %5741 = vrot.lane.b32.xlu0 %v1196, 112
      %v5742 = vpop.permute.xlu0 %5741
      %5743 = vrot.lane.b32.xlu0 %v1197, 112
      %v5744 = vpop.permute.xlu0 %5743
      %5745 = vrot.lane.b32.xlu0 %v1128, 80
      %v5746 = vpop.permute.xlu0 %5745
      %5747 = vrot.lane.b32.xlu0 %v1133, 80
      %v5748 = vpop.permute.xlu0 %5747
      %5749 = vrot.lane.b32.xlu0 %v1138, 80
      %v5750 = vpop.permute.xlu0 %5749
      %5751 = vrot.lane.b32.xlu0 %v1143, 80
      %v5752 = vpop.permute.xlu0 %5751
      %5753 = vrot.lane.b32.xlu0 %v1148, 80
      %v5754 = vpop.permute.xlu0 %5753
      %5755 = vrot.lane.b32.xlu0 %v1153, 80
      %v5756 = vpop.permute.xlu0 %5755
      %5757 = vrot.lane.b32.xlu0 %v1158, 80
      %v5758 = vpop.permute.xlu0 %5757
      %5759 = vrot.lane.b32.xlu0 %v1163, 80
      %v5760 = vpop.permute.xlu0 %5759
      %v5761 = vsel %vm1254, %v5730, 0
      %v5763 = vsel %vm1254, %v5732, 0
      %v5765 = vsel %vm1254, %v5734, 0
      %v5767 = vsel %vm1254, %v5736, 0
      %v5769 = vsel %vm1254, %v5738, 0
      %v5771 = vsel %vm1254, %v5740, 0
      %v5773 = vsel %vm1254, %v5742, 0
      %v5775 = vsel %vm1254, %v5744, 0
      %v5777 = vsel %vm1254, %v5746, 0
      %v5779 = vsel %vm1254, %v5748, 0
      %v5781 = vsel %vm1254, %v5750, 0
      %v5783 = vsel %vm1254, %v5752, 0
      %v5785 = vsel %vm1254, %v5754, 0
      %v5787 = vsel %vm1254, %v5756, 0
      %v5789 = vsel %vm1254, %v5758, 0
      %v5791 = vsel %vm1254, %v5760, 0
      %5793 = vmatprep.subr.mxu0 0.0
      %5794 = vmatpush1.xpose.msra.mxu0 %v5777
      %5795 = vmatprep.subr.mxu0 0.0
      %5796 = vmatpush1.xpose.msra.mxu0 %v5779
      %5797 = vmatprep.subr.mxu0 0.0
      %5798 = vmatpush1.xpose.msra.mxu0 %v5781
      %5799 = vmatprep.subr.mxu0 0.0
      %5800 = vmatpush1.xpose.msra.mxu0 %v5783
      %5801 = vmatprep.subr.mxu0 0.0
      %5802 = vmatpush1.xpose.msra.mxu0 %v5785
      %5803 = vmatprep.subr.mxu0 0.0
      %5804 = vmatpush1.xpose.msra.mxu0 %v5787
      %5805 = vmatprep.subr.mxu0 0.0
      %5806 = vmatpush1.xpose.msra.mxu0 %v5789
      %5807 = vmatprep.subr.mxu0 0.0
      %5808 = vmatpush1.xpose.msra.mxu0 %v5791
      %5809 = vmatprep.subr.mxu0 0.0
      %5810 = vmatpush1.xpose.msra.mxu0 0.0
      %5811 = vmatprep.subr.mxu0 0.0
      %5812 = vmatpush1.xpose.msra.mxu0 0.0
      %5813 = vmatprep.subr.mxu0 0.0
      %5814 = vmatpush1.xpose.msra.mxu0 0.0
      %5815 = vmatprep.subr.mxu0 0.0
      %5816 = vmatpush1.xpose.msra.mxu0 0.0
      %5817 = vmatprep.subr.mxu0 0.0
      %5818 = vmatpush1.xpose.msra.mxu0 0.0
      %5819 = vmatprep.subr.mxu0 0.0
      %5820 = vmatpush1.xpose.msra.mxu0 0.0
      %5821 = vmatprep.subr.mxu0 0.0
      %5822 = vmatpush1.xpose.msra.mxu0 0.0
      %5823 = vmatprep.subr.mxu0 0.0
      %5824 = vmatpush1.xpose.msra.mxu0 0.0
      %5825 = vmatprep.subr.mxu0 0.0
      %5826 = vmatpush1.xpose.msra.mxu0 0.0
      %5827 = vmatprep.subr.mxu0 0.0
      %5828 = vmatpush1.xpose.msra.mxu0 0.0
      %5829 = vmatprep.subr.mxu0 0.0
      %5830 = vmatpush1.xpose.msra.mxu0 0.0
      %5831 = vmatprep.subr.mxu0 0.0
      %5832 = vmatpush1.xpose.msra.mxu0 0.0
      %5833 = vmatprep.subr.mxu0 0.0
      %5834 = vmatpush1.xpose.msra.mxu0 0.0
      %5835 = vmatprep.subr.mxu0 0.0
      %5836 = vmatpush1.xpose.msra.mxu0 0.0
      %5837 = vmatprep.subr.mxu0 0.0
      %5838 = vmatpush1.xpose.msra.mxu0 0.0
      %5839 = vmatprep.subr.mxu0 0.0
      %5840 = vmatpush1.xpose.msra.mxu0 0.0
      %5841 = vmatprep.subr.mxu0 0.0
      %5842 = vmatpush1.xpose.msra.mxu0 0.0
      %5843 = vmatprep.subr.mxu0 0.0
      %5844 = vmatpush1.xpose.msra.mxu0 0.0
      %5845 = vmatprep.subr.mxu0 0.0
      %5846 = vmatpush1.xpose.msra.mxu0 0.0
      %5847 = vmatprep.subr.mxu0 0.0
      %5848 = vmatpush1.xpose.msra.mxu0 0.0
      %5849 = vmatprep.subr.mxu0 0.0
      %5850 = vmatpush1.xpose.msra.mxu0 0.0
      %5851 = vmatprep.subr.mxu0 0.0
      %5852 = vmatpush1.xpose.msra.mxu0 0.0
      %5853 = vmatprep.subr.mxu0 0.0
      %5854 = vmatpush1.xpose.msra.mxu0 0.0
      %5855 = vmatprep.subr.mxu0 0.0
      %5856 = vmatpush1.xpose.msra.mxu0 0.0
      %5857 = vmatprep.mubr.f32.mxu0 0.0
      %5858 = vmatmul.mubr.f32.gmra.mrb[0].mxu0 %v5761
      %v5859 = vpop.f32.mrb[0].mxu0
      %v5860 = vadd.f32 %v5214, %v5859
      %v5861 = vpop.f32.mrb[0].mxu0
      %5862 = vmatprep.mubr.f32.mxu0 0.0
      %5863 = vmatmul.mubr.f32.gmra.mrb[0].mxu0 %v5763
      %v5864 = vpop.f32.mrb[0].mxu0
      %v5865 = vadd.f32 %v5215, %v5864
      %v5866 = vpop.f32.mrb[0].mxu0
      %5867 = vmatprep.mubr.f32.mxu0 0.0
      %5868 = vmatmul.mubr.f32.gmra.mrb[0].mxu0 %v5765
      %v5869 = vpop.f32.mrb[0].mxu0
      %v5870 = vadd.f32 %v5216, %v5869
      %v5871 = vpop.f32.mrb[0].mxu0
      %5872 = vmatprep.mubr.f32.mxu0 0.0
      %5873 = vmatmul.mubr.f32.gmra.mrb[0].mxu0 %v5767
      %v5874 = vpop.f32.mrb[0].mxu0
      %v5875 = vadd.f32 %v5217, %v5874
      %v5876 = vpop.f32.mrb[0].mxu0
      %5877 = vmatprep.mubr.f32.mxu0 0.0
      %5878 = vmatmul.mubr.f32.gmra.mrb[0].mxu0 %v5769
      %v5879 = vpop.f32.mrb[0].mxu0
      %v5880 = vadd.f32 %v5218, %v5879
      %v5881 = vpop.f32.mrb[0].mxu0
      %5882 = vmatprep.mubr.f32.mxu0 0.0
      %5883 = vmatmul.mubr.f32.gmra.mrb[0].mxu0 %v5771
      %v5884 = vpop.f32.mrb[0].mxu0
      %v5885 = vadd.f32 %v5219, %v5884
      %v5886 = vpop.f32.mrb[0].mxu0
      %5887 = vmatprep.mubr.f32.mxu0 0.0
      %5888 = vmatmul.mubr.f32.gmra.mrb[0].mxu0 %v5773
      %v5889 = vpop.f32.mrb[0].mxu0
      %v5890 = vadd.f32 %v5220, %v5889
      %v5891 = vpop.f32.mrb[0].mxu0
      %5892 = vmatprep.mubr.f32.mxu0 0.0
      %5893 = vmatmul.mubr.f32.gmra.mrb[0].mxu0 %v5775
      %v5894 = vpop.f32.mrb[0].mxu0
      %v5895 = vadd.f32 %v5221, %v5894
      %v5896 = vpop.f32.mrb[0].mxu0
      %5897 = vdwg.mxu0
      %v5898 = vsel %vm1907, %v5353, -inf
      %5899 = vmax.xlane.f32.xlu0 %v5898
      %v5900 = vpop.xlane.xlu0 %5899
      %v5901 = vsel %vm1907, %v5358, -inf
      %5902 = vmax.xlane.f32.xlu0 %v5901
      %v5903 = vpop.xlane.xlu0 %5902
      %v5904 = vsel %vm1907, %v5363, -inf
      %5905 = vmax.xlane.f32.xlu0 %v5904
      %v5906 = vpop.xlane.xlu0 %5905
      %v5907 = vsel %vm1907, %v5368, -inf
      %5908 = vmax.xlane.f32.xlu0 %v5907
      %v5909 = vpop.xlane.xlu0 %5908
      %v5910 = vsel %vm1907, %v5373, -inf
      %5911 = vmax.xlane.f32.xlu0 %v5910
      %v5912 = vpop.xlane.xlu0 %5911
      %v5913 = vsel %vm1907, %v5378, -inf
      %5914 = vmax.xlane.f32.xlu0 %v5913
      %v5915 = vpop.xlane.xlu0 %5914
      %v5916 = vsel %vm1907, %v5383, -inf
      %5917 = vmax.xlane.f32.xlu0 %v5916
      %v5918 = vpop.xlane.xlu0 %5917
      %v5919 = vsel %vm1907, %v5388, -inf
      %5920 = vmax.xlane.f32.xlu0 %v5919
      %v5921 = vpop.xlane.xlu0 %5920
      %v5922 = vsel %vm1907, %v5522, -inf
      %5923 = vmax.xlane.f32.xlu0 %v5922
      %v5924 = vpop.xlane.xlu0 %5923
      %v5925 = vsel %vm1907, %v5527, -inf
      %5926 = vmax.xlane.f32.xlu0 %v5925
      %v5927 = vpop.xlane.xlu0 %5926
      %v5928 = vsel %vm1907, %v5532, -inf
      %5929 = vmax.xlane.f32.xlu0 %v5928
      %v5930 = vpop.xlane.xlu0 %5929
      %v5931 = vsel %vm1907, %v5537, -inf
      %5932 = vmax.xlane.f32.xlu0 %v5931
      %v5933 = vpop.xlane.xlu0 %5932
      %v5934 = vsel %vm1907, %v5542, -inf
      %5935 = vmax.xlane.f32.xlu0 %v5934
      %v5936 = vpop.xlane.xlu0 %5935
      %v5937 = vsel %vm1907, %v5547, -inf
      %5938 = vmax.xlane.f32.xlu0 %v5937
      %v5939 = vpop.xlane.xlu0 %5938
      %v5940 = vsel %vm1907, %v5552, -inf
      %5941 = vmax.xlane.f32.xlu0 %v5940
      %v5942 = vpop.xlane.xlu0 %5941
      %v5943 = vsel %vm1907, %v5557, -inf
      %5944 = vmax.xlane.f32.xlu0 %v5943
      %v5945 = vpop.xlane.xlu0 %5944
      %v5946 = vsel %vm1907, %v5691, -inf
      %5947 = vmax.xlane.f32.xlu0 %v5946
      %v5948 = vpop.xlane.xlu0 %5947
      %v5949 = vsel %vm1907, %v5696, -inf
      %5950 = vmax.xlane.f32.xlu0 %v5949
      %v5951 = vpop.xlane.xlu0 %5950
      %v5952 = vsel %vm1907, %v5701, -inf
      %5953 = vmax.xlane.f32.xlu0 %v5952
      %v5954 = vpop.xlane.xlu0 %5953
      %v5955 = vsel %vm1907, %v5706, -inf
      %5956 = vmax.xlane.f32.xlu0 %v5955
      %v5957 = vpop.xlane.xlu0 %5956
      %v5958 = vsel %vm1907, %v5711, -inf
      %5959 = vmax.xlane.f32.xlu0 %v5958
      %v5960 = vpop.xlane.xlu0 %5959
      %v5961 = vsel %vm1907, %v5716, -inf
      %5962 = vmax.xlane.f32.xlu0 %v5961
      %v5963 = vpop.xlane.xlu0 %5962
      %v5964 = vsel %vm1907, %v5721, -inf
      %5965 = vmax.xlane.f32.xlu0 %v5964
      %v5966 = vpop.xlane.xlu0 %5965
      %v5967 = vsel %vm1907, %v5726, -inf
      %5968 = vmax.xlane.f32.xlu0 %v5967
      %v5969 = vpop.xlane.xlu0 %5968
      %v5970 = vsel %vm1907, %v5860, -inf
      %5971 = vmax.xlane.f32.xlu0 %v5970
      %v5972 = vpop.xlane.xlu0 %5971
      %v5973 = vsel %vm1907, %v5865, -inf
      %5974 = vmax.xlane.f32.xlu0 %v5973
      %v5975 = vpop.xlane.xlu0 %5974
      %v5976 = vsel %vm1907, %v5870, -inf
      %5977 = vmax.xlane.f32.xlu0 %v5976
      %v5978 = vpop.xlane.xlu0 %5977
      %v5979 = vsel %vm1907, %v5875, -inf
      %5980 = vmax.xlane.f32.xlu0 %v5979
      %v5981 = vpop.xlane.xlu0 %5980
      %v5982 = vsel %vm1907, %v5880, -inf
      %5983 = vmax.xlane.f32.xlu0 %v5982
      %v5984 = vpop.xlane.xlu0 %5983
      %v5985 = vsel %vm1907, %v5885, -inf
      %5986 = vmax.xlane.f32.xlu0 %v5985
      %v5987 = vpop.xlane.xlu0 %5986
      %v5988 = vsel %vm1907, %v5890, -inf
      %5989 = vmax.xlane.f32.xlu0 %v5988
      %v5990 = vpop.xlane.xlu0 %5989
      %v5991 = vsel %vm1907, %v5895, -inf
      %5992 = vmax.xlane.f32.xlu0 %v5991
      %v5993 = vpop.xlane.xlu0 %5992
      %v5994 = vsub.f32 %v5353, %v5900
      %v5995 = vsub.f32 %v5358, %v5903
      %v5996 = vsub.f32 %v5363, %v5906
      %v5997 = vsub.f32 %v5368, %v5909
      %v5998 = vsub.f32 %v5373, %v5912
      %v5999 = vsub.f32 %v5378, %v5915
      %v6000 = vsub.f32 %v5383, %v5918
      %v6001 = vsub.f32 %v5388, %v5921
      %v6002 = vsub.f32 %v5522, %v5924
      %v6003 = vsub.f32 %v5527, %v5927
      %v6004 = vsub.f32 %v5532, %v5930
      %v6005 = vsub.f32 %v5537, %v5933
      %v6006 = vsub.f32 %v5542, %v5936
      %v6007 = vsub.f32 %v5547, %v5939
      %v6008 = vsub.f32 %v5552, %v5942
      %v6009 = vsub.f32 %v5557, %v5945
      %v6010 = vsub.f32 %v5691, %v5948
      %v6011 = vsub.f32 %v5696, %v5951
      %v6012 = vsub.f32 %v5701, %v5954
      %v6013 = vsub.f32 %v5706, %v5957
      %v6014 = vsub.f32 %v5711, %v5960
      %v6015 = vsub.f32 %v5716, %v5963
      %v6016 = vsub.f32 %v5721, %v5966
      %v6017 = vsub.f32 %v5726, %v5969
      %v6018 = vsub.f32 %v5860, %v5972
      %v6019 = vsub.f32 %v5865, %v5975
      %v6020 = vsub.f32 %v5870, %v5978
      %v6021 = vsub.f32 %v5875, %v5981
      %v6022 = vsub.f32 %v5880, %v5984
      %v6023 = vsub.f32 %v5885, %v5987
      %v6024 = vsub.f32 %v5890, %v5990
      %v6025 = vsub.f32 %v5895, %v5993
      %v6026 = vmul.f32 %v5994, 1.442695
      %v6027 = vpow.pop %v6026
      %v6028 = vmul.f32 %v5995, 1.442695
      %v6029 = vpow.pop %v6028
      %v6030 = vmul.f32 %v5996, 1.442695
      %v6031 = vpow.pop %v6030
      %v6032 = vmul.f32 %v5997, 1.442695
      %v6033 = vpow.pop %v6032
      %v6034 = vmul.f32 %v5998, 1.442695
      %v6035 = vpow.pop %v6034
      %v6036 = vmul.f32 %v5999, 1.442695
      %v6037 = vpow.pop %v6036
      %v6038 = vmul.f32 %v6000, 1.442695
      %v6039 = vpow.pop %v6038
      %v6040 = vmul.f32 %v6001, 1.442695
      %v6041 = vpow.pop %v6040
      %v6042 = vmul.f32 %v6002, 1.442695
      %v6043 = vpow.pop %v6042
      %v6044 = vmul.f32 %v6003, 1.442695
      %v6045 = vpow.pop %v6044
      %v6046 = vmul.f32 %v6004, 1.442695
      %v6047 = vpow.pop %v6046
      %v6048 = vmul.f32 %v6005, 1.442695
      %v6049 = vpow.pop %v6048
      %v6050 = vmul.f32 %v6006, 1.442695
      %v6051 = vpow.pop %v6050
      %v6052 = vmul.f32 %v6007, 1.442695
      %v6053 = vpow.pop %v6052
      %v6054 = vmul.f32 %v6008, 1.442695
      %v6055 = vpow.pop %v6054
      %v6056 = vmul.f32 %v6009, 1.442695
      %v6057 = vpow.pop %v6056
      %v6058 = vmul.f32 %v6010, 1.442695
      %v6059 = vpow.pop %v6058
      %v6060 = vmul.f32 %v6011, 1.442695
      %v6061 = vpow.pop %v6060
      %v6062 = vmul.f32 %v6012, 1.442695
      %v6063 = vpow.pop %v6062
      %v6064 = vmul.f32 %v6013, 1.442695
      %v6065 = vpow.pop %v6064
      %v6066 = vmul.f32 %v6014, 1.442695
      %v6067 = vpow.pop %v6066
      %v6068 = vmul.f32 %v6015, 1.442695
      %v6069 = vpow.pop %v6068
      %v6070 = vmul.f32 %v6016, 1.442695
      %v6071 = vpow.pop %v6070
      %v6072 = vmul.f32 %v6017, 1.442695
      %v6073 = vpow.pop %v6072
      %v6074 = vmul.f32 %v6018, 1.442695
      %v6075 = vpow.pop %v6074
      %v6076 = vmul.f32 %v6019, 1.442695
      %v6077 = vpow.pop %v6076
      %v6078 = vmul.f32 %v6020, 1.442695
      %v6079 = vpow.pop %v6078
      %v6080 = vmul.f32 %v6021, 1.442695
      %v6081 = vpow.pop %v6080
      %v6082 = vmul.f32 %v6022, 1.442695
      %v6083 = vpow.pop %v6082
      %v6084 = vmul.f32 %v6023, 1.442695
      %v6085 = vpow.pop %v6084
      %v6086 = vmul.f32 %v6024, 1.442695
      %v6087 = vpow.pop %v6086
      %v6088 = vmul.f32 %v6025, 1.442695
      %v6089 = vpow.pop %v6088
      %v6090 = vsel %vm1907, %v6027, 0.0
      %6091 = vadd.xlane.f32.xlu0 %v6090
      %v6092 = vpop.xlane.xlu0 %6091
      %v6093 = vsel %vm1907, %v6029, 0.0
      %6094 = vadd.xlane.f32.xlu0 %v6093
      %v6095 = vpop.xlane.xlu0 %6094
      %v6096 = vsel %vm1907, %v6031, 0.0
      %6097 = vadd.xlane.f32.xlu0 %v6096
      %v6098 = vpop.xlane.xlu0 %6097
      %v6099 = vsel %vm1907, %v6033, 0.0
      %6100 = vadd.xlane.f32.xlu0 %v6099
      %v6101 = vpop.xlane.xlu0 %6100
      %v6102 = vsel %vm1907, %v6035, 0.0
      %6103 = vadd.xlane.f32.xlu0 %v6102
      %v6104 = vpop.xlane.xlu0 %6103
      %v6105 = vsel %vm1907, %v6037, 0.0
      %6106 = vadd.xlane.f32.xlu0 %v6105
      %v6107 = vpop.xlane.xlu0 %6106
      %v6108 = vsel %vm1907, %v6039, 0.0
      %6109 = vadd.xlane.f32.xlu0 %v6108
      %v6110 = vpop.xlane.xlu0 %6109
      %v6111 = vsel %vm1907, %v6041, 0.0
      %6112 = vadd.xlane.f32.xlu0 %v6111
      %v6113 = vpop.xlane.xlu0 %6112
      %v6114 = vsel %vm1907, %v6043, 0.0
      %6115 = vadd.xlane.f32.xlu0 %v6114
      %v6116 = vpop.xlane.xlu0 %6115
      %v6117 = vsel %vm1907, %v6045, 0.0
      %6118 = vadd.xlane.f32.xlu0 %v6117
      %v6119 = vpop.xlane.xlu0 %6118
      %v6120 = vsel %vm1907, %v6047, 0.0
      %6121 = vadd.xlane.f32.xlu0 %v6120
      %v6122 = vpop.xlane.xlu0 %6121
      %v6123 = vsel %vm1907, %v6049, 0.0
      %6124 = vadd.xlane.f32.xlu0 %v6123
      %v6125 = vpop.xlane.xlu0 %6124
      %v6126 = vsel %vm1907, %v6051, 0.0
      %6127 = vadd.xlane.f32.xlu0 %v6126
      %v6128 = vpop.xlane.xlu0 %6127
      %v6129 = vsel %vm1907, %v6053, 0.0
      %6130 = vadd.xlane.f32.xlu0 %v6129
      %v6131 = vpop.xlane.xlu0 %6130
      %v6132 = vsel %vm1907, %v6055, 0.0
      %6133 = vadd.xlane.f32.xlu0 %v6132
      %v6134 = vpop.xlane.xlu0 %6133
      %v6135 = vsel %vm1907, %v6057, 0.0
      %6136 = vadd.xlane.f32.xlu0 %v6135
      %v6137 = vpop.xlane.xlu0 %6136
      %v6138 = vsel %vm1907, %v6059, 0.0
      %6139 = vadd.xlane.f32.xlu0 %v6138
      %v6140 = vpop.xlane.xlu0 %6139
      %v6141 = vsel %vm1907, %v6061, 0.0
      %6142 = vadd.xlane.f32.xlu0 %v6141
      %v6143 = vpop.xlane.xlu0 %6142
      %v6144 = vsel %vm1907, %v6063, 0.0
      %6145 = vadd.xlane.f32.xlu0 %v6144
      %v6146 = vpop.xlane.xlu0 %6145
      %v6147 = vsel %vm1907, %v6065, 0.0
      %6148 = vadd.xlane.f32.xlu0 %v6147
      %v6149 = vpop.xlane.xlu0 %6148
      %v6150 = vsel %vm1907, %v6067, 0.0
      %6151 = vadd.xlane.f32.xlu0 %v6150
      %v6152 = vpop.xlane.xlu0 %6151
      %v6153 = vsel %vm1907, %v6069, 0.0
      %6154 = vadd.xlane.f32.xlu0 %v6153
      %v6155 = vpop.xlane.xlu0 %6154
      %v6156 = vsel %vm1907, %v6071, 0.0
      %6157 = vadd.xlane.f32.xlu0 %v6156
      %v6158 = vpop.xlane.xlu0 %6157
      %v6159 = vsel %vm1907, %v6073, 0.0
      %6160 = vadd.xlane.f32.xlu0 %v6159
      %v6161 = vpop.xlane.xlu0 %6160
      %v6162 = vsel %vm1907, %v6075, 0.0
      %6163 = vadd.xlane.f32.xlu0 %v6162
      %v6164 = vpop.xlane.xlu0 %6163
      %v6165 = vsel %vm1907, %v6077, 0.0
      %6166 = vadd.xlane.f32.xlu0 %v6165
      %v6167 = vpop.xlane.xlu0 %6166
      %v6168 = vsel %vm1907, %v6079, 0.0
      %6169 = vadd.xlane.f32.xlu0 %v6168
      %v6170 = vpop.xlane.xlu0 %6169
      %v6171 = vsel %vm1907, %v6081, 0.0
      %6172 = vadd.xlane.f32.xlu0 %v6171
      %v6173 = vpop.xlane.xlu0 %6172
      %v6174 = vsel %vm1907, %v6083, 0.0
      %6175 = vadd.xlane.f32.xlu0 %v6174
      %v6176 = vpop.xlane.xlu0 %6175
      %v6177 = vsel %vm1907, %v6085, 0.0
      %6178 = vadd.xlane.f32.xlu0 %v6177
      %v6179 = vpop.xlane.xlu0 %6178
      %v6180 = vsel %vm1907, %v6087, 0.0
      %6181 = vadd.xlane.f32.xlu0 %v6180
      %v6182 = vpop.xlane.xlu0 %6181
      %v6183 = vsel %vm1907, %v6089, 0.0
      %6184 = vadd.xlane.f32.xlu0 %v6183
      %v6185 = vpop.xlane.xlu0 %6184
      %v6186 = vrcp.pop %v6092
      %v6187 = vrcp.pop %v6095
      %v6188 = vrcp.pop %v6098
      %v6189 = vrcp.pop %v6101
      %v6190 = vrcp.pop %v6104
      %v6191 = vrcp.pop %v6107
      %v6192 = vrcp.pop %v6110
      %v6193 = vrcp.pop %v6113
      %v6194 = vrcp.pop %v6116
      %v6195 = vrcp.pop %v6119
      %v6196 = vrcp.pop %v6122
      %v6197 = vrcp.pop %v6125
      %v6198 = vrcp.pop %v6128
      %v6199 = vrcp.pop %v6131
      %v6200 = vrcp.pop %v6134
      %v6201 = vrcp.pop %v6137
      %v6202 = vrcp.pop %v6140
      %v6203 = vrcp.pop %v6143
      %v6204 = vrcp.pop %v6146
      %v6205 = vrcp.pop %v6149
      %v6206 = vrcp.pop %v6152
      %v6207 = vrcp.pop %v6155
      %v6208 = vrcp.pop %v6158
      %v6209 = vrcp.pop %v6161
      %v6210 = vrcp.pop %v6164
      %v6211 = vrcp.pop %v6167
      %v6212 = vrcp.pop %v6170
      %v6213 = vrcp.pop %v6173
      %v6214 = vrcp.pop %v6176
      %v6215 = vrcp.pop %v6179
      %v6216 = vrcp.pop %v6182
      %v6217 = vrcp.pop %v6185
      %v6218 = vmul.f32 %v6027, %v6186
      %v6219 = vmul.f32 %v6029, %v6187
      %v6220 = vmul.f32 %v6031, %v6188
      %v6221 = vmul.f32 %v6033, %v6189
      %v6222 = vmul.f32 %v6035, %v6190
      %v6223 = vmul.f32 %v6037, %v6191
      %v6224 = vmul.f32 %v6039, %v6192
      %v6225 = vmul.f32 %v6041, %v6193
      %v6226 = vmul.f32 %v6043, %v6194
      %v6227 = vmul.f32 %v6045, %v6195
      %v6228 = vmul.f32 %v6047, %v6196
      %v6229 = vmul.f32 %v6049, %v6197
      %v6230 = vmul.f32 %v6051, %v6198
      %v6231 = vmul.f32 %v6053, %v6199
      %v6232 = vmul.f32 %v6055, %v6200
      %v6233 = vmul.f32 %v6057, %v6201
      %v6234 = vmul.f32 %v6059, %v6202
      %v6235 = vmul.f32 %v6061, %v6203
      %v6236 = vmul.f32 %v6063, %v6204
      %v6237 = vmul.f32 %v6065, %v6205
      %v6238 = vmul.f32 %v6067, %v6206
      %v6239 = vmul.f32 %v6069, %v6207
      %v6240 = vmul.f32 %v6071, %v6208
      %v6241 = vmul.f32 %v6073, %v6209
      %v6242 = vmul.f32 %v6075, %v6210
      %v6243 = vmul.f32 %v6077, %v6211
      %v6244 = vmul.f32 %v6079, %v6212
      %v6245 = vmul.f32 %v6081, %v6213
      %v6246 = vmul.f32 %v6083, %v6214
      %v6247 = vmul.f32 %v6085, %v6215
      %v6248 = vmul.f32 %v6087, %v6216
      %v6249 = vmul.f32 %v6089, %v6217
      %6250 = vrot.lane.b32.xlu0 %v1008, 48
      %v6251 = vpop.permute.xlu0 %6250
      %6252 = vrot.lane.b32.xlu0 %v1013, 48
      %v6253 = vpop.permute.xlu0 %6252
      %6254 = vrot.lane.b32.xlu0 %v1018, 48
      %v6255 = vpop.permute.xlu0 %6254
      %6256 = vrot.lane.b32.xlu0 %v1023, 48
      %v6257 = vpop.permute.xlu0 %6256
      %6258 = vrot.lane.b32.xlu0 %v1028, 48
      %v6259 = vpop.permute.xlu0 %6258
      %6260 = vrot.lane.b32.xlu0 %v1033, 48
      %v6261 = vpop.permute.xlu0 %6260
      %6262 = vrot.lane.b32.xlu0 %v1038, 48
      %v6263 = vpop.permute.xlu0 %6262
      %6264 = vrot.lane.b32.xlu0 %v1043, 48
      %v6265 = vpop.permute.xlu0 %6264
      %v6275 = vsel %vm1907, %v6218, 0
      %v6278 = vsel %vm1907, %v6219, 0
      %v6281 = vsel %vm1907, %v6220, 0
      %v6284 = vsel %vm1907, %v6221, 0
      %v6287 = vsel %vm1907, %v6222, 0
      %v6290 = vsel %vm1907, %v6223, 0
      %v6293 = vsel %vm1907, %v6224, 0
      %v6296 = vsel %vm1907, %v6225, 0
      %6298 = vmatprep.subr.mxu0 0.0
      %6299 = vmatpush1.msra.mxu0 %v6251
      %6300 = vmatprep.subr.mxu0 0.0
      %6301 = vmatpush1.msra.mxu0 %v6253
      %6302 = vmatprep.subr.mxu0 0.0
      %6303 = vmatpush1.msra.mxu0 %v6255
      %6304 = vmatprep.subr.mxu0 0.0
      %6305 = vmatpush1.msra.mxu0 %v6257
      %6306 = vmatprep.subr.mxu0 0.0
      %6307 = vmatpush1.msra.mxu0 %v6259
      %6308 = vmatprep.subr.mxu0 0.0
      %6309 = vmatpush1.msra.mxu0 %v6261
      %6310 = vmatprep.subr.mxu0 0.0
      %6311 = vmatpush1.msra.mxu0 %v6263
      %6312 = vmatprep.subr.mxu0 0.0
      %6313 = vmatpush1.msra.mxu0 %v6265
      %6314 = vmatprep.subr.mxu0 0.0
      %6315 = vmatpush1.msra.mxu0 0.0
      %6316 = vmatprep.subr.mxu0 0.0
      %6317 = vmatpush1.msra.mxu0 0.0
      %6318 = vmatprep.subr.mxu0 0.0
      %6319 = vmatpush1.msra.mxu0 0.0
      %6320 = vmatprep.subr.mxu0 0.0
      %6321 = vmatpush1.msra.mxu0 0.0
      %6322 = vmatprep.subr.mxu0 0.0
      %6323 = vmatpush1.msra.mxu0 0.0
      %6324 = vmatprep.subr.mxu0 0.0
      %6325 = vmatpush1.msra.mxu0 0.0
      %6326 = vmatprep.subr.mxu0 0.0
      %6327 = vmatpush1.msra.mxu0 0.0
      %6328 = vmatprep.subr.mxu0 0.0
      %6329 = vmatpush1.msra.mxu0 0.0
      %6330 = vmatprep.subr.mxu0 0.0
      %6331 = vmatpush1.msra.mxu0 0.0
      %6332 = vmatprep.subr.mxu0 0.0
      %6333 = vmatpush1.msra.mxu0 0.0
      %6334 = vmatprep.subr.mxu0 0.0
      %6335 = vmatpush1.msra.mxu0 0.0
      %6336 = vmatprep.subr.mxu0 0.0
      %6337 = vmatpush1.msra.mxu0 0.0
      %6338 = vmatprep.subr.mxu0 0.0
      %6339 = vmatpush1.msra.mxu0 0.0
      %6340 = vmatprep.subr.mxu0 0.0
      %6341 = vmatpush1.msra.mxu0 0.0
      %6342 = vmatprep.subr.mxu0 0.0
      %6343 = vmatpush1.msra.mxu0 0.0
      %6344 = vmatprep.subr.mxu0 0.0
      %6345 = vmatpush1.msra.mxu0 0.0
      %6346 = vmatprep.subr.mxu0 0.0
      %6347 = vmatpush1.msra.mxu0 0.0
      %6348 = vmatprep.subr.mxu0 0.0
      %6349 = vmatpush1.msra.mxu0 0.0
      %6350 = vmatprep.subr.mxu0 0.0
      %6351 = vmatpush1.msra.mxu0 0.0
      %6352 = vmatprep.subr.mxu0 0.0
      %6353 = vmatpush1.msra.mxu0 0.0
      %6354 = vmatprep.subr.mxu0 0.0
      %6355 = vmatpush1.msra.mxu0 0.0
      %6356 = vmatprep.subr.mxu0 0.0
      %6357 = vmatpush1.msra.mxu0 0.0
      %6358 = vmatprep.subr.mxu0 0.0
      %6359 = vmatpush1.msra.mxu0 0.0
      %6360 = vmatprep.subr.mxu0 0.0
      %6361 = vmatpush1.msra.mxu0 0.0
      %6362 = vmatprep.mubr.f32.mxu0 0.0
      %6363 = vmatmul.mubr.f32.gmra.mrb[0].mxu0 %v6275
      %v6364 = vpop.f32.mrb[0].mxu0
      %v6365 = vadd.f32 0.0, %v6364
      %v6366 = vpop.f32.mrb[0].mxu0
      %6367 = vmatprep.mubr.f32.mxu0 0.0
      %6368 = vmatmul.mubr.f32.gmra.mrb[0].mxu0 %v6278
      %v6369 = vpop.f32.mrb[0].mxu0
      %v6370 = vadd.f32 0.0, %v6369
      %v6371 = vpop.f32.mrb[0].mxu0
      %6372 = vmatprep.mubr.f32.mxu0 0.0
      %6373 = vmatmul.mubr.f32.gmra.mrb[0].mxu0 %v6281
      %v6374 = vpop.f32.mrb[0].mxu0
      %v6375 = vadd.f32 0.0, %v6374
      %v6376 = vpop.f32.mrb[0].mxu0
      %6377 = vmatprep.mubr.f32.mxu0 0.0
      %6378 = vmatmul.mubr.f32.gmra.mrb[0].mxu0 %v6284
      %v6379 = vpop.f32.mrb[0].mxu0
      %v6380 = vadd.f32 0.0, %v6379
      %v6381 = vpop.f32.mrb[0].mxu0
      %6382 = vmatprep.mubr.f32.mxu0 0.0
      %6383 = vmatmul.mubr.f32.gmra.mrb[0].mxu0 %v6287
      %v6384 = vpop.f32.mrb[0].mxu0
      %v6385 = vadd.f32 0.0, %v6384
      %v6386 = vpop.f32.mrb[0].mxu0
      %6387 = vmatprep.mubr.f32.mxu0 0.0
      %6388 = vmatmul.mubr.f32.gmra.mrb[0].mxu0 %v6290
      %v6389 = vpop.f32.mrb[0].mxu0
      %v6390 = vadd.f32 0.0, %v6389
      %v6391 = vpop.f32.mrb[0].mxu0
      %6392 = vmatprep.mubr.f32.mxu0 0.0
      %6393 = vmatmul.mubr.f32.gmra.mrb[0].mxu0 %v6293
      %v6394 = vpop.f32.mrb[0].mxu0
      %v6395 = vadd.f32 0.0, %v6394
      %v6396 = vpop.f32.mrb[0].mxu0
      %6397 = vmatprep.mubr.f32.mxu0 0.0
      %6398 = vmatmul.mubr.f32.gmra.mrb[0].mxu0 %v6296
      %v6399 = vpop.f32.mrb[0].mxu0
      %v6400 = vadd.f32 0.0, %v6399
      %v6401 = vpop.f32.mrb[0].mxu0
      %6402 = vdwg.mxu0
      %6403 = vrot.lane.b32.xlu0 %v1048, 48
      %v6404 = vpop.permute.xlu0 %6403
      %6405 = vrot.lane.b32.xlu0 %v1053, 48
      %v6406 = vpop.permute.xlu0 %6405
      %6407 = vrot.lane.b32.xlu0 %v1058, 48
      %v6408 = vpop.permute.xlu0 %6407
      %6409 = vrot.lane.b32.xlu0 %v1063, 48
      %v6410 = vpop.permute.xlu0 %6409
      %6411 = vrot.lane.b32.xlu0 %v1068, 48
      %v6412 = vpop.permute.xlu0 %6411
      %6413 = vrot.lane.b32.xlu0 %v1073, 48
      %v6414 = vpop.permute.xlu0 %6413
      %6415 = vrot.lane.b32.xlu0 %v1078, 48
      %v6416 = vpop.permute.xlu0 %6415
      %6417 = vrot.lane.b32.xlu0 %v1083, 48
      %v6418 = vpop.permute.xlu0 %6417
      %v6428 = vsel %vm1907, %v6226, 0
      %v6431 = vsel %vm1907, %v6227, 0
      %v6434 = vsel %vm1907, %v6228, 0
      %v6437 = vsel %vm1907, %v6229, 0
      %v6440 = vsel %vm1907, %v6230, 0
      %v6443 = vsel %vm1907, %v6231, 0
      %v6446 = vsel %vm1907, %v6232, 0
      %v6449 = vsel %vm1907, %v6233, 0
      %6451 = vmatprep.subr.mxu0 0.0
      %6452 = vmatpush1.msra.mxu0 %v6404
      %6453 = vmatprep.subr.mxu0 0.0
      %6454 = vmatpush1.msra.mxu0 %v6406
      %6455 = vmatprep.subr.mxu0 0.0
      %6456 = vmatpush1.msra.mxu0 %v6408
      %6457 = vmatprep.subr.mxu0 0.0
      %6458 = vmatpush1.msra.mxu0 %v6410
      %6459 = vmatprep.subr.mxu0 0.0
      %6460 = vmatpush1.msra.mxu0 %v6412
      %6461 = vmatprep.subr.mxu0 0.0
      %6462 = vmatpush1.msra.mxu0 %v6414
      %6463 = vmatprep.subr.mxu0 0.0
      %6464 = vmatpush1.msra.mxu0 %v6416
      %6465 = vmatprep.subr.mxu0 0.0
      %6466 = vmatpush1.msra.mxu0 %v6418
      %6467 = vmatprep.subr.mxu0 0.0
      %6468 = vmatpush1.msra.mxu0 0.0
      %6469 = vmatprep.subr.mxu0 0.0
      %6470 = vmatpush1.msra.mxu0 0.0
      %6471 = vmatprep.subr.mxu0 0.0
      %6472 = vmatpush1.msra.mxu0 0.0
      %6473 = vmatprep.subr.mxu0 0.0
      %6474 = vmatpush1.msra.mxu0 0.0
      %6475 = vmatprep.subr.mxu0 0.0
      %6476 = vmatpush1.msra.mxu0 0.0
      %6477 = vmatprep.subr.mxu0 0.0
      %6478 = vmatpush1.msra.mxu0 0.0
      %6479 = vmatprep.subr.mxu0 0.0
      %6480 = vmatpush1.msra.mxu0 0.0
      %6481 = vmatprep.subr.mxu0 0.0
      %6482 = vmatpush1.msra.mxu0 0.0
      %6483 = vmatprep.subr.mxu0 0.0
      %6484 = vmatpush1.msra.mxu0 0.0
      %6485 = vmatprep.subr.mxu0 0.0
      %6486 = vmatpush1.msra.mxu0 0.0
      %6487 = vmatprep.subr.mxu0 0.0
      %6488 = vmatpush1.msra.mxu0 0.0
      %6489 = vmatprep.subr.mxu0 0.0
      %6490 = vmatpush1.msra.mxu0 0.0
      %6491 = vmatprep.subr.mxu0 0.0
      %6492 = vmatpush1.msra.mxu0 0.0
      %6493 = vmatprep.subr.mxu0 0.0
      %6494 = vmatpush1.msra.mxu0 0.0
      %6495 = vmatprep.subr.mxu0 0.0
      %6496 = vmatpush1.msra.mxu0 0.0
      %6497 = vmatprep.subr.mxu0 0.0
      %6498 = vmatpush1.msra.mxu0 0.0
      %6499 = vmatprep.subr.mxu0 0.0
      %6500 = vmatpush1.msra.mxu0 0.0
      %6501 = vmatprep.subr.mxu0 0.0
      %6502 = vmatpush1.msra.mxu0 0.0
      %6503 = vmatprep.subr.mxu0 0.0
      %6504 = vmatpush1.msra.mxu0 0.0
      %6505 = vmatprep.subr.mxu0 0.0
      %6506 = vmatpush1.msra.mxu0 0.0
      %6507 = vmatprep.subr.mxu0 0.0
      %6508 = vmatpush1.msra.mxu0 0.0
      %6509 = vmatprep.subr.mxu0 0.0
      %6510 = vmatpush1.msra.mxu0 0.0
      %6511 = vmatprep.subr.mxu0 0.0
      %6512 = vmatpush1.msra.mxu0 0.0
      %6513 = vmatprep.subr.mxu0 0.0
      %6514 = vmatpush1.msra.mxu0 0.0
      %6515 = vmatprep.mubr.f32.mxu0 0.0
      %6516 = vmatmul.mubr.f32.gmra.mrb[0].mxu0 %v6428
      %v6517 = vpop.f32.mrb[0].mxu0
      %v6518 = vadd.f32 0.0, %v6517
      %v6519 = vpop.f32.mrb[0].mxu0
      %6520 = vmatprep.mubr.f32.mxu0 0.0
      %6521 = vmatmul.mubr.f32.gmra.mrb[0].mxu0 %v6431
      %v6522 = vpop.f32.mrb[0].mxu0
      %v6523 = vadd.f32 0.0, %v6522
      %v6524 = vpop.f32.mrb[0].mxu0
      %6525 = vmatprep.mubr.f32.mxu0 0.0
      %6526 = vmatmul.mubr.f32.gmra.mrb[0].mxu0 %v6434
      %v6527 = vpop.f32.mrb[0].mxu0
      %v6528 = vadd.f32 0.0, %v6527
      %v6529 = vpop.f32.mrb[0].mxu0
      %6530 = vmatprep.mubr.f32.mxu0 0.0
      %6531 = vmatmul.mubr.f32.gmra.mrb[0].mxu0 %v6437
      %v6532 = vpop.f32.mrb[0].mxu0
      %v6533 = vadd.f32 0.0, %v6532
      %v6534 = vpop.f32.mrb[0].mxu0
      %6535 = vmatprep.mubr.f32.mxu0 0.0
      %6536 = vmatmul.mubr.f32.gmra.mrb[0].mxu0 %v6440
      %v6537 = vpop.f32.mrb[0].mxu0
      %v6538 = vadd.f32 0.0, %v6537
      %v6539 = vpop.f32.mrb[0].mxu0
      %6540 = vmatprep.mubr.f32.mxu0 0.0
      %6541 = vmatmul.mubr.f32.gmra.mrb[0].mxu0 %v6443
      %v6542 = vpop.f32.mrb[0].mxu0
      %v6543 = vadd.f32 0.0, %v6542
      %v6544 = vpop.f32.mrb[0].mxu0
      %6545 = vmatprep.mubr.f32.mxu0 0.0
      %6546 = vmatmul.mubr.f32.gmra.mrb[0].mxu0 %v6446
      %v6547 = vpop.f32.mrb[0].mxu0
      %v6548 = vadd.f32 0.0, %v6547
      %v6549 = vpop.f32.mrb[0].mxu0
      %6550 = vmatprep.mubr.f32.mxu0 0.0
      %6551 = vmatmul.mubr.f32.gmra.mrb[0].mxu0 %v6449
      %v6552 = vpop.f32.mrb[0].mxu0
      %v6553 = vadd.f32 0.0, %v6552
      %v6554 = vpop.f32.mrb[0].mxu0
      %6555 = vdwg.mxu0
      %6556 = vrot.lane.b32.xlu0 %v1088, 48
      %v6557 = vpop.permute.xlu0 %6556
      %6558 = vrot.lane.b32.xlu0 %v1093, 48
      %v6559 = vpop.permute.xlu0 %6558
      %6560 = vrot.lane.b32.xlu0 %v1098, 48
      %v6561 = vpop.permute.xlu0 %6560
      %6562 = vrot.lane.b32.xlu0 %v1103, 48
      %v6563 = vpop.permute.xlu0 %6562
      %6564 = vrot.lane.b32.xlu0 %v1108, 48
      %v6565 = vpop.permute.xlu0 %6564
      %6566 = vrot.lane.b32.xlu0 %v1113, 48
      %v6567 = vpop.permute.xlu0 %6566
      %6568 = vrot.lane.b32.xlu0 %v1118, 48
      %v6569 = vpop.permute.xlu0 %6568
      %6570 = vrot.lane.b32.xlu0 %v1123, 48
      %v6571 = vpop.permute.xlu0 %6570
      %v6581 = vsel %vm1907, %v6234, 0
      %v6584 = vsel %vm1907, %v6235, 0
      %v6587 = vsel %vm1907, %v6236, 0
      %v6590 = vsel %vm1907, %v6237, 0
      %v6593 = vsel %vm1907, %v6238, 0
      %v6596 = vsel %vm1907, %v6239, 0
      %v6599 = vsel %vm1907, %v6240, 0
      %v6602 = vsel %vm1907, %v6241, 0
      %6604 = vmatprep.subr.mxu0 0.0
      %6605 = vmatpush1.msra.mxu0 %v6557
      %6606 = vmatprep.subr.mxu0 0.0
      %6607 = vmatpush1.msra.mxu0 %v6559
      %6608 = vmatprep.subr.mxu0 0.0
      %6609 = vmatpush1.msra.mxu0 %v6561
      %6610 = vmatprep.subr.mxu0 0.0
      %6611 = vmatpush1.msra.mxu0 %v6563
      %6612 = vmatprep.subr.mxu0 0.0
      %6613 = vmatpush1.msra.mxu0 %v6565
      %6614 = vmatprep.subr.mxu0 0.0
      %6615 = vmatpush1.msra.mxu0 %v6567
      %6616 = vmatprep.subr.mxu0 0.0
      %6617 = vmatpush1.msra.mxu0 %v6569
      %6618 = vmatprep.subr.mxu0 0.0
      %6619 = vmatpush1.msra.mxu0 %v6571
      %6620 = vmatprep.subr.mxu0 0.0
      %6621 = vmatpush1.msra.mxu0 0.0
      %6622 = vmatprep.subr.mxu0 0.0
      %6623 = vmatpush1.msra.mxu0 0.0
      %6624 = vmatprep.subr.mxu0 0.0
      %6625 = vmatpush1.msra.mxu0 0.0
      %6626 = vmatprep.subr.mxu0 0.0
      %6627 = vmatpush1.msra.mxu0 0.0
      %6628 = vmatprep.subr.mxu0 0.0
      %6629 = vmatpush1.msra.mxu0 0.0
      %6630 = vmatprep.subr.mxu0 0.0
      %6631 = vmatpush1.msra.mxu0 0.0
      %6632 = vmatprep.subr.mxu0 0.0
      %6633 = vmatpush1.msra.mxu0 0.0
      %6634 = vmatprep.subr.mxu0 0.0
      %6635 = vmatpush1.msra.mxu0 0.0
      %6636 = vmatprep.subr.mxu0 0.0
      %6637 = vmatpush1.msra.mxu0 0.0
      %6638 = vmatprep.subr.mxu0 0.0
      %6639 = vmatpush1.msra.mxu0 0.0
      %6640 = vmatprep.subr.mxu0 0.0
      %6641 = vmatpush1.msra.mxu0 0.0
      %6642 = vmatprep.subr.mxu0 0.0
      %6643 = vmatpush1.msra.mxu0 0.0
      %6644 = vmatprep.subr.mxu0 0.0
      %6645 = vmatpush1.msra.mxu0 0.0
      %6646 = vmatprep.subr.mxu0 0.0
      %6647 = vmatpush1.msra.mxu0 0.0
      %6648 = vmatprep.subr.mxu0 0.0
      %6649 = vmatpush1.msra.mxu0 0.0
      %6650 = vmatprep.subr.mxu0 0.0
      %6651 = vmatpush1.msra.mxu0 0.0
      %6652 = vmatprep.subr.mxu0 0.0
      %6653 = vmatpush1.msra.mxu0 0.0
      %6654 = vmatprep.subr.mxu0 0.0
      %6655 = vmatpush1.msra.mxu0 0.0
      %6656 = vmatprep.subr.mxu0 0.0
      %6657 = vmatpush1.msra.mxu0 0.0
      %6658 = vmatprep.subr.mxu0 0.0
      %6659 = vmatpush1.msra.mxu0 0.0
      %6660 = vmatprep.subr.mxu0 0.0
      %6661 = vmatpush1.msra.mxu0 0.0
      %6662 = vmatprep.subr.mxu0 0.0
      %6663 = vmatpush1.msra.mxu0 0.0
      %6664 = vmatprep.subr.mxu0 0.0
      %6665 = vmatpush1.msra.mxu0 0.0
      %6666 = vmatprep.subr.mxu0 0.0
      %6667 = vmatpush1.msra.mxu0 0.0
      %6668 = vmatprep.mubr.f32.mxu0 0.0
      %6669 = vmatmul.mubr.f32.gmra.mrb[0].mxu0 %v6581
      %v6670 = vpop.f32.mrb[0].mxu0
      %v6671 = vadd.f32 0.0, %v6670
      %v6672 = vpop.f32.mrb[0].mxu0
      %6673 = vmatprep.mubr.f32.mxu0 0.0
      %6674 = vmatmul.mubr.f32.gmra.mrb[0].mxu0 %v6584
      %v6675 = vpop.f32.mrb[0].mxu0
      %v6676 = vadd.f32 0.0, %v6675
      %v6677 = vpop.f32.mrb[0].mxu0
      %6678 = vmatprep.mubr.f32.mxu0 0.0
      %6679 = vmatmul.mubr.f32.gmra.mrb[0].mxu0 %v6587
      %v6680 = vpop.f32.mrb[0].mxu0
      %v6681 = vadd.f32 0.0, %v6680
      %v6682 = vpop.f32.mrb[0].mxu0
      %6683 = vmatprep.mubr.f32.mxu0 0.0
      %6684 = vmatmul.mubr.f32.gmra.mrb[0].mxu0 %v6590
      %v6685 = vpop.f32.mrb[0].mxu0
      %v6686 = vadd.f32 0.0, %v6685
      %v6687 = vpop.f32.mrb[0].mxu0
      %6688 = vmatprep.mubr.f32.mxu0 0.0
      %6689 = vmatmul.mubr.f32.gmra.mrb[0].mxu0 %v6593
      %v6690 = vpop.f32.mrb[0].mxu0
      %v6691 = vadd.f32 0.0, %v6690
      %v6692 = vpop.f32.mrb[0].mxu0
      %6693 = vmatprep.mubr.f32.mxu0 0.0
      %6694 = vmatmul.mubr.f32.gmra.mrb[0].mxu0 %v6596
      %v6695 = vpop.f32.mrb[0].mxu0
      %v6696 = vadd.f32 0.0, %v6695
      %v6697 = vpop.f32.mrb[0].mxu0
      %6698 = vmatprep.mubr.f32.mxu0 0.0
      %6699 = vmatmul.mubr.f32.gmra.mrb[0].mxu0 %v6599
      %v6700 = vpop.f32.mrb[0].mxu0
      %v6701 = vadd.f32 0.0, %v6700
      %v6702 = vpop.f32.mrb[0].mxu0
      %6703 = vmatprep.mubr.f32.mxu0 0.0
      %6704 = vmatmul.mubr.f32.gmra.mrb[0].mxu0 %v6602
      %v6705 = vpop.f32.mrb[0].mxu0
      %v6706 = vadd.f32 0.0, %v6705
      %v6707 = vpop.f32.mrb[0].mxu0
      %6708 = vdwg.mxu0
      %6709 = vrot.lane.b32.xlu0 %v1128, 48
      %v6710 = vpop.permute.xlu0 %6709
      %6711 = vrot.lane.b32.xlu0 %v1133, 48
      %v6712 = vpop.permute.xlu0 %6711
      %6713 = vrot.lane.b32.xlu0 %v1138, 48
      %v6714 = vpop.permute.xlu0 %6713
      %6715 = vrot.lane.b32.xlu0 %v1143, 48
      %v6716 = vpop.permute.xlu0 %6715
      %6717 = vrot.lane.b32.xlu0 %v1148, 48
      %v6718 = vpop.permute.xlu0 %6717
      %6719 = vrot.lane.b32.xlu0 %v1153, 48
      %v6720 = vpop.permute.xlu0 %6719
      %6721 = vrot.lane.b32.xlu0 %v1158, 48
      %v6722 = vpop.permute.xlu0 %6721
      %6723 = vrot.lane.b32.xlu0 %v1163, 48
      %v6724 = vpop.permute.xlu0 %6723
      %v6734 = vsel %vm1907, %v6242, 0
      %v6737 = vsel %vm1907, %v6243, 0
      %v6740 = vsel %vm1907, %v6244, 0
      %v6743 = vsel %vm1907, %v6245, 0
      %v6746 = vsel %vm1907, %v6246, 0
      %v6749 = vsel %vm1907, %v6247, 0
      %v6752 = vsel %vm1907, %v6248, 0
      %v6755 = vsel %vm1907, %v6249, 0
      %6757 = vmatprep.subr.mxu0 0.0
      %6758 = vmatpush1.msra.mxu0 %v6710
      %6759 = vmatprep.subr.mxu0 0.0
      %6760 = vmatpush1.msra.mxu0 %v6712
      %6761 = vmatprep.subr.mxu0 0.0
      %6762 = vmatpush1.msra.mxu0 %v6714
      %6763 = vmatprep.subr.mxu0 0.0
      %6764 = vmatpush1.msra.mxu0 %v6716
      %6765 = vmatprep.subr.mxu0 0.0
      %6766 = vmatpush1.msra.mxu0 %v6718
      %6767 = vmatprep.subr.mxu0 0.0
      %6768 = vmatpush1.msra.mxu0 %v6720
      %6769 = vmatprep.subr.mxu0 0.0
      %6770 = vmatpush1.msra.mxu0 %v6722
      %6771 = vmatprep.subr.mxu0 0.0
      %6772 = vmatpush1.msra.mxu0 %v6724
      %6773 = vmatprep.subr.mxu0 0.0
      %6774 = vmatpush1.msra.mxu0 0.0
      %6775 = vmatprep.subr.mxu0 0.0
      %6776 = vmatpush1.msra.mxu0 0.0
      %6777 = vmatprep.subr.mxu0 0.0
      %6778 = vmatpush1.msra.mxu0 0.0
      %6779 = vmatprep.subr.mxu0 0.0
      %6780 = vmatpush1.msra.mxu0 0.0
      %6781 = vmatprep.subr.mxu0 0.0
      %6782 = vmatpush1.msra.mxu0 0.0
      %6783 = vmatprep.subr.mxu0 0.0
      %6784 = vmatpush1.msra.mxu0 0.0
      %6785 = vmatprep.subr.mxu0 0.0
      %6786 = vmatpush1.msra.mxu0 0.0
      %6787 = vmatprep.subr.mxu0 0.0
      %6788 = vmatpush1.msra.mxu0 0.0
      %6789 = vmatprep.subr.mxu0 0.0
      %6790 = vmatpush1.msra.mxu0 0.0
      %6791 = vmatprep.subr.mxu0 0.0
      %6792 = vmatpush1.msra.mxu0 0.0
      %6793 = vmatprep.subr.mxu0 0.0
      %6794 = vmatpush1.msra.mxu0 0.0
      %6795 = vmatprep.subr.mxu0 0.0
      %6796 = vmatpush1.msra.mxu0 0.0
      %6797 = vmatprep.subr.mxu0 0.0
      %6798 = vmatpush1.msra.mxu0 0.0
      %6799 = vmatprep.subr.mxu0 0.0
      %6800 = vmatpush1.msra.mxu0 0.0
      %6801 = vmatprep.subr.mxu0 0.0
      %6802 = vmatpush1.msra.mxu0 0.0
      %6803 = vmatprep.subr.mxu0 0.0
      %6804 = vmatpush1.msra.mxu0 0.0
      %6805 = vmatprep.subr.mxu0 0.0
      %6806 = vmatpush1.msra.mxu0 0.0
      %6807 = vmatprep.subr.mxu0 0.0
      %6808 = vmatpush1.msra.mxu0 0.0
      %6809 = vmatprep.subr.mxu0 0.0
      %6810 = vmatpush1.msra.mxu0 0.0
      %6811 = vmatprep.subr.mxu0 0.0
      %6812 = vmatpush1.msra.mxu0 0.0
      %6813 = vmatprep.subr.mxu0 0.0
      %6814 = vmatpush1.msra.mxu0 0.0
      %6815 = vmatprep.subr.mxu0 0.0
      %6816 = vmatpush1.msra.mxu0 0.0
      %6817 = vmatprep.subr.mxu0 0.0
      %6818 = vmatpush1.msra.mxu0 0.0
      %6819 = vmatprep.subr.mxu0 0.0
      %6820 = vmatpush1.msra.mxu0 0.0
      %6821 = vmatprep.mubr.f32.mxu0 0.0
      %6822 = vmatmul.mubr.f32.gmra.mrb[0].mxu0 %v6734
      %v6823 = vpop.f32.mrb[0].mxu0
      %v6824 = vadd.f32 0.0, %v6823
      %v6825 = vpop.f32.mrb[0].mxu0
      %6826 = vmatprep.mubr.f32.mxu0 0.0
      %6827 = vmatmul.mubr.f32.gmra.mrb[0].mxu0 %v6737
      %v6828 = vpop.f32.mrb[0].mxu0
      %v6829 = vadd.f32 0.0, %v6828
      %v6830 = vpop.f32.mrb[0].mxu0
      %6831 = vmatprep.mubr.f32.mxu0 0.0
      %6832 = vmatmul.mubr.f32.gmra.mrb[0].mxu0 %v6740
      %v6833 = vpop.f32.mrb[0].mxu0
      %v6834 = vadd.f32 0.0, %v6833
      %v6835 = vpop.f32.mrb[0].mxu0
      %6836 = vmatprep.mubr.f32.mxu0 0.0
      %6837 = vmatmul.mubr.f32.gmra.mrb[0].mxu0 %v6743
      %v6838 = vpop.f32.mrb[0].mxu0
      %v6839 = vadd.f32 0.0, %v6838
      %v6840 = vpop.f32.mrb[0].mxu0
      %6841 = vmatprep.mubr.f32.mxu0 0.0
      %6842 = vmatmul.mubr.f32.gmra.mrb[0].mxu0 %v6746
      %v6843 = vpop.f32.mrb[0].mxu0
      %v6844 = vadd.f32 0.0, %v6843
      %v6845 = vpop.f32.mrb[0].mxu0
      %6846 = vmatprep.mubr.f32.mxu0 0.0
      %6847 = vmatmul.mubr.f32.gmra.mrb[0].mxu0 %v6749
      %v6848 = vpop.f32.mrb[0].mxu0
      %v6849 = vadd.f32 0.0, %v6848
      %v6850 = vpop.f32.mrb[0].mxu0
      %6851 = vmatprep.mubr.f32.mxu0 0.0
      %6852 = vmatmul.mubr.f32.gmra.mrb[0].mxu0 %v6752
      %v6853 = vpop.f32.mrb[0].mxu0
      %v6854 = vadd.f32 0.0, %v6853
      %v6855 = vpop.f32.mrb[0].mxu0
      %6856 = vmatprep.mubr.f32.mxu0 0.0
      %6857 = vmatmul.mubr.f32.gmra.mrb[0].mxu0 %v6755
      %v6858 = vpop.f32.mrb[0].mxu0
      %v6859 = vadd.f32 0.0, %v6858
      %v6860 = vpop.f32.mrb[0].mxu0
      %6861 = vdwg.mxu0
      %v6862 = vld [vmem:[%s3 + $0x10] sm:$0xff]
      %v6864 = vsel %vm1254, %v6365, 0
      %v6867 = vsel %vm1254, %v6370, 0
      %v6870 = vsel %vm1254, %v6375, 0
      %v6873 = vsel %vm1254, %v6380, 0
      %v6876 = vsel %vm1254, %v6385, 0
      %v6879 = vsel %vm1254, %v6390, 0
      %v6882 = vsel %vm1254, %v6395, 0
      %v6885 = vsel %vm1254, %v6400, 0
      %v6888 = vsel %vm1254, %v6518, 0
      %v6891 = vsel %vm1254, %v6523, 0
      %v6894 = vsel %vm1254, %v6528, 0
      %v6897 = vsel %vm1254, %v6533, 0
      %v6900 = vsel %vm1254, %v6538, 0
      %v6903 = vsel %vm1254, %v6543, 0
      %v6906 = vsel %vm1254, %v6548, 0
      %v6909 = vsel %vm1254, %v6553, 0
      %v6912 = vsel %vm1254, %v6671, 0
      %v6915 = vsel %vm1254, %v6676, 0
      %v6918 = vsel %vm1254, %v6681, 0
      %v6921 = vsel %vm1254, %v6686, 0
      %v6924 = vsel %vm1254, %v6691, 0
      %v6927 = vsel %vm1254, %v6696, 0
      %v6930 = vsel %vm1254, %v6701, 0
      %v6933 = vsel %vm1254, %v6706, 0
      %v6936 = vsel %vm1254, %v6824, 0
      %v6939 = vsel %vm1254, %v6829, 0
      %v6942 = vsel %vm1254, %v6834, 0
      %v6945 = vsel %vm1254, %v6839, 0
      %v6948 = vsel %vm1254, %v6844, 0
      %v6951 = vsel %vm1254, %v6849, 0
      %v6954 = vsel %vm1254, %v6854, 0
      %v6957 = vsel %vm1254, %v6859, 0
      %6959 = vmatprep.subr.mxu0 0.0
      %6960 = vmatpush1.msra.mxu0 %v6862
      %6961 = vmatprep.subr.mxu0 0.0
      %6962 = vmatpush1.msra.mxu0 0.0
      %6963 = vmatprep.subr.mxu0 0.0
      %6964 = vmatpush1.msra.mxu0 0.0
      %6965 = vmatprep.subr.mxu0 0.0
      %6966 = vmatpush1.msra.mxu0 0.0
      %6967 = vmatprep.subr.mxu0 0.0
      %6968 = vmatpush1.msra.mxu0 0.0
      %6969 = vmatprep.subr.mxu0 0.0
      %6970 = vmatpush1.msra.mxu0 0.0
      %6971 = vmatprep.subr.mxu0 0.0
      %6972 = vmatpush1.msra.mxu0 0.0
      %6973 = vmatprep.subr.mxu0 0.0
      %6974 = vmatpush1.msra.mxu0 0.0
      %6975 = vmatprep.subr.mxu0 0.0
      %6976 = vmatpush1.msra.mxu0 0.0
      %6977 = vmatprep.subr.mxu0 0.0
      %6978 = vmatpush1.msra.mxu0 0.0
      %6979 = vmatprep.subr.mxu0 0.0
      %6980 = vmatpush1.msra.mxu0 0.0
      %6981 = vmatprep.subr.mxu0 0.0
      %6982 = vmatpush1.msra.mxu0 0.0
      %6983 = vmatprep.subr.mxu0 0.0
      %6984 = vmatpush1.msra.mxu0 0.0
      %6985 = vmatprep.subr.mxu0 0.0
      %6986 = vmatpush1.msra.mxu0 0.0
      %6987 = vmatprep.subr.mxu0 0.0
      %6988 = vmatpush1.msra.mxu0 0.0
      %6989 = vmatprep.subr.mxu0 0.0
      %6990 = vmatpush1.msra.mxu0 0.0
      %6991 = vmatprep.subr.mxu0 0.0
      %6992 = vmatpush1.msra.mxu0 0.0
      %6993 = vmatprep.subr.mxu0 0.0
      %6994 = vmatpush1.msra.mxu0 0.0
      %6995 = vmatprep.subr.mxu0 0.0
      %6996 = vmatpush1.msra.mxu0 0.0
      %6997 = vmatprep.subr.mxu0 0.0
      %6998 = vmatpush1.msra.mxu0 0.0
      %6999 = vmatprep.subr.mxu0 0.0
      %7000 = vmatpush1.msra.mxu0 0.0
      %7001 = vmatprep.subr.mxu0 0.0
      %7002 = vmatpush1.msra.mxu0 0.0
      %7003 = vmatprep.subr.mxu0 0.0
      %7004 = vmatpush1.msra.mxu0 0.0
      %7005 = vmatprep.subr.mxu0 0.0
      %7006 = vmatpush1.msra.mxu0 0.0
      %7007 = vmatprep.subr.mxu0 0.0
      %7008 = vmatpush1.msra.mxu0 0.0
      %7009 = vmatprep.subr.mxu0 0.0
      %7010 = vmatpush1.msra.mxu0 0.0
      %7011 = vmatprep.subr.mxu0 0.0
      %7012 = vmatpush1.msra.mxu0 0.0
      %7013 = vmatprep.subr.mxu0 0.0
      %7014 = vmatpush1.msra.mxu0 0.0
      %7015 = vmatprep.subr.mxu0 0.0
      %7016 = vmatpush1.msra.mxu0 0.0
      %7017 = vmatprep.subr.mxu0 0.0
      %7018 = vmatpush1.msra.mxu0 0.0
      %7019 = vmatprep.subr.mxu0 0.0
      %7020 = vmatpush1.msra.mxu0 0.0
      %7021 = vmatprep.subr.mxu0 0.0
      %7022 = vmatpush1.msra.mxu0 0.0
      %7023 = vmatprep.mubr.f32.mxu0 0.0
      %7024 = vmatmul.mubr.f32.gmra.mrb[0].mxu0 %v6864
      %v7025 = vpop.f32.mrb[0].mxu0
      %v7026 = vadd.f32 0.0, %v7025
      %v7027 = vpop.f32.mrb[0].mxu0
      %7028 = vmatprep.mubr.f32.mxu0 0.0
      %7029 = vmatmul.mubr.f32.gmra.mrb[0].mxu0 %v6867
      %v7030 = vpop.f32.mrb[0].mxu0
      %v7031 = vadd.f32 0.0, %v7030
      %v7032 = vpop.f32.mrb[0].mxu0
      %7033 = vmatprep.mubr.f32.mxu0 0.0
      %7034 = vmatmul.mubr.f32.gmra.mrb[0].mxu0 %v6870
      %v7035 = vpop.f32.mrb[0].mxu0
      %v7036 = vadd.f32 0.0, %v7035
      %v7037 = vpop.f32.mrb[0].mxu0
      %7038 = vmatprep.mubr.f32.mxu0 0.0
      %7039 = vmatmul.mubr.f32.gmra.mrb[0].mxu0 %v6873
      %v7040 = vpop.f32.mrb[0].mxu0
      %v7041 = vadd.f32 0.0, %v7040
      %v7042 = vpop.f32.mrb[0].mxu0
      %7043 = vmatprep.mubr.f32.mxu0 0.0
      %7044 = vmatmul.mubr.f32.gmra.mrb[0].mxu0 %v6876
      %v7045 = vpop.f32.mrb[0].mxu0
      %v7046 = vadd.f32 0.0, %v7045
      %v7047 = vpop.f32.mrb[0].mxu0
      %7048 = vmatprep.mubr.f32.mxu0 0.0
      %7049 = vmatmul.mubr.f32.gmra.mrb[0].mxu0 %v6879
      %v7050 = vpop.f32.mrb[0].mxu0
      %v7051 = vadd.f32 0.0, %v7050
      %v7052 = vpop.f32.mrb[0].mxu0
      %7053 = vmatprep.mubr.f32.mxu0 0.0
      %7054 = vmatmul.mubr.f32.gmra.mrb[0].mxu0 %v6882
      %v7055 = vpop.f32.mrb[0].mxu0
      %v7056 = vadd.f32 0.0, %v7055
      %v7057 = vpop.f32.mrb[0].mxu0
      %7058 = vmatprep.mubr.f32.mxu0 0.0
      %7059 = vmatmul.mubr.f32.gmra.mrb[0].mxu0 %v6885
      %v7060 = vpop.f32.mrb[0].mxu0
      %v7061 = vadd.f32 0.0, %v7060
      %v7062 = vpop.f32.mrb[0].mxu0
      %7063 = vmatprep.mubr.f32.mxu0 0.0
      %7064 = vmatmul.mubr.f32.gmra.mrb[0].mxu0 %v6888
      %v7065 = vpop.f32.mrb[0].mxu0
      %v7066 = vadd.f32 0.0, %v7065
      %v7067 = vpop.f32.mrb[0].mxu0
      %7068 = vmatprep.mubr.f32.mxu0 0.0
      %7069 = vmatmul.mubr.f32.gmra.mrb[0].mxu0 %v6891
      %v7070 = vpop.f32.mrb[0].mxu0
      %v7071 = vadd.f32 0.0, %v7070
      %v7072 = vpop.f32.mrb[0].mxu0
      %7073 = vmatprep.mubr.f32.mxu0 0.0
      %7074 = vmatmul.mubr.f32.gmra.mrb[0].mxu0 %v6894
      %v7075 = vpop.f32.mrb[0].mxu0
      %v7076 = vadd.f32 0.0, %v7075
      %v7077 = vpop.f32.mrb[0].mxu0
      %7078 = vmatprep.mubr.f32.mxu0 0.0
      %7079 = vmatmul.mubr.f32.gmra.mrb[0].mxu0 %v6897
      %v7080 = vpop.f32.mrb[0].mxu0
      %v7081 = vadd.f32 0.0, %v7080
      %v7082 = vpop.f32.mrb[0].mxu0
      %7083 = vmatprep.mubr.f32.mxu0 0.0
      %7084 = vmatmul.mubr.f32.gmra.mrb[0].mxu0 %v6900
      %v7085 = vpop.f32.mrb[0].mxu0
      %v7086 = vadd.f32 0.0, %v7085
      %v7087 = vpop.f32.mrb[0].mxu0
      %7088 = vmatprep.mubr.f32.mxu0 0.0
      %7089 = vmatmul.mubr.f32.gmra.mrb[0].mxu0 %v6903
      %v7090 = vpop.f32.mrb[0].mxu0
      %v7091 = vadd.f32 0.0, %v7090
      %v7092 = vpop.f32.mrb[0].mxu0
      %7093 = vmatprep.mubr.f32.mxu0 0.0
      %7094 = vmatmul.mubr.f32.gmra.mrb[0].mxu0 %v6906
      %v7095 = vpop.f32.mrb[0].mxu0
      %v7096 = vadd.f32 0.0, %v7095
      %v7097 = vpop.f32.mrb[0].mxu0
      %7098 = vmatprep.mubr.f32.mxu0 0.0
      %7099 = vmatmul.mubr.f32.gmra.mrb[0].mxu0 %v6909
      %v7100 = vpop.f32.mrb[0].mxu0
      %v7101 = vadd.f32 0.0, %v7100
      %v7102 = vpop.f32.mrb[0].mxu0
      %7103 = vmatprep.mubr.f32.mxu0 0.0
      %7104 = vmatmul.mubr.f32.gmra.mrb[0].mxu0 %v6912
      %v7105 = vpop.f32.mrb[0].mxu0
      %v7106 = vadd.f32 0.0, %v7105
      %v7107 = vpop.f32.mrb[0].mxu0
      %7108 = vmatprep.mubr.f32.mxu0 0.0
      %7109 = vmatmul.mubr.f32.gmra.mrb[0].mxu0 %v6915
      %v7110 = vpop.f32.mrb[0].mxu0
      %v7111 = vadd.f32 0.0, %v7110
      %v7112 = vpop.f32.mrb[0].mxu0
      %7113 = vmatprep.mubr.f32.mxu0 0.0
      %7114 = vmatmul.mubr.f32.gmra.mrb[0].mxu0 %v6918
      %v7115 = vpop.f32.mrb[0].mxu0
      %v7116 = vadd.f32 0.0, %v7115
      %v7117 = vpop.f32.mrb[0].mxu0
      %7118 = vmatprep.mubr.f32.mxu0 0.0
      %7119 = vmatmul.mubr.f32.gmra.mrb[0].mxu0 %v6921
      %v7120 = vpop.f32.mrb[0].mxu0
      %v7121 = vadd.f32 0.0, %v7120
      %v7122 = vpop.f32.mrb[0].mxu0
      %7123 = vmatprep.mubr.f32.mxu0 0.0
      %7124 = vmatmul.mubr.f32.gmra.mrb[0].mxu0 %v6924
      %v7125 = vpop.f32.mrb[0].mxu0
      %v7126 = vadd.f32 0.0, %v7125
      %v7127 = vpop.f32.mrb[0].mxu0
      %7128 = vmatprep.mubr.f32.mxu0 0.0
      %7129 = vmatmul.mubr.f32.gmra.mrb[0].mxu0 %v6927
      %v7130 = vpop.f32.mrb[0].mxu0
      %v7131 = vadd.f32 0.0, %v7130
      %v7132 = vpop.f32.mrb[0].mxu0
      %7133 = vmatprep.mubr.f32.mxu0 0.0
      %7134 = vmatmul.mubr.f32.gmra.mrb[0].mxu0 %v6930
      %v7135 = vpop.f32.mrb[0].mxu0
      %v7136 = vadd.f32 0.0, %v7135
      %v7137 = vpop.f32.mrb[0].mxu0
      %7138 = vmatprep.mubr.f32.mxu0 0.0
      %7139 = vmatmul.mubr.f32.gmra.mrb[0].mxu0 %v6933
      %v7140 = vpop.f32.mrb[0].mxu0
      %v7141 = vadd.f32 0.0, %v7140
      %v7142 = vpop.f32.mrb[0].mxu0
      %7143 = vmatprep.mubr.f32.mxu0 0.0
      %7144 = vmatmul.mubr.f32.gmra.mrb[0].mxu0 %v6936
      %v7145 = vpop.f32.mrb[0].mxu0
      %v7146 = vadd.f32 0.0, %v7145
      %v7147 = vpop.f32.mrb[0].mxu0
      %7148 = vmatprep.mubr.f32.mxu0 0.0
      %7149 = vmatmul.mubr.f32.gmra.mrb[0].mxu0 %v6939
      %v7150 = vpop.f32.mrb[0].mxu0
      %v7151 = vadd.f32 0.0, %v7150
      %v7152 = vpop.f32.mrb[0].mxu0
      %7153 = vmatprep.mubr.f32.mxu0 0.0
      %7154 = vmatmul.mubr.f32.gmra.mrb[0].mxu0 %v6942
      %v7155 = vpop.f32.mrb[0].mxu0
      %v7156 = vadd.f32 0.0, %v7155
      %v7157 = vpop.f32.mrb[0].mxu0
      %7158 = vmatprep.mubr.f32.mxu0 0.0
      %7159 = vmatmul.mubr.f32.gmra.mrb[0].mxu0 %v6945
      %v7160 = vpop.f32.mrb[0].mxu0
      %v7161 = vadd.f32 0.0, %v7160
      %v7162 = vpop.f32.mrb[0].mxu0
      %7163 = vmatprep.mubr.f32.mxu0 0.0
      %7164 = vmatmul.mubr.f32.gmra.mrb[0].mxu0 %v6948
      %v7165 = vpop.f32.mrb[0].mxu0
      %v7166 = vadd.f32 0.0, %v7165
      %v7167 = vpop.f32.mrb[0].mxu0
      %7168 = vmatprep.mubr.f32.mxu0 0.0
      %7169 = vmatmul.mubr.f32.gmra.mrb[0].mxu0 %v6951
      %v7170 = vpop.f32.mrb[0].mxu0
      %v7171 = vadd.f32 0.0, %v7170
      %v7172 = vpop.f32.mrb[0].mxu0
      %7173 = vmatprep.mubr.f32.mxu0 0.0
      %7174 = vmatmul.mubr.f32.gmra.mrb[0].mxu0 %v6954
      %v7175 = vpop.f32.mrb[0].mxu0
      %v7176 = vadd.f32 0.0, %v7175
      %v7177 = vpop.f32.mrb[0].mxu0
      %7178 = vmatprep.mubr.f32.mxu0 0.0
      %7179 = vmatmul.mubr.f32.gmra.mrb[0].mxu0 %v6957
      %v7180 = vpop.f32.mrb[0].mxu0
      %v7181 = vadd.f32 0.0, %v7180
      %v7182 = vpop.f32.mrb[0].mxu0
      %7183 = vdwg.mxu0
      %v7184 = vadd.f32 %v5031, %v7026
      %v7185 = vadd.f32 %v5036, %v7031
      %v7186 = vadd.f32 %v5041, %v7036
      %v7187 = vadd.f32 %v5046, %v7041
      %v7188 = vadd.f32 %v5051, %v7046
      %v7189 = vadd.f32 %v5056, %v7051
      %v7190 = vadd.f32 %v5061, %v7056
      %v7191 = vadd.f32 %v5066, %v7061
      %v7192 = vadd.f32 %v5071, %v7066
      %v7193 = vadd.f32 %v5076, %v7071
      %v7194 = vadd.f32 %v5081, %v7076
      %v7195 = vadd.f32 %v5086, %v7081
      %v7196 = vadd.f32 %v5091, %v7086
      %v7197 = vadd.f32 %v5096, %v7091
      %v7198 = vadd.f32 %v5101, %v7096
      %v7199 = vadd.f32 %v5106, %v7101
      %v7200 = vadd.f32 %v5111, %v7106
      %v7201 = vadd.f32 %v5116, %v7111
      %v7202 = vadd.f32 %v5121, %v7116
      %v7203 = vadd.f32 %v5126, %v7121
      %v7204 = vadd.f32 %v5131, %v7126
      %v7205 = vadd.f32 %v5136, %v7131
      %v7206 = vadd.f32 %v5141, %v7136
      %v7207 = vadd.f32 %v5146, %v7141
      %v7208 = vadd.f32 %v5151, %v7146
      %v7209 = vadd.f32 %v5156, %v7151
      %v7210 = vadd.f32 %v5161, %v7156
      %v7211 = vadd.f32 %v5166, %v7161
      %v7212 = vadd.f32 %v5171, %v7166
      %v7213 = vadd.f32 %v5176, %v7171
      %v7214 = vadd.f32 %v5181, %v7176
      %v7215 = vadd.f32 %v5186, %v7181
      %s7216 = scalar_lea.vmem %s7, 768
      %v7217 = vld [vmem:[%s7216] sm:$0xff]
      %v7218 = vld [vmem:[%s7216 + $0x8] sm:$0xff]
      %v7219 = vld [vmem:[%s7216 + $0x10] sm:$0xff]
      %v7220 = vld [vmem:[%s7216 + $0x18] sm:$0xff]
      %v7221 = vld [vmem:[%s7216 + $0x20] sm:$0xff]
      %v7222 = vld [vmem:[%s7216 + $0x28] sm:$0xff]
      %v7223 = vld [vmem:[%s7216 + $0x30] sm:$0xff]
      %v7224 = vld [vmem:[%s7216 + $0x38] sm:$0xff]
      %v7225 = vld [vmem:[%s7216 + $0x40] sm:$0xff]
      %v7226 = vld [vmem:[%s7216 + $0x48] sm:$0xff]
      %v7227 = vld [vmem:[%s7216 + $0x50] sm:$0xff]
      %v7228 = vld [vmem:[%s7216 + $0x58] sm:$0xff]
      %v7229 = vld [vmem:[%s7216 + $0x60] sm:$0xff]
      %v7230 = vld [vmem:[%s7216 + $0x68] sm:$0xff]
      %v7231 = vld [vmem:[%s7216 + $0x70] sm:$0xff]
      %v7232 = vld [vmem:[%s7216 + $0x78] sm:$0xff]
      %v7233 = vld [vmem:[%s7216 + $0x80] sm:$0xff]
      %v7234 = vld [vmem:[%s7216 + $0x88] sm:$0xff]
      %v7235 = vld [vmem:[%s7216 + $0x90] sm:$0xff]
      %v7236 = vld [vmem:[%s7216 + $0x98] sm:$0xff]
      %v7237 = vld [vmem:[%s7216 + $0xa0] sm:$0xff]
      %v7238 = vld [vmem:[%s7216 + $0xa8] sm:$0xff]
      %v7239 = vld [vmem:[%s7216 + $0xb0] sm:$0xff]
      %v7240 = vld [vmem:[%s7216 + $0xb8] sm:$0xff]
      %v7241 = vld [vmem:[%s7216 + $0xc0] sm:$0xff]
      %v7242 = vld [vmem:[%s7216 + $0xc8] sm:$0xff]
      %v7243 = vld [vmem:[%s7216 + $0xd0] sm:$0xff]
      %v7244 = vld [vmem:[%s7216 + $0xd8] sm:$0xff]
      %v7245 = vld [vmem:[%s7216 + $0xe0] sm:$0xff]
      %v7246 = vld [vmem:[%s7216 + $0xe8] sm:$0xff]
      %v7247 = vld [vmem:[%s7216 + $0xf0] sm:$0xff]
      %v7248 = vld [vmem:[%s7216 + $0xf8] sm:$0xff]
      %7249 = vrot.lane.b32.xlu0 %v1166, 104
      %v7250 = vpop.permute.xlu0 %7249
      %7251 = vrot.lane.b32.xlu0 %v1167, 104
      %v7252 = vpop.permute.xlu0 %7251
      %7253 = vrot.lane.b32.xlu0 %v1168, 104
      %v7254 = vpop.permute.xlu0 %7253
      %7255 = vrot.lane.b32.xlu0 %v1169, 104
      %v7256 = vpop.permute.xlu0 %7255
      %7257 = vrot.lane.b32.xlu0 %v1170, 104
      %v7258 = vpop.permute.xlu0 %7257
      %7259 = vrot.lane.b32.xlu0 %v1171, 104
      %v7260 = vpop.permute.xlu0 %7259
      %7261 = vrot.lane.b32.xlu0 %v1172, 104
      %v7262 = vpop.permute.xlu0 %7261
      %7263 = vrot.lane.b32.xlu0 %v1173, 104
      %v7264 = vpop.permute.xlu0 %7263
      %7265 = vrot.lane.b32.xlu0 %v1008, 72
      %v7266 = vpop.permute.xlu0 %7265
      %7267 = vrot.lane.b32.xlu0 %v1013, 72
      %v7268 = vpop.permute.xlu0 %7267
      %7269 = vrot.lane.b32.xlu0 %v1018, 72
      %v7270 = vpop.permute.xlu0 %7269
      %7271 = vrot.lane.b32.xlu0 %v1023, 72
      %v7272 = vpop.permute.xlu0 %7271
      %7273 = vrot.lane.b32.xlu0 %v1028, 72
      %v7274 = vpop.permute.xlu0 %7273
      %7275 = vrot.lane.b32.xlu0 %v1033, 72
      %v7276 = vpop.permute.xlu0 %7275
      %7277 = vrot.lane.b32.xlu0 %v1038, 72
      %v7278 = vpop.permute.xlu0 %7277
      %7279 = vrot.lane.b32.xlu0 %v1043, 72
      %v7280 = vpop.permute.xlu0 %7279
      %v7281 = vsel %vm1254, %v7250, 0
      %v7283 = vsel %vm1254, %v7252, 0
      %v7285 = vsel %vm1254, %v7254, 0
      %v7287 = vsel %vm1254, %v7256, 0
      %v7289 = vsel %vm1254, %v7258, 0
      %v7291 = vsel %vm1254, %v7260, 0
      %v7293 = vsel %vm1254, %v7262, 0
      %v7295 = vsel %vm1254, %v7264, 0
      %v7297 = vsel %vm1254, %v7266, 0
      %v7299 = vsel %vm1254, %v7268, 0
      %v7301 = vsel %vm1254, %v7270, 0
      %v7303 = vsel %vm1254, %v7272, 0
      %v7305 = vsel %vm1254, %v7274, 0
      %v7307 = vsel %vm1254, %v7276, 0
      %v7309 = vsel %vm1254, %v7278, 0
      %v7311 = vsel %vm1254, %v7280, 0
      %7313 = vmatprep.subr.mxu0 0.0
      %7314 = vmatpush1.xpose.msra.mxu0 %v7297
      %7315 = vmatprep.subr.mxu0 0.0
      %7316 = vmatpush1.xpose.msra.mxu0 %v7299
      %7317 = vmatprep.subr.mxu0 0.0
      %7318 = vmatpush1.xpose.msra.mxu0 %v7301
      %7319 = vmatprep.subr.mxu0 0.0
      %7320 = vmatpush1.xpose.msra.mxu0 %v7303
      %7321 = vmatprep.subr.mxu0 0.0
      %7322 = vmatpush1.xpose.msra.mxu0 %v7305
      %7323 = vmatprep.subr.mxu0 0.0
      %7324 = vmatpush1.xpose.msra.mxu0 %v7307
      %7325 = vmatprep.subr.mxu0 0.0
      %7326 = vmatpush1.xpose.msra.mxu0 %v7309
      %7327 = vmatprep.subr.mxu0 0.0
      %7328 = vmatpush1.xpose.msra.mxu0 %v7311
      %7329 = vmatprep.subr.mxu0 0.0
      %7330 = vmatpush1.xpose.msra.mxu0 0.0
      %7331 = vmatprep.subr.mxu0 0.0
      %7332 = vmatpush1.xpose.msra.mxu0 0.0
      %7333 = vmatprep.subr.mxu0 0.0
      %7334 = vmatpush1.xpose.msra.mxu0 0.0
      %7335 = vmatprep.subr.mxu0 0.0
      %7336 = vmatpush1.xpose.msra.mxu0 0.0
      %7337 = vmatprep.subr.mxu0 0.0
      %7338 = vmatpush1.xpose.msra.mxu0 0.0
      %7339 = vmatprep.subr.mxu0 0.0
      %7340 = vmatpush1.xpose.msra.mxu0 0.0
      %7341 = vmatprep.subr.mxu0 0.0
      %7342 = vmatpush1.xpose.msra.mxu0 0.0
      %7343 = vmatprep.subr.mxu0 0.0
      %7344 = vmatpush1.xpose.msra.mxu0 0.0
      %7345 = vmatprep.subr.mxu0 0.0
      %7346 = vmatpush1.xpose.msra.mxu0 0.0
      %7347 = vmatprep.subr.mxu0 0.0
      %7348 = vmatpush1.xpose.msra.mxu0 0.0
      %7349 = vmatprep.subr.mxu0 0.0
      %7350 = vmatpush1.xpose.msra.mxu0 0.0
      %7351 = vmatprep.subr.mxu0 0.0
      %7352 = vmatpush1.xpose.msra.mxu0 0.0
      %7353 = vmatprep.subr.mxu0 0.0
      %7354 = vmatpush1.xpose.msra.mxu0 0.0
      %7355 = vmatprep.subr.mxu0 0.0
      %7356 = vmatpush1.xpose.msra.mxu0 0.0
      %7357 = vmatprep.subr.mxu0 0.0
      %7358 = vmatpush1.xpose.msra.mxu0 0.0
      %7359 = vmatprep.subr.mxu0 0.0
      %7360 = vmatpush1.xpose.msra.mxu0 0.0
      %7361 = vmatprep.subr.mxu0 0.0
      %7362 = vmatpush1.xpose.msra.mxu0 0.0
      %7363 = vmatprep.subr.mxu0 0.0
      %7364 = vmatpush1.xpose.msra.mxu0 0.0
      %7365 = vmatprep.subr.mxu0 0.0
      %7366 = vmatpush1.xpose.msra.mxu0 0.0
      %7367 = vmatprep.subr.mxu0 0.0
      %7368 = vmatpush1.xpose.msra.mxu0 0.0
      %7369 = vmatprep.subr.mxu0 0.0
      %7370 = vmatpush1.xpose.msra.mxu0 0.0
      %7371 = vmatprep.subr.mxu0 0.0
      %7372 = vmatpush1.xpose.msra.mxu0 0.0
      %7373 = vmatprep.subr.mxu0 0.0
      %7374 = vmatpush1.xpose.msra.mxu0 0.0
      %7375 = vmatprep.subr.mxu0 0.0
      %7376 = vmatpush1.xpose.msra.mxu0 0.0
      %7377 = vmatprep.mubr.f32.mxu0 0.0
      %7378 = vmatmul.mubr.f32.gmra.mrb[0].mxu0 %v7281
      %v7379 = vpop.f32.mrb[0].mxu0
      %v7380 = vadd.f32 %v7217, %v7379
      %v7381 = vpop.f32.mrb[0].mxu0
      %7382 = vmatprep.mubr.f32.mxu0 0.0
      %7383 = vmatmul.mubr.f32.gmra.mrb[0].mxu0 %v7283
      %v7384 = vpop.f32.mrb[0].mxu0
      %v7385 = vadd.f32 %v7218, %v7384
      %v7386 = vpop.f32.mrb[0].mxu0
      %7387 = vmatprep.mubr.f32.mxu0 0.0
      %7388 = vmatmul.mubr.f32.gmra.mrb[0].mxu0 %v7285
      %v7389 = vpop.f32.mrb[0].mxu0
      %v7390 = vadd.f32 %v7219, %v7389
      %v7391 = vpop.f32.mrb[0].mxu0
      %7392 = vmatprep.mubr.f32.mxu0 0.0
      %7393 = vmatmul.mubr.f32.gmra.mrb[0].mxu0 %v7287
      %v7394 = vpop.f32.mrb[0].mxu0
      %v7395 = vadd.f32 %v7220, %v7394
      %v7396 = vpop.f32.mrb[0].mxu0
      %7397 = vmatprep.mubr.f32.mxu0 0.0
      %7398 = vmatmul.mubr.f32.gmra.mrb[0].mxu0 %v7289
      %v7399 = vpop.f32.mrb[0].mxu0
      %v7400 = vadd.f32 %v7221, %v7399
      %v7401 = vpop.f32.mrb[0].mxu0
      %7402 = vmatprep.mubr.f32.mxu0 0.0
      %7403 = vmatmul.mubr.f32.gmra.mrb[0].mxu0 %v7291
      %v7404 = vpop.f32.mrb[0].mxu0
      %v7405 = vadd.f32 %v7222, %v7404
      %v7406 = vpop.f32.mrb[0].mxu0
      %7407 = vmatprep.mubr.f32.mxu0 0.0
      %7408 = vmatmul.mubr.f32.gmra.mrb[0].mxu0 %v7293
      %v7409 = vpop.f32.mrb[0].mxu0
      %v7410 = vadd.f32 %v7223, %v7409
      %v7411 = vpop.f32.mrb[0].mxu0
      %7412 = vmatprep.mubr.f32.mxu0 0.0
      %7413 = vmatmul.mubr.f32.gmra.mrb[0].mxu0 %v7295
      %v7414 = vpop.f32.mrb[0].mxu0
      %v7415 = vadd.f32 %v7224, %v7414
      %v7416 = vpop.f32.mrb[0].mxu0
      %7417 = vdwg.mxu0
      %7418 = vrot.lane.b32.xlu0 %v1174, 104
      %v7419 = vpop.permute.xlu0 %7418
      %7420 = vrot.lane.b32.xlu0 %v1175, 104
      %v7421 = vpop.permute.xlu0 %7420
      %7422 = vrot.lane.b32.xlu0 %v1176, 104
      %v7423 = vpop.permute.xlu0 %7422
      %7424 = vrot.lane.b32.xlu0 %v1177, 104
      %v7425 = vpop.permute.xlu0 %7424
      %7426 = vrot.lane.b32.xlu0 %v1178, 104
      %v7427 = vpop.permute.xlu0 %7426
      %7428 = vrot.lane.b32.xlu0 %v1179, 104
      %v7429 = vpop.permute.xlu0 %7428
      %7430 = vrot.lane.b32.xlu0 %v1180, 104
      %v7431 = vpop.permute.xlu0 %7430
      %7432 = vrot.lane.b32.xlu0 %v1181, 104
      %v7433 = vpop.permute.xlu0 %7432
      %7434 = vrot.lane.b32.xlu0 %v1048, 72
      %v7435 = vpop.permute.xlu0 %7434
      %7436 = vrot.lane.b32.xlu0 %v1053, 72
      %v7437 = vpop.permute.xlu0 %7436
      %7438 = vrot.lane.b32.xlu0 %v1058, 72
      %v7439 = vpop.permute.xlu0 %7438
      %7440 = vrot.lane.b32.xlu0 %v1063, 72
      %v7441 = vpop.permute.xlu0 %7440
      %7442 = vrot.lane.b32.xlu0 %v1068, 72
      %v7443 = vpop.permute.xlu0 %7442
      %7444 = vrot.lane.b32.xlu0 %v1073, 72
      %v7445 = vpop.permute.xlu0 %7444
      %7446 = vrot.lane.b32.xlu0 %v1078, 72
      %v7447 = vpop.permute.xlu0 %7446
      %7448 = vrot.lane.b32.xlu0 %v1083, 72
      %v7449 = vpop.permute.xlu0 %7448
      %v7450 = vsel %vm1254, %v7419, 0
      %v7452 = vsel %vm1254, %v7421, 0
      %v7454 = vsel %vm1254, %v7423, 0
      %v7456 = vsel %vm1254, %v7425, 0
      %v7458 = vsel %vm1254, %v7427, 0
      %v7460 = vsel %vm1254, %v7429, 0
      %v7462 = vsel %vm1254, %v7431, 0
      %v7464 = vsel %vm1254, %v7433, 0
      %v7466 = vsel %vm1254, %v7435, 0
      %v7468 = vsel %vm1254, %v7437, 0
      %v7470 = vsel %vm1254, %v7439, 0
      %v7472 = vsel %vm1254, %v7441, 0
      %v7474 = vsel %vm1254, %v7443, 0
      %v7476 = vsel %vm1254, %v7445, 0
      %v7478 = vsel %vm1254, %v7447, 0
      %v7480 = vsel %vm1254, %v7449, 0
      %7482 = vmatprep.subr.mxu0 0.0
      %7483 = vmatpush1.xpose.msra.mxu0 %v7466
      %7484 = vmatprep.subr.mxu0 0.0
      %7485 = vmatpush1.xpose.msra.mxu0 %v7468
      %7486 = vmatprep.subr.mxu0 0.0
      %7487 = vmatpush1.xpose.msra.mxu0 %v7470
      %7488 = vmatprep.subr.mxu0 0.0
      %7489 = vmatpush1.xpose.msra.mxu0 %v7472
      %7490 = vmatprep.subr.mxu0 0.0
      %7491 = vmatpush1.xpose.msra.mxu0 %v7474
      %7492 = vmatprep.subr.mxu0 0.0
      %7493 = vmatpush1.xpose.msra.mxu0 %v7476
      %7494 = vmatprep.subr.mxu0 0.0
      %7495 = vmatpush1.xpose.msra.mxu0 %v7478
      %7496 = vmatprep.subr.mxu0 0.0
      %7497 = vmatpush1.xpose.msra.mxu0 %v7480
      %7498 = vmatprep.subr.mxu0 0.0
      %7499 = vmatpush1.xpose.msra.mxu0 0.0
      %7500 = vmatprep.subr.mxu0 0.0
      %7501 = vmatpush1.xpose.msra.mxu0 0.0
      %7502 = vmatprep.subr.mxu0 0.0
      %7503 = vmatpush1.xpose.msra.mxu0 0.0
      %7504 = vmatprep.subr.mxu0 0.0
      %7505 = vmatpush1.xpose.msra.mxu0 0.0
      %7506 = vmatprep.subr.mxu0 0.0
      %7507 = vmatpush1.xpose.msra.mxu0 0.0
      %7508 = vmatprep.subr.mxu0 0.0
      %7509 = vmatpush1.xpose.msra.mxu0 0.0
      %7510 = vmatprep.subr.mxu0 0.0
      %7511 = vmatpush1.xpose.msra.mxu0 0.0
      %7512 = vmatprep.subr.mxu0 0.0
      %7513 = vmatpush1.xpose.msra.mxu0 0.0
      %7514 = vmatprep.subr.mxu0 0.0
      %7515 = vmatpush1.xpose.msra.mxu0 0.0
      %7516 = vmatprep.subr.mxu0 0.0
      %7517 = vmatpush1.xpose.msra.mxu0 0.0
      %7518 = vmatprep.subr.mxu0 0.0
      %7519 = vmatpush1.xpose.msra.mxu0 0.0
      %7520 = vmatprep.subr.mxu0 0.0
      %7521 = vmatpush1.xpose.msra.mxu0 0.0
      %7522 = vmatprep.subr.mxu0 0.0
      %7523 = vmatpush1.xpose.msra.mxu0 0.0
      %7524 = vmatprep.subr.mxu0 0.0
      %7525 = vmatpush1.xpose.msra.mxu0 0.0
      %7526 = vmatprep.subr.mxu0 0.0
      %7527 = vmatpush1.xpose.msra.mxu0 0.0
      %7528 = vmatprep.subr.mxu0 0.0
      %7529 = vmatpush1.xpose.msra.mxu0 0.0
      %7530 = vmatprep.subr.mxu0 0.0
      %7531 = vmatpush1.xpose.msra.mxu0 0.0
      %7532 = vmatprep.subr.mxu0 0.0
      %7533 = vmatpush1.xpose.msra.mxu0 0.0
      %7534 = vmatprep.subr.mxu0 0.0
      %7535 = vmatpush1.xpose.msra.mxu0 0.0
      %7536 = vmatprep.subr.mxu0 0.0
      %7537 = vmatpush1.xpose.msra.mxu0 0.0
      %7538 = vmatprep.subr.mxu0 0.0
      %7539 = vmatpush1.xpose.msra.mxu0 0.0
      %7540 = vmatprep.subr.mxu0 0.0
      %7541 = vmatpush1.xpose.msra.mxu0 0.0
      %7542 = vmatprep.subr.mxu0 0.0
      %7543 = vmatpush1.xpose.msra.mxu0 0.0
      %7544 = vmatprep.subr.mxu0 0.0
      %7545 = vmatpush1.xpose.msra.mxu0 0.0
      %7546 = vmatprep.mubr.f32.mxu0 0.0
      %7547 = vmatmul.mubr.f32.gmra.mrb[0].mxu0 %v7450
      %v7548 = vpop.f32.mrb[0].mxu0
      %v7549 = vadd.f32 %v7225, %v7548
      %v7550 = vpop.f32.mrb[0].mxu0
      %7551 = vmatprep.mubr.f32.mxu0 0.0
      %7552 = vmatmul.mubr.f32.gmra.mrb[0].mxu0 %v7452
      %v7553 = vpop.f32.mrb[0].mxu0
      %v7554 = vadd.f32 %v7226, %v7553
      %v7555 = vpop.f32.mrb[0].mxu0
      %7556 = vmatprep.mubr.f32.mxu0 0.0
      %7557 = vmatmul.mubr.f32.gmra.mrb[0].mxu0 %v7454
      %v7558 = vpop.f32.mrb[0].mxu0
      %v7559 = vadd.f32 %v7227, %v7558
      %v7560 = vpop.f32.mrb[0].mxu0
      %7561 = vmatprep.mubr.f32.mxu0 0.0
      %7562 = vmatmul.mubr.f32.gmra.mrb[0].mxu0 %v7456
      %v7563 = vpop.f32.mrb[0].mxu0
      %v7564 = vadd.f32 %v7228, %v7563
      %v7565 = vpop.f32.mrb[0].mxu0
      %7566 = vmatprep.mubr.f32.mxu0 0.0
      %7567 = vmatmul.mubr.f32.gmra.mrb[0].mxu0 %v7458
      %v7568 = vpop.f32.mrb[0].mxu0
      %v7569 = vadd.f32 %v7229, %v7568
      %v7570 = vpop.f32.mrb[0].mxu0
      %7571 = vmatprep.mubr.f32.mxu0 0.0
      %7572 = vmatmul.mubr.f32.gmra.mrb[0].mxu0 %v7460
      %v7573 = vpop.f32.mrb[0].mxu0
      %v7574 = vadd.f32 %v7230, %v7573
      %v7575 = vpop.f32.mrb[0].mxu0
      %7576 = vmatprep.mubr.f32.mxu0 0.0
      %7577 = vmatmul.mubr.f32.gmra.mrb[0].mxu0 %v7462
      %v7578 = vpop.f32.mrb[0].mxu0
      %v7579 = vadd.f32 %v7231, %v7578
      %v7580 = vpop.f32.mrb[0].mxu0
      %7581 = vmatprep.mubr.f32.mxu0 0.0
      %7582 = vmatmul.mubr.f32.gmra.mrb[0].mxu0 %v7464
      %v7583 = vpop.f32.mrb[0].mxu0
      %v7584 = vadd.f32 %v7232, %v7583
      %v7585 = vpop.f32.mrb[0].mxu0
      %7586 = vdwg.mxu0
      %7587 = vrot.lane.b32.xlu0 %v1182, 104
      %v7588 = vpop.permute.xlu0 %7587
      %7589 = vrot.lane.b32.xlu0 %v1183, 104
      %v7590 = vpop.permute.xlu0 %7589
      %7591 = vrot.lane.b32.xlu0 %v1184, 104
      %v7592 = vpop.permute.xlu0 %7591
      %7593 = vrot.lane.b32.xlu0 %v1185, 104
      %v7594 = vpop.permute.xlu0 %7593
      %7595 = vrot.lane.b32.xlu0 %v1186, 104
      %v7596 = vpop.permute.xlu0 %7595
      %7597 = vrot.lane.b32.xlu0 %v1187, 104
      %v7598 = vpop.permute.xlu0 %7597
      %7599 = vrot.lane.b32.xlu0 %v1188, 104
      %v7600 = vpop.permute.xlu0 %7599
      %7601 = vrot.lane.b32.xlu0 %v1189, 104
      %v7602 = vpop.permute.xlu0 %7601
      %7603 = vrot.lane.b32.xlu0 %v1088, 72
      %v7604 = vpop.permute.xlu0 %7603
      %7605 = vrot.lane.b32.xlu0 %v1093, 72
      %v7606 = vpop.permute.xlu0 %7605
      %7607 = vrot.lane.b32.xlu0 %v1098, 72
      %v7608 = vpop.permute.xlu0 %7607
      %7609 = vrot.lane.b32.xlu0 %v1103, 72
      %v7610 = vpop.permute.xlu0 %7609
      %7611 = vrot.lane.b32.xlu0 %v1108, 72
      %v7612 = vpop.permute.xlu0 %7611
      %7613 = vrot.lane.b32.xlu0 %v1113, 72
      %v7614 = vpop.permute.xlu0 %7613
      %7615 = vrot.lane.b32.xlu0 %v1118, 72
      %v7616 = vpop.permute.xlu0 %7615
      %7617 = vrot.lane.b32.xlu0 %v1123, 72
      %v7618 = vpop.permute.xlu0 %7617
      %v7619 = vsel %vm1254, %v7588, 0
      %v7621 = vsel %vm1254, %v7590, 0
      %v7623 = vsel %vm1254, %v7592, 0
      %v7625 = vsel %vm1254, %v7594, 0
      %v7627 = vsel %vm1254, %v7596, 0
      %v7629 = vsel %vm1254, %v7598, 0
      %v7631 = vsel %vm1254, %v7600, 0
      %v7633 = vsel %vm1254, %v7602, 0
      %v7635 = vsel %vm1254, %v7604, 0
      %v7637 = vsel %vm1254, %v7606, 0
      %v7639 = vsel %vm1254, %v7608, 0
      %v7641 = vsel %vm1254, %v7610, 0
      %v7643 = vsel %vm1254, %v7612, 0
      %v7645 = vsel %vm1254, %v7614, 0
      %v7647 = vsel %vm1254, %v7616, 0
      %v7649 = vsel %vm1254, %v7618, 0
      %7651 = vmatprep.subr.mxu0 0.0
      %7652 = vmatpush1.xpose.msra.mxu0 %v7635
      %7653 = vmatprep.subr.mxu0 0.0
      %7654 = vmatpush1.xpose.msra.mxu0 %v7637
      %7655 = vmatprep.subr.mxu0 0.0
      %7656 = vmatpush1.xpose.msra.mxu0 %v7639
      %7657 = vmatprep.subr.mxu0 0.0
      %7658 = vmatpush1.xpose.msra.mxu0 %v7641
      %7659 = vmatprep.subr.mxu0 0.0
      %7660 = vmatpush1.xpose.msra.mxu0 %v7643
      %7661 = vmatprep.subr.mxu0 0.0
      %7662 = vmatpush1.xpose.msra.mxu0 %v7645
      %7663 = vmatprep.subr.mxu0 0.0
      %7664 = vmatpush1.xpose.msra.mxu0 %v7647
      %7665 = vmatprep.subr.mxu0 0.0
      %7666 = vmatpush1.xpose.msra.mxu0 %v7649
      %7667 = vmatprep.subr.mxu0 0.0
      %7668 = vmatpush1.xpose.msra.mxu0 0.0
      %7669 = vmatprep.subr.mxu0 0.0
      %7670 = vmatpush1.xpose.msra.mxu0 0.0
      %7671 = vmatprep.subr.mxu0 0.0
      %7672 = vmatpush1.xpose.msra.mxu0 0.0
      %7673 = vmatprep.subr.mxu0 0.0
      %7674 = vmatpush1.xpose.msra.mxu0 0.0
      %7675 = vmatprep.subr.mxu0 0.0
      %7676 = vmatpush1.xpose.msra.mxu0 0.0
      %7677 = vmatprep.subr.mxu0 0.0
      %7678 = vmatpush1.xpose.msra.mxu0 0.0
      %7679 = vmatprep.subr.mxu0 0.0
      %7680 = vmatpush1.xpose.msra.mxu0 0.0
      %7681 = vmatprep.subr.mxu0 0.0
      %7682 = vmatpush1.xpose.msra.mxu0 0.0
      %7683 = vmatprep.subr.mxu0 0.0
      %7684 = vmatpush1.xpose.msra.mxu0 0.0
      %7685 = vmatprep.subr.mxu0 0.0
      %7686 = vmatpush1.xpose.msra.mxu0 0.0
      %7687 = vmatprep.subr.mxu0 0.0
      %7688 = vmatpush1.xpose.msra.mxu0 0.0
      %7689 = vmatprep.subr.mxu0 0.0
      %7690 = vmatpush1.xpose.msra.mxu0 0.0
      %7691 = vmatprep.subr.mxu0 0.0
      %7692 = vmatpush1.xpose.msra.mxu0 0.0
      %7693 = vmatprep.subr.mxu0 0.0
      %7694 = vmatpush1.xpose.msra.mxu0 0.0
      %7695 = vmatprep.subr.mxu0 0.0
      %7696 = vmatpush1.xpose.msra.mxu0 0.0
      %7697 = vmatprep.subr.mxu0 0.0
      %7698 = vmatpush1.xpose.msra.mxu0 0.0
      %7699 = vmatprep.subr.mxu0 0.0
      %7700 = vmatpush1.xpose.msra.mxu0 0.0
      %7701 = vmatprep.subr.mxu0 0.0
      %7702 = vmatpush1.xpose.msra.mxu0 0.0
      %7703 = vmatprep.subr.mxu0 0.0
      %7704 = vmatpush1.xpose.msra.mxu0 0.0
      %7705 = vmatprep.subr.mxu0 0.0
      %7706 = vmatpush1.xpose.msra.mxu0 0.0
      %7707 = vmatprep.subr.mxu0 0.0
      %7708 = vmatpush1.xpose.msra.mxu0 0.0
      %7709 = vmatprep.subr.mxu0 0.0
      %7710 = vmatpush1.xpose.msra.mxu0 0.0
      %7711 = vmatprep.subr.mxu0 0.0
      %7712 = vmatpush1.xpose.msra.mxu0 0.0
      %7713 = vmatprep.subr.mxu0 0.0
      %7714 = vmatpush1.xpose.msra.mxu0 0.0
      %7715 = vmatprep.mubr.f32.mxu0 0.0
      %7716 = vmatmul.mubr.f32.gmra.mrb[0].mxu0 %v7619
      %v7717 = vpop.f32.mrb[0].mxu0
      %v7718 = vadd.f32 %v7233, %v7717
      %v7719 = vpop.f32.mrb[0].mxu0
      %7720 = vmatprep.mubr.f32.mxu0 0.0
      %7721 = vmatmul.mubr.f32.gmra.mrb[0].mxu0 %v7621
      %v7722 = vpop.f32.mrb[0].mxu0
      %v7723 = vadd.f32 %v7234, %v7722
      %v7724 = vpop.f32.mrb[0].mxu0
      %7725 = vmatprep.mubr.f32.mxu0 0.0
      %7726 = vmatmul.mubr.f32.gmra.mrb[0].mxu0 %v7623
      %v7727 = vpop.f32.mrb[0].mxu0
      %v7728 = vadd.f32 %v7235, %v7727
      %v7729 = vpop.f32.mrb[0].mxu0
      %7730 = vmatprep.mubr.f32.mxu0 0.0
      %7731 = vmatmul.mubr.f32.gmra.mrb[0].mxu0 %v7625
      %v7732 = vpop.f32.mrb[0].mxu0
      %v7733 = vadd.f32 %v7236, %v7732
      %v7734 = vpop.f32.mrb[0].mxu0
      %7735 = vmatprep.mubr.f32.mxu0 0.0
      %7736 = vmatmul.mubr.f32.gmra.mrb[0].mxu0 %v7627
      %v7737 = vpop.f32.mrb[0].mxu0
      %v7738 = vadd.f32 %v7237, %v7737
      %v7739 = vpop.f32.mrb[0].mxu0
      %7740 = vmatprep.mubr.f32.mxu0 0.0
      %7741 = vmatmul.mubr.f32.gmra.mrb[0].mxu0 %v7629
      %v7742 = vpop.f32.mrb[0].mxu0
      %v7743 = vadd.f32 %v7238, %v7742
      %v7744 = vpop.f32.mrb[0].mxu0
      %7745 = vmatprep.mubr.f32.mxu0 0.0
      %7746 = vmatmul.mubr.f32.gmra.mrb[0].mxu0 %v7631
      %v7747 = vpop.f32.mrb[0].mxu0
      %v7748 = vadd.f32 %v7239, %v7747
      %v7749 = vpop.f32.mrb[0].mxu0
      %7750 = vmatprep.mubr.f32.mxu0 0.0
      %7751 = vmatmul.mubr.f32.gmra.mrb[0].mxu0 %v7633
      %v7752 = vpop.f32.mrb[0].mxu0
      %v7753 = vadd.f32 %v7240, %v7752
      %v7754 = vpop.f32.mrb[0].mxu0
      %7755 = vdwg.mxu0
      %7756 = vrot.lane.b32.xlu0 %v1190, 104
      %v7757 = vpop.permute.xlu0 %7756
      %7758 = vrot.lane.b32.xlu0 %v1191, 104
      %v7759 = vpop.permute.xlu0 %7758
      %7760 = vrot.lane.b32.xlu0 %v1192, 104
      %v7761 = vpop.permute.xlu0 %7760
      %7762 = vrot.lane.b32.xlu0 %v1193, 104
      %v7763 = vpop.permute.xlu0 %7762
      %7764 = vrot.lane.b32.xlu0 %v1194, 104
      %v7765 = vpop.permute.xlu0 %7764
      %7766 = vrot.lane.b32.xlu0 %v1195, 104
      %v7767 = vpop.permute.xlu0 %7766
      %7768 = vrot.lane.b32.xlu0 %v1196, 104
      %v7769 = vpop.permute.xlu0 %7768
      %7770 = vrot.lane.b32.xlu0 %v1197, 104
      %v7771 = vpop.permute.xlu0 %7770
      %7772 = vrot.lane.b32.xlu0 %v1128, 72
      %v7773 = vpop.permute.xlu0 %7772
      %7774 = vrot.lane.b32.xlu0 %v1133, 72
      %v7775 = vpop.permute.xlu0 %7774
      %7776 = vrot.lane.b32.xlu0 %v1138, 72
      %v7777 = vpop.permute.xlu0 %7776
      %7778 = vrot.lane.b32.xlu0 %v1143, 72
      %v7779 = vpop.permute.xlu0 %7778
      %7780 = vrot.lane.b32.xlu0 %v1148, 72
      %v7781 = vpop.permute.xlu0 %7780
      %7782 = vrot.lane.b32.xlu0 %v1153, 72
      %v7783 = vpop.permute.xlu0 %7782
      %7784 = vrot.lane.b32.xlu0 %v1158, 72
      %v7785 = vpop.permute.xlu0 %7784
      %7786 = vrot.lane.b32.xlu0 %v1163, 72
      %v7787 = vpop.permute.xlu0 %7786
      %v7788 = vsel %vm1254, %v7757, 0
      %v7790 = vsel %vm1254, %v7759, 0
      %v7792 = vsel %vm1254, %v7761, 0
      %v7794 = vsel %vm1254, %v7763, 0
      %v7796 = vsel %vm1254, %v7765, 0
      %v7798 = vsel %vm1254, %v7767, 0
      %v7800 = vsel %vm1254, %v7769, 0
      %v7802 = vsel %vm1254, %v7771, 0
      %v7804 = vsel %vm1254, %v7773, 0
      %v7806 = vsel %vm1254, %v7775, 0
      %v7808 = vsel %vm1254, %v7777, 0
      %v7810 = vsel %vm1254, %v7779, 0
      %v7812 = vsel %vm1254, %v7781, 0
      %v7814 = vsel %vm1254, %v7783, 0
      %v7816 = vsel %vm1254, %v7785, 0
      %v7818 = vsel %vm1254, %v7787, 0
      %7820 = vmatprep.subr.mxu0 0.0
      %7821 = vmatpush1.xpose.msra.mxu0 %v7804
      %7822 = vmatprep.subr.mxu0 0.0
      %7823 = vmatpush1.xpose.msra.mxu0 %v7806
      %7824 = vmatprep.subr.mxu0 0.0
      %7825 = vmatpush1.xpose.msra.mxu0 %v7808
      %7826 = vmatprep.subr.mxu0 0.0
      %7827 = vmatpush1.xpose.msra.mxu0 %v7810
      %7828 = vmatprep.subr.mxu0 0.0
      %7829 = vmatpush1.xpose.msra.mxu0 %v7812
      %7830 = vmatprep.subr.mxu0 0.0
      %7831 = vmatpush1.xpose.msra.mxu0 %v7814
      %7832 = vmatprep.subr.mxu0 0.0
      %7833 = vmatpush1.xpose.msra.mxu0 %v7816
      %7834 = vmatprep.subr.mxu0 0.0
      %7835 = vmatpush1.xpose.msra.mxu0 %v7818
      %7836 = vmatprep.subr.mxu0 0.0
      %7837 = vmatpush1.xpose.msra.mxu0 0.0
      %7838 = vmatprep.subr.mxu0 0.0
      %7839 = vmatpush1.xpose.msra.mxu0 0.0
      %7840 = vmatprep.subr.mxu0 0.0
      %7841 = vmatpush1.xpose.msra.mxu0 0.0
      %7842 = vmatprep.subr.mxu0 0.0
      %7843 = vmatpush1.xpose.msra.mxu0 0.0
      %7844 = vmatprep.subr.mxu0 0.0
      %7845 = vmatpush1.xpose.msra.mxu0 0.0
      %7846 = vmatprep.subr.mxu0 0.0
      %7847 = vmatpush1.xpose.msra.mxu0 0.0
      %7848 = vmatprep.subr.mxu0 0.0
      %7849 = vmatpush1.xpose.msra.mxu0 0.0
      %7850 = vmatprep.subr.mxu0 0.0
      %7851 = vmatpush1.xpose.msra.mxu0 0.0
      %7852 = vmatprep.subr.mxu0 0.0
      %7853 = vmatpush1.xpose.msra.mxu0 0.0
      %7854 = vmatprep.subr.mxu0 0.0
      %7855 = vmatpush1.xpose.msra.mxu0 0.0
      %7856 = vmatprep.subr.mxu0 0.0
      %7857 = vmatpush1.xpose.msra.mxu0 0.0
      %7858 = vmatprep.subr.mxu0 0.0
      %7859 = vmatpush1.xpose.msra.mxu0 0.0
      %7860 = vmatprep.subr.mxu0 0.0
      %7861 = vmatpush1.xpose.msra.mxu0 0.0
      %7862 = vmatprep.subr.mxu0 0.0
      %7863 = vmatpush1.xpose.msra.mxu0 0.0
      %7864 = vmatprep.subr.mxu0 0.0
      %7865 = vmatpush1.xpose.msra.mxu0 0.0
      %7866 = vmatprep.subr.mxu0 0.0
      %7867 = vmatpush1.xpose.msra.mxu0 0.0
      %7868 = vmatprep.subr.mxu0 0.0
      %7869 = vmatpush1.xpose.msra.mxu0 0.0
      %7870 = vmatprep.subr.mxu0 0.0
      %7871 = vmatpush1.xpose.msra.mxu0 0.0
      %7872 = vmatprep.subr.mxu0 0.0
      %7873 = vmatpush1.xpose.msra.mxu0 0.0
      %7874 = vmatprep.subr.mxu0 0.0
      %7875 = vmatpush1.xpose.msra.mxu0 0.0
      %7876 = vmatprep.subr.mxu0 0.0
      %7877 = vmatpush1.xpose.msra.mxu0 0.0
      %7878 = vmatprep.subr.mxu0 0.0
      %7879 = vmatpush1.xpose.msra.mxu0 0.0
      %7880 = vmatprep.subr.mxu0 0.0
      %7881 = vmatpush1.xpose.msra.mxu0 0.0
      %7882 = vmatprep.subr.mxu0 0.0
      %7883 = vmatpush1.xpose.msra.mxu0 0.0
      %7884 = vmatprep.mubr.f32.mxu0 0.0
      %7885 = vmatmul.mubr.f32.gmra.mrb[0].mxu0 %v7788
      %v7886 = vpop.f32.mrb[0].mxu0
      %v7887 = vadd.f32 %v7241, %v7886
      %v7888 = vpop.f32.mrb[0].mxu0
      %7889 = vmatprep.mubr.f32.mxu0 0.0
      %7890 = vmatmul.mubr.f32.gmra.mrb[0].mxu0 %v7790
      %v7891 = vpop.f32.mrb[0].mxu0
      %v7892 = vadd.f32 %v7242, %v7891
      %v7893 = vpop.f32.mrb[0].mxu0
      %7894 = vmatprep.mubr.f32.mxu0 0.0
      %7895 = vmatmul.mubr.f32.gmra.mrb[0].mxu0 %v7792
      %v7896 = vpop.f32.mrb[0].mxu0
      %v7897 = vadd.f32 %v7243, %v7896
      %v7898 = vpop.f32.mrb[0].mxu0
      %7899 = vmatprep.mubr.f32.mxu0 0.0
      %7900 = vmatmul.mubr.f32.gmra.mrb[0].mxu0 %v7794
      %v7901 = vpop.f32.mrb[0].mxu0
      %v7902 = vadd.f32 %v7244, %v7901
      %v7903 = vpop.f32.mrb[0].mxu0
      %7904 = vmatprep.mubr.f32.mxu0 0.0
      %7905 = vmatmul.mubr.f32.gmra.mrb[0].mxu0 %v7796
      %v7906 = vpop.f32.mrb[0].mxu0
      %v7907 = vadd.f32 %v7245, %v7906
      %v7908 = vpop.f32.mrb[0].mxu0
      %7909 = vmatprep.mubr.f32.mxu0 0.0
      %7910 = vmatmul.mubr.f32.gmra.mrb[0].mxu0 %v7798
      %v7911 = vpop.f32.mrb[0].mxu0
      %v7912 = vadd.f32 %v7246, %v7911
      %v7913 = vpop.f32.mrb[0].mxu0
      %7914 = vmatprep.mubr.f32.mxu0 0.0
      %7915 = vmatmul.mubr.f32.gmra.mrb[0].mxu0 %v7800
      %v7916 = vpop.f32.mrb[0].mxu0
      %v7917 = vadd.f32 %v7247, %v7916
      %v7918 = vpop.f32.mrb[0].mxu0
      %7919 = vmatprep.mubr.f32.mxu0 0.0
      %7920 = vmatmul.mubr.f32.gmra.mrb[0].mxu0 %v7802
      %v7921 = vpop.f32.mrb[0].mxu0
      %v7922 = vadd.f32 %v7248, %v7921
      %v7923 = vpop.f32.mrb[0].mxu0
      %7924 = vdwg.mxu0
      %v7925 = vsel %vm1907, %v7380, -inf
      %7926 = vmax.xlane.f32.xlu0 %v7925
      %v7927 = vpop.xlane.xlu0 %7926
      %v7928 = vsel %vm1907, %v7385, -inf
      %7929 = vmax.xlane.f32.xlu0 %v7928
      %v7930 = vpop.xlane.xlu0 %7929
      %v7931 = vsel %vm1907, %v7390, -inf
      %7932 = vmax.xlane.f32.xlu0 %v7931
      %v7933 = vpop.xlane.xlu0 %7932
      %v7934 = vsel %vm1907, %v7395, -inf
      %7935 = vmax.xlane.f32.xlu0 %v7934
      %v7936 = vpop.xlane.xlu0 %7935
      %v7937 = vsel %vm1907, %v7400, -inf
      %7938 = vmax.xlane.f32.xlu0 %v7937
      %v7939 = vpop.xlane.xlu0 %7938
      %v7940 = vsel %vm1907, %v7405, -inf
      %7941 = vmax.xlane.f32.xlu0 %v7940
      %v7942 = vpop.xlane.xlu0 %7941
      %v7943 = vsel %vm1907, %v7410, -inf
      %7944 = vmax.xlane.f32.xlu0 %v7943
      %v7945 = vpop.xlane.xlu0 %7944
      %v7946 = vsel %vm1907, %v7415, -inf
      %7947 = vmax.xlane.f32.xlu0 %v7946
      %v7948 = vpop.xlane.xlu0 %7947
      %v7949 = vsel %vm1907, %v7549, -inf
      %7950 = vmax.xlane.f32.xlu0 %v7949
      %v7951 = vpop.xlane.xlu0 %7950
      %v7952 = vsel %vm1907, %v7554, -inf
      %7953 = vmax.xlane.f32.xlu0 %v7952
      %v7954 = vpop.xlane.xlu0 %7953
      %v7955 = vsel %vm1907, %v7559, -inf
      %7956 = vmax.xlane.f32.xlu0 %v7955
      %v7957 = vpop.xlane.xlu0 %7956
      %v7958 = vsel %vm1907, %v7564, -inf
      %7959 = vmax.xlane.f32.xlu0 %v7958
      %v7960 = vpop.xlane.xlu0 %7959
      %v7961 = vsel %vm1907, %v7569, -inf
      %7962 = vmax.xlane.f32.xlu0 %v7961
      %v7963 = vpop.xlane.xlu0 %7962
      %v7964 = vsel %vm1907, %v7574, -inf
      %7965 = vmax.xlane.f32.xlu0 %v7964
      %v7966 = vpop.xlane.xlu0 %7965
      %v7967 = vsel %vm1907, %v7579, -inf
      %7968 = vmax.xlane.f32.xlu0 %v7967
      %v7969 = vpop.xlane.xlu0 %7968
      %v7970 = vsel %vm1907, %v7584, -inf
      %7971 = vmax.xlane.f32.xlu0 %v7970
      %v7972 = vpop.xlane.xlu0 %7971
      %v7973 = vsel %vm1907, %v7718, -inf
      %7974 = vmax.xlane.f32.xlu0 %v7973
      %v7975 = vpop.xlane.xlu0 %7974
      %v7976 = vsel %vm1907, %v7723, -inf
      %7977 = vmax.xlane.f32.xlu0 %v7976
      %v7978 = vpop.xlane.xlu0 %7977
      %v7979 = vsel %vm1907, %v7728, -inf
      %7980 = vmax.xlane.f32.xlu0 %v7979
      %v7981 = vpop.xlane.xlu0 %7980
      %v7982 = vsel %vm1907, %v7733, -inf
      %7983 = vmax.xlane.f32.xlu0 %v7982
      %v7984 = vpop.xlane.xlu0 %7983
      %v7985 = vsel %vm1907, %v7738, -inf
      %7986 = vmax.xlane.f32.xlu0 %v7985
      %v7987 = vpop.xlane.xlu0 %7986
      %v7988 = vsel %vm1907, %v7743, -inf
      %7989 = vmax.xlane.f32.xlu0 %v7988
      %v7990 = vpop.xlane.xlu0 %7989
      %v7991 = vsel %vm1907, %v7748, -inf
      %7992 = vmax.xlane.f32.xlu0 %v7991
      %v7993 = vpop.xlane.xlu0 %7992
      %v7994 = vsel %vm1907, %v7753, -inf
      %7995 = vmax.xlane.f32.xlu0 %v7994
      %v7996 = vpop.xlane.xlu0 %7995
      %v7997 = vsel %vm1907, %v7887, -inf
      %7998 = vmax.xlane.f32.xlu0 %v7997
      %v7999 = vpop.xlane.xlu0 %7998
      %v8000 = vsel %vm1907, %v7892, -inf
      %8001 = vmax.xlane.f32.xlu0 %v8000
      %v8002 = vpop.xlane.xlu0 %8001
      %v8003 = vsel %vm1907, %v7897, -inf
      %8004 = vmax.xlane.f32.xlu0 %v8003
      %v8005 = vpop.xlane.xlu0 %8004
      %v8006 = vsel %vm1907, %v7902, -inf
      %8007 = vmax.xlane.f32.xlu0 %v8006
      %v8008 = vpop.xlane.xlu0 %8007
      %v8009 = vsel %vm1907, %v7907, -inf
      %8010 = vmax.xlane.f32.xlu0 %v8009
      %v8011 = vpop.xlane.xlu0 %8010
      %v8012 = vsel %vm1907, %v7912, -inf
      %8013 = vmax.xlane.f32.xlu0 %v8012
      %v8014 = vpop.xlane.xlu0 %8013
      %v8015 = vsel %vm1907, %v7917, -inf
      %8016 = vmax.xlane.f32.xlu0 %v8015
      %v8017 = vpop.xlane.xlu0 %8016
      %v8018 = vsel %vm1907, %v7922, -inf
      %8019 = vmax.xlane.f32.xlu0 %v8018
      %v8020 = vpop.xlane.xlu0 %8019
      %v8021 = vsub.f32 %v7380, %v7927
      %v8022 = vsub.f32 %v7385, %v7930
      %v8023 = vsub.f32 %v7390, %v7933
      %v8024 = vsub.f32 %v7395, %v7936
      %v8025 = vsub.f32 %v7400, %v7939
      %v8026 = vsub.f32 %v7405, %v7942
      %v8027 = vsub.f32 %v7410, %v7945
      %v8028 = vsub.f32 %v7415, %v7948
      %v8029 = vsub.f32 %v7549, %v7951
      %v8030 = vsub.f32 %v7554, %v7954
      %v8031 = vsub.f32 %v7559, %v7957
      %v8032 = vsub.f32 %v7564, %v7960
      %v8033 = vsub.f32 %v7569, %v7963
      %v8034 = vsub.f32 %v7574, %v7966
      %v8035 = vsub.f32 %v7579, %v7969
      %v8036 = vsub.f32 %v7584, %v7972
      %v8037 = vsub.f32 %v7718, %v7975
      %v8038 = vsub.f32 %v7723, %v7978
      %v8039 = vsub.f32 %v7728, %v7981
      %v8040 = vsub.f32 %v7733, %v7984
      %v8041 = vsub.f32 %v7738, %v7987
      %v8042 = vsub.f32 %v7743, %v7990
      %v8043 = vsub.f32 %v7748, %v7993
      %v8044 = vsub.f32 %v7753, %v7996
      %v8045 = vsub.f32 %v7887, %v7999
      %v8046 = vsub.f32 %v7892, %v8002
      %v8047 = vsub.f32 %v7897, %v8005
      %v8048 = vsub.f32 %v7902, %v8008
      %v8049 = vsub.f32 %v7907, %v8011
      %v8050 = vsub.f32 %v7912, %v8014
      %v8051 = vsub.f32 %v7917, %v8017
      %v8052 = vsub.f32 %v7922, %v8020
      %v8053 = vmul.f32 %v8021, 1.442695
      %v8054 = vpow.pop %v8053
      %v8055 = vmul.f32 %v8022, 1.442695
      %v8056 = vpow.pop %v8055
      %v8057 = vmul.f32 %v8023, 1.442695
      %v8058 = vpow.pop %v8057
      %v8059 = vmul.f32 %v8024, 1.442695
      %v8060 = vpow.pop %v8059
      %v8061 = vmul.f32 %v8025, 1.442695
      %v8062 = vpow.pop %v8061
      %v8063 = vmul.f32 %v8026, 1.442695
      %v8064 = vpow.pop %v8063
      %v8065 = vmul.f32 %v8027, 1.442695
      %v8066 = vpow.pop %v8065
      %v8067 = vmul.f32 %v8028, 1.442695
      %v8068 = vpow.pop %v8067
      %v8069 = vmul.f32 %v8029, 1.442695
      %v8070 = vpow.pop %v8069
      %v8071 = vmul.f32 %v8030, 1.442695
      %v8072 = vpow.pop %v8071
      %v8073 = vmul.f32 %v8031, 1.442695
      %v8074 = vpow.pop %v8073
      %v8075 = vmul.f32 %v8032, 1.442695
      %v8076 = vpow.pop %v8075
      %v8077 = vmul.f32 %v8033, 1.442695
      %v8078 = vpow.pop %v8077
      %v8079 = vmul.f32 %v8034, 1.442695
      %v8080 = vpow.pop %v8079
      %v8081 = vmul.f32 %v8035, 1.442695
      %v8082 = vpow.pop %v8081
      %v8083 = vmul.f32 %v8036, 1.442695
      %v8084 = vpow.pop %v8083
      %v8085 = vmul.f32 %v8037, 1.442695
      %v8086 = vpow.pop %v8085
      %v8087 = vmul.f32 %v8038, 1.442695
      %v8088 = vpow.pop %v8087
      %v8089 = vmul.f32 %v8039, 1.442695
      %v8090 = vpow.pop %v8089
      %v8091 = vmul.f32 %v8040, 1.442695
      %v8092 = vpow.pop %v8091
      %v8093 = vmul.f32 %v8041, 1.442695
      %v8094 = vpow.pop %v8093
      %v8095 = vmul.f32 %v8042, 1.442695
      %v8096 = vpow.pop %v8095
      %v8097 = vmul.f32 %v8043, 1.442695
      %v8098 = vpow.pop %v8097
      %v8099 = vmul.f32 %v8044, 1.442695
      %v8100 = vpow.pop %v8099
      %v8101 = vmul.f32 %v8045, 1.442695
      %v8102 = vpow.pop %v8101
      %v8103 = vmul.f32 %v8046, 1.442695
      %v8104 = vpow.pop %v8103
      %v8105 = vmul.f32 %v8047, 1.442695
      %v8106 = vpow.pop %v8105
      %v8107 = vmul.f32 %v8048, 1.442695
      %v8108 = vpow.pop %v8107
      %v8109 = vmul.f32 %v8049, 1.442695
      %v8110 = vpow.pop %v8109
      %v8111 = vmul.f32 %v8050, 1.442695
      %v8112 = vpow.pop %v8111
      %v8113 = vmul.f32 %v8051, 1.442695
      %v8114 = vpow.pop %v8113
      %v8115 = vmul.f32 %v8052, 1.442695
      %v8116 = vpow.pop %v8115
      %v8117 = vsel %vm1907, %v8054, 0.0
      %8118 = vadd.xlane.f32.xlu0 %v8117
      %v8119 = vpop.xlane.xlu0 %8118
      %v8120 = vsel %vm1907, %v8056, 0.0
      %8121 = vadd.xlane.f32.xlu0 %v8120
      %v8122 = vpop.xlane.xlu0 %8121
      %v8123 = vsel %vm1907, %v8058, 0.0
      %8124 = vadd.xlane.f32.xlu0 %v8123
      %v8125 = vpop.xlane.xlu0 %8124
      %v8126 = vsel %vm1907, %v8060, 0.0
      %8127 = vadd.xlane.f32.xlu0 %v8126
      %v8128 = vpop.xlane.xlu0 %8127
      %v8129 = vsel %vm1907, %v8062, 0.0
      %8130 = vadd.xlane.f32.xlu0 %v8129
      %v8131 = vpop.xlane.xlu0 %8130
      %v8132 = vsel %vm1907, %v8064, 0.0
      %8133 = vadd.xlane.f32.xlu0 %v8132
      %v8134 = vpop.xlane.xlu0 %8133
      %v8135 = vsel %vm1907, %v8066, 0.0
      %8136 = vadd.xlane.f32.xlu0 %v8135
      %v8137 = vpop.xlane.xlu0 %8136
      %v8138 = vsel %vm1907, %v8068, 0.0
      %8139 = vadd.xlane.f32.xlu0 %v8138
      %v8140 = vpop.xlane.xlu0 %8139
      %v8141 = vsel %vm1907, %v8070, 0.0
      %8142 = vadd.xlane.f32.xlu0 %v8141
      %v8143 = vpop.xlane.xlu0 %8142
      %v8144 = vsel %vm1907, %v8072, 0.0
      %8145 = vadd.xlane.f32.xlu0 %v8144
      %v8146 = vpop.xlane.xlu0 %8145
      %v8147 = vsel %vm1907, %v8074, 0.0
      %8148 = vadd.xlane.f32.xlu0 %v8147
      %v8149 = vpop.xlane.xlu0 %8148
      %v8150 = vsel %vm1907, %v8076, 0.0
      %8151 = vadd.xlane.f32.xlu0 %v8150
      %v8152 = vpop.xlane.xlu0 %8151
      %v8153 = vsel %vm1907, %v8078, 0.0
      %8154 = vadd.xlane.f32.xlu0 %v8153
      %v8155 = vpop.xlane.xlu0 %8154
      %v8156 = vsel %vm1907, %v8080, 0.0
      %8157 = vadd.xlane.f32.xlu0 %v8156
      %v8158 = vpop.xlane.xlu0 %8157
      %v8159 = vsel %vm1907, %v8082, 0.0
      %8160 = vadd.xlane.f32.xlu0 %v8159
      %v8161 = vpop.xlane.xlu0 %8160
      %v8162 = vsel %vm1907, %v8084, 0.0
      %8163 = vadd.xlane.f32.xlu0 %v8162
      %v8164 = vpop.xlane.xlu0 %8163
      %v8165 = vsel %vm1907, %v8086, 0.0
      %8166 = vadd.xlane.f32.xlu0 %v8165
      %v8167 = vpop.xlane.xlu0 %8166
      %v8168 = vsel %vm1907, %v8088, 0.0
      %8169 = vadd.xlane.f32.xlu0 %v8168
      %v8170 = vpop.xlane.xlu0 %8169
      %v8171 = vsel %vm1907, %v8090, 0.0
      %8172 = vadd.xlane.f32.xlu0 %v8171
      %v8173 = vpop.xlane.xlu0 %8172
      %v8174 = vsel %vm1907, %v8092, 0.0
      %8175 = vadd.xlane.f32.xlu0 %v8174
      %v8176 = vpop.xlane.xlu0 %8175
      %v8177 = vsel %vm1907, %v8094, 0.0
      %8178 = vadd.xlane.f32.xlu0 %v8177
      %v8179 = vpop.xlane.xlu0 %8178
      %v8180 = vsel %vm1907, %v8096, 0.0
      %8181 = vadd.xlane.f32.xlu0 %v8180
      %v8182 = vpop.xlane.xlu0 %8181
      %v8183 = vsel %vm1907, %v8098, 0.0
      %8184 = vadd.xlane.f32.xlu0 %v8183
      %v8185 = vpop.xlane.xlu0 %8184
      %v8186 = vsel %vm1907, %v8100, 0.0
      %8187 = vadd.xlane.f32.xlu0 %v8186
      %v8188 = vpop.xlane.xlu0 %8187
      %v8189 = vsel %vm1907, %v8102, 0.0
      %8190 = vadd.xlane.f32.xlu0 %v8189
      %v8191 = vpop.xlane.xlu0 %8190
      %v8192 = vsel %vm1907, %v8104, 0.0
      %8193 = vadd.xlane.f32.xlu0 %v8192
      %v8194 = vpop.xlane.xlu0 %8193
      %v8195 = vsel %vm1907, %v8106, 0.0
      %8196 = vadd.xlane.f32.xlu0 %v8195
      %v8197 = vpop.xlane.xlu0 %8196
      %v8198 = vsel %vm1907, %v8108, 0.0
      %8199 = vadd.xlane.f32.xlu0 %v8198
      %v8200 = vpop.xlane.xlu0 %8199
      %v8201 = vsel %vm1907, %v8110, 0.0
      %8202 = vadd.xlane.f32.xlu0 %v8201
      %v8203 = vpop.xlane.xlu0 %8202
      %v8204 = vsel %vm1907, %v8112, 0.0
      %8205 = vadd.xlane.f32.xlu0 %v8204
      %v8206 = vpop.xlane.xlu0 %8205
      %v8207 = vsel %vm1907, %v8114, 0.0
      %8208 = vadd.xlane.f32.xlu0 %v8207
      %v8209 = vpop.xlane.xlu0 %8208
      %v8210 = vsel %vm1907, %v8116, 0.0
      %8211 = vadd.xlane.f32.xlu0 %v8210
      %v8212 = vpop.xlane.xlu0 %8211
      %v8213 = vrcp.pop %v8119
      %v8214 = vrcp.pop %v8122
      %v8215 = vrcp.pop %v8125
      %v8216 = vrcp.pop %v8128
      %v8217 = vrcp.pop %v8131
      %v8218 = vrcp.pop %v8134
      %v8219 = vrcp.pop %v8137
      %v8220 = vrcp.pop %v8140
      %v8221 = vrcp.pop %v8143
      %v8222 = vrcp.pop %v8146
      %v8223 = vrcp.pop %v8149
      %v8224 = vrcp.pop %v8152
      %v8225 = vrcp.pop %v8155
      %v8226 = vrcp.pop %v8158
      %v8227 = vrcp.pop %v8161
      %v8228 = vrcp.pop %v8164
      %v8229 = vrcp.pop %v8167
      %v8230 = vrcp.pop %v8170
      %v8231 = vrcp.pop %v8173
      %v8232 = vrcp.pop %v8176
      %v8233 = vrcp.pop %v8179
      %v8234 = vrcp.pop %v8182
      %v8235 = vrcp.pop %v8185
      %v8236 = vrcp.pop %v8188
      %v8237 = vrcp.pop %v8191
      %v8238 = vrcp.pop %v8194
      %v8239 = vrcp.pop %v8197
      %v8240 = vrcp.pop %v8200
      %v8241 = vrcp.pop %v8203
      %v8242 = vrcp.pop %v8206
      %v8243 = vrcp.pop %v8209
      %v8244 = vrcp.pop %v8212
      %v8245 = vmul.f32 %v8054, %v8213
      %v8246 = vmul.f32 %v8056, %v8214
      %v8247 = vmul.f32 %v8058, %v8215
      %v8248 = vmul.f32 %v8060, %v8216
      %v8249 = vmul.f32 %v8062, %v8217
      %v8250 = vmul.f32 %v8064, %v8218
      %v8251 = vmul.f32 %v8066, %v8219
      %v8252 = vmul.f32 %v8068, %v8220
      %v8253 = vmul.f32 %v8070, %v8221
      %v8254 = vmul.f32 %v8072, %v8222
      %v8255 = vmul.f32 %v8074, %v8223
      %v8256 = vmul.f32 %v8076, %v8224
      %v8257 = vmul.f32 %v8078, %v8225
      %v8258 = vmul.f32 %v8080, %v8226
      %v8259 = vmul.f32 %v8082, %v8227
      %v8260 = vmul.f32 %v8084, %v8228
      %v8261 = vmul.f32 %v8086, %v8229
      %v8262 = vmul.f32 %v8088, %v8230
      %v8263 = vmul.f32 %v8090, %v8231
      %v8264 = vmul.f32 %v8092, %v8232
      %v8265 = vmul.f32 %v8094, %v8233
      %v8266 = vmul.f32 %v8096, %v8234
      %v8267 = vmul.f32 %v8098, %v8235
      %v8268 = vmul.f32 %v8100, %v8236
      %v8269 = vmul.f32 %v8102, %v8237
      %v8270 = vmul.f32 %v8104, %v8238
      %v8271 = vmul.f32 %v8106, %v8239
      %v8272 = vmul.f32 %v8108, %v8240
      %v8273 = vmul.f32 %v8110, %v8241
      %v8274 = vmul.f32 %v8112, %v8242
      %v8275 = vmul.f32 %v8114, %v8243
      %v8276 = vmul.f32 %v8116, %v8244
      %8277 = vrot.lane.b32.xlu0 %v1008, 40
      %v8278 = vpop.permute.xlu0 %8277
      %8279 = vrot.lane.b32.xlu0 %v1013, 40
      %v8280 = vpop.permute.xlu0 %8279
      %8281 = vrot.lane.b32.xlu0 %v1018, 40
      %v8282 = vpop.permute.xlu0 %8281
      %8283 = vrot.lane.b32.xlu0 %v1023, 40
      %v8284 = vpop.permute.xlu0 %8283
      %8285 = vrot.lane.b32.xlu0 %v1028, 40
      %v8286 = vpop.permute.xlu0 %8285
      %8287 = vrot.lane.b32.xlu0 %v1033, 40
      %v8288 = vpop.permute.xlu0 %8287
      %8289 = vrot.lane.b32.xlu0 %v1038, 40
      %v8290 = vpop.permute.xlu0 %8289
      %8291 = vrot.lane.b32.xlu0 %v1043, 40
      %v8292 = vpop.permute.xlu0 %8291
      %v8302 = vsel %vm1907, %v8245, 0
      %v8305 = vsel %vm1907, %v8246, 0
      %v8308 = vsel %vm1907, %v8247, 0
      %v8311 = vsel %vm1907, %v8248, 0
      %v8314 = vsel %vm1907, %v8249, 0
      %v8317 = vsel %vm1907, %v8250, 0
      %v8320 = vsel %vm1907, %v8251, 0
      %v8323 = vsel %vm1907, %v8252, 0
      %8325 = vmatprep.subr.mxu0 0.0
      %8326 = vmatpush1.msra.mxu0 %v8278
      %8327 = vmatprep.subr.mxu0 0.0
      %8328 = vmatpush1.msra.mxu0 %v8280
      %8329 = vmatprep.subr.mxu0 0.0
      %8330 = vmatpush1.msra.mxu0 %v8282
      %8331 = vmatprep.subr.mxu0 0.0
      %8332 = vmatpush1.msra.mxu0 %v8284
      %8333 = vmatprep.subr.mxu0 0.0
      %8334 = vmatpush1.msra.mxu0 %v8286
      %8335 = vmatprep.subr.mxu0 0.0
      %8336 = vmatpush1.msra.mxu0 %v8288
      %8337 = vmatprep.subr.mxu0 0.0
      %8338 = vmatpush1.msra.mxu0 %v8290
      %8339 = vmatprep.subr.mxu0 0.0
      %8340 = vmatpush1.msra.mxu0 %v8292
      %8341 = vmatprep.subr.mxu0 0.0
      %8342 = vmatpush1.msra.mxu0 0.0
      %8343 = vmatprep.subr.mxu0 0.0
      %8344 = vmatpush1.msra.mxu0 0.0
      %8345 = vmatprep.subr.mxu0 0.0
      %8346 = vmatpush1.msra.mxu0 0.0
      %8347 = vmatprep.subr.mxu0 0.0
      %8348 = vmatpush1.msra.mxu0 0.0
      %8349 = vmatprep.subr.mxu0 0.0
      %8350 = vmatpush1.msra.mxu0 0.0
      %8351 = vmatprep.subr.mxu0 0.0
      %8352 = vmatpush1.msra.mxu0 0.0
      %8353 = vmatprep.subr.mxu0 0.0
      %8354 = vmatpush1.msra.mxu0 0.0
      %8355 = vmatprep.subr.mxu0 0.0
      %8356 = vmatpush1.msra.mxu0 0.0
      %8357 = vmatprep.subr.mxu0 0.0
      %8358 = vmatpush1.msra.mxu0 0.0
      %8359 = vmatprep.subr.mxu0 0.0
      %8360 = vmatpush1.msra.mxu0 0.0
      %8361 = vmatprep.subr.mxu0 0.0
      %8362 = vmatpush1.msra.mxu0 0.0
      %8363 = vmatprep.subr.mxu0 0.0
      %8364 = vmatpush1.msra.mxu0 0.0
      %8365 = vmatprep.subr.mxu0 0.0
      %8366 = vmatpush1.msra.mxu0 0.0
      %8367 = vmatprep.subr.mxu0 0.0
      %8368 = vmatpush1.msra.mxu0 0.0
      %8369 = vmatprep.subr.mxu0 0.0
      %8370 = vmatpush1.msra.mxu0 0.0
      %8371 = vmatprep.subr.mxu0 0.0
      %8372 = vmatpush1.msra.mxu0 0.0
      %8373 = vmatprep.subr.mxu0 0.0
      %8374 = vmatpush1.msra.mxu0 0.0
      %8375 = vmatprep.subr.mxu0 0.0
      %8376 = vmatpush1.msra.mxu0 0.0
      %8377 = vmatprep.subr.mxu0 0.0
      %8378 = vmatpush1.msra.mxu0 0.0
      %8379 = vmatprep.subr.mxu0 0.0
      %8380 = vmatpush1.msra.mxu0 0.0
      %8381 = vmatprep.subr.mxu0 0.0
      %8382 = vmatpush1.msra.mxu0 0.0
      %8383 = vmatprep.subr.mxu0 0.0
      %8384 = vmatpush1.msra.mxu0 0.0
      %8385 = vmatprep.subr.mxu0 0.0
      %8386 = vmatpush1.msra.mxu0 0.0
      %8387 = vmatprep.subr.mxu0 0.0
      %8388 = vmatpush1.msra.mxu0 0.0
      %8389 = vmatprep.mubr.f32.mxu0 0.0
      %8390 = vmatmul.mubr.f32.gmra.mrb[0].mxu0 %v8302
      %v8391 = vpop.f32.mrb[0].mxu0
      %v8392 = vadd.f32 0.0, %v8391
      %v8393 = vpop.f32.mrb[0].mxu0
      %8394 = vmatprep.mubr.f32.mxu0 0.0
      %8395 = vmatmul.mubr.f32.gmra.mrb[0].mxu0 %v8305
      %v8396 = vpop.f32.mrb[0].mxu0
      %v8397 = vadd.f32 0.0, %v8396
      %v8398 = vpop.f32.mrb[0].mxu0
      %8399 = vmatprep.mubr.f32.mxu0 0.0
      %8400 = vmatmul.mubr.f32.gmra.mrb[0].mxu0 %v8308
      %v8401 = vpop.f32.mrb[0].mxu0
      %v8402 = vadd.f32 0.0, %v8401
      %v8403 = vpop.f32.mrb[0].mxu0
      %8404 = vmatprep.mubr.f32.mxu0 0.0
      %8405 = vmatmul.mubr.f32.gmra.mrb[0].mxu0 %v8311
      %v8406 = vpop.f32.mrb[0].mxu0
      %v8407 = vadd.f32 0.0, %v8406
      %v8408 = vpop.f32.mrb[0].mxu0
      %8409 = vmatprep.mubr.f32.mxu0 0.0
      %8410 = vmatmul.mubr.f32.gmra.mrb[0].mxu0 %v8314
      %v8411 = vpop.f32.mrb[0].mxu0
      %v8412 = vadd.f32 0.0, %v8411
      %v8413 = vpop.f32.mrb[0].mxu0
      %8414 = vmatprep.mubr.f32.mxu0 0.0
      %8415 = vmatmul.mubr.f32.gmra.mrb[0].mxu0 %v8317
      %v8416 = vpop.f32.mrb[0].mxu0
      %v8417 = vadd.f32 0.0, %v8416
      %v8418 = vpop.f32.mrb[0].mxu0
      %8419 = vmatprep.mubr.f32.mxu0 0.0
      %8420 = vmatmul.mubr.f32.gmra.mrb[0].mxu0 %v8320
      %v8421 = vpop.f32.mrb[0].mxu0
      %v8422 = vadd.f32 0.0, %v8421
      %v8423 = vpop.f32.mrb[0].mxu0
      %8424 = vmatprep.mubr.f32.mxu0 0.0
      %8425 = vmatmul.mubr.f32.gmra.mrb[0].mxu0 %v8323
      %v8426 = vpop.f32.mrb[0].mxu0
      %v8427 = vadd.f32 0.0, %v8426
      %v8428 = vpop.f32.mrb[0].mxu0
      %8429 = vdwg.mxu0
      %8430 = vrot.lane.b32.xlu0 %v1048, 40
      %v8431 = vpop.permute.xlu0 %8430
      %8432 = vrot.lane.b32.xlu0 %v1053, 40
      %v8433 = vpop.permute.xlu0 %8432
      %8434 = vrot.lane.b32.xlu0 %v1058, 40
      %v8435 = vpop.permute.xlu0 %8434
      %8436 = vrot.lane.b32.xlu0 %v1063, 40
      %v8437 = vpop.permute.xlu0 %8436
      %8438 = vrot.lane.b32.xlu0 %v1068, 40
      %v8439 = vpop.permute.xlu0 %8438
      %8440 = vrot.lane.b32.xlu0 %v1073, 40
      %v8441 = vpop.permute.xlu0 %8440
      %8442 = vrot.lane.b32.xlu0 %v1078, 40
      %v8443 = vpop.permute.xlu0 %8442
      %8444 = vrot.lane.b32.xlu0 %v1083, 40
      %v8445 = vpop.permute.xlu0 %8444
      %v8455 = vsel %vm1907, %v8253, 0
      %v8458 = vsel %vm1907, %v8254, 0
      %v8461 = vsel %vm1907, %v8255, 0
      %v8464 = vsel %vm1907, %v8256, 0
      %v8467 = vsel %vm1907, %v8257, 0
      %v8470 = vsel %vm1907, %v8258, 0
      %v8473 = vsel %vm1907, %v8259, 0
      %v8476 = vsel %vm1907, %v8260, 0
      %8478 = vmatprep.subr.mxu0 0.0
      %8479 = vmatpush1.msra.mxu0 %v8431
      %8480 = vmatprep.subr.mxu0 0.0
      %8481 = vmatpush1.msra.mxu0 %v8433
      %8482 = vmatprep.subr.mxu0 0.0
      %8483 = vmatpush1.msra.mxu0 %v8435
      %8484 = vmatprep.subr.mxu0 0.0
      %8485 = vmatpush1.msra.mxu0 %v8437
      %8486 = vmatprep.subr.mxu0 0.0
      %8487 = vmatpush1.msra.mxu0 %v8439
      %8488 = vmatprep.subr.mxu0 0.0
      %8489 = vmatpush1.msra.mxu0 %v8441
      %8490 = vmatprep.subr.mxu0 0.0
      %8491 = vmatpush1.msra.mxu0 %v8443
      %8492 = vmatprep.subr.mxu0 0.0
      %8493 = vmatpush1.msra.mxu0 %v8445
      %8494 = vmatprep.subr.mxu0 0.0
      %8495 = vmatpush1.msra.mxu0 0.0
      %8496 = vmatprep.subr.mxu0 0.0
      %8497 = vmatpush1.msra.mxu0 0.0
      %8498 = vmatprep.subr.mxu0 0.0
      %8499 = vmatpush1.msra.mxu0 0.0
      %8500 = vmatprep.subr.mxu0 0.0
      %8501 = vmatpush1.msra.mxu0 0.0
      %8502 = vmatprep.subr.mxu0 0.0
      %8503 = vmatpush1.msra.mxu0 0.0
      %8504 = vmatprep.subr.mxu0 0.0
      %8505 = vmatpush1.msra.mxu0 0.0
      %8506 = vmatprep.subr.mxu0 0.0
      %8507 = vmatpush1.msra.mxu0 0.0
      %8508 = vmatprep.subr.mxu0 0.0
      %8509 = vmatpush1.msra.mxu0 0.0
      %8510 = vmatprep.subr.mxu0 0.0
      %8511 = vmatpush1.msra.mxu0 0.0
      %8512 = vmatprep.subr.mxu0 0.0
      %8513 = vmatpush1.msra.mxu0 0.0
      %8514 = vmatprep.subr.mxu0 0.0
      %8515 = vmatpush1.msra.mxu0 0.0
      %8516 = vmatprep.subr.mxu0 0.0
      %8517 = vmatpush1.msra.mxu0 0.0
      %8518 = vmatprep.subr.mxu0 0.0
      %8519 = vmatpush1.msra.mxu0 0.0
      %8520 = vmatprep.subr.mxu0 0.0
      %8521 = vmatpush1.msra.mxu0 0.0
      %8522 = vmatprep.subr.mxu0 0.0
      %8523 = vmatpush1.msra.mxu0 0.0
      %8524 = vmatprep.subr.mxu0 0.0
      %8525 = vmatpush1.msra.mxu0 0.0
      %8526 = vmatprep.subr.mxu0 0.0
      %8527 = vmatpush1.msra.mxu0 0.0
      %8528 = vmatprep.subr.mxu0 0.0
      %8529 = vmatpush1.msra.mxu0 0.0
      %8530 = vmatprep.subr.mxu0 0.0
      %8531 = vmatpush1.msra.mxu0 0.0
      %8532 = vmatprep.subr.mxu0 0.0
      %8533 = vmatpush1.msra.mxu0 0.0
      %8534 = vmatprep.subr.mxu0 0.0
      %8535 = vmatpush1.msra.mxu0 0.0
      %8536 = vmatprep.subr.mxu0 0.0
      %8537 = vmatpush1.msra.mxu0 0.0
      %8538 = vmatprep.subr.mxu0 0.0
      %8539 = vmatpush1.msra.mxu0 0.0
      %8540 = vmatprep.subr.mxu0 0.0
      %8541 = vmatpush1.msra.mxu0 0.0
      %8542 = vmatprep.mubr.f32.mxu0 0.0
      %8543 = vmatmul.mubr.f32.gmra.mrb[0].mxu0 %v8455
      %v8544 = vpop.f32.mrb[0].mxu0
      %v8545 = vadd.f32 0.0, %v8544
      %v8546 = vpop.f32.mrb[0].mxu0
      %8547 = vmatprep.mubr.f32.mxu0 0.0
      %8548 = vmatmul.mubr.f32.gmra.mrb[0].mxu0 %v8458
      %v8549 = vpop.f32.mrb[0].mxu0
      %v8550 = vadd.f32 0.0, %v8549
      %v8551 = vpop.f32.mrb[0].mxu0
      %8552 = vmatprep.mubr.f32.mxu0 0.0
      %8553 = vmatmul.mubr.f32.gmra.mrb[0].mxu0 %v8461
      %v8554 = vpop.f32.mrb[0].mxu0
      %v8555 = vadd.f32 0.0, %v8554
      %v8556 = vpop.f32.mrb[0].mxu0
      %8557 = vmatprep.mubr.f32.mxu0 0.0
      %8558 = vmatmul.mubr.f32.gmra.mrb[0].mxu0 %v8464
      %v8559 = vpop.f32.mrb[0].mxu0
      %v8560 = vadd.f32 0.0, %v8559
      %v8561 = vpop.f32.mrb[0].mxu0
      %8562 = vmatprep.mubr.f32.mxu0 0.0
      %8563 = vmatmul.mubr.f32.gmra.mrb[0].mxu0 %v8467
      %v8564 = vpop.f32.mrb[0].mxu0
      %v8565 = vadd.f32 0.0, %v8564
      %v8566 = vpop.f32.mrb[0].mxu0
      %8567 = vmatprep.mubr.f32.mxu0 0.0
      %8568 = vmatmul.mubr.f32.gmra.mrb[0].mxu0 %v8470
      %v8569 = vpop.f32.mrb[0].mxu0
      %v8570 = vadd.f32 0.0, %v8569
      %v8571 = vpop.f32.mrb[0].mxu0
      %8572 = vmatprep.mubr.f32.mxu0 0.0
      %8573 = vmatmul.mubr.f32.gmra.mrb[0].mxu0 %v8473
      %v8574 = vpop.f32.mrb[0].mxu0
      %v8575 = vadd.f32 0.0, %v8574
      %v8576 = vpop.f32.mrb[0].mxu0
      %8577 = vmatprep.mubr.f32.mxu0 0.0
      %8578 = vmatmul.mubr.f32.gmra.mrb[0].mxu0 %v8476
      %v8579 = vpop.f32.mrb[0].mxu0
      %v8580 = vadd.f32 0.0, %v8579
      %v8581 = vpop.f32.mrb[0].mxu0
      %8582 = vdwg.mxu0
      %8583 = vrot.lane.b32.xlu0 %v1088, 40
      %v8584 = vpop.permute.xlu0 %8583
      %8585 = vrot.lane.b32.xlu0 %v1093, 40
      %v8586 = vpop.permute.xlu0 %8585
      %8587 = vrot.lane.b32.xlu0 %v1098, 40
      %v8588 = vpop.permute.xlu0 %8587
      %8589 = vrot.lane.b32.xlu0 %v1103, 40
      %v8590 = vpop.permute.xlu0 %8589
      %8591 = vrot.lane.b32.xlu0 %v1108, 40
      %v8592 = vpop.permute.xlu0 %8591
      %8593 = vrot.lane.b32.xlu0 %v1113, 40
      %v8594 = vpop.permute.xlu0 %8593
      %8595 = vrot.lane.b32.xlu0 %v1118, 40
      %v8596 = vpop.permute.xlu0 %8595
      %8597 = vrot.lane.b32.xlu0 %v1123, 40
      %v8598 = vpop.permute.xlu0 %8597
      %v8608 = vsel %vm1907, %v8261, 0
      %v8611 = vsel %vm1907, %v8262, 0
      %v8614 = vsel %vm1907, %v8263, 0
      %v8617 = vsel %vm1907, %v8264, 0
      %v8620 = vsel %vm1907, %v8265, 0
      %v8623 = vsel %vm1907, %v8266, 0
      %v8626 = vsel %vm1907, %v8267, 0
      %v8629 = vsel %vm1907, %v8268, 0
      %8631 = vmatprep.subr.mxu0 0.0
      %8632 = vmatpush1.msra.mxu0 %v8584
      %8633 = vmatprep.subr.mxu0 0.0
      %8634 = vmatpush1.msra.mxu0 %v8586
      %8635 = vmatprep.subr.mxu0 0.0
      %8636 = vmatpush1.msra.mxu0 %v8588
      %8637 = vmatprep.subr.mxu0 0.0
      %8638 = vmatpush1.msra.mxu0 %v8590
      %8639 = vmatprep.subr.mxu0 0.0
      %8640 = vmatpush1.msra.mxu0 %v8592
      %8641 = vmatprep.subr.mxu0 0.0
      %8642 = vmatpush1.msra.mxu0 %v8594
      %8643 = vmatprep.subr.mxu0 0.0
      %8644 = vmatpush1.msra.mxu0 %v8596
      %8645 = vmatprep.subr.mxu0 0.0
      %8646 = vmatpush1.msra.mxu0 %v8598
      %8647 = vmatprep.subr.mxu0 0.0
      %8648 = vmatpush1.msra.mxu0 0.0
      %8649 = vmatprep.subr.mxu0 0.0
      %8650 = vmatpush1.msra.mxu0 0.0
      %8651 = vmatprep.subr.mxu0 0.0
      %8652 = vmatpush1.msra.mxu0 0.0
      %8653 = vmatprep.subr.mxu0 0.0
      %8654 = vmatpush1.msra.mxu0 0.0
      %8655 = vmatprep.subr.mxu0 0.0
      %8656 = vmatpush1.msra.mxu0 0.0
      %8657 = vmatprep.subr.mxu0 0.0
      %8658 = vmatpush1.msra.mxu0 0.0
      %8659 = vmatprep.subr.mxu0 0.0
      %8660 = vmatpush1.msra.mxu0 0.0
      %8661 = vmatprep.subr.mxu0 0.0
      %8662 = vmatpush1.msra.mxu0 0.0
      %8663 = vmatprep.subr.mxu0 0.0
      %8664 = vmatpush1.msra.mxu0 0.0
      %8665 = vmatprep.subr.mxu0 0.0
      %8666 = vmatpush1.msra.mxu0 0.0
      %8667 = vmatprep.subr.mxu0 0.0
      %8668 = vmatpush1.msra.mxu0 0.0
      %8669 = vmatprep.subr.mxu0 0.0
      %8670 = vmatpush1.msra.mxu0 0.0
      %8671 = vmatprep.subr.mxu0 0.0
      %8672 = vmatpush1.msra.mxu0 0.0
      %8673 = vmatprep.subr.mxu0 0.0
      %8674 = vmatpush1.msra.mxu0 0.0
      %8675 = vmatprep.subr.mxu0 0.0
      %8676 = vmatpush1.msra.mxu0 0.0
      %8677 = vmatprep.subr.mxu0 0.0
      %8678 = vmatpush1.msra.mxu0 0.0
      %8679 = vmatprep.subr.mxu0 0.0
      %8680 = vmatpush1.msra.mxu0 0.0
      %8681 = vmatprep.subr.mxu0 0.0
      %8682 = vmatpush1.msra.mxu0 0.0
      %8683 = vmatprep.subr.mxu0 0.0
      %8684 = vmatpush1.msra.mxu0 0.0
      %8685 = vmatprep.subr.mxu0 0.0
      %8686 = vmatpush1.msra.mxu0 0.0
      %8687 = vmatprep.subr.mxu0 0.0
      %8688 = vmatpush1.msra.mxu0 0.0
      %8689 = vmatprep.subr.mxu0 0.0
      %8690 = vmatpush1.msra.mxu0 0.0
      %8691 = vmatprep.subr.mxu0 0.0
      %8692 = vmatpush1.msra.mxu0 0.0
      %8693 = vmatprep.subr.mxu0 0.0
      %8694 = vmatpush1.msra.mxu0 0.0
      %8695 = vmatprep.mubr.f32.mxu0 0.0
      %8696 = vmatmul.mubr.f32.gmra.mrb[0].mxu0 %v8608
      %v8697 = vpop.f32.mrb[0].mxu0
      %v8698 = vadd.f32 0.0, %v8697
      %v8699 = vpop.f32.mrb[0].mxu0
      %8700 = vmatprep.mubr.f32.mxu0 0.0
      %8701 = vmatmul.mubr.f32.gmra.mrb[0].mxu0 %v8611
      %v8702 = vpop.f32.mrb[0].mxu0
      %v8703 = vadd.f32 0.0, %v8702
      %v8704 = vpop.f32.mrb[0].mxu0
      %8705 = vmatprep.mubr.f32.mxu0 0.0
      %8706 = vmatmul.mubr.f32.gmra.mrb[0].mxu0 %v8614
      %v8707 = vpop.f32.mrb[0].mxu0
      %v8708 = vadd.f32 0.0, %v8707
      %v8709 = vpop.f32.mrb[0].mxu0
      %8710 = vmatprep.mubr.f32.mxu0 0.0
      %8711 = vmatmul.mubr.f32.gmra.mrb[0].mxu0 %v8617
      %v8712 = vpop.f32.mrb[0].mxu0
      %v8713 = vadd.f32 0.0, %v8712
      %v8714 = vpop.f32.mrb[0].mxu0
      %8715 = vmatprep.mubr.f32.mxu0 0.0
      %8716 = vmatmul.mubr.f32.gmra.mrb[0].mxu0 %v8620
      %v8717 = vpop.f32.mrb[0].mxu0
      %v8718 = vadd.f32 0.0, %v8717
      %v8719 = vpop.f32.mrb[0].mxu0
      %8720 = vmatprep.mubr.f32.mxu0 0.0
      %8721 = vmatmul.mubr.f32.gmra.mrb[0].mxu0 %v8623
      %v8722 = vpop.f32.mrb[0].mxu0
      %v8723 = vadd.f32 0.0, %v8722
      %v8724 = vpop.f32.mrb[0].mxu0
      %8725 = vmatprep.mubr.f32.mxu0 0.0
      %8726 = vmatmul.mubr.f32.gmra.mrb[0].mxu0 %v8626
      %v8727 = vpop.f32.mrb[0].mxu0
      %v8728 = vadd.f32 0.0, %v8727
      %v8729 = vpop.f32.mrb[0].mxu0
      %8730 = vmatprep.mubr.f32.mxu0 0.0
      %8731 = vmatmul.mubr.f32.gmra.mrb[0].mxu0 %v8629
      %v8732 = vpop.f32.mrb[0].mxu0
      %v8733 = vadd.f32 0.0, %v8732
      %v8734 = vpop.f32.mrb[0].mxu0
      %8735 = vdwg.mxu0
      %8736 = vrot.lane.b32.xlu0 %v1128, 40
      %v8737 = vpop.permute.xlu0 %8736
      %8738 = vrot.lane.b32.xlu0 %v1133, 40
      %v8739 = vpop.permute.xlu0 %8738
      %8740 = vrot.lane.b32.xlu0 %v1138, 40
      %v8741 = vpop.permute.xlu0 %8740
      %8742 = vrot.lane.b32.xlu0 %v1143, 40
      %v8743 = vpop.permute.xlu0 %8742
      %8744 = vrot.lane.b32.xlu0 %v1148, 40
      %v8745 = vpop.permute.xlu0 %8744
      %8746 = vrot.lane.b32.xlu0 %v1153, 40
      %v8747 = vpop.permute.xlu0 %8746
      %8748 = vrot.lane.b32.xlu0 %v1158, 40
      %v8749 = vpop.permute.xlu0 %8748
      %8750 = vrot.lane.b32.xlu0 %v1163, 40
      %v8751 = vpop.permute.xlu0 %8750
      %v8761 = vsel %vm1907, %v8269, 0
      %v8764 = vsel %vm1907, %v8270, 0
      %v8767 = vsel %vm1907, %v8271, 0
      %v8770 = vsel %vm1907, %v8272, 0
      %v8773 = vsel %vm1907, %v8273, 0
      %v8776 = vsel %vm1907, %v8274, 0
      %v8779 = vsel %vm1907, %v8275, 0
      %v8782 = vsel %vm1907, %v8276, 0
      %8784 = vmatprep.subr.mxu0 0.0
      %8785 = vmatpush1.msra.mxu0 %v8737
      %8786 = vmatprep.subr.mxu0 0.0
      %8787 = vmatpush1.msra.mxu0 %v8739
      %8788 = vmatprep.subr.mxu0 0.0
      %8789 = vmatpush1.msra.mxu0 %v8741
      %8790 = vmatprep.subr.mxu0 0.0
      %8791 = vmatpush1.msra.mxu0 %v8743
      %8792 = vmatprep.subr.mxu0 0.0
      %8793 = vmatpush1.msra.mxu0 %v8745
      %8794 = vmatprep.subr.mxu0 0.0
      %8795 = vmatpush1.msra.mxu0 %v8747
      %8796 = vmatprep.subr.mxu0 0.0
      %8797 = vmatpush1.msra.mxu0 %v8749
      %8798 = vmatprep.subr.mxu0 0.0
      %8799 = vmatpush1.msra.mxu0 %v8751
      %8800 = vmatprep.subr.mxu0 0.0
      %8801 = vmatpush1.msra.mxu0 0.0
      %8802 = vmatprep.subr.mxu0 0.0
      %8803 = vmatpush1.msra.mxu0 0.0
      %8804 = vmatprep.subr.mxu0 0.0
      %8805 = vmatpush1.msra.mxu0 0.0
      %8806 = vmatprep.subr.mxu0 0.0
      %8807 = vmatpush1.msra.mxu0 0.0
      %8808 = vmatprep.subr.mxu0 0.0
      %8809 = vmatpush1.msra.mxu0 0.0
      %8810 = vmatprep.subr.mxu0 0.0
      %8811 = vmatpush1.msra.mxu0 0.0
      %8812 = vmatprep.subr.mxu0 0.0
      %8813 = vmatpush1.msra.mxu0 0.0
      %8814 = vmatprep.subr.mxu0 0.0
      %8815 = vmatpush1.msra.mxu0 0.0
      %8816 = vmatprep.subr.mxu0 0.0
      %8817 = vmatpush1.msra.mxu0 0.0
      %8818 = vmatprep.subr.mxu0 0.0
      %8819 = vmatpush1.msra.mxu0 0.0
      %8820 = vmatprep.subr.mxu0 0.0
      %8821 = vmatpush1.msra.mxu0 0.0
      %8822 = vmatprep.subr.mxu0 0.0
      %8823 = vmatpush1.msra.mxu0 0.0
      %8824 = vmatprep.subr.mxu0 0.0
      %8825 = vmatpush1.msra.mxu0 0.0
      %8826 = vmatprep.subr.mxu0 0.0
      %8827 = vmatpush1.msra.mxu0 0.0
      %8828 = vmatprep.subr.mxu0 0.0
      %8829 = vmatpush1.msra.mxu0 0.0
      %8830 = vmatprep.subr.mxu0 0.0
      %8831 = vmatpush1.msra.mxu0 0.0
      %8832 = vmatprep.subr.mxu0 0.0
      %8833 = vmatpush1.msra.mxu0 0.0
      %8834 = vmatprep.subr.mxu0 0.0
      %8835 = vmatpush1.msra.mxu0 0.0
      %8836 = vmatprep.subr.mxu0 0.0
      %8837 = vmatpush1.msra.mxu0 0.0
      %8838 = vmatprep.subr.mxu0 0.0
      %8839 = vmatpush1.msra.mxu0 0.0
      %8840 = vmatprep.subr.mxu0 0.0
      %8841 = vmatpush1.msra.mxu0 0.0
      %8842 = vmatprep.subr.mxu0 0.0
      %8843 = vmatpush1.msra.mxu0 0.0
      %8844 = vmatprep.subr.mxu0 0.0
      %8845 = vmatpush1.msra.mxu0 0.0
      %8846 = vmatprep.subr.mxu0 0.0
      %8847 = vmatpush1.msra.mxu0 0.0
      %8848 = vmatprep.mubr.f32.mxu0 0.0
      %8849 = vmatmul.mubr.f32.gmra.mrb[0].mxu0 %v8761
      %v8850 = vpop.f32.mrb[0].mxu0
      %v8851 = vadd.f32 0.0, %v8850
      %v8852 = vpop.f32.mrb[0].mxu0
      %8853 = vmatprep.mubr.f32.mxu0 0.0
      %8854 = vmatmul.mubr.f32.gmra.mrb[0].mxu0 %v8764
      %v8855 = vpop.f32.mrb[0].mxu0
      %v8856 = vadd.f32 0.0, %v8855
      %v8857 = vpop.f32.mrb[0].mxu0
      %8858 = vmatprep.mubr.f32.mxu0 0.0
      %8859 = vmatmul.mubr.f32.gmra.mrb[0].mxu0 %v8767
      %v8860 = vpop.f32.mrb[0].mxu0
      %v8861 = vadd.f32 0.0, %v8860
      %v8862 = vpop.f32.mrb[0].mxu0
      %8863 = vmatprep.mubr.f32.mxu0 0.0
      %8864 = vmatmul.mubr.f32.gmra.mrb[0].mxu0 %v8770
      %v8865 = vpop.f32.mrb[0].mxu0
      %v8866 = vadd.f32 0.0, %v8865
      %v8867 = vpop.f32.mrb[0].mxu0
      %8868 = vmatprep.mubr.f32.mxu0 0.0
      %8869 = vmatmul.mubr.f32.gmra.mrb[0].mxu0 %v8773
      %v8870 = vpop.f32.mrb[0].mxu0
      %v8871 = vadd.f32 0.0, %v8870
      %v8872 = vpop.f32.mrb[0].mxu0
      %8873 = vmatprep.mubr.f32.mxu0 0.0
      %8874 = vmatmul.mubr.f32.gmra.mrb[0].mxu0 %v8776
      %v8875 = vpop.f32.mrb[0].mxu0
      %v8876 = vadd.f32 0.0, %v8875
      %v8877 = vpop.f32.mrb[0].mxu0
      %8878 = vmatprep.mubr.f32.mxu0 0.0
      %8879 = vmatmul.mubr.f32.gmra.mrb[0].mxu0 %v8779
      %v8880 = vpop.f32.mrb[0].mxu0
      %v8881 = vadd.f32 0.0, %v8880
      %v8882 = vpop.f32.mrb[0].mxu0
      %8883 = vmatprep.mubr.f32.mxu0 0.0
      %8884 = vmatmul.mubr.f32.gmra.mrb[0].mxu0 %v8782
      %v8885 = vpop.f32.mrb[0].mxu0
      %v8886 = vadd.f32 0.0, %v8885
      %v8887 = vpop.f32.mrb[0].mxu0
      %8888 = vdwg.mxu0
      %v8889 = vld [vmem:[%s3 + $0x18] sm:$0xff]
      %v8891 = vsel %vm1254, %v8392, 0
      %v8894 = vsel %vm1254, %v8397, 0
      %v8897 = vsel %vm1254, %v8402, 0
      %v8900 = vsel %vm1254, %v8407, 0
      %v8903 = vsel %vm1254, %v8412, 0
      %v8906 = vsel %vm1254, %v8417, 0
      %v8909 = vsel %vm1254, %v8422, 0
      %v8912 = vsel %vm1254, %v8427, 0
      %v8915 = vsel %vm1254, %v8545, 0
      %v8918 = vsel %vm1254, %v8550, 0
      %v8921 = vsel %vm1254, %v8555, 0
      %v8924 = vsel %vm1254, %v8560, 0
      %v8927 = vsel %vm1254, %v8565, 0
      %v8930 = vsel %vm1254, %v8570, 0
      %v8933 = vsel %vm1254, %v8575, 0
      %v8936 = vsel %vm1254, %v8580, 0
      %v8939 = vsel %vm1254, %v8698, 0
      %v8942 = vsel %vm1254, %v8703, 0
      %v8945 = vsel %vm1254, %v8708, 0
      %v8948 = vsel %vm1254, %v8713, 0
      %v8951 = vsel %vm1254, %v8718, 0
      %v8954 = vsel %vm1254, %v8723, 0
      %v8957 = vsel %vm1254, %v8728, 0
      %v8960 = vsel %vm1254, %v8733, 0
      %v8963 = vsel %vm1254, %v8851, 0
      %v8966 = vsel %vm1254, %v8856, 0
      %v8969 = vsel %vm1254, %v8861, 0
      %v8972 = vsel %vm1254, %v8866, 0
      %v8975 = vsel %vm1254, %v8871, 0
      %v8978 = vsel %vm1254, %v8876, 0
      %v8981 = vsel %vm1254, %v8881, 0
      %v8984 = vsel %vm1254, %v8886, 0
      %8986 = vmatprep.subr.mxu0 0.0
      %8987 = vmatpush1.msra.mxu0 %v8889
      %8988 = vmatprep.subr.mxu0 0.0
      %8989 = vmatpush1.msra.mxu0 0.0
      %8990 = vmatprep.subr.mxu0 0.0
      %8991 = vmatpush1.msra.mxu0 0.0
      %8992 = vmatprep.subr.mxu0 0.0
      %8993 = vmatpush1.msra.mxu0 0.0
      %8994 = vmatprep.subr.mxu0 0.0
      %8995 = vmatpush1.msra.mxu0 0.0
      %8996 = vmatprep.subr.mxu0 0.0
      %8997 = vmatpush1.msra.mxu0 0.0
      %8998 = vmatprep.subr.mxu0 0.0
      %8999 = vmatpush1.msra.mxu0 0.0
      %9000 = vmatprep.subr.mxu0 0.0
      %9001 = vmatpush1.msra.mxu0 0.0
      %9002 = vmatprep.subr.mxu0 0.0
      %9003 = vmatpush1.msra.mxu0 0.0
      %9004 = vmatprep.subr.mxu0 0.0
      %9005 = vmatpush1.msra.mxu0 0.0
      %9006 = vmatprep.subr.mxu0 0.0
      %9007 = vmatpush1.msra.mxu0 0.0
      %9008 = vmatprep.subr.mxu0 0.0
      %9009 = vmatpush1.msra.mxu0 0.0
      %9010 = vmatprep.subr.mxu0 0.0
      %9011 = vmatpush1.msra.mxu0 0.0
      %9012 = vmatprep.subr.mxu0 0.0
      %9013 = vmatpush1.msra.mxu0 0.0
      %9014 = vmatprep.subr.mxu0 0.0
      %9015 = vmatpush1.msra.mxu0 0.0
      %9016 = vmatprep.subr.mxu0 0.0
      %9017 = vmatpush1.msra.mxu0 0.0
      %9018 = vmatprep.subr.mxu0 0.0
      %9019 = vmatpush1.msra.mxu0 0.0
      %9020 = vmatprep.subr.mxu0 0.0
      %9021 = vmatpush1.msra.mxu0 0.0
      %9022 = vmatprep.subr.mxu0 0.0
      %9023 = vmatpush1.msra.mxu0 0.0
      %9024 = vmatprep.subr.mxu0 0.0
      %9025 = vmatpush1.msra.mxu0 0.0
      %9026 = vmatprep.subr.mxu0 0.0
      %9027 = vmatpush1.msra.mxu0 0.0
      %9028 = vmatprep.subr.mxu0 0.0
      %9029 = vmatpush1.msra.mxu0 0.0
      %9030 = vmatprep.subr.mxu0 0.0
      %9031 = vmatpush1.msra.mxu0 0.0
      %9032 = vmatprep.subr.mxu0 0.0
      %9033 = vmatpush1.msra.mxu0 0.0
      %9034 = vmatprep.subr.mxu0 0.0
      %9035 = vmatpush1.msra.mxu0 0.0
      %9036 = vmatprep.subr.mxu0 0.0
      %9037 = vmatpush1.msra.mxu0 0.0
      %9038 = vmatprep.subr.mxu0 0.0
      %9039 = vmatpush1.msra.mxu0 0.0
      %9040 = vmatprep.subr.mxu0 0.0
      %9041 = vmatpush1.msra.mxu0 0.0
      %9042 = vmatprep.subr.mxu0 0.0
      %9043 = vmatpush1.msra.mxu0 0.0
      %9044 = vmatprep.subr.mxu0 0.0
      %9045 = vmatpush1.msra.mxu0 0.0
      %9046 = vmatprep.subr.mxu0 0.0
      %9047 = vmatpush1.msra.mxu0 0.0
      %9048 = vmatprep.subr.mxu0 0.0
      %9049 = vmatpush1.msra.mxu0 0.0
      %9050 = vmatprep.mubr.f32.mxu0 0.0
      %9051 = vmatmul.mubr.f32.gmra.mrb[0].mxu0 %v8891
      %v9052 = vpop.f32.mrb[0].mxu0
      %v9053 = vadd.f32 0.0, %v9052
      %v9054 = vpop.f32.mrb[0].mxu0
      %9055 = vmatprep.mubr.f32.mxu0 0.0
      %9056 = vmatmul.mubr.f32.gmra.mrb[0].mxu0 %v8894
      %v9057 = vpop.f32.mrb[0].mxu0
      %v9058 = vadd.f32 0.0, %v9057
      %v9059 = vpop.f32.mrb[0].mxu0
      %9060 = vmatprep.mubr.f32.mxu0 0.0
      %9061 = vmatmul.mubr.f32.gmra.mrb[0].mxu0 %v8897
      %v9062 = vpop.f32.mrb[0].mxu0
      %v9063 = vadd.f32 0.0, %v9062
      %v9064 = vpop.f32.mrb[0].mxu0
      %9065 = vmatprep.mubr.f32.mxu0 0.0
      %9066 = vmatmul.mubr.f32.gmra.mrb[0].mxu0 %v8900
      %v9067 = vpop.f32.mrb[0].mxu0
      %v9068 = vadd.f32 0.0, %v9067
      %v9069 = vpop.f32.mrb[0].mxu0
      %9070 = vmatprep.mubr.f32.mxu0 0.0
      %9071 = vmatmul.mubr.f32.gmra.mrb[0].mxu0 %v8903
      %v9072 = vpop.f32.mrb[0].mxu0
      %v9073 = vadd.f32 0.0, %v9072
      %v9074 = vpop.f32.mrb[0].mxu0
      %9075 = vmatprep.mubr.f32.mxu0 0.0
      %9076 = vmatmul.mubr.f32.gmra.mrb[0].mxu0 %v8906
      %v9077 = vpop.f32.mrb[0].mxu0
      %v9078 = vadd.f32 0.0, %v9077
      %v9079 = vpop.f32.mrb[0].mxu0
      %9080 = vmatprep.mubr.f32.mxu0 0.0
      %9081 = vmatmul.mubr.f32.gmra.mrb[0].mxu0 %v8909
      %v9082 = vpop.f32.mrb[0].mxu0
      %v9083 = vadd.f32 0.0, %v9082
      %v9084 = vpop.f32.mrb[0].mxu0
      %9085 = vmatprep.mubr.f32.mxu0 0.0
      %9086 = vmatmul.mubr.f32.gmra.mrb[0].mxu0 %v8912
      %v9087 = vpop.f32.mrb[0].mxu0
      %v9088 = vadd.f32 0.0, %v9087
      %v9089 = vpop.f32.mrb[0].mxu0
      %9090 = vmatprep.mubr.f32.mxu0 0.0
      %9091 = vmatmul.mubr.f32.gmra.mrb[0].mxu0 %v8915
      %v9092 = vpop.f32.mrb[0].mxu0
      %v9093 = vadd.f32 0.0, %v9092
      %v9094 = vpop.f32.mrb[0].mxu0
      %9095 = vmatprep.mubr.f32.mxu0 0.0
      %9096 = vmatmul.mubr.f32.gmra.mrb[0].mxu0 %v8918
      %v9097 = vpop.f32.mrb[0].mxu0
      %v9098 = vadd.f32 0.0, %v9097
      %v9099 = vpop.f32.mrb[0].mxu0
      %9100 = vmatprep.mubr.f32.mxu0 0.0
      %9101 = vmatmul.mubr.f32.gmra.mrb[0].mxu0 %v8921
      %v9102 = vpop.f32.mrb[0].mxu0
      %v9103 = vadd.f32 0.0, %v9102
      %v9104 = vpop.f32.mrb[0].mxu0
      %9105 = vmatprep.mubr.f32.mxu0 0.0
      %9106 = vmatmul.mubr.f32.gmra.mrb[0].mxu0 %v8924
      %v9107 = vpop.f32.mrb[0].mxu0
      %v9108 = vadd.f32 0.0, %v9107
      %v9109 = vpop.f32.mrb[0].mxu0
      %9110 = vmatprep.mubr.f32.mxu0 0.0
      %9111 = vmatmul.mubr.f32.gmra.mrb[0].mxu0 %v8927
      %v9112 = vpop.f32.mrb[0].mxu0
      %v9113 = vadd.f32 0.0, %v9112
      %v9114 = vpop.f32.mrb[0].mxu0
      %9115 = vmatprep.mubr.f32.mxu0 0.0
      %9116 = vmatmul.mubr.f32.gmra.mrb[0].mxu0 %v8930
      %v9117 = vpop.f32.mrb[0].mxu0
      %v9118 = vadd.f32 0.0, %v9117
      %v9119 = vpop.f32.mrb[0].mxu0
      %9120 = vmatprep.mubr.f32.mxu0 0.0
      %9121 = vmatmul.mubr.f32.gmra.mrb[0].mxu0 %v8933
      %v9122 = vpop.f32.mrb[0].mxu0
      %v9123 = vadd.f32 0.0, %v9122
      %v9124 = vpop.f32.mrb[0].mxu0
      %9125 = vmatprep.mubr.f32.mxu0 0.0
      %9126 = vmatmul.mubr.f32.gmra.mrb[0].mxu0 %v8936
      %v9127 = vpop.f32.mrb[0].mxu0
      %v9128 = vadd.f32 0.0, %v9127
      %v9129 = vpop.f32.mrb[0].mxu0
      %9130 = vmatprep.mubr.f32.mxu0 0.0
      %9131 = vmatmul.mubr.f32.gmra.mrb[0].mxu0 %v8939
      %v9132 = vpop.f32.mrb[0].mxu0
      %v9133 = vadd.f32 0.0, %v9132
      %v9134 = vpop.f32.mrb[0].mxu0
      %9135 = vmatprep.mubr.f32.mxu0 0.0
      %9136 = vmatmul.mubr.f32.gmra.mrb[0].mxu0 %v8942
      %v9137 = vpop.f32.mrb[0].mxu0
      %v9138 = vadd.f32 0.0, %v9137
      %v9139 = vpop.f32.mrb[0].mxu0
      %9140 = vmatprep.mubr.f32.mxu0 0.0
      %9141 = vmatmul.mubr.f32.gmra.mrb[0].mxu0 %v8945
      %v9142 = vpop.f32.mrb[0].mxu0
      %v9143 = vadd.f32 0.0, %v9142
      %v9144 = vpop.f32.mrb[0].mxu0
      %9145 = vmatprep.mubr.f32.mxu0 0.0
      %9146 = vmatmul.mubr.f32.gmra.mrb[0].mxu0 %v8948
      %v9147 = vpop.f32.mrb[0].mxu0
      %v9148 = vadd.f32 0.0, %v9147
      %v9149 = vpop.f32.mrb[0].mxu0
      %9150 = vmatprep.mubr.f32.mxu0 0.0
      %9151 = vmatmul.mubr.f32.gmra.mrb[0].mxu0 %v8951
      %v9152 = vpop.f32.mrb[0].mxu0
      %v9153 = vadd.f32 0.0, %v9152
      %v9154 = vpop.f32.mrb[0].mxu0
      %9155 = vmatprep.mubr.f32.mxu0 0.0
      %9156 = vmatmul.mubr.f32.gmra.mrb[0].mxu0 %v8954
      %v9157 = vpop.f32.mrb[0].mxu0
      %v9158 = vadd.f32 0.0, %v9157
      %v9159 = vpop.f32.mrb[0].mxu0
      %9160 = vmatprep.mubr.f32.mxu0 0.0
      %9161 = vmatmul.mubr.f32.gmra.mrb[0].mxu0 %v8957
      %v9162 = vpop.f32.mrb[0].mxu0
      %v9163 = vadd.f32 0.0, %v9162
      %v9164 = vpop.f32.mrb[0].mxu0
      %9165 = vmatprep.mubr.f32.mxu0 0.0
      %9166 = vmatmul.mubr.f32.gmra.mrb[0].mxu0 %v8960
      %v9167 = vpop.f32.mrb[0].mxu0
      %v9168 = vadd.f32 0.0, %v9167
      %v9169 = vpop.f32.mrb[0].mxu0
      %9170 = vmatprep.mubr.f32.mxu0 0.0
      %9171 = vmatmul.mubr.f32.gmra.mrb[0].mxu0 %v8963
      %v9172 = vpop.f32.mrb[0].mxu0
      %v9173 = vadd.f32 0.0, %v9172
      %v9174 = vpop.f32.mrb[0].mxu0
      %9175 = vmatprep.mubr.f32.mxu0 0.0
      %9176 = vmatmul.mubr.f32.gmra.mrb[0].mxu0 %v8966
      %v9177 = vpop.f32.mrb[0].mxu0
      %v9178 = vadd.f32 0.0, %v9177
      %v9179 = vpop.f32.mrb[0].mxu0
      %9180 = vmatprep.mubr.f32.mxu0 0.0
      %9181 = vmatmul.mubr.f32.gmra.mrb[0].mxu0 %v8969
      %v9182 = vpop.f32.mrb[0].mxu0
      %v9183 = vadd.f32 0.0, %v9182
      %v9184 = vpop.f32.mrb[0].mxu0
      %9185 = vmatprep.mubr.f32.mxu0 0.0
      %9186 = vmatmul.mubr.f32.gmra.mrb[0].mxu0 %v8972
      %v9187 = vpop.f32.mrb[0].mxu0
      %v9188 = vadd.f32 0.0, %v9187
      %v9189 = vpop.f32.mrb[0].mxu0
      %9190 = vmatprep.mubr.f32.mxu0 0.0
      %9191 = vmatmul.mubr.f32.gmra.mrb[0].mxu0 %v8975
      %v9192 = vpop.f32.mrb[0].mxu0
      %v9193 = vadd.f32 0.0, %v9192
      %v9194 = vpop.f32.mrb[0].mxu0
      %9195 = vmatprep.mubr.f32.mxu0 0.0
      %9196 = vmatmul.mubr.f32.gmra.mrb[0].mxu0 %v8978
      %v9197 = vpop.f32.mrb[0].mxu0
      %v9198 = vadd.f32 0.0, %v9197
      %v9199 = vpop.f32.mrb[0].mxu0
      %9200 = vmatprep.mubr.f32.mxu0 0.0
      %9201 = vmatmul.mubr.f32.gmra.mrb[0].mxu0 %v8981
      %v9202 = vpop.f32.mrb[0].mxu0
      %v9203 = vadd.f32 0.0, %v9202
      %v9204 = vpop.f32.mrb[0].mxu0
      %9205 = vmatprep.mubr.f32.mxu0 0.0
      %9206 = vmatmul.mubr.f32.gmra.mrb[0].mxu0 %v8984
      %v9207 = vpop.f32.mrb[0].mxu0
      %v9208 = vadd.f32 0.0, %v9207
      %v9209 = vpop.f32.mrb[0].mxu0
      %9210 = vdwg.mxu0
      %v9211 = vadd.f32 %v7184, %v9053
      %v9212 = vadd.f32 %v7185, %v9058
      %v9213 = vadd.f32 %v7186, %v9063
      %v9214 = vadd.f32 %v7187, %v9068
      %v9215 = vadd.f32 %v7188, %v9073
      %v9216 = vadd.f32 %v7189, %v9078
      %v9217 = vadd.f32 %v7190, %v9083
      %v9218 = vadd.f32 %v7191, %v9088
      %v9219 = vadd.f32 %v7192, %v9093
      %v9220 = vadd.f32 %v7193, %v9098
      %v9221 = vadd.f32 %v7194, %v9103
      %v9222 = vadd.f32 %v7195, %v9108
      %v9223 = vadd.f32 %v7196, %v9113
      %v9224 = vadd.f32 %v7197, %v9118
      %v9225 = vadd.f32 %v7198, %v9123
      %v9226 = vadd.f32 %v7199, %v9128
      %v9227 = vadd.f32 %v7200, %v9133
      %v9228 = vadd.f32 %v7201, %v9138
      %v9229 = vadd.f32 %v7202, %v9143
      %v9230 = vadd.f32 %v7203, %v9148
      %v9231 = vadd.f32 %v7204, %v9153
      %v9232 = vadd.f32 %v7205, %v9158
      %v9233 = vadd.f32 %v7206, %v9163
      %v9234 = vadd.f32 %v7207, %v9168
      %v9235 = vadd.f32 %v7208, %v9173
      %v9236 = vadd.f32 %v7209, %v9178
      %v9237 = vadd.f32 %v7210, %v9183
      %v9238 = vadd.f32 %v7211, %v9188
      %v9239 = vadd.f32 %v7212, %v9193
      %v9240 = vadd.f32 %v7213, %v9198
      %v9241 = vadd.f32 %v7214, %v9203
      %v9242 = vadd.f32 %v7215, %v9208
      %v9243 = vld [vmem:[%s4] sm:$0x1]
      %v9245 = vlaneseq
      %v9246 = vshrl.u32 %v9245, 7
      %v9247 = vsub.s32 0, %v9246
      %v9248 = vrot.slane %v9243, %v9247
      %v9250 = vadd.f32 %v9211, %v9248
      %v9251 = vadd.f32 %v9212, %v9248
      %v9252 = vadd.f32 %v9213, %v9248
      %v9253 = vadd.f32 %v9214, %v9248
      %v9254 = vadd.f32 %v9215, %v9248
      %v9255 = vadd.f32 %v9216, %v9248
      %v9256 = vadd.f32 %v9217, %v9248
      %v9257 = vadd.f32 %v9218, %v9248
      %v9258 = vadd.f32 %v9219, %v9248
      %v9259 = vadd.f32 %v9220, %v9248
      %v9260 = vadd.f32 %v9221, %v9248
      %v9261 = vadd.f32 %v9222, %v9248
      %v9262 = vadd.f32 %v9223, %v9248
      %v9263 = vadd.f32 %v9224, %v9248
      %v9264 = vadd.f32 %v9225, %v9248
      %v9265 = vadd.f32 %v9226, %v9248
      %v9266 = vadd.f32 %v9227, %v9248
      %v9267 = vadd.f32 %v9228, %v9248
      %v9268 = vadd.f32 %v9229, %v9248
      %v9269 = vadd.f32 %v9230, %v9248
      %v9270 = vadd.f32 %v9231, %v9248
      %v9271 = vadd.f32 %v9232, %v9248
      %v9272 = vadd.f32 %v9233, %v9248
      %v9273 = vadd.f32 %v9234, %v9248
      %v9274 = vadd.f32 %v9235, %v9248
      %v9275 = vadd.f32 %v9236, %v9248
      %v9276 = vadd.f32 %v9237, %v9248
      %v9277 = vadd.f32 %v9238, %v9248
      %v9278 = vadd.f32 %v9239, %v9248
      %v9279 = vadd.f32 %v9240, %v9248
      %v9280 = vadd.f32 %v9241, %v9248
      %v9281 = vadd.f32 %v9242, %v9248
      %9282 = vst.msk [vmem:[%s305] sm:$0xff] %vm338, %v9250
      %9283 = vst.msk [vmem:[%s305 + $0x8] sm:$0xff] %vm338, %v9251
      %9284 = vst.msk [vmem:[%s305 + $0x10] sm:$0xff] %vm338, %v9252
      %9285 = vst.msk [vmem:[%s305 + $0x18] sm:$0xff] %vm338, %v9253
      %9286 = vst.msk [vmem:[%s305 + $0x20] sm:$0xff] %vm338, %v9254
      %9287 = vst.msk [vmem:[%s305 + $0x28] sm:$0xff] %vm338, %v9255
      %9288 = vst.msk [vmem:[%s305 + $0x30] sm:$0xff] %vm338, %v9256
      %9289 = vst.msk [vmem:[%s305 + $0x38] sm:$0xff] %vm338, %v9257
      %9290 = vst.msk [vmem:[%s305 + $0x40] sm:$0xff] %vm338, %v9258
      %9291 = vst.msk [vmem:[%s305 + $0x48] sm:$0xff] %vm338, %v9259
      %9292 = vst.msk [vmem:[%s305 + $0x50] sm:$0xff] %vm338, %v9260
      %9293 = vst.msk [vmem:[%s305 + $0x58] sm:$0xff] %vm338, %v9261
      %9294 = vst.msk [vmem:[%s305 + $0x60] sm:$0xff] %vm338, %v9262
      %9295 = vst.msk [vmem:[%s305 + $0x68] sm:$0xff] %vm338, %v9263
      %9296 = vst.msk [vmem:[%s305 + $0x70] sm:$0xff] %vm338, %v9264
      %9297 = vst.msk [vmem:[%s305 + $0x78] sm:$0xff] %vm338, %v9265
      %9298 = vst.msk [vmem:[%s305 + $0x80] sm:$0xff] %vm338, %v9266
      %9299 = vst.msk [vmem:[%s305 + $0x88] sm:$0xff] %vm338, %v9267
      %9300 = vst.msk [vmem:[%s305 + $0x90] sm:$0xff] %vm338, %v9268
      %9301 = vst.msk [vmem:[%s305 + $0x98] sm:$0xff] %vm338, %v9269
      %9302 = vst.msk [vmem:[%s305 + $0xa0] sm:$0xff] %vm338, %v9270
      %9303 = vst.msk [vmem:[%s305 + $0xa8] sm:$0xff] %vm338, %v9271
      %9304 = vst.msk [vmem:[%s305 + $0xb0] sm:$0xff] %vm338, %v9272
      %9305 = vst.msk [vmem:[%s305 + $0xb8] sm:$0xff] %vm338, %v9273
      %9306 = vst.msk [vmem:[%s305 + $0xc0] sm:$0xff] %vm338, %v9274
      %9307 = vst.msk [vmem:[%s305 + $0xc8] sm:$0xff] %vm338, %v9275
      %9308 = vst.msk [vmem:[%s305 + $0xd0] sm:$0xff] %vm338, %v9276
      %9309 = vst.msk [vmem:[%s305 + $0xd8] sm:$0xff] %vm338, %v9277
      %9310 = vst.msk [vmem:[%s305 + $0xe0] sm:$0xff] %vm338, %v9278
      %9311 = vst.msk [vmem:[%s305 + $0xe8] sm:$0xff] %vm338, %v9279
      %9312 = vst.msk [vmem:[%s305 + $0xf0] sm:$0xff] %vm338, %v9280
      %9313 = vst.msk [vmem:[%s305 + $0xf8] sm:$0xff] %vm338, %v9281
      %p9314 = scmp.lt.s32.totalorder %s19, 1
      %s9315 = scalar_select %p9314, %s19, 1
      %s9316 = smul.addr %s9315, 32
      %s9317 = smul.addr %s9316, 8
      %s9318 = scalar_lea.vmem %s8, %s9317
      // Predicated region
      $region53: #{swin_block_forward.2} parent=51 // pred_check
        %p9319 = pneg %p210
      $region54: #{swin_block_forward.2} parent=51 // pred_check_branch
        %9321 = sbr.rel (%p9319) target = $region56
      $region55: #{swin_block_forward.2} parent=51 // pred_region
        _
      $region56: #{swin_block_forward.2} parent=51 // pred_fallthru
        _
    $region52: #{swin_block_forward.2} parent=5 // pred_fallthru
      _
    %p9322 = scmp.le.s32.totalorder 2, %s14
    // Predicated region
    $region57: #{swin_block_forward.2} parent=5 // pred_check
      %p9323 = pneg %p9322
    $region58: #{swin_block_forward.2} parent=5 // pred_check_branch
      %9325 = sbr.rel (%p9323) target = $region60
    $region59: #{swin_block_forward.2} parent=5 // pred_region
      %s9326 = ssub.s32 %s14, 2
      // Predicated region
      $region61: #{swin_block_forward.2} parent=59 // pred_check
        %p9327 = pneg %p216
      $region62: #{swin_block_forward.2} parent=59 // pred_check_branch
        %9329 = sbr.rel (%p9327) target = $region64
      $region63: #{swin_block_forward.2} parent=59 // pred_region
        %p9330 = scmp.lt.s32.totalorder %s20, 1
        %s9331 = scalar_select %p9330, %s20, 1
        %s9332 = smul.addr %s9331, 32
        %s9333 = smul.addr %s9332, 8
        %s9334 = scalar_lea.vmem %s8, %s9333
      $region64: #{swin_block_forward.2} parent=59 // pred_fallthru
        _
    $region60: #{swin_block_forward.2} parent=5 // pred_fallthru
      _
  $region6: #{swin_block_forward.2} parent=0 // loop_footer
    %s18 = sadd.s32 1, %s14
  $region7: #{swin_block_forward.2} parent=0 // loop_footer_branch
    %13 = sbr.rel target = $region3
  $region8: #{swin_block_forward.2} parent=0 // loop_exit
    _

</llo_original>
